<compile_context>
chip_gen: v7x
topology: tpu7x:2x2x1
jax: 0.10.0
libtpu: 0.0.40
codegen_flags: <defaults>
</compile_context>

<pallas_src>
import numpy as np
import jax
import jax.numpy as jnp
from jax.experimental import pallas as pl
from jax.experimental.pallas import tpu as pltpu


# ----------------------------------------------------------------------------
# Fused per-stage Pallas kernel
# ----------------------------------------------------------------------------
def _make_stage_kernel(k, s, Ho, Wo, C, R):
    """stage conv (k x k, stride s) + PReLU, then R resnet blocks, per image."""
    Nc = Wo * C          # lane width of the canonical activation slab
    Hp2 = Ho + 2         # canonical slab rows (one zero pad row top & bottom)

    def kernel(x_ref, wc_ref, bc_ref, w1_ref, b1_ref, w2_ref, b2_ref,
               alpha_ref, o_ref, ypad_ref):
        # x_ref    : (s, Hp_in//s, Win*Cin) bf16  phase-split row-padded input
        # wc_ref   : (k, Win*Cin, Nc)       bf16  stage-conv row weights
        # bc_ref   : (1, Nc)                f32   bias tiled over wo
        # w1/w2    : (R, 3, Nc, Nc)         bf16  resblock row weights
        # b1/b2    : (R, 1, Nc)             f32
        # alpha_ref: (1+R,)                 f32   PReLU slopes (SMEM)
        # o_ref    : (Hp2, Nc)              f32   canonical padded output slab
        # ypad_ref : (Hp2, Nc)              f32   scratch for resblock interm.

        o_ref[...] = jnp.zeros_like(o_ref)
        ypad_ref[...] = jnp.zeros_like(ypad_ref)

        # ---- stage conv + bias + PReLU ------------------------------------
        acc = None
        for kh in range(k):
            qh, rh = divmod(kh, s)
            xs = x_ref[rh, qh:qh + Ho, :]
            t = jnp.dot(xs, wc_ref[kh], preferred_element_type=jnp.float32)
            acc = t if acc is None else acc + t
        acc = acc + bc_ref[...]
        a0 = alpha_ref[0]
        o_ref[1:1 + Ho, :] = jnp.where(acc >= 0.0, acc, a0 * acc)

        # ---- resnet blocks: x + conv3x3(PReLU(conv3x3(x))) ----------------
        for r in range(R):
            acc1 = None
            for kh in range(3):
                xs = o_ref[kh:kh + Ho, :].astype(jnp.bfloat16)
                t = jnp.dot(xs, w1_ref[r, kh],
                            preferred_element_type=jnp.float32)
                acc1 = t if acc1 is None else acc1 + t
            acc1 = acc1 + b1_ref[r]
            a1 = alpha_ref[1 + r]
            ypad_ref[1:1 + Ho, :] = jnp.where(acc1 >= 0.0, acc1, a1 * acc1)

            acc2 = None
            for kh in range(3):
                xs = ypad_ref[kh:kh + Ho, :].astype(jnp.bfloat16)
                t = jnp.dot(xs, w2_ref[r, kh],
                            preferred_element_type=jnp.float32)
                acc2 = t if acc2 is None else acc2 + t
            o_ref[1:1 + Ho, :] = acc2 + b2_ref[r] + o_ref[1:1 + Ho, :]

    return kernel


def _run_stage(prep, x_slab):
    n, s, hph, kin = x_slab.shape
    k, Ho, Wo, C, R = prep["k"], prep["s_k"], prep["Wo"], prep["C"], prep["R"]
    # (prep["s_k"] holds Ho; see prepare_encoder)
    Ho = prep["Ho"]
    Nc = Wo * C
    Hp2 = Ho + 2
    kernel = _make_stage_kernel(k, s, Ho, Wo, C, R)
    return pl.pallas_call(
        kernel,
        out_shape=jax.ShapeDtypeStruct((n, Hp2, Nc), jnp.float32),
        grid=(n,),
        in_specs=[
            pl.BlockSpec((None, s, hph, kin), lambda i: (i, 0, 0, 0)),
            pl.BlockSpec((k, kin, Nc), lambda i: (0, 0, 0)),
            pl.BlockSpec((1, Nc), lambda i: (0, 0)),
            pl.BlockSpec((R, 3, Nc, Nc), lambda i: (0, 0, 0, 0)),
            pl.BlockSpec((R, 1, Nc), lambda i: (0, 0, 0)),
            pl.BlockSpec((R, 3, Nc, Nc), lambda i: (0, 0, 0, 0)),
            pl.BlockSpec((R, 1, Nc), lambda i: (0, 0, 0)),
            pl.BlockSpec(memory_space=pltpu.MemorySpace.SMEM),
        ],
        out_specs=pl.BlockSpec((None, Hp2, Nc), lambda i: (i, 0, 0)),
        scratch_shapes=[pltpu.VMEM((Hp2, Nc), jnp.float32)],
        compiler_params=pltpu.CompilerParams(
            dimension_semantics=("parallel",)),
    )(x_slab, prep["wc"], prep["bc"], prep["w1"], prep["b1"],
      prep["w2"], prep["b2"], prep["alphas"])


# ----------------------------------------------------------------------------
# Wrapper glue (tiny XLA ops only: pad / reshape / transpose / cast)
# ----------------------------------------------------------------------------
def _phase_split_rows(x_rows, s):
    """(N, Hp, L) f32 row-padded slab -> (N, s, Hp//s, L) bf16 phase split."""
    n, hp, l = x_rows.shape
    extra = (-hp) % s
    if extra:
        x_rows = jnp.pad(x_rows, ((0, 0), (0, extra), (0, 0)))
        hp += extra
    xr = x_rows.reshape(n, hp // s, s, l).transpose(0, 2, 1, 3)
    return xr.astype(jnp.bfloat16)


def image_encoder_forward(x_nchw, prepared):
    n = x_nchw.shape[0]
    x = jnp.transpose(x_nchw, (0, 2, 3, 1)).astype(jnp.float32)          # NHWC
    h, w, cin = x.shape[1], x.shape[2], x.shape[3]

    # stage-0 input slab: rows padded by p, lanes = w*cin + c
    p0 = (prepared[0]["k"] - 1) // 2
    rows0 = jnp.pad(x, ((0, 0), (p0, p0), (0, 0), (0, 0)))
    rows0 = rows0.reshape(n, h + 2 * p0, w * cin)
    slab = _phase_split_rows(rows0, prepared[0]["s"])

    slabs = []
    o = _run_stage(prepared[0], slab)
    slabs.append(o)
    for st in prepared[1:]:
        # the previous canonical output slab is already the row-padded (p=1)
        # activation that this 3x3 stage conv needs — just phase split it.
        slab = _phase_split_rows(o, st["s"])
        o = _run_stage(st, slab)
        slabs.append(o)

    feats = []
    for st, o in zip(prepared, slabs):
        ho, wo, c = st["Ho"], st["Wo"], st["C"]
        f = o.reshape(n, ho + 2, wo, c)[:, 1:1 + ho]                     # NHWC
        feats.append(jnp.transpose(f, (0, 3, 1, 2)))                     # NCHW
    x0, x1, x2, x3, x4 = feats
    return (x4, x3, x2, x1, x0)


# ----------------------------------------------------------------------------
# Parameters (PyTorch-equivalent structure) and offline prep (row weights)
# ----------------------------------------------------------------------------
def _conv_init(key, ksz, cin, cout):
    kw_, kb_ = jax.random.split(key)
    fan_in = ksz * ksz * cin
    w = jax.random.normal(kw_, (ksz, ksz, cin, cout), jnp.float32) / jnp.sqrt(fan_in)
    b = jax.random.normal(kb_, (cout,), jnp.float32) * 0.01
    return w, b


def make_image_encoder_params(key, in_chs, init_chs, num_resblock=1):
    alpha0 = jnp.float32(0.25)                    # nn.PReLU() default init
    stages = []
    chans = [in_chs] + list(init_chs)
    for sdx in range(5):
        key, k1 = jax.random.split(key)
        ksz = 7 if sdx == 0 else 3
        w, b = _conv_init(k1, ksz, chans[sdx], chans[sdx + 1])
        rbs = []
        for _ in range(num_resblock):
            key, k2, k3 = jax.random.split(key, 3)
            w1, b1 = _conv_init(k2, 3, chans[sdx + 1], chans[sdx + 1])
            w2, b2 = _conv_init(k3, 3, chans[sdx + 1], chans[sdx + 1])
            rbs.append({"w1": w1, "b1": b1, "alpha": alpha0, "w2": w2, "b2": b2})
        stages.append({"k": ksz, "stride": 1 if sdx == 0 else 2,
                       "w": w, "b": b, "alpha": alpha0, "resblocks": rbs})
    return stages


def _as_bf16_f32(w):
    # round once to bf16 so kernel & reference use identical weight values
    return np.asarray(jnp.asarray(w).astype(jnp.bfloat16).astype(jnp.float32))


def _row_weights(w4, stride, pad, w_in, w_out):
    """(k,k,cin,cout) -> (k, w_in*cin, w_out*cout) block-sparse row weights."""
    k, _, cin, cout = w4.shape
    m = np.zeros((k, w_in, cin, w_out, cout), np.float32)
    for kh in range(k):
        for kw in range(k):
            for wo in range(w_out):
                win = stride * wo + kw - pad
                if 0 <= win < w_in:
                    m[kh, win, :, wo, :] = w4[kh, kw]
    return jnp.asarray(m.reshape(k, w_in * cin, w_out * cout),
                       dtype=jnp.bfloat16)


def _tiled_bias(b, w_out):
    return jnp.asarray(np.tile(np.asarray(b, np.float32), w_out)[None, :])


def prepare_encoder(raw_stages, height, width):
    prepared = []
    h, w = height, width
    for st in raw_stages:
        k, s = st["k"], st["stride"]
        p = (k - 1) // 2
        ho = (h + 2 * p - k) // s + 1
        wo = (w + 2 * p - k) // s + 1
        c = int(st["w"].shape[3])
        r = len(st["resblocks"])
        wc = _row_weights(_as_bf16_f32(st["w"]), s, p, w, wo)
        bc = _tiled_bias(st["b"], wo)
        w1 = jnp.stack([_row_weights(_as_bf16_f32(rb["w1"]), 1, 1, wo, wo)
                        for rb in st["resblocks"]])
        b1 = jnp.stack([_tiled_bias(rb["b1"], wo) for rb in st["resblocks"]])
        w2 = jnp.stack([_row_weights(_as_bf16_f32(rb["w2"]), 1, 1, wo, wo)
                        for rb in st["resblocks"]])
        b2 = jnp.stack([_tiled_bias(rb["b2"], wo) for rb in st["resblocks"]])
        alphas = jnp.stack([jnp.float32(st["alpha"])] +
                           [jnp.float32(rb["alpha"]) for rb in st["resblocks"]])
        prepared.append({"k": k, "s": s, "s_k": s, "Ho": ho, "Wo": wo, "C": c,
                         "R": r, "wc": wc, "bc": bc, "w1": w1, "b1": b1,
                         "w2": w2, "b2": b2, "alphas": alphas})
        h, w = ho, wo
    return prepared


# ----------------------------------------------------------------------------
# Pure-JAX reference with the same numerics (bf16 operands, f32 accumulation)
# ----------------------------------------------------------------------------
def _ref_conv(x, w, b, stride):
    k = w.shape[0]
    p = (k - 1) // 2
    y = jax.lax.conv_general_dilated(
        x.astype(jnp.bfloat16), w.astype(jnp.bfloat16),
        (stride, stride), [(p, p), (p, p)],
        dimension_numbers=("NHWC", "HWIO", "NHWC"),
        preferred_element_type=jnp.float32)
    return y + b.reshape(1, 1, 1, -1)


def _ref_prelu(x, alpha):
    return jnp.where(x >= 0, x, alpha * x)


def image_encoder_reference(x_nchw, raw_stages):
    x = jnp.transpose(x_nchw, (0, 2, 3, 1)).astype(jnp.float32)
    feats = []
    for st in raw_stages:
        x = _ref_prelu(_ref_conv(x, st["w"], st["b"], st["stride"]), st["alpha"])
        for rb in st["resblocks"]:
            y = _ref_prelu(_ref_conv(x, rb["w1"], rb["b1"], 1), rb["alpha"])
            x = x + _ref_conv(y, rb["w2"], rb["b2"], 1)
        feats.append(x)
    x0, x1, x2, x3, x4 = feats
    return tuple(jnp.transpose(t, (0, 3, 1, 2)) for t in (x4, x3, x2, x1, x0))


# ----------------------------------------------------------------------------
if __name__ == "__main__":
    key = jax.random.PRNGKey(0)
    k_param, k_x = jax.random.split(key)

    in_chs = 4
    init_chs = [8, 16, 32, 32, 32]
    raw = make_image_encoder_params(k_param, in_chs, init_chs, num_resblock=1)

    # NCHW input, matching the PyTorch module's convention.
    x = jax.random.normal(k_x, (2, in_chs, 16, 16), jnp.float32)

    prepared = prepare_encoder(raw, 16, 16)
    fwd = jax.jit(lambda xx: image_encoder_forward(xx, prepared))
    outs = fwd(x)
    outs = jax.tree_util.tree_map(jax.block_until_ready, outs)

    # Shapes follow (x4, x3, x2, x1, x0).
    expected = [(2, 32, 1, 1), (2, 32, 2, 2), (2, 32, 4, 4),
                (2, 16, 8, 8), (2, 8, 16, 16)]
    assert [tuple(o.shape) for o in outs] == expected, [o.shape for o in outs]

    # Numerical check against a pure-JAX (lax.conv) reference of the same math.
    refs = image_encoder_reference(x, raw)
    for o, r in zip(outs, refs):
        assert jnp.allclose(o, r, atol=2e-3, rtol=2e-3), \
            float(jnp.max(jnp.abs(o - r)))

    print("KERNEL_OK")
</pallas_src>

<mosaic_0001>
module attributes {stable_mosaic.version = 11 : i64} {
  func.func @kernel(%arg0: i32, %arg1: memref<1x1x22x64xbf16, #tpu.memory_space<vmem>>, %arg2: memref<7x64x128xbf16, #tpu.memory_space<vmem>>, %arg3: memref<1x128xf32, #tpu.memory_space<vmem>>, %arg4: memref<1x3x128x128xbf16, #tpu.memory_space<vmem>>, %arg5: memref<1x1x128xf32, #tpu.memory_space<vmem>>, %arg6: memref<1x3x128x128xbf16, #tpu.memory_space<vmem>>, %arg7: memref<1x1x128xf32, #tpu.memory_space<vmem>>, %arg8: memref<2xf32, #tpu.memory_space<smem>>, %arg9: memref<1x18x128xf32, #tpu.memory_space<vmem>>, %arg10: memref<18x128xf32, #tpu.memory_space<vmem>>) attributes {dimension_semantics = [#tpu.dimension_semantics<parallel>], iteration_bounds = array<i64: 2>, scalar_prefetch = 0 : i64, scratch_operands = 1 : i64, tpu.core_type = #tpu.core_type<tc>, window_params = [{transform_indices = @transform_0, window_bounds = array<i64: 1, 1, 22, 64>}, {pipeline_mode = #tpu.pipeline_mode<synchronous>, transform_indices = @transform_1, window_bounds = array<i64: 7, 64, 128>}, {pipeline_mode = #tpu.pipeline_mode<synchronous>, transform_indices = @transform_2, window_bounds = array<i64: 1, 128>}, {pipeline_mode = #tpu.pipeline_mode<synchronous>, transform_indices = @transform_3, window_bounds = array<i64: 1, 3, 128, 128>}, {pipeline_mode = #tpu.pipeline_mode<synchronous>, transform_indices = @transform_4, window_bounds = array<i64: 1, 1, 128>}, {pipeline_mode = #tpu.pipeline_mode<synchronous>, transform_indices = @transform_5, window_bounds = array<i64: 1, 3, 128, 128>}, {pipeline_mode = #tpu.pipeline_mode<synchronous>, transform_indices = @transform_6, window_bounds = array<i64: 1, 1, 128>}, {transform_indices = @transform_7, window_bounds = array<i64: 2>}, {transform_indices = @transform_8, window_bounds = array<i64: 1, 18, 128>}]} {
    %cst = arith.constant 0.000000e+00 : f32
    %0 = vector.broadcast %cst : f32 to vector<18x128xf32>
    %c0 = arith.constant 0 : index
    %c0_0 = arith.constant 0 : index
    %c0_1 = arith.constant 0 : index
    %1 = vector.load %arg9[%c0, %c0_0, %c0_1] : memref<1x18x128xf32, #tpu.memory_space<vmem>>, vector<1x18x128xf32>
    %2 = vector.shape_cast %1 : vector<1x18x128xf32> to vector<18x128xf32>
    %3 = vector.shape_cast %0 : vector<18x128xf32> to vector<1x18x128xf32>
    tpu.vector_store %arg9[%c0, %c0_0, %c0_1], %3 {strides = array<i32>} : memref<1x18x128xf32, #tpu.memory_space<vmem>>, vector<1x18x128xf32>,
    %cst_2 = arith.constant 0.000000e+00 : f32
    %4 = vector.broadcast %cst_2 : f32 to vector<18x128xf32>
    %c0_3 = arith.constant 0 : index
    %c0_4 = arith.constant 0 : index
    %5 = vector.load %arg10[%c0_3, %c0_4] : memref<18x128xf32, #tpu.memory_space<vmem>>, vector<18x128xf32>
    tpu.vector_store %arg10[%c0_3, %c0_4], %4 {strides = array<i32>} : memref<18x128xf32, #tpu.memory_space<vmem>>, vector<18x128xf32>,
    %c0_5 = arith.constant 0 : index
    %c0_6 = arith.constant 0 : index
    %c0_7 = arith.constant 0 : index
    %c0_8 = arith.constant 0 : index
    %6 = vector.load %arg1[%c0_5, %c0_6, %c0_7, %c0_8] : memref<1x1x22x64xbf16, #tpu.memory_space<vmem>>, vector<1x1x16x64xbf16>
    %7 = vector.shape_cast %6 : vector<1x1x16x64xbf16> to vector<16x64xbf16>
    %c0_9 = arith.constant 0 : index
    %c0_10 = arith.constant 0 : index
    %c0_11 = arith.constant 0 : index
    %8 = vector.load %arg2[%c0_9, %c0_10, %c0_11] : memref<7x64x128xbf16, #tpu.memory_space<vmem>>, vector<1x64x128xbf16>
    %9 = vector.shape_cast %8 : vector<1x64x128xbf16> to vector<64x128xbf16>
    %cst_12 = arith.constant dense<0.000000e+00> : vector<16x128xf32>
    %10 = tpu.matmul %7, %9, %cst_12 {dimension_numbers = #tpu.dot_dimension_numbers<[1], [0], [0], [1], [0, 0, 1, 1], [], []>} : vector<16x64xbf16>, vector<64x128xbf16>, vector<16x128xf32> -> vector<16x128xf32>
    %c0_13 = arith.constant 0 : index
    %c0_14 = arith.constant 0 : index
    %c1 = arith.constant 1 : index
    %c0_15 = arith.constant 0 : index
    %11 = vector.load %arg1[%c0_13, %c0_14, %c1, %c0_15] : memref<1x1x22x64xbf16, #tpu.memory_space<vmem>>, vector<1x1x16x64xbf16>
    %12 = vector.shape_cast %11 : vector<1x1x16x64xbf16> to vector<16x64xbf16>
    %c1_16 = arith.constant 1 : index
    %c0_17 = arith.constant 0 : index
    %c0_18 = arith.constant 0 : index
    %13 = vector.load %arg2[%c1_16, %c0_17, %c0_18] : memref<7x64x128xbf16, #tpu.memory_space<vmem>>, vector<1x64x128xbf16>
    %14 = vector.shape_cast %13 : vector<1x64x128xbf16> to vector<64x128xbf16>
    %cst_19 = arith.constant dense<0.000000e+00> : vector<16x128xf32>
    %15 = tpu.matmul %12, %14, %cst_19 {dimension_numbers = #tpu.dot_dimension_numbers<[1], [0], [0], [1], [0, 0, 1, 1], [], []>} : vector<16x64xbf16>, vector<64x128xbf16>, vector<16x128xf32> -> vector<16x128xf32>
    %16 = arith.addf %10, %15 : vector<16x128xf32>
    %c0_20 = arith.constant 0 : index
    %c0_21 = arith.constant 0 : index
    %c2 = arith.constant 2 : index
    %c0_22 = arith.constant 0 : index
    %17 = vector.load %arg1[%c0_20, %c0_21, %c2, %c0_22] : memref<1x1x22x64xbf16, #tpu.memory_space<vmem>>, vector<1x1x16x64xbf16>
    %18 = vector.shape_cast %17 : vector<1x1x16x64xbf16> to vector<16x64xbf16>
    %c2_23 = arith.constant 2 : index
    %c0_24 = arith.constant 0 : index
    %c0_25 = arith.constant 0 : index
    %19 = vector.load %arg2[%c2_23, %c0_24, %c0_25] : memref<7x64x128xbf16, #tpu.memory_space<vmem>>, vector<1x64x128xbf16>
    %20 = vector.shape_cast %19 : vector<1x64x128xbf16> to vector<64x128xbf16>
    %cst_26 = arith.constant dense<0.000000e+00> : vector<16x128xf32>
    %21 = tpu.matmul %18, %20, %cst_26 {dimension_numbers = #tpu.dot_dimension_numbers<[1], [0], [0], [1], [0, 0, 1, 1], [], []>} : vector<16x64xbf16>, vector<64x128xbf16>, vector<16x128xf32> -> vector<16x128xf32>
    %22 = arith.addf %16, %21 : vector<16x128xf32>
    %c0_27 = arith.constant 0 : index
    %c0_28 = arith.constant 0 : index
    %c3 = arith.constant 3 : index
    %c0_29 = arith.constant 0 : index
    %23 = vector.load %arg1[%c0_27, %c0_28, %c3, %c0_29] : memref<1x1x22x64xbf16, #tpu.memory_space<vmem>>, vector<1x1x16x64xbf16>
    %24 = vector.shape_cast %23 : vector<1x1x16x64xbf16> to vector<16x64xbf16>
    %c3_30 = arith.constant 3 : index
    %c0_31 = arith.constant 0 : index
    %c0_32 = arith.constant 0 : index
    %25 = vector.load %arg2[%c3_30, %c0_31, %c0_32] : memref<7x64x128xbf16, #tpu.memory_space<vmem>>, vector<1x64x128xbf16>
    %26 = vector.shape_cast %25 : vector<1x64x128xbf16> to vector<64x128xbf16>
    %cst_33 = arith.constant dense<0.000000e+00> : vector<16x128xf32>
    %27 = tpu.matmul %24, %26, %cst_33 {dimension_numbers = #tpu.dot_dimension_numbers<[1], [0], [0], [1], [0, 0, 1, 1], [], []>} : vector<16x64xbf16>, vector<64x128xbf16>, vector<16x128xf32> -> vector<16x128xf32>
    %28 = arith.addf %22, %27 : vector<16x128xf32>
    %c0_34 = arith.constant 0 : index
    %c0_35 = arith.constant 0 : index
    %c4 = arith.constant 4 : index
    %c0_36 = arith.constant 0 : index
    %29 = vector.load %arg1[%c0_34, %c0_35, %c4, %c0_36] : memref<1x1x22x64xbf16, #tpu.memory_space<vmem>>, vector<1x1x16x64xbf16>
    %30 = vector.shape_cast %29 : vector<1x1x16x64xbf16> to vector<16x64xbf16>
    %c4_37 = arith.constant 4 : index
    %c0_38 = arith.constant 0 : index
    %c0_39 = arith.constant 0 : index
    %31 = vector.load %arg2[%c4_37, %c0_38, %c0_39] : memref<7x64x128xbf16, #tpu.memory_space<vmem>>, vector<1x64x128xbf16>
    %32 = vector.shape_cast %31 : vector<1x64x128xbf16> to vector<64x128xbf16>
    %cst_40 = arith.constant dense<0.000000e+00> : vector<16x128xf32>
    %33 = tpu.matmul %30, %32, %cst_40 {dimension_numbers = #tpu.dot_dimension_numbers<[1], [0], [0], [1], [0, 0, 1, 1], [], []>} : vector<16x64xbf16>, vector<64x128xbf16>, vector<16x128xf32> -> vector<16x128xf32>
    %34 = arith.addf %28, %33 : vector<16x128xf32>
    %c0_41 = arith.constant 0 : index
    %c0_42 = arith.constant 0 : index
    %c5 = arith.constant 5 : index
    %c0_43 = arith.constant 0 : index
    %35 = vector.load %arg1[%c0_41, %c0_42, %c5, %c0_43] : memref<1x1x22x64xbf16, #tpu.memory_space<vmem>>, vector<1x1x16x64xbf16>
    %36 = vector.shape_cast %35 : vector<1x1x16x64xbf16> to vector<16x64xbf16>
    %c5_44 = arith.constant 5 : index
    %c0_45 = arith.constant 0 : index
    %c0_46 = arith.constant 0 : index
    %37 = vector.load %arg2[%c5_44, %c0_45, %c0_46] : memref<7x64x128xbf16, #tpu.memory_space<vmem>>, vector<1x64x128xbf16>
    %38 = vector.shape_cast %37 : vector<1x64x128xbf16> to vector<64x128xbf16>
    %cst_47 = arith.constant dense<0.000000e+00> : vector<16x128xf32>
    %39 = tpu.matmul %36, %38, %cst_47 {dimension_numbers = #tpu.dot_dimension_numbers<[1], [0], [0], [1], [0, 0, 1, 1], [], []>} : vector<16x64xbf16>, vector<64x128xbf16>, vector<16x128xf32> -> vector<16x128xf32>
    %40 = arith.addf %34, %39 : vector<16x128xf32>
    %c0_48 = arith.constant 0 : index
    %c0_49 = arith.constant 0 : index
    %c6 = arith.constant 6 : index
    %c0_50 = arith.constant 0 : index
    %41 = vector.load %arg1[%c0_48, %c0_49, %c6, %c0_50] : memref<1x1x22x64xbf16, #tpu.memory_space<vmem>>, vector<1x1x16x64xbf16>
    %42 = vector.shape_cast %41 : vector<1x1x16x64xbf16> to vector<16x64xbf16>
    %c6_51 = arith.constant 6 : index
    %c0_52 = arith.constant 0 : index
    %c0_53 = arith.constant 0 : index
    %43 = vector.load %arg2[%c6_51, %c0_52, %c0_53] : memref<7x64x128xbf16, #tpu.memory_space<vmem>>, vector<1x64x128xbf16>
    %44 = vector.shape_cast %43 : vector<1x64x128xbf16> to vector<64x128xbf16>
    %cst_54 = arith.constant dense<0.000000e+00> : vector<16x128xf32>
    %45 = tpu.matmul %42, %44, %cst_54 {dimension_numbers = #tpu.dot_dimension_numbers<[1], [0], [0], [1], [0, 0, 1, 1], [], []>} : vector<16x64xbf16>, vector<64x128xbf16>, vector<16x128xf32> -> vector<16x128xf32>
    %46 = arith.addf %40, %45 : vector<16x128xf32>
    %c0_55 = arith.constant 0 : index
    %c0_56 = arith.constant 0 : index
    %47 = vector.load %arg3[%c0_55, %c0_56] : memref<1x128xf32, #tpu.memory_space<vmem>>, vector<1x128xf32>
    %48 = vector.broadcast %47 : vector<1x128xf32> to vector<16x128xf32>
    %49 = arith.addf %46, %48 : vector<16x128xf32>
    %c0_57 = arith.constant 0 : index
    %50 = memref.load %arg8[%c0_57] : memref<2xf32, #tpu.memory_space<smem>>
    %cst_58 = arith.constant 0.000000e+00 : f32
    %51 = vector.broadcast %cst_58 : f32 to vector<16x128xf32>
    %52 = arith.cmpf oge, %49, %51 : vector<16x128xf32>
    %53 = vector.broadcast %50 : f32 to vector<16x128xf32>
    %54 = arith.mulf %53, %49 : vector<16x128xf32>
    %55 = arith.select %52, %49, %54 : vector<16x128xi1>, vector<16x128xf32>
    %c0_59 = arith.constant 0 : index
    %c1_60 = arith.constant 1 : index
    %c0_61 = arith.constant 0 : index
    %56 = vector.load %arg9[%c0_59, %c1_60, %c0_61] : memref<1x18x128xf32, #tpu.memory_space<vmem>>, vector<1x16x128xf32>
    %57 = vector.shape_cast %56 : vector<1x16x128xf32> to vector<16x128xf32>
    %58 = vector.shape_cast %55 : vector<16x128xf32> to vector<1x16x128xf32>
    tpu.vector_store %arg9[%c0_59, %c1_60, %c0_61], %58 {strides = array<i32>} : memref<1x18x128xf32, #tpu.memory_space<vmem>>, vector<1x16x128xf32>,
    %c0_62 = arith.constant 0 : index
    %c0_63 = arith.constant 0 : index
    %c0_64 = arith.constant 0 : index
    %59 = vector.load %arg9[%c0_62, %c0_63, %c0_64] : memref<1x18x128xf32, #tpu.memory_space<vmem>>, vector<1x16x128xf32>
    %60 = vector.shape_cast %59 : vector<1x16x128xf32> to vector<16x128xf32>
    %61 = arith.truncf %60 : vector<16x128xf32> to vector<16x128xbf16>
    %c0_65 = arith.constant 0 : index
    %c0_66 = arith.constant 0 : index
    %c0_67 = arith.constant 0 : index
    %c0_68 = arith.constant 0 : index
    %62 = vector.load %arg4[%c0_65, %c0_66, %c0_67, %c0_68] : memref<1x3x128x128xbf16, #tpu.memory_space<vmem>>, vector<1x1x128x128xbf16>
    %63 = vector.shape_cast %62 : vector<1x1x128x128xbf16> to vector<128x128xbf16>
    %cst_69 = arith.constant dense<0.000000e+00> : vector<16x128xf32>
    %64 = tpu.matmul %61, %63, %cst_69 {dimension_numbers = #tpu.dot_dimension_numbers<[1], [0], [0], [1], [0, 0, 1, 1], [], []>} : vector<16x128xbf16>, vector<128x128xbf16>, vector<16x128xf32> -> vector<16x128xf32>
    %c0_70 = arith.constant 0 : index
    %c1_71 = arith.constant 1 : index
    %c0_72 = arith.constant 0 : index
    %65 = vector.load %arg9[%c0_70, %c1_71, %c0_72] : memref<1x18x128xf32, #tpu.memory_space<vmem>>, vector<1x16x128xf32>
    %66 = vector.shape_cast %65 : vector<1x16x128xf32> to vector<16x128xf32>
    %67 = arith.truncf %66 : vector<16x128xf32> to vector<16x128xbf16>
    %c0_73 = arith.constant 0 : index
    %c1_74 = arith.constant 1 : index
    %c0_75 = arith.constant 0 : index
    %c0_76 = arith.constant 0 : index
    %68 = vector.load %arg4[%c0_73, %c1_74, %c0_75, %c0_76] : memref<1x3x128x128xbf16, #tpu.memory_space<vmem>>, vector<1x1x128x128xbf16>
    %69 = vector.shape_cast %68 : vector<1x1x128x128xbf16> to vector<128x128xbf16>
    %cst_77 = arith.constant dense<0.000000e+00> : vector<16x128xf32>
    %70 = tpu.matmul %67, %69, %cst_77 {dimension_numbers = #tpu.dot_dimension_numbers<[1], [0], [0], [1], [0, 0, 1, 1], [], []>} : vector<16x128xbf16>, vector<128x128xbf16>, vector<16x128xf32> -> vector<16x128xf32>
    %71 = arith.addf %64, %70 : vector<16x128xf32>
    %c0_78 = arith.constant 0 : index
    %c2_79 = arith.constant 2 : index
    %c0_80 = arith.constant 0 : index
    %72 = vector.load %arg9[%c0_78, %c2_79, %c0_80] : memref<1x18x128xf32, #tpu.memory_space<vmem>>, vector<1x16x128xf32>
    %73 = vector.shape_cast %72 : vector<1x16x128xf32> to vector<16x128xf32>
    %74 = arith.truncf %73 : vector<16x128xf32> to vector<16x128xbf16>
    %c0_81 = arith.constant 0 : index
    %c2_82 = arith.constant 2 : index
    %c0_83 = arith.constant 0 : index
    %c0_84 = arith.constant 0 : index
    %75 = vector.load %arg4[%c0_81, %c2_82, %c0_83, %c0_84] : memref<1x3x128x128xbf16, #tpu.memory_space<vmem>>, vector<1x1x128x128xbf16>
    %76 = vector.shape_cast %75 : vector<1x1x128x128xbf16> to vector<128x128xbf16>
    %cst_85 = arith.constant dense<0.000000e+00> : vector<16x128xf32>
    %77 = tpu.matmul %74, %76, %cst_85 {dimension_numbers = #tpu.dot_dimension_numbers<[1], [0], [0], [1], [0, 0, 1, 1], [], []>} : vector<16x128xbf16>, vector<128x128xbf16>, vector<16x128xf32> -> vector<16x128xf32>
    %78 = arith.addf %71, %77 : vector<16x128xf32>
    %c0_86 = arith.constant 0 : index
    %c0_87 = arith.constant 0 : index
    %c0_88 = arith.constant 0 : index
    %79 = vector.load %arg5[%c0_86, %c0_87, %c0_88] : memref<1x1x128xf32, #tpu.memory_space<vmem>>, vector<1x1x128xf32>
    %80 = vector.shape_cast %79 : vector<1x1x128xf32> to vector<1x128xf32>
    %81 = vector.broadcast %80 : vector<1x128xf32> to vector<16x128xf32>
    %82 = arith.addf %78, %81 : vector<16x128xf32>
    %c1_89 = arith.constant 1 : index
    %83 = memref.load %arg8[%c1_89] : memref<2xf32, #tpu.memory_space<smem>>
    %cst_90 = arith.constant 0.000000e+00 : f32
    %84 = vector.broadcast %cst_90 : f32 to vector<16x128xf32>
    %85 = arith.cmpf oge, %82, %84 : vector<16x128xf32>
    %86 = vector.broadcast %83 : f32 to vector<16x128xf32>
    %87 = arith.mulf %86, %82 : vector<16x128xf32>
    %88 = arith.select %85, %82, %87 : vector<16x128xi1>, vector<16x128xf32>
    %c1_91 = arith.constant 1 : index
    %c0_92 = arith.constant 0 : index
    %89 = vector.load %arg10[%c1_91, %c0_92] : memref<18x128xf32, #tpu.memory_space<vmem>>, vector<16x128xf32>
    tpu.vector_store %arg10[%c1_91, %c0_92], %88 {strides = array<i32>} : memref<18x128xf32, #tpu.memory_space<vmem>>, vector<16x128xf32>,
    %c0_93 = arith.constant 0 : index
    %c0_94 = arith.constant 0 : index
    %90 = vector.load %arg10[%c0_93, %c0_94] : memref<18x128xf32, #tpu.memory_space<vmem>>, vector<16x128xf32>
    %91 = arith.truncf %90 : vector<16x128xf32> to vector<16x128xbf16>
    %c0_95 = arith.constant 0 : index
    %c0_96 = arith.constant 0 : index
    %c0_97 = arith.constant 0 : index
    %c0_98 = arith.constant 0 : index
    %92 = vector.load %arg6[%c0_95, %c0_96, %c0_97, %c0_98] : memref<1x3x128x128xbf16, #tpu.memory_space<vmem>>, vector<1x1x128x128xbf16>
    %93 = vector.shape_cast %92 : vector<1x1x128x128xbf16> to vector<128x128xbf16>
    %cst_99 = arith.constant dense<0.000000e+00> : vector<16x128xf32>
    %94 = tpu.matmul %91, %93, %cst_99 {dimension_numbers = #tpu.dot_dimension_numbers<[1], [0], [0], [1], [0, 0, 1, 1], [], []>} : vector<16x128xbf16>, vector<128x128xbf16>, vector<16x128xf32> -> vector<16x128xf32>
    %c1_100 = arith.constant 1 : index
    %c0_101 = arith.constant 0 : index
    %95 = vector.load %arg10[%c1_100, %c0_101] : memref<18x128xf32, #tpu.memory_space<vmem>>, vector<16x128xf32>
    %96 = arith.truncf %95 : vector<16x128xf32> to vector<16x128xbf16>
    %c0_102 = arith.constant 0 : index
    %c1_103 = arith.constant 1 : index
    %c0_104 = arith.constant 0 : index
    %c0_105 = arith.constant 0 : index
    %97 = vector.load %arg6[%c0_102, %c1_103, %c0_104, %c0_105] : memref<1x3x128x128xbf16, #tpu.memory_space<vmem>>, vector<1x1x128x128xbf16>
    %98 = vector.shape_cast %97 : vector<1x1x128x128xbf16> to vector<128x128xbf16>
    %cst_106 = arith.constant dense<0.000000e+00> : vector<16x128xf32>
    %99 = tpu.matmul %96, %98, %cst_106 {dimension_numbers = #tpu.dot_dimension_numbers<[1], [0], [0], [1], [0, 0, 1, 1], [], []>} : vector<16x128xbf16>, vector<128x128xbf16>, vector<16x128xf32> -> vector<16x128xf32>
    %100 = arith.addf %94, %99 : vector<16x128xf32>
    %c2_107 = arith.constant 2 : index
    %c0_108 = arith.constant 0 : index
    %101 = vector.load %arg10[%c2_107, %c0_108] : memref<18x128xf32, #tpu.memory_space<vmem>>, vector<16x128xf32>
    %102 = arith.truncf %101 : vector<16x128xf32> to vector<16x128xbf16>
    %c0_109 = arith.constant 0 : index
    %c2_110 = arith.constant 2 : index
    %c0_111 = arith.constant 0 : index
    %c0_112 = arith.constant 0 : index
    %103 = vector.load %arg6[%c0_109, %c2_110, %c0_111, %c0_112] : memref<1x3x128x128xbf16, #tpu.memory_space<vmem>>, vector<1x1x128x128xbf16>
    %104 = vector.shape_cast %103 : vector<1x1x128x128xbf16> to vector<128x128xbf16>
    %cst_113 = arith.constant dense<0.000000e+00> : vector<16x128xf32>
    %105 = tpu.matmul %102, %104, %cst_113 {dimension_numbers = #tpu.dot_dimension_numbers<[1], [0], [0], [1], [0, 0, 1, 1], [], []>} : vector<16x128xbf16>, vector<128x128xbf16>, vector<16x128xf32> -> vector<16x128xf32>
    %106 = arith.addf %100, %105 : vector<16x128xf32>
    %c0_114 = arith.constant 0 : index
    %c0_115 = arith.constant 0 : index
    %c0_116 = arith.constant 0 : index
    %107 = vector.load %arg7[%c0_114, %c0_115, %c0_116] : memref<1x1x128xf32, #tpu.memory_space<vmem>>, vector<1x1x128xf32>
    %108 = vector.shape_cast %107 : vector<1x1x128xf32> to vector<1x128xf32>
    %109 = vector.broadcast %108 : vector<1x128xf32> to vector<16x128xf32>
    %110 = arith.addf %106, %109 : vector<16x128xf32>
    %c0_117 = arith.constant 0 : index
    %c1_118 = arith.constant 1 : index
    %c0_119 = arith.constant 0 : index
    %111 = vector.load %arg9[%c0_117, %c1_118, %c0_119] : memref<1x18x128xf32, #tpu.memory_space<vmem>>, vector<1x16x128xf32>
    %112 = vector.shape_cast %111 : vector<1x16x128xf32> to vector<16x128xf32>
    %113 = arith.addf %110, %112 : vector<16x128xf32>
    %c0_120 = arith.constant 0 : index
    %c1_121 = arith.constant 1 : index
    %c0_122 = arith.constant 0 : index
    %114 = vector.load %arg9[%c0_120, %c1_121, %c0_122] : memref<1x18x128xf32, #tpu.memory_space<vmem>>, vector<1x16x128xf32>
    %115 = vector.shape_cast %114 : vector<1x16x128xf32> to vector<16x128xf32>
    %116 = vector.shape_cast %113 : vector<16x128xf32> to vector<1x16x128xf32>
    tpu.vector_store %arg9[%c0_120, %c1_121, %c0_122], %116 {strides = array<i32>} : memref<1x18x128xf32, #tpu.memory_space<vmem>>, vector<1x16x128xf32>,
    return
  }
  func.func @transform_0(%arg0: i32) -> (i32, i32, i32, i32) {
    %c0_i32 = arith.constant 0 : i32
    %c0_i32_0 = arith.constant 0 : i32
    %c0_i32_1 = arith.constant 0 : i32
    %c0_i32_2 = arith.constant 0 : i32
    return %arg0, %c0_i32, %c0_i32_0, %c0_i32_1 : i32, i32, i32, i32
  }
  func.func @transform_1(%arg0: i32) -> (i32, i32, i32) {
    %c0_i32 = arith.constant 0 : i32
    %c0_i32_0 = arith.constant 0 : i32
    %c0_i32_1 = arith.constant 0 : i32
    %c0_i32_2 = arith.constant 0 : i32
    return %c0_i32, %c0_i32_0, %c0_i32_1 : i32, i32, i32
  }
  func.func @transform_2(%arg0: i32) -> (i32, i32) {
    %c0_i32 = arith.constant 0 : i32
    %c0_i32_0 = arith.constant 0 : i32
    %c0_i32_1 = arith.constant 0 : i32
    return %c0_i32, %c0_i32_0 : i32, i32
  }
  func.func @transform_3(%arg0: i32) -> (i32, i32, i32, i32) {
    %c0_i32 = arith.constant 0 : i32
    %c0_i32_0 = arith.constant 0 : i32
    %c0_i32_1 = arith.constant 0 : i32
    %c0_i32_2 = arith.constant 0 : i32
    %c0_i32_3 = arith.constant 0 : i32
    return %c0_i32, %c0_i32_0, %c0_i32_1, %c0_i32_2 : i32, i32, i32, i32
  }
  func.func @transform_4(%arg0: i32) -> (i32, i32, i32) {
    %c0_i32 = arith.constant 0 : i32
    %c0_i32_0 = arith.constant 0 : i32
    %c0_i32_1 = arith.constant 0 : i32
    %c0_i32_2 = arith.constant 0 : i32
    return %c0_i32, %c0_i32_0, %c0_i32_1 : i32, i32, i32
  }
  func.func @transform_5(%arg0: i32) -> (i32, i32, i32, i32) {
    %c0_i32 = arith.constant 0 : i32
    %c0_i32_0 = arith.constant 0 : i32
    %c0_i32_1 = arith.constant 0 : i32
    %c0_i32_2 = arith.constant 0 : i32
    %c0_i32_3 = arith.constant 0 : i32
    return %c0_i32, %c0_i32_0, %c0_i32_1, %c0_i32_2 : i32, i32, i32, i32
  }
  func.func @transform_6(%arg0: i32) -> (i32, i32, i32) {
    %c0_i32 = arith.constant 0 : i32
    %c0_i32_0 = arith.constant 0 : i32
    %c0_i32_1 = arith.constant 0 : i32
    %c0_i32_2 = arith.constant 0 : i32
    return %c0_i32, %c0_i32_0, %c0_i32_1 : i32, i32, i32
  }
  func.func @transform_7(%arg0: i32) -> i32 {
    %c0_i32 = arith.constant 0 : i32
    %c0_i32_0 = arith.constant 0 : i32
    return %c0_i32 : i32
  }
  func.func @transform_8(%arg0: i32) -> (i32, i32, i32) {
    %c0_i32 = arith.constant 0 : i32
    %c0_i32_0 = arith.constant 0 : i32
    %c0_i32_1 = arith.constant 0 : i32
    return %arg0, %c0_i32, %c0_i32_0 : i32, i32, i32
  }
}

module attributes {stable_mosaic.version = 11 : i64} {
  func.func @kernel(%arg0: i32, %arg1: memref<1x2x9x128xbf16, #tpu.memory_space<vmem>>, %arg2: memref<3x128x128xbf16, #tpu.memory_space<vmem>>, %arg3: memref<1x128xf32, #tpu.memory_space<vmem>>, %arg4: memref<1x3x128x128xbf16, #tpu.memory_space<vmem>>, %arg5: memref<1x1x128xf32, #tpu.memory_space<vmem>>, %arg6: memref<1x3x128x128xbf16, #tpu.memory_space<vmem>>, %arg7: memref<1x1x128xf32, #tpu.memory_space<vmem>>, %arg8: memref<2xf32, #tpu.memory_space<smem>>, %arg9: memref<1x10x128xf32, #tpu.memory_space<vmem>>, %arg10: memref<10x128xf32, #tpu.memory_space<vmem>>) attributes {dimension_semantics = [#tpu.dimension_semantics<parallel>], iteration_bounds = array<i64: 2>, scalar_prefetch = 0 : i64, scratch_operands = 1 : i64, tpu.core_type = #tpu.core_type<tc>, window_params = [{transform_indices = @transform_0, window_bounds = array<i64: 1, 2, 9, 128>}, {pipeline_mode = #tpu.pipeline_mode<synchronous>, transform_indices = @transform_1, window_bounds = array<i64: 3, 128, 128>}, {pipeline_mode = #tpu.pipeline_mode<synchronous>, transform_indices = @transform_2, window_bounds = array<i64: 1, 128>}, {pipeline_mode = #tpu.pipeline_mode<synchronous>, transform_indices = @transform_3, window_bounds = array<i64: 1, 3, 128, 128>}, {pipeline_mode = #tpu.pipeline_mode<synchronous>, transform_indices = @transform_4, window_bounds = array<i64: 1, 1, 128>}, {pipeline_mode = #tpu.pipeline_mode<synchronous>, transform_indices = @transform_5, window_bounds = array<i64: 1, 3, 128, 128>}, {pipeline_mode = #tpu.pipeline_mode<synchronous>, transform_indices = @transform_6, window_bounds = array<i64: 1, 1, 128>}, {transform_indices = @transform_7, window_bounds = array<i64: 2>}, {transform_indices = @transform_8, window_bounds = array<i64: 1, 10, 128>}]} {
    %cst = arith.constant 0.000000e+00 : f32
    %0 = vector.broadcast %cst : f32 to vector<10x128xf32>
    %c0 = arith.constant 0 : index
    %c0_0 = arith.constant 0 : index
    %c0_1 = arith.constant 0 : index
    %1 = vector.load %arg9[%c0, %c0_0, %c0_1] : memref<1x10x128xf32, #tpu.memory_space<vmem>>, vector<1x10x128xf32>
    %2 = vector.shape_cast %1 : vector<1x10x128xf32> to vector<10x128xf32>
    %3 = vector.shape_cast %0 : vector<10x128xf32> to vector<1x10x128xf32>
    tpu.vector_store %arg9[%c0, %c0_0, %c0_1], %3 {strides = array<i32>} : memref<1x10x128xf32, #tpu.memory_space<vmem>>, vector<1x10x128xf32>,
    %cst_2 = arith.constant 0.000000e+00 : f32
    %4 = vector.broadcast %cst_2 : f32 to vector<10x128xf32>
    %c0_3 = arith.constant 0 : index
    %c0_4 = arith.constant 0 : index
    %5 = vector.load %arg10[%c0_3, %c0_4] : memref<10x128xf32, #tpu.memory_space<vmem>>, vector<10x128xf32>
    tpu.vector_store %arg10[%c0_3, %c0_4], %4 {strides = array<i32>} : memref<10x128xf32, #tpu.memory_space<vmem>>, vector<10x128xf32>,
    %c0_5 = arith.constant 0 : index
    %c0_6 = arith.constant 0 : index
    %c0_7 = arith.constant 0 : index
    %c0_8 = arith.constant 0 : index
    %6 = vector.load %arg1[%c0_5, %c0_6, %c0_7, %c0_8] : memref<1x2x9x128xbf16, #tpu.memory_space<vmem>>, vector<1x1x8x128xbf16>
    %7 = vector.shape_cast %6 : vector<1x1x8x128xbf16> to vector<8x128xbf16>
    %c0_9 = arith.constant 0 : index
    %c0_10 = arith.constant 0 : index
    %c0_11 = arith.constant 0 : index
    %8 = vector.load %arg2[%c0_9, %c0_10, %c0_11] : memref<3x128x128xbf16, #tpu.memory_space<vmem>>, vector<1x128x128xbf16>
    %9 = vector.shape_cast %8 : vector<1x128x128xbf16> to vector<128x128xbf16>
    %cst_12 = arith.constant dense<0.000000e+00> : vector<8x128xf32>
    %10 = tpu.matmul %7, %9, %cst_12 {dimension_numbers = #tpu.dot_dimension_numbers<[1], [0], [0], [1], [0, 0, 1, 1], [], []>} : vector<8x128xbf16>, vector<128x128xbf16>, vector<8x128xf32> -> vector<8x128xf32>
    %c0_13 = arith.constant 0 : index
    %c1 = arith.constant 1 : index
    %c0_14 = arith.constant 0 : index
    %c0_15 = arith.constant 0 : index
    %11 = vector.load %arg1[%c0_13, %c1, %c0_14, %c0_15] : memref<1x2x9x128xbf16, #tpu.memory_space<vmem>>, vector<1x1x8x128xbf16>
    %12 = vector.shape_cast %11 : vector<1x1x8x128xbf16> to vector<8x128xbf16>
    %c1_16 = arith.constant 1 : index
    %c0_17 = arith.constant 0 : index
    %c0_18 = arith.constant 0 : index
    %13 = vector.load %arg2[%c1_16, %c0_17, %c0_18] : memref<3x128x128xbf16, #tpu.memory_space<vmem>>, vector<1x128x128xbf16>
    %14 = vector.shape_cast %13 : vector<1x128x128xbf16> to vector<128x128xbf16>
    %cst_19 = arith.constant dense<0.000000e+00> : vector<8x128xf32>
    %15 = tpu.matmul %12, %14, %cst_19 {dimension_numbers = #tpu.dot_dimension_numbers<[1], [0], [0], [1], [0, 0, 1, 1], [], []>} : vector<8x128xbf16>, vector<128x128xbf16>, vector<8x128xf32> -> vector<8x128xf32>
    %16 = arith.addf %10, %15 : vector<8x128xf32>
    %c0_20 = arith.constant 0 : index
    %c0_21 = arith.constant 0 : index
    %c1_22 = arith.constant 1 : index
    %c0_23 = arith.constant 0 : index
    %17 = vector.load %arg1[%c0_20, %c0_21, %c1_22, %c0_23] : memref<1x2x9x128xbf16, #tpu.memory_space<vmem>>, vector<1x1x8x128xbf16>
    %18 = vector.shape_cast %17 : vector<1x1x8x128xbf16> to vector<8x128xbf16>
    %c2 = arith.constant 2 : index
    %c0_24 = arith.constant 0 : index
    %c0_25 = arith.constant 0 : index
    %19 = vector.load %arg2[%c2, %c0_24, %c0_25] : memref<3x128x128xbf16, #tpu.memory_space<vmem>>, vector<1x128x128xbf16>
    %20 = vector.shape_cast %19 : vector<1x128x128xbf16> to vector<128x128xbf16>
    %cst_26 = arith.constant dense<0.000000e+00> : vector<8x128xf32>
    %21 = tpu.matmul %18, %20, %cst_26 {dimension_numbers = #tpu.dot_dimension_numbers<[1], [0], [0], [1], [0, 0, 1, 1], [], []>} : vector<8x128xbf16>, vector<128x128xbf16>, vector<8x128xf32> -> vector<8x128xf32>
    %22 = arith.addf %16, %21 : vector<8x128xf32>
    %c0_27 = arith.constant 0 : index
    %c0_28 = arith.constant 0 : index
    %23 = vector.load %arg3[%c0_27, %c0_28] : memref<1x128xf32, #tpu.memory_space<vmem>>, vector<1x128xf32>
    %24 = vector.broadcast %23 : vector<1x128xf32> to vector<8x128xf32>
    %25 = arith.addf %22, %24 : vector<8x128xf32>
    %c0_29 = arith.constant 0 : index
    %26 = memref.load %arg8[%c0_29] : memref<2xf32, #tpu.memory_space<smem>>
    %cst_30 = arith.constant 0.000000e+00 : f32
    %27 = vector.broadcast %cst_30 : f32 to vector<8x128xf32>
    %28 = arith.cmpf oge, %25, %27 : vector<8x128xf32>
    %29 = vector.broadcast %26 : f32 to vector<8x128xf32>
    %30 = arith.mulf %29, %25 : vector<8x128xf32>
    %31 = arith.select %28, %25, %30 : vector<8x128xi1>, vector<8x128xf32>
    %c0_31 = arith.constant 0 : index
    %c1_32 = arith.constant 1 : index
    %c0_33 = arith.constant 0 : index
    %32 = vector.load %arg9[%c0_31, %c1_32, %c0_33] : memref<1x10x128xf32, #tpu.memory_space<vmem>>, vector<1x8x128xf32>
    %33 = vector.shape_cast %32 : vector<1x8x128xf32> to vector<8x128xf32>
    %34 = vector.shape_cast %31 : vector<8x128xf32> to vector<1x8x128xf32>
    tpu.vector_store %arg9[%c0_31, %c1_32, %c0_33], %34 {strides = array<i32>} : memref<1x10x128xf32, #tpu.memory_space<vmem>>, vector<1x8x128xf32>,
    %c0_34 = arith.constant 0 : index
    %c0_35 = arith.constant 0 : index
    %c0_36 = arith.constant 0 : index
    %35 = vector.load %arg9[%c0_34, %c0_35, %c0_36] : memref<1x10x128xf32, #tpu.memory_space<vmem>>, vector<1x8x128xf32>
    %36 = vector.shape_cast %35 : vector<1x8x128xf32> to vector<8x128xf32>
    %37 = arith.truncf %36 : vector<8x128xf32> to vector<8x128xbf16>
    %c0_37 = arith.constant 0 : index
    %c0_38 = arith.constant 0 : index
    %c0_39 = arith.constant 0 : index
    %c0_40 = arith.constant 0 : index
    %38 = vector.load %arg4[%c0_37, %c0_38, %c0_39, %c0_40] : memref<1x3x128x128xbf16, #tpu.memory_space<vmem>>, vector<1x1x128x128xbf16>
    %39 = vector.shape_cast %38 : vector<1x1x128x128xbf16> to vector<128x128xbf16>
    %cst_41 = arith.constant dense<0.000000e+00> : vector<8x128xf32>
    %40 = tpu.matmul %37, %39, %cst_41 {dimension_numbers = #tpu.dot_dimension_numbers<[1], [0], [0], [1], [0, 0, 1, 1], [], []>} : vector<8x128xbf16>, vector<128x128xbf16>, vector<8x128xf32> -> vector<8x128xf32>
    %c0_42 = arith.constant 0 : index
    %c1_43 = arith.constant 1 : index
    %c0_44 = arith.constant 0 : index
    %41 = vector.load %arg9[%c0_42, %c1_43, %c0_44] : memref<1x10x128xf32, #tpu.memory_space<vmem>>, vector<1x8x128xf32>
    %42 = vector.shape_cast %41 : vector<1x8x128xf32> to vector<8x128xf32>
    %43 = arith.truncf %42 : vector<8x128xf32> to vector<8x128xbf16>
    %c0_45 = arith.constant 0 : index
    %c1_46 = arith.constant 1 : index
    %c0_47 = arith.constant 0 : index
    %c0_48 = arith.constant 0 : index
    %44 = vector.load %arg4[%c0_45, %c1_46, %c0_47, %c0_48] : memref<1x3x128x128xbf16, #tpu.memory_space<vmem>>, vector<1x1x128x128xbf16>
    %45 = vector.shape_cast %44 : vector<1x1x128x128xbf16> to vector<128x128xbf16>
    %cst_49 = arith.constant dense<0.000000e+00> : vector<8x128xf32>
    %46 = tpu.matmul %43, %45, %cst_49 {dimension_numbers = #tpu.dot_dimension_numbers<[1], [0], [0], [1], [0, 0, 1, 1], [], []>} : vector<8x128xbf16>, vector<128x128xbf16>, vector<8x128xf32> -> vector<8x128xf32>
    %47 = arith.addf %40, %46 : vector<8x128xf32>
    %c0_50 = arith.constant 0 : index
    %c2_51 = arith.constant 2 : index
    %c0_52 = arith.constant 0 : index
    %48 = vector.load %arg9[%c0_50, %c2_51, %c0_52] : memref<1x10x128xf32, #tpu.memory_space<vmem>>, vector<1x8x128xf32>
    %49 = vector.shape_cast %48 : vector<1x8x128xf32> to vector<8x128xf32>
    %50 = arith.truncf %49 : vector<8x128xf32> to vector<8x128xbf16>
    %c0_53 = arith.constant 0 : index
    %c2_54 = arith.constant 2 : index
    %c0_55 = arith.constant 0 : index
    %c0_56 = arith.constant 0 : index
    %51 = vector.load %arg4[%c0_53, %c2_54, %c0_55, %c0_56] : memref<1x3x128x128xbf16, #tpu.memory_space<vmem>>, vector<1x1x128x128xbf16>
    %52 = vector.shape_cast %51 : vector<1x1x128x128xbf16> to vector<128x128xbf16>
    %cst_57 = arith.constant dense<0.000000e+00> : vector<8x128xf32>
    %53 = tpu.matmul %50, %52, %cst_57 {dimension_numbers = #tpu.dot_dimension_numbers<[1], [0], [0], [1], [0, 0, 1, 1], [], []>} : vector<8x128xbf16>, vector<128x128xbf16>, vector<8x128xf32> -> vector<8x128xf32>
    %54 = arith.addf %47, %53 : vector<8x128xf32>
    %c0_58 = arith.constant 0 : index
    %c0_59 = arith.constant 0 : index
    %c0_60 = arith.constant 0 : index
    %55 = vector.load %arg5[%c0_58, %c0_59, %c0_60] : memref<1x1x128xf32, #tpu.memory_space<vmem>>, vector<1x1x128xf32>
    %56 = vector.shape_cast %55 : vector<1x1x128xf32> to vector<1x128xf32>
    %57 = vector.broadcast %56 : vector<1x128xf32> to vector<8x128xf32>
    %58 = arith.addf %54, %57 : vector<8x128xf32>
    %c1_61 = arith.constant 1 : index
    %59 = memref.load %arg8[%c1_61] : memref<2xf32, #tpu.memory_space<smem>>
    %cst_62 = arith.constant 0.000000e+00 : f32
    %60 = vector.broadcast %cst_62 : f32 to vector<8x128xf32>
    %61 = arith.cmpf oge, %58, %60 : vector<8x128xf32>
    %62 = vector.broadcast %59 : f32 to vector<8x128xf32>
    %63 = arith.mulf %62, %58 : vector<8x128xf32>
    %64 = arith.select %61, %58, %63 : vector<8x128xi1>, vector<8x128xf32>
    %c1_63 = arith.constant 1 : index
    %c0_64 = arith.constant 0 : index
    %65 = vector.load %arg10[%c1_63, %c0_64] : memref<10x128xf32, #tpu.memory_space<vmem>>, vector<8x128xf32>
    tpu.vector_store %arg10[%c1_63, %c0_64], %64 {strides = array<i32>} : memref<10x128xf32, #tpu.memory_space<vmem>>, vector<8x128xf32>,
    %c0_65 = arith.constant 0 : index
    %c0_66 = arith.constant 0 : index
    %66 = vector.load %arg10[%c0_65, %c0_66] : memref<10x128xf32, #tpu.memory_space<vmem>>, vector<8x128xf32>
    %67 = arith.truncf %66 : vector<8x128xf32> to vector<8x128xbf16>
    %c0_67 = arith.constant 0 : index
    %c0_68 = arith.constant 0 : index
    %c0_69 = arith.constant 0 : index
    %c0_70 = arith.constant 0 : index
    %68 = vector.load %arg6[%c0_67, %c0_68, %c0_69, %c0_70] : memref<1x3x128x128xbf16, #tpu.memory_space<vmem>>, vector<1x1x128x128xbf16>
    %69 = vector.shape_cast %68 : vector<1x1x128x128xbf16> to vector<128x128xbf16>
    %cst_71 = arith.constant dense<0.000000e+00> : vector<8x128xf32>
    %70 = tpu.matmul %67, %69, %cst_71 {dimension_numbers = #tpu.dot_dimension_numbers<[1], [0], [0], [1], [0, 0, 1, 1], [], []>} : vector<8x128xbf16>, vector<128x128xbf16>, vector<8x128xf32> -> vector<8x128xf32>
    %c1_72 = arith.constant 1 : index
    %c0_73 = arith.constant 0 : index
    %71 = vector.load %arg10[%c1_72, %c0_73] : memref<10x128xf32, #tpu.memory_space<vmem>>, vector<8x128xf32>
    %72 = arith.truncf %71 : vector<8x128xf32> to vector<8x128xbf16>
    %c0_74 = arith.constant 0 : index
    %c1_75 = arith.constant 1 : index
    %c0_76 = arith.constant 0 : index
    %c0_77 = arith.constant 0 : index
    %73 = vector.load %arg6[%c0_74, %c1_75, %c0_76, %c0_77] : memref<1x3x128x128xbf16, #tpu.memory_space<vmem>>, vector<1x1x128x128xbf16>
    %74 = vector.shape_cast %73 : vector<1x1x128x128xbf16> to vector<128x128xbf16>
    %cst_78 = arith.constant dense<0.000000e+00> : vector<8x128xf32>
    %75 = tpu.matmul %72, %74, %cst_78 {dimension_numbers = #tpu.dot_dimension_numbers<[1], [0], [0], [1], [0, 0, 1, 1], [], []>} : vector<8x128xbf16>, vector<128x128xbf16>, vector<8x128xf32> -> vector<8x128xf32>
    %76 = arith.addf %70, %75 : vector<8x128xf32>
    %c2_79 = arith.constant 2 : index
    %c0_80 = arith.constant 0 : index
    %77 = vector.load %arg10[%c2_79, %c0_80] : memref<10x128xf32, #tpu.memory_space<vmem>>, vector<8x128xf32>
    %78 = arith.truncf %77 : vector<8x128xf32> to vector<8x128xbf16>
    %c0_81 = arith.constant 0 : index
    %c2_82 = arith.constant 2 : index
    %c0_83 = arith.constant 0 : index
    %c0_84 = arith.constant 0 : index
    %79 = vector.load %arg6[%c0_81, %c2_82, %c0_83, %c0_84] : memref<1x3x128x128xbf16, #tpu.memory_space<vmem>>, vector<1x1x128x128xbf16>
    %80 = vector.shape_cast %79 : vector<1x1x128x128xbf16> to vector<128x128xbf16>
    %cst_85 = arith.constant dense<0.000000e+00> : vector<8x128xf32>
    %81 = tpu.matmul %78, %80, %cst_85 {dimension_numbers = #tpu.dot_dimension_numbers<[1], [0], [0], [1], [0, 0, 1, 1], [], []>} : vector<8x128xbf16>, vector<128x128xbf16>, vector<8x128xf32> -> vector<8x128xf32>
    %82 = arith.addf %76, %81 : vector<8x128xf32>
    %c0_86 = arith.constant 0 : index
    %c0_87 = arith.constant 0 : index
    %c0_88 = arith.constant 0 : index
    %83 = vector.load %arg7[%c0_86, %c0_87, %c0_88] : memref<1x1x128xf32, #tpu.memory_space<vmem>>, vector<1x1x128xf32>
    %84 = vector.shape_cast %83 : vector<1x1x128xf32> to vector<1x128xf32>
    %85 = vector.broadcast %84 : vector<1x128xf32> to vector<8x128xf32>
    %86 = arith.addf %82, %85 : vector<8x128xf32>
    %c0_89 = arith.constant 0 : index
    %c1_90 = arith.constant 1 : index
    %c0_91 = arith.constant 0 : index
    %87 = vector.load %arg9[%c0_89, %c1_90, %c0_91] : memref<1x10x128xf32, #tpu.memory_space<vmem>>, vector<1x8x128xf32>
    %88 = vector.shape_cast %87 : vector<1x8x128xf32> to vector<8x128xf32>
    %89 = arith.addf %86, %88 : vector<8x128xf32>
    %c0_92 = arith.constant 0 : index
    %c1_93 = arith.constant 1 : index
    %c0_94 = arith.constant 0 : index
    %90 = vector.load %arg9[%c0_92, %c1_93, %c0_94] : memref<1x10x128xf32, #tpu.memory_space<vmem>>, vector<1x8x128xf32>
    %91 = vector.shape_cast %90 : vector<1x8x128xf32> to vector<8x128xf32>
    %92 = vector.shape_cast %89 : vector<8x128xf32> to vector<1x8x128xf32>
    tpu.vector_store %arg9[%c0_92, %c1_93, %c0_94], %92 {strides = array<i32>} : memref<1x10x128xf32, #tpu.memory_space<vmem>>, vector<1x8x128xf32>,
    return
  }
  func.func @transform_0(%arg0: i32) -> (i32, i32, i32, i32) {
    %c0_i32 = arith.constant 0 : i32
    %c0_i32_0 = arith.constant 0 : i32
    %c0_i32_1 = arith.constant 0 : i32
    %c0_i32_2 = arith.constant 0 : i32
    return %arg0, %c0_i32, %c0_i32_0, %c0_i32_1 : i32, i32, i32, i32
  }
  func.func @transform_1(%arg0: i32) -> (i32, i32, i32) {
    %c0_i32 = arith.constant 0 : i32
    %c0_i32_0 = arith.constant 0 : i32
    %c0_i32_1 = arith.constant 0 : i32
    %c0_i32_2 = arith.constant 0 : i32
    return %c0_i32, %c0_i32_0, %c0_i32_1 : i32, i32, i32
  }
  func.func @transform_2(%arg0: i32) -> (i32, i32) {
    %c0_i32 = arith.constant 0 : i32
    %c0_i32_0 = arith.constant 0 : i32
    %c0_i32_1 = arith.constant 0 : i32
    return %c0_i32, %c0_i32_0 : i32, i32
  }
  func.func @transform_3(%arg0: i32) -> (i32, i32, i32, i32) {
    %c0_i32 = arith.constant 0 : i32
    %c0_i32_0 = arith.constant 0 : i32
    %c0_i32_1 = arith.constant 0 : i32
    %c0_i32_2 = arith.constant 0 : i32
    %c0_i32_3 = arith.constant 0 : i32
    return %c0_i32, %c0_i32_0, %c0_i32_1, %c0_i32_2 : i32, i32, i32, i32
  }
  func.func @transform_4(%arg0: i32) -> (i32, i32, i32) {
    %c0_i32 = arith.constant 0 : i32
    %c0_i32_0 = arith.constant 0 : i32
    %c0_i32_1 = arith.constant 0 : i32
    %c0_i32_2 = arith.constant 0 : i32
    return %c0_i32, %c0_i32_0, %c0_i32_1 : i32, i32, i32
  }
  func.func @transform_5(%arg0: i32) -> (i32, i32, i32, i32) {
    %c0_i32 = arith.constant 0 : i32
    %c0_i32_0 = arith.constant 0 : i32
    %c0_i32_1 = arith.constant 0 : i32
    %c0_i32_2 = arith.constant 0 : i32
    %c0_i32_3 = arith.constant 0 : i32
    return %c0_i32, %c0_i32_0, %c0_i32_1, %c0_i32_2 : i32, i32, i32, i32
  }
  func.func @transform_6(%arg0: i32) -> (i32, i32, i32) {
    %c0_i32 = arith.constant 0 : i32
    %c0_i32_0 = arith.constant 0 : i32
    %c0_i32_1 = arith.constant 0 : i32
    %c0_i32_2 = arith.constant 0 : i32
    return %c0_i32, %c0_i32_0, %c0_i32_1 : i32, i32, i32
  }
  func.func @transform_7(%arg0: i32) -> i32 {
    %c0_i32 = arith.constant 0 : i32
    %c0_i32_0 = arith.constant 0 : i32
    return %c0_i32 : i32
  }
  func.func @transform_8(%arg0: i32) -> (i32, i32, i32) {
    %c0_i32 = arith.constant 0 : i32
    %c0_i32_0 = arith.constant 0 : i32
    %c0_i32_1 = arith.constant 0 : i32
    return %arg0, %c0_i32, %c0_i32_0 : i32, i32, i32
  }
}

module attributes {stable_mosaic.version = 11 : i64} {
  func.func @kernel(%arg0: i32, %arg1: memref<1x2x5x128xbf16, #tpu.memory_space<vmem>>, %arg2: memref<3x128x128xbf16, #tpu.memory_space<vmem>>, %arg3: memref<1x128xf32, #tpu.memory_space<vmem>>, %arg4: memref<1x3x128x128xbf16, #tpu.memory_space<vmem>>, %arg5: memref<1x1x128xf32, #tpu.memory_space<vmem>>, %arg6: memref<1x3x128x128xbf16, #tpu.memory_space<vmem>>, %arg7: memref<1x1x128xf32, #tpu.memory_space<vmem>>, %arg8: memref<2xf32, #tpu.memory_space<smem>>, %arg9: memref<1x6x128xf32, #tpu.memory_space<vmem>>, %arg10: memref<6x128xf32, #tpu.memory_space<vmem>>) attributes {dimension_semantics = [#tpu.dimension_semantics<parallel>], iteration_bounds = array<i64: 2>, scalar_prefetch = 0 : i64, scratch_operands = 1 : i64, tpu.core_type = #tpu.core_type<tc>, window_params = [{transform_indices = @transform_0, window_bounds = array<i64: 1, 2, 5, 128>}, {pipeline_mode = #tpu.pipeline_mode<synchronous>, transform_indices = @transform_1, window_bounds = array<i64: 3, 128, 128>}, {pipeline_mode = #tpu.pipeline_mode<synchronous>, transform_indices = @transform_2, window_bounds = array<i64: 1, 128>}, {pipeline_mode = #tpu.pipeline_mode<synchronous>, transform_indices = @transform_3, window_bounds = array<i64: 1, 3, 128, 128>}, {pipeline_mode = #tpu.pipeline_mode<synchronous>, transform_indices = @transform_4, window_bounds = array<i64: 1, 1, 128>}, {pipeline_mode = #tpu.pipeline_mode<synchronous>, transform_indices = @transform_5, window_bounds = array<i64: 1, 3, 128, 128>}, {pipeline_mode = #tpu.pipeline_mode<synchronous>, transform_indices = @transform_6, window_bounds = array<i64: 1, 1, 128>}, {transform_indices = @transform_7, window_bounds = array<i64: 2>}, {transform_indices = @transform_8, window_bounds = array<i64: 1, 6, 128>}]} {
    %cst = arith.constant 0.000000e+00 : f32
    %0 = vector.broadcast %cst : f32 to vector<6x128xf32>
    %c0 = arith.constant 0 : index
    %c0_0 = arith.constant 0 : index
    %c0_1 = arith.constant 0 : index
    %1 = vector.load %arg9[%c0, %c0_0, %c0_1] : memref<1x6x128xf32, #tpu.memory_space<vmem>>, vector<1x6x128xf32>
    %2 = vector.shape_cast %1 : vector<1x6x128xf32> to vector<6x128xf32>
    %3 = vector.shape_cast %0 : vector<6x128xf32> to vector<1x6x128xf32>
    tpu.vector_store %arg9[%c0, %c0_0, %c0_1], %3 {strides = array<i32>} : memref<1x6x128xf32, #tpu.memory_space<vmem>>, vector<1x6x128xf32>,
    %cst_2 = arith.constant 0.000000e+00 : f32
    %4 = vector.broadcast %cst_2 : f32 to vector<6x128xf32>
    %c0_3 = arith.constant 0 : index
    %c0_4 = arith.constant 0 : index
    %5 = vector.load %arg10[%c0_3, %c0_4] : memref<6x128xf32, #tpu.memory_space<vmem>>, vector<6x128xf32>
    tpu.vector_store %arg10[%c0_3, %c0_4], %4 {strides = array<i32>} : memref<6x128xf32, #tpu.memory_space<vmem>>, vector<6x128xf32>,
    %c0_5 = arith.constant 0 : index
    %c0_6 = arith.constant 0 : index
    %c0_7 = arith.constant 0 : index
    %c0_8 = arith.constant 0 : index
    %6 = vector.load %arg1[%c0_5, %c0_6, %c0_7, %c0_8] : memref<1x2x5x128xbf16, #tpu.memory_space<vmem>>, vector<1x1x4x128xbf16>
    %7 = vector.shape_cast %6 : vector<1x1x4x128xbf16> to vector<4x128xbf16>
    %c0_9 = arith.constant 0 : index
    %c0_10 = arith.constant 0 : index
    %c0_11 = arith.constant 0 : index
    %8 = vector.load %arg2[%c0_9, %c0_10, %c0_11] : memref<3x128x128xbf16, #tpu.memory_space<vmem>>, vector<1x128x128xbf16>
    %9 = vector.shape_cast %8 : vector<1x128x128xbf16> to vector<128x128xbf16>
    %cst_12 = arith.constant dense<0.000000e+00> : vector<4x128xf32>
    %10 = tpu.matmul %7, %9, %cst_12 {dimension_numbers = #tpu.dot_dimension_numbers<[1], [0], [0], [1], [0, 0, 1, 1], [], []>} : vector<4x128xbf16>, vector<128x128xbf16>, vector<4x128xf32> -> vector<4x128xf32>
    %c0_13 = arith.constant 0 : index
    %c1 = arith.constant 1 : index
    %c0_14 = arith.constant 0 : index
    %c0_15 = arith.constant 0 : index
    %11 = vector.load %arg1[%c0_13, %c1, %c0_14, %c0_15] : memref<1x2x5x128xbf16, #tpu.memory_space<vmem>>, vector<1x1x4x128xbf16>
    %12 = vector.shape_cast %11 : vector<1x1x4x128xbf16> to vector<4x128xbf16>
    %c1_16 = arith.constant 1 : index
    %c0_17 = arith.constant 0 : index
    %c0_18 = arith.constant 0 : index
    %13 = vector.load %arg2[%c1_16, %c0_17, %c0_18] : memref<3x128x128xbf16, #tpu.memory_space<vmem>>, vector<1x128x128xbf16>
    %14 = vector.shape_cast %13 : vector<1x128x128xbf16> to vector<128x128xbf16>
    %cst_19 = arith.constant dense<0.000000e+00> : vector<4x128xf32>
    %15 = tpu.matmul %12, %14, %cst_19 {dimension_numbers = #tpu.dot_dimension_numbers<[1], [0], [0], [1], [0, 0, 1, 1], [], []>} : vector<4x128xbf16>, vector<128x128xbf16>, vector<4x128xf32> -> vector<4x128xf32>
    %16 = arith.addf %10, %15 : vector<4x128xf32>
    %c0_20 = arith.constant 0 : index
    %c0_21 = arith.constant 0 : index
    %c1_22 = arith.constant 1 : index
    %c0_23 = arith.constant 0 : index
    %17 = vector.load %arg1[%c0_20, %c0_21, %c1_22, %c0_23] : memref<1x2x5x128xbf16, #tpu.memory_space<vmem>>, vector<1x1x4x128xbf16>
    %18 = vector.shape_cast %17 : vector<1x1x4x128xbf16> to vector<4x128xbf16>
    %c2 = arith.constant 2 : index
    %c0_24 = arith.constant 0 : index
    %c0_25 = arith.constant 0 : index
    %19 = vector.load %arg2[%c2, %c0_24, %c0_25] : memref<3x128x128xbf16, #tpu.memory_space<vmem>>, vector<1x128x128xbf16>
    %20 = vector.shape_cast %19 : vector<1x128x128xbf16> to vector<128x128xbf16>
    %cst_26 = arith.constant dense<0.000000e+00> : vector<4x128xf32>
    %21 = tpu.matmul %18, %20, %cst_26 {dimension_numbers = #tpu.dot_dimension_numbers<[1], [0], [0], [1], [0, 0, 1, 1], [], []>} : vector<4x128xbf16>, vector<128x128xbf16>, vector<4x128xf32> -> vector<4x128xf32>
    %22 = arith.addf %16, %21 : vector<4x128xf32>
    %c0_27 = arith.constant 0 : index
    %c0_28 = arith.constant 0 : index
    %23 = vector.load %arg3[%c0_27, %c0_28] : memref<1x128xf32, #tpu.memory_space<vmem>>, vector<1x128xf32>
    %24 = vector.broadcast %23 : vector<1x128xf32> to vector<4x128xf32>
    %25 = arith.addf %22, %24 : vector<4x128xf32>
    %c0_29 = arith.constant 0 : index
    %26 = memref.load %arg8[%c0_29] : memref<2xf32, #tpu.memory_space<smem>>
    %cst_30 = arith.constant 0.000000e+00 : f32
    %27 = vector.broadcast %cst_30 : f32 to vector<4x128xf32>
    %28 = arith.cmpf oge, %25, %27 : vector<4x128xf32>
    %29 = vector.broadcast %26 : f32 to vector<4x128xf32>
    %30 = arith.mulf %29, %25 : vector<4x128xf32>
    %31 = arith.select %28, %25, %30 : vector<4x128xi1>, vector<4x128xf32>
    %c0_31 = arith.constant 0 : index
    %c1_32 = arith.constant 1 : index
    %c0_33 = arith.constant 0 : index
    %32 = vector.load %arg9[%c0_31, %c1_32, %c0_33] : memref<1x6x128xf32, #tpu.memory_space<vmem>>, vector<1x4x128xf32>
    %33 = vector.shape_cast %32 : vector<1x4x128xf32> to vector<4x128xf32>
    %34 = vector.shape_cast %31 : vector<4x128xf32> to vector<1x4x128xf32>
    tpu.vector_store %arg9[%c0_31, %c1_32, %c0_33], %34 {strides = array<i32>} : memref<1x6x128xf32, #tpu.memory_space<vmem>>, vector<1x4x128xf32>,
    %c0_34 = arith.constant 0 : index
    %c0_35 = arith.constant 0 : index
    %c0_36 = arith.constant 0 : index
    %35 = vector.load %arg9[%c0_34, %c0_35, %c0_36] : memref<1x6x128xf32, #tpu.memory_space<vmem>>, vector<1x4x128xf32>
    %36 = vector.shape_cast %35 : vector<1x4x128xf32> to vector<4x128xf32>
    %37 = arith.truncf %36 : vector<4x128xf32> to vector<4x128xbf16>
    %c0_37 = arith.constant 0 : index
    %c0_38 = arith.constant 0 : index
    %c0_39 = arith.constant 0 : index
    %c0_40 = arith.constant 0 : index
    %38 = vector.load %arg4[%c0_37, %c0_38, %c0_39, %c0_40] : memref<1x3x128x128xbf16, #tpu.memory_space<vmem>>, vector<1x1x128x128xbf16>
    %39 = vector.shape_cast %38 : vector<1x1x128x128xbf16> to vector<128x128xbf16>
    %cst_41 = arith.constant dense<0.000000e+00> : vector<4x128xf32>
    %40 = tpu.matmul %37, %39, %cst_41 {dimension_numbers = #tpu.dot_dimension_numbers<[1], [0], [0], [1], [0, 0, 1, 1], [], []>} : vector<4x128xbf16>, vector<128x128xbf16>, vector<4x128xf32> -> vector<4x128xf32>
    %c0_42 = arith.constant 0 : index
    %c1_43 = arith.constant 1 : index
    %c0_44 = arith.constant 0 : index
    %41 = vector.load %arg9[%c0_42, %c1_43, %c0_44] : memref<1x6x128xf32, #tpu.memory_space<vmem>>, vector<1x4x128xf32>
    %42 = vector.shape_cast %41 : vector<1x4x128xf32> to vector<4x128xf32>
    %43 = arith.truncf %42 : vector<4x128xf32> to vector<4x128xbf16>
    %c0_45 = arith.constant 0 : index
    %c1_46 = arith.constant 1 : index
    %c0_47 = arith.constant 0 : index
    %c0_48 = arith.constant 0 : index
    %44 = vector.load %arg4[%c0_45, %c1_46, %c0_47, %c0_48] : memref<1x3x128x128xbf16, #tpu.memory_space<vmem>>, vector<1x1x128x128xbf16>
    %45 = vector.shape_cast %44 : vector<1x1x128x128xbf16> to vector<128x128xbf16>
    %cst_49 = arith.constant dense<0.000000e+00> : vector<4x128xf32>
    %46 = tpu.matmul %43, %45, %cst_49 {dimension_numbers = #tpu.dot_dimension_numbers<[1], [0], [0], [1], [0, 0, 1, 1], [], []>} : vector<4x128xbf16>, vector<128x128xbf16>, vector<4x128xf32> -> vector<4x128xf32>
    %47 = arith.addf %40, %46 : vector<4x128xf32>
    %c0_50 = arith.constant 0 : index
    %c2_51 = arith.constant 2 : index
    %c0_52 = arith.constant 0 : index
    %48 = vector.load %arg9[%c0_50, %c2_51, %c0_52] : memref<1x6x128xf32, #tpu.memory_space<vmem>>, vector<1x4x128xf32>
    %49 = vector.shape_cast %48 : vector<1x4x128xf32> to vector<4x128xf32>
    %50 = arith.truncf %49 : vector<4x128xf32> to vector<4x128xbf16>
    %c0_53 = arith.constant 0 : index
    %c2_54 = arith.constant 2 : index
    %c0_55 = arith.constant 0 : index
    %c0_56 = arith.constant 0 : index
    %51 = vector.load %arg4[%c0_53, %c2_54, %c0_55, %c0_56] : memref<1x3x128x128xbf16, #tpu.memory_space<vmem>>, vector<1x1x128x128xbf16>
    %52 = vector.shape_cast %51 : vector<1x1x128x128xbf16> to vector<128x128xbf16>
    %cst_57 = arith.constant dense<0.000000e+00> : vector<4x128xf32>
    %53 = tpu.matmul %50, %52, %cst_57 {dimension_numbers = #tpu.dot_dimension_numbers<[1], [0], [0], [1], [0, 0, 1, 1], [], []>} : vector<4x128xbf16>, vector<128x128xbf16>, vector<4x128xf32> -> vector<4x128xf32>
    %54 = arith.addf %47, %53 : vector<4x128xf32>
    %c0_58 = arith.constant 0 : index
    %c0_59 = arith.constant 0 : index
    %c0_60 = arith.constant 0 : index
    %55 = vector.load %arg5[%c0_58, %c0_59, %c0_60] : memref<1x1x128xf32, #tpu.memory_space<vmem>>, vector<1x1x128xf32>
    %56 = vector.shape_cast %55 : vector<1x1x128xf32> to vector<1x128xf32>
    %57 = vector.broadcast %56 : vector<1x128xf32> to vector<4x128xf32>
    %58 = arith.addf %54, %57 : vector<4x128xf32>
    %c1_61 = arith.constant 1 : index
    %59 = memref.load %arg8[%c1_61] : memref<2xf32, #tpu.memory_space<smem>>
    %cst_62 = arith.constant 0.000000e+00 : f32
    %60 = vector.broadcast %cst_62 : f32 to vector<4x128xf32>
    %61 = arith.cmpf oge, %58, %60 : vector<4x128xf32>
    %62 = vector.broadcast %59 : f32 to vector<4x128xf32>
    %63 = arith.mulf %62, %58 : vector<4x128xf32>
    %64 = arith.select %61, %58, %63 : vector<4x128xi1>, vector<4x128xf32>
    %c1_63 = arith.constant 1 : index
    %c0_64 = arith.constant 0 : index
    %65 = vector.load %arg10[%c1_63, %c0_64] : memref<6x128xf32, #tpu.memory_space<vmem>>, vector<4x128xf32>
    tpu.vector_store %arg10[%c1_63, %c0_64], %64 {strides = array<i32>} : memref<6x128xf32, #tpu.memory_space<vmem>>, vector<4x128xf32>,
    %c0_65 = arith.constant 0 : index
    %c0_66 = arith.constant 0 : index
    %66 = vector.load %arg10[%c0_65, %c0_66] : memref<6x128xf32, #tpu.memory_space<vmem>>, vector<4x128xf32>
    %67 = arith.truncf %66 : vector<4x128xf32> to vector<4x128xbf16>
    %c0_67 = arith.constant 0 : index
    %c0_68 = arith.constant 0 : index
    %c0_69 = arith.constant 0 : index
    %c0_70 = arith.constant 0 : index
    %68 = vector.load %arg6[%c0_67, %c0_68, %c0_69, %c0_70] : memref<1x3x128x128xbf16, #tpu.memory_space<vmem>>, vector<1x1x128x128xbf16>
    %69 = vector.shape_cast %68 : vector<1x1x128x128xbf16> to vector<128x128xbf16>
    %cst_71 = arith.constant dense<0.000000e+00> : vector<4x128xf32>
    %70 = tpu.matmul %67, %69, %cst_71 {dimension_numbers = #tpu.dot_dimension_numbers<[1], [0], [0], [1], [0, 0, 1, 1], [], []>} : vector<4x128xbf16>, vector<128x128xbf16>, vector<4x128xf32> -> vector<4x128xf32>
    %c1_72 = arith.constant 1 : index
    %c0_73 = arith.constant 0 : index
    %71 = vector.load %arg10[%c1_72, %c0_73] : memref<6x128xf32, #tpu.memory_space<vmem>>, vector<4x128xf32>
    %72 = arith.truncf %71 : vector<4x128xf32> to vector<4x128xbf16>
    %c0_74 = arith.constant 0 : index
    %c1_75 = arith.constant 1 : index
    %c0_76 = arith.constant 0 : index
    %c0_77 = arith.constant 0 : index
    %73 = vector.load %arg6[%c0_74, %c1_75, %c0_76, %c0_77] : memref<1x3x128x128xbf16, #tpu.memory_space<vmem>>, vector<1x1x128x128xbf16>
    %74 = vector.shape_cast %73 : vector<1x1x128x128xbf16> to vector<128x128xbf16>
    %cst_78 = arith.constant dense<0.000000e+00> : vector<4x128xf32>
    %75 = tpu.matmul %72, %74, %cst_78 {dimension_numbers = #tpu.dot_dimension_numbers<[1], [0], [0], [1], [0, 0, 1, 1], [], []>} : vector<4x128xbf16>, vector<128x128xbf16>, vector<4x128xf32> -> vector<4x128xf32>
    %76 = arith.addf %70, %75 : vector<4x128xf32>
    %c2_79 = arith.constant 2 : index
    %c0_80 = arith.constant 0 : index
    %77 = vector.load %arg10[%c2_79, %c0_80] : memref<6x128xf32, #tpu.memory_space<vmem>>, vector<4x128xf32>
    %78 = arith.truncf %77 : vector<4x128xf32> to vector<4x128xbf16>
    %c0_81 = arith.constant 0 : index
    %c2_82 = arith.constant 2 : index
    %c0_83 = arith.constant 0 : index
    %c0_84 = arith.constant 0 : index
    %79 = vector.load %arg6[%c0_81, %c2_82, %c0_83, %c0_84] : memref<1x3x128x128xbf16, #tpu.memory_space<vmem>>, vector<1x1x128x128xbf16>
    %80 = vector.shape_cast %79 : vector<1x1x128x128xbf16> to vector<128x128xbf16>
    %cst_85 = arith.constant dense<0.000000e+00> : vector<4x128xf32>
    %81 = tpu.matmul %78, %80, %cst_85 {dimension_numbers = #tpu.dot_dimension_numbers<[1], [0], [0], [1], [0, 0, 1, 1], [], []>} : vector<4x128xbf16>, vector<128x128xbf16>, vector<4x128xf32> -> vector<4x128xf32>
    %82 = arith.addf %76, %81 : vector<4x128xf32>
    %c0_86 = arith.constant 0 : index
    %c0_87 = arith.constant 0 : index
    %c0_88 = arith.constant 0 : index
    %83 = vector.load %arg7[%c0_86, %c0_87, %c0_88] : memref<1x1x128xf32, #tpu.memory_space<vmem>>, vector<1x1x128xf32>
    %84 = vector.shape_cast %83 : vector<1x1x128xf32> to vector<1x128xf32>
    %85 = vector.broadcast %84 : vector<1x128xf32> to vector<4x128xf32>
    %86 = arith.addf %82, %85 : vector<4x128xf32>
    %c0_89 = arith.constant 0 : index
    %c1_90 = arith.constant 1 : index
    %c0_91 = arith.constant 0 : index
    %87 = vector.load %arg9[%c0_89, %c1_90, %c0_91] : memref<1x6x128xf32, #tpu.memory_space<vmem>>, vector<1x4x128xf32>
    %88 = vector.shape_cast %87 : vector<1x4x128xf32> to vector<4x128xf32>
    %89 = arith.addf %86, %88 : vector<4x128xf32>
    %c0_92 = arith.constant 0 : index
    %c1_93 = arith.constant 1 : index
    %c0_94 = arith.constant 0 : index
    %90 = vector.load %arg9[%c0_92, %c1_93, %c0_94] : memref<1x6x128xf32, #tpu.memory_space<vmem>>, vector<1x4x128xf32>
    %91 = vector.shape_cast %90 : vector<1x4x128xf32> to vector<4x128xf32>
    %92 = vector.shape_cast %89 : vector<4x128xf32> to vector<1x4x128xf32>
    tpu.vector_store %arg9[%c0_92, %c1_93, %c0_94], %92 {strides = array<i32>} : memref<1x6x128xf32, #tpu.memory_space<vmem>>, vector<1x4x128xf32>,
    return
  }
  func.func @transform_0(%arg0: i32) -> (i32, i32, i32, i32) {
    %c0_i32 = arith.constant 0 : i32
    %c0_i32_0 = arith.constant 0 : i32
    %c0_i32_1 = arith.constant 0 : i32
    %c0_i32_2 = arith.constant 0 : i32
    return %arg0, %c0_i32, %c0_i32_0, %c0_i32_1 : i32, i32, i32, i32
  }
  func.func @transform_1(%arg0: i32) -> (i32, i32, i32) {
    %c0_i32 = arith.constant 0 : i32
    %c0_i32_0 = arith.constant 0 : i32
    %c0_i32_1 = arith.constant 0 : i32
    %c0_i32_2 = arith.constant 0 : i32
    return %c0_i32, %c0_i32_0, %c0_i32_1 : i32, i32, i32
  }
  func.func @transform_2(%arg0: i32) -> (i32, i32) {
    %c0_i32 = arith.constant 0 : i32
    %c0_i32_0 = arith.constant 0 : i32
    %c0_i32_1 = arith.constant 0 : i32
    return %c0_i32, %c0_i32_0 : i32, i32
  }
  func.func @transform_3(%arg0: i32) -> (i32, i32, i32, i32) {
    %c0_i32 = arith.constant 0 : i32
    %c0_i32_0 = arith.constant 0 : i32
    %c0_i32_1 = arith.constant 0 : i32
    %c0_i32_2 = arith.constant 0 : i32
    %c0_i32_3 = arith.constant 0 : i32
    return %c0_i32, %c0_i32_0, %c0_i32_1, %c0_i32_2 : i32, i32, i32, i32
  }
  func.func @transform_4(%arg0: i32) -> (i32, i32, i32) {
    %c0_i32 = arith.constant 0 : i32
    %c0_i32_0 = arith.constant 0 : i32
    %c0_i32_1 = arith.constant 0 : i32
    %c0_i32_2 = arith.constant 0 : i32
    return %c0_i32, %c0_i32_0, %c0_i32_1 : i32, i32, i32
  }
  func.func @transform_5(%arg0: i32) -> (i32, i32, i32, i32) {
    %c0_i32 = arith.constant 0 : i32
    %c0_i32_0 = arith.constant 0 : i32
    %c0_i32_1 = arith.constant 0 : i32
    %c0_i32_2 = arith.constant 0 : i32
    %c0_i32_3 = arith.constant 0 : i32
    return %c0_i32, %c0_i32_0, %c0_i32_1, %c0_i32_2 : i32, i32, i32, i32
  }
  func.func @transform_6(%arg0: i32) -> (i32, i32, i32) {
    %c0_i32 = arith.constant 0 : i32
    %c0_i32_0 = arith.constant 0 : i32
    %c0_i32_1 = arith.constant 0 : i32
    %c0_i32_2 = arith.constant 0 : i32
    return %c0_i32, %c0_i32_0, %c0_i32_1 : i32, i32, i32
  }
  func.func @transform_7(%arg0: i32) -> i32 {
    %c0_i32 = arith.constant 0 : i32
    %c0_i32_0 = arith.constant 0 : i32
    return %c0_i32 : i32
  }
  func.func @transform_8(%arg0: i32) -> (i32, i32, i32) {
    %c0_i32 = arith.constant 0 : i32
    %c0_i32_0 = arith.constant 0 : i32
    %c0_i32_1 = arith.constant 0 : i32
    return %arg0, %c0_i32, %c0_i32_0 : i32, i32, i32
  }
}

module attributes {stable_mosaic.version = 11 : i64} {
  func.func @kernel(%arg0: i32, %arg1: memref<1x2x3x128xbf16, #tpu.memory_space<vmem>>, %arg2: memref<3x128x64xbf16, #tpu.memory_space<vmem>>, %arg3: memref<1x64xf32, #tpu.memory_space<vmem>>, %arg4: memref<1x3x64x64xbf16, #tpu.memory_space<vmem>>, %arg5: memref<1x1x64xf32, #tpu.memory_space<vmem>>, %arg6: memref<1x3x64x64xbf16, #tpu.memory_space<vmem>>, %arg7: memref<1x1x64xf32, #tpu.memory_space<vmem>>, %arg8: memref<2xf32, #tpu.memory_space<smem>>, %arg9: memref<1x4x64xf32, #tpu.memory_space<vmem>>, %arg10: memref<4x64xf32, #tpu.memory_space<vmem>>) attributes {dimension_semantics = [#tpu.dimension_semantics<parallel>], iteration_bounds = array<i64: 2>, scalar_prefetch = 0 : i64, scratch_operands = 1 : i64, tpu.core_type = #tpu.core_type<tc>, window_params = [{transform_indices = @transform_0, window_bounds = array<i64: 1, 2, 3, 128>}, {pipeline_mode = #tpu.pipeline_mode<synchronous>, transform_indices = @transform_1, window_bounds = array<i64: 3, 128, 64>}, {pipeline_mode = #tpu.pipeline_mode<synchronous>, transform_indices = @transform_2, window_bounds = array<i64: 1, 64>}, {pipeline_mode = #tpu.pipeline_mode<synchronous>, transform_indices = @transform_3, window_bounds = array<i64: 1, 3, 64, 64>}, {pipeline_mode = #tpu.pipeline_mode<synchronous>, transform_indices = @transform_4, window_bounds = array<i64: 1, 1, 64>}, {pipeline_mode = #tpu.pipeline_mode<synchronous>, transform_indices = @transform_5, window_bounds = array<i64: 1, 3, 64, 64>}, {pipeline_mode = #tpu.pipeline_mode<synchronous>, transform_indices = @transform_6, window_bounds = array<i64: 1, 1, 64>}, {transform_indices = @transform_7, window_bounds = array<i64: 2>}, {transform_indices = @transform_8, window_bounds = array<i64: 1, 4, 64>}]} {
    %cst = arith.constant 0.000000e+00 : f32
    %0 = vector.broadcast %cst : f32 to vector<4x64xf32>
    %c0 = arith.constant 0 : index
    %c0_0 = arith.constant 0 : index
    %c0_1 = arith.constant 0 : index
    %1 = vector.load %arg9[%c0, %c0_0, %c0_1] : memref<1x4x64xf32, #tpu.memory_space<vmem>>, vector<1x4x64xf32>
    %2 = vector.shape_cast %1 : vector<1x4x64xf32> to vector<4x64xf32>
    %3 = vector.shape_cast %0 : vector<4x64xf32> to vector<1x4x64xf32>
    tpu.vector_store %arg9[%c0, %c0_0, %c0_1], %3 {strides = array<i32>} : memref<1x4x64xf32, #tpu.memory_space<vmem>>, vector<1x4x64xf32>,
    %cst_2 = arith.constant 0.000000e+00 : f32
    %4 = vector.broadcast %cst_2 : f32 to vector<4x64xf32>
    %c0_3 = arith.constant 0 : index
    %c0_4 = arith.constant 0 : index
    %5 = vector.load %arg10[%c0_3, %c0_4] : memref<4x64xf32, #tpu.memory_space<vmem>>, vector<4x64xf32>
    tpu.vector_store %arg10[%c0_3, %c0_4], %4 {strides = array<i32>} : memref<4x64xf32, #tpu.memory_space<vmem>>, vector<4x64xf32>,
    %c0_5 = arith.constant 0 : index
    %c0_6 = arith.constant 0 : index
    %c0_7 = arith.constant 0 : index
    %c0_8 = arith.constant 0 : index
    %6 = vector.load %arg1[%c0_5, %c0_6, %c0_7, %c0_8] : memref<1x2x3x128xbf16, #tpu.memory_space<vmem>>, vector<1x1x2x128xbf16>
    %7 = vector.shape_cast %6 : vector<1x1x2x128xbf16> to vector<2x128xbf16>
    %c0_9 = arith.constant 0 : index
    %c0_10 = arith.constant 0 : index
    %c0_11 = arith.constant 0 : index
    %8 = vector.load %arg2[%c0_9, %c0_10, %c0_11] : memref<3x128x64xbf16, #tpu.memory_space<vmem>>, vector<1x128x64xbf16>
    %9 = vector.shape_cast %8 : vector<1x128x64xbf16> to vector<128x64xbf16>
    %cst_12 = arith.constant dense<0.000000e+00> : vector<2x64xf32>
    %10 = tpu.matmul %7, %9, %cst_12 {dimension_numbers = #tpu.dot_dimension_numbers<[1], [0], [0], [1], [0, 0, 1, 1], [], []>} : vector<2x128xbf16>, vector<128x64xbf16>, vector<2x64xf32> -> vector<2x64xf32>
    %c0_13 = arith.constant 0 : index
    %c1 = arith.constant 1 : index
    %c0_14 = arith.constant 0 : index
    %c0_15 = arith.constant 0 : index
    %11 = vector.load %arg1[%c0_13, %c1, %c0_14, %c0_15] : memref<1x2x3x128xbf16, #tpu.memory_space<vmem>>, vector<1x1x2x128xbf16>
    %12 = vector.shape_cast %11 : vector<1x1x2x128xbf16> to vector<2x128xbf16>
    %c1_16 = arith.constant 1 : index
    %c0_17 = arith.constant 0 : index
    %c0_18 = arith.constant 0 : index
    %13 = vector.load %arg2[%c1_16, %c0_17, %c0_18] : memref<3x128x64xbf16, #tpu.memory_space<vmem>>, vector<1x128x64xbf16>
    %14 = vector.shape_cast %13 : vector<1x128x64xbf16> to vector<128x64xbf16>
    %cst_19 = arith.constant dense<0.000000e+00> : vector<2x64xf32>
    %15 = tpu.matmul %12, %14, %cst_19 {dimension_numbers = #tpu.dot_dimension_numbers<[1], [0], [0], [1], [0, 0, 1, 1], [], []>} : vector<2x128xbf16>, vector<128x64xbf16>, vector<2x64xf32> -> vector<2x64xf32>
    %16 = arith.addf %10, %15 : vector<2x64xf32>
    %c0_20 = arith.constant 0 : index
    %c0_21 = arith.constant 0 : index
    %c1_22 = arith.constant 1 : index
    %c0_23 = arith.constant 0 : index
    %17 = vector.load %arg1[%c0_20, %c0_21, %c1_22, %c0_23] : memref<1x2x3x128xbf16, #tpu.memory_space<vmem>>, vector<1x1x2x128xbf16>
    %18 = vector.shape_cast %17 : vector<1x1x2x128xbf16> to vector<2x128xbf16>
    %c2 = arith.constant 2 : index
    %c0_24 = arith.constant 0 : index
    %c0_25 = arith.constant 0 : index
    %19 = vector.load %arg2[%c2, %c0_24, %c0_25] : memref<3x128x64xbf16, #tpu.memory_space<vmem>>, vector<1x128x64xbf16>
    %20 = vector.shape_cast %19 : vector<1x128x64xbf16> to vector<128x64xbf16>
    %cst_26 = arith.constant dense<0.000000e+00> : vector<2x64xf32>
    %21 = tpu.matmul %18, %20, %cst_26 {dimension_numbers = #tpu.dot_dimension_numbers<[1], [0], [0], [1], [0, 0, 1, 1], [], []>} : vector<2x128xbf16>, vector<128x64xbf16>, vector<2x64xf32> -> vector<2x64xf32>
    %22 = arith.addf %16, %21 : vector<2x64xf32>
    %c0_27 = arith.constant 0 : index
    %c0_28 = arith.constant 0 : index
    %23 = vector.load %arg3[%c0_27, %c0_28] : memref<1x64xf32, #tpu.memory_space<vmem>>, vector<1x64xf32>
    %24 = vector.broadcast %23 : vector<1x64xf32> to vector<2x64xf32>
    %25 = arith.addf %22, %24 : vector<2x64xf32>
    %c0_29 = arith.constant 0 : index
    %26 = memref.load %arg8[%c0_29] : memref<2xf32, #tpu.memory_space<smem>>
    %cst_30 = arith.constant 0.000000e+00 : f32
    %27 = vector.broadcast %cst_30 : f32 to vector<2x64xf32>
    %28 = arith.cmpf oge, %25, %27 : vector<2x64xf32>
    %29 = vector.broadcast %26 : f32 to vector<2x64xf32>
    %30 = arith.mulf %29, %25 : vector<2x64xf32>
    %31 = arith.select %28, %25, %30 : vector<2x64xi1>, vector<2x64xf32>
    %c0_31 = arith.constant 0 : index
    %c1_32 = arith.constant 1 : index
    %c0_33 = arith.constant 0 : index
    %32 = vector.load %arg9[%c0_31, %c1_32, %c0_33] : memref<1x4x64xf32, #tpu.memory_space<vmem>>, vector<1x2x64xf32>
    %33 = vector.shape_cast %32 : vector<1x2x64xf32> to vector<2x64xf32>
    %34 = vector.shape_cast %31 : vector<2x64xf32> to vector<1x2x64xf32>
    tpu.vector_store %arg9[%c0_31, %c1_32, %c0_33], %34 {strides = array<i32>} : memref<1x4x64xf32, #tpu.memory_space<vmem>>, vector<1x2x64xf32>,
    %c0_34 = arith.constant 0 : index
    %c0_35 = arith.constant 0 : index
    %c0_36 = arith.constant 0 : index
    %35 = vector.load %arg9[%c0_34, %c0_35, %c0_36] : memref<1x4x64xf32, #tpu.memory_space<vmem>>, vector<1x2x64xf32>
    %36 = vector.shape_cast %35 : vector<1x2x64xf32> to vector<2x64xf32>
    %37 = arith.truncf %36 : vector<2x64xf32> to vector<2x64xbf16>
    %c0_37 = arith.constant 0 : index
    %c0_38 = arith.constant 0 : index
    %c0_39 = arith.constant 0 : index
    %c0_40 = arith.constant 0 : index
    %38 = vector.load %arg4[%c0_37, %c0_38, %c0_39, %c0_40] : memref<1x3x64x64xbf16, #tpu.memory_space<vmem>>, vector<1x1x64x64xbf16>
    %39 = vector.shape_cast %38 : vector<1x1x64x64xbf16> to vector<64x64xbf16>
    %cst_41 = arith.constant dense<0.000000e+00> : vector<2x64xf32>
    %40 = tpu.matmul %37, %39, %cst_41 {dimension_numbers = #tpu.dot_dimension_numbers<[1], [0], [0], [1], [0, 0, 1, 1], [], []>} : vector<2x64xbf16>, vector<64x64xbf16>, vector<2x64xf32> -> vector<2x64xf32>
    %c0_42 = arith.constant 0 : index
    %c1_43 = arith.constant 1 : index
    %c0_44 = arith.constant 0 : index
    %41 = vector.load %arg9[%c0_42, %c1_43, %c0_44] : memref<1x4x64xf32, #tpu.memory_space<vmem>>, vector<1x2x64xf32>
    %42 = vector.shape_cast %41 : vector<1x2x64xf32> to vector<2x64xf32>
    %43 = arith.truncf %42 : vector<2x64xf32> to vector<2x64xbf16>
    %c0_45 = arith.constant 0 : index
    %c1_46 = arith.constant 1 : index
    %c0_47 = arith.constant 0 : index
    %c0_48 = arith.constant 0 : index
    %44 = vector.load %arg4[%c0_45, %c1_46, %c0_47, %c0_48] : memref<1x3x64x64xbf16, #tpu.memory_space<vmem>>, vector<1x1x64x64xbf16>
    %45 = vector.shape_cast %44 : vector<1x1x64x64xbf16> to vector<64x64xbf16>
    %cst_49 = arith.constant dense<0.000000e+00> : vector<2x64xf32>
    %46 = tpu.matmul %43, %45, %cst_49 {dimension_numbers = #tpu.dot_dimension_numbers<[1], [0], [0], [1], [0, 0, 1, 1], [], []>} : vector<2x64xbf16>, vector<64x64xbf16>, vector<2x64xf32> -> vector<2x64xf32>
    %47 = arith.addf %40, %46 : vector<2x64xf32>
    %c0_50 = arith.constant 0 : index
    %c2_51 = arith.constant 2 : index
    %c0_52 = arith.constant 0 : index
    %48 = vector.load %arg9[%c0_50, %c2_51, %c0_52] : memref<1x4x64xf32, #tpu.memory_space<vmem>>, vector<1x2x64xf32>
    %49 = vector.shape_cast %48 : vector<1x2x64xf32> to vector<2x64xf32>
    %50 = arith.truncf %49 : vector<2x64xf32> to vector<2x64xbf16>
    %c0_53 = arith.constant 0 : index
    %c2_54 = arith.constant 2 : index
    %c0_55 = arith.constant 0 : index
    %c0_56 = arith.constant 0 : index
    %51 = vector.load %arg4[%c0_53, %c2_54, %c0_55, %c0_56] : memref<1x3x64x64xbf16, #tpu.memory_space<vmem>>, vector<1x1x64x64xbf16>
    %52 = vector.shape_cast %51 : vector<1x1x64x64xbf16> to vector<64x64xbf16>
    %cst_57 = arith.constant dense<0.000000e+00> : vector<2x64xf32>
    %53 = tpu.matmul %50, %52, %cst_57 {dimension_numbers = #tpu.dot_dimension_numbers<[1], [0], [0], [1], [0, 0, 1, 1], [], []>} : vector<2x64xbf16>, vector<64x64xbf16>, vector<2x64xf32> -> vector<2x64xf32>
    %54 = arith.addf %47, %53 : vector<2x64xf32>
    %c0_58 = arith.constant 0 : index
    %c0_59 = arith.constant 0 : index
    %c0_60 = arith.constant 0 : index
    %55 = vector.load %arg5[%c0_58, %c0_59, %c0_60] : memref<1x1x64xf32, #tpu.memory_space<vmem>>, vector<1x1x64xf32>
    %56 = vector.shape_cast %55 : vector<1x1x64xf32> to vector<1x64xf32>
    %57 = vector.broadcast %56 : vector<1x64xf32> to vector<2x64xf32>
    %58 = arith.addf %54, %57 : vector<2x64xf32>
    %c1_61 = arith.constant 1 : index
    %59 = memref.load %arg8[%c1_61] : memref<2xf32, #tpu.memory_space<smem>>
    %cst_62 = arith.constant 0.000000e+00 : f32
    %60 = vector.broadcast %cst_62 : f32 to vector<2x64xf32>
    %61 = arith.cmpf oge, %58, %60 : vector<2x64xf32>
    %62 = vector.broadcast %59 : f32 to vector<2x64xf32>
    %63 = arith.mulf %62, %58 : vector<2x64xf32>
    %64 = arith.select %61, %58, %63 : vector<2x64xi1>, vector<2x64xf32>
    %c1_63 = arith.constant 1 : index
    %c0_64 = arith.constant 0 : index
    %65 = vector.load %arg10[%c1_63, %c0_64] : memref<4x64xf32, #tpu.memory_space<vmem>>, vector<2x64xf32>
    tpu.vector_store %arg10[%c1_63, %c0_64], %64 {strides = array<i32>} : memref<4x64xf32, #tpu.memory_space<vmem>>, vector<2x64xf32>,
    %c0_65 = arith.constant 0 : index
    %c0_66 = arith.constant 0 : index
    %66 = vector.load %arg10[%c0_65, %c0_66] : memref<4x64xf32, #tpu.memory_space<vmem>>, vector<2x64xf32>
    %67 = arith.truncf %66 : vector<2x64xf32> to vector<2x64xbf16>
    %c0_67 = arith.constant 0 : index
    %c0_68 = arith.constant 0 : index
    %c0_69 = arith.constant 0 : index
    %c0_70 = arith.constant 0 : index
    %68 = vector.load %arg6[%c0_67, %c0_68, %c0_69, %c0_70] : memref<1x3x64x64xbf16, #tpu.memory_space<vmem>>, vector<1x1x64x64xbf16>
    %69 = vector.shape_cast %68 : vector<1x1x64x64xbf16> to vector<64x64xbf16>
    %cst_71 = arith.constant dense<0.000000e+00> : vector<2x64xf32>
    %70 = tpu.matmul %67, %69, %cst_71 {dimension_numbers = #tpu.dot_dimension_numbers<[1], [0], [0], [1], [0, 0, 1, 1], [], []>} : vector<2x64xbf16>, vector<64x64xbf16>, vector<2x64xf32> -> vector<2x64xf32>
    %c1_72 = arith.constant 1 : index
    %c0_73 = arith.constant 0 : index
    %71 = vector.load %arg10[%c1_72, %c0_73] : memref<4x64xf32, #tpu.memory_space<vmem>>, vector<2x64xf32>
    %72 = arith.truncf %71 : vector<2x64xf32> to vector<2x64xbf16>
    %c0_74 = arith.constant 0 : index
    %c1_75 = arith.constant 1 : index
    %c0_76 = arith.constant 0 : index
    %c0_77 = arith.constant 0 : index
    %73 = vector.load %arg6[%c0_74, %c1_75, %c0_76, %c0_77] : memref<1x3x64x64xbf16, #tpu.memory_space<vmem>>, vector<1x1x64x64xbf16>
    %74 = vector.shape_cast %73 : vector<1x1x64x64xbf16> to vector<64x64xbf16>
    %cst_78 = arith.constant dense<0.000000e+00> : vector<2x64xf32>
    %75 = tpu.matmul %72, %74, %cst_78 {dimension_numbers = #tpu.dot_dimension_numbers<[1], [0], [0], [1], [0, 0, 1, 1], [], []>} : vector<2x64xbf16>, vector<64x64xbf16>, vector<2x64xf32> -> vector<2x64xf32>
    %76 = arith.addf %70, %75 : vector<2x64xf32>
    %c2_79 = arith.constant 2 : index
    %c0_80 = arith.constant 0 : index
    %77 = vector.load %arg10[%c2_79, %c0_80] : memref<4x64xf32, #tpu.memory_space<vmem>>, vector<2x64xf32>
    %78 = arith.truncf %77 : vector<2x64xf32> to vector<2x64xbf16>
    %c0_81 = arith.constant 0 : index
    %c2_82 = arith.constant 2 : index
    %c0_83 = arith.constant 0 : index
    %c0_84 = arith.constant 0 : index
    %79 = vector.load %arg6[%c0_81, %c2_82, %c0_83, %c0_84] : memref<1x3x64x64xbf16, #tpu.memory_space<vmem>>, vector<1x1x64x64xbf16>
    %80 = vector.shape_cast %79 : vector<1x1x64x64xbf16> to vector<64x64xbf16>
    %cst_85 = arith.constant dense<0.000000e+00> : vector<2x64xf32>
    %81 = tpu.matmul %78, %80, %cst_85 {dimension_numbers = #tpu.dot_dimension_numbers<[1], [0], [0], [1], [0, 0, 1, 1], [], []>} : vector<2x64xbf16>, vector<64x64xbf16>, vector<2x64xf32> -> vector<2x64xf32>
    %82 = arith.addf %76, %81 : vector<2x64xf32>
    %c0_86 = arith.constant 0 : index
    %c0_87 = arith.constant 0 : index
    %c0_88 = arith.constant 0 : index
    %83 = vector.load %arg7[%c0_86, %c0_87, %c0_88] : memref<1x1x64xf32, #tpu.memory_space<vmem>>, vector<1x1x64xf32>
    %84 = vector.shape_cast %83 : vector<1x1x64xf32> to vector<1x64xf32>
    %85 = vector.broadcast %84 : vector<1x64xf32> to vector<2x64xf32>
    %86 = arith.addf %82, %85 : vector<2x64xf32>
    %c0_89 = arith.constant 0 : index
    %c1_90 = arith.constant 1 : index
    %c0_91 = arith.constant 0 : index
    %87 = vector.load %arg9[%c0_89, %c1_90, %c0_91] : memref<1x4x64xf32, #tpu.memory_space<vmem>>, vector<1x2x64xf32>
    %88 = vector.shape_cast %87 : vector<1x2x64xf32> to vector<2x64xf32>
    %89 = arith.addf %86, %88 : vector<2x64xf32>
    %c0_92 = arith.constant 0 : index
    %c1_93 = arith.constant 1 : index
    %c0_94 = arith.constant 0 : index
    %90 = vector.load %arg9[%c0_92, %c1_93, %c0_94] : memref<1x4x64xf32, #tpu.memory_space<vmem>>, vector<1x2x64xf32>
    %91 = vector.shape_cast %90 : vector<1x2x64xf32> to vector<2x64xf32>
    %92 = vector.shape_cast %89 : vector<2x64xf32> to vector<1x2x64xf32>
    tpu.vector_store %arg9[%c0_92, %c1_93, %c0_94], %92 {strides = array<i32>} : memref<1x4x64xf32, #tpu.memory_space<vmem>>, vector<1x2x64xf32>,
    return
  }
  func.func @transform_0(%arg0: i32) -> (i32, i32, i32, i32) {
    %c0_i32 = arith.constant 0 : i32
    %c0_i32_0 = arith.constant 0 : i32
    %c0_i32_1 = arith.constant 0 : i32
    %c0_i32_2 = arith.constant 0 : i32
    return %arg0, %c0_i32, %c0_i32_0, %c0_i32_1 : i32, i32, i32, i32
  }
  func.func @transform_1(%arg0: i32) -> (i32, i32, i32) {
    %c0_i32 = arith.constant 0 : i32
    %c0_i32_0 = arith.constant 0 : i32
    %c0_i32_1 = arith.constant 0 : i32
    %c0_i32_2 = arith.constant 0 : i32
    return %c0_i32, %c0_i32_0, %c0_i32_1 : i32, i32, i32
  }
  func.func @transform_2(%arg0: i32) -> (i32, i32) {
    %c0_i32 = arith.constant 0 : i32
    %c0_i32_0 = arith.constant 0 : i32
    %c0_i32_1 = arith.constant 0 : i32
    return %c0_i32, %c0_i32_0 : i32, i32
  }
  func.func @transform_3(%arg0: i32) -> (i32, i32, i32, i32) {
    %c0_i32 = arith.constant 0 : i32
    %c0_i32_0 = arith.constant 0 : i32
    %c0_i32_1 = arith.constant 0 : i32
    %c0_i32_2 = arith.constant 0 : i32
    %c0_i32_3 = arith.constant 0 : i32
    return %c0_i32, %c0_i32_0, %c0_i32_1, %c0_i32_2 : i32, i32, i32, i32
  }
  func.func @transform_4(%arg0: i32) -> (i32, i32, i32) {
    %c0_i32 = arith.constant 0 : i32
    %c0_i32_0 = arith.constant 0 : i32
    %c0_i32_1 = arith.constant 0 : i32
    %c0_i32_2 = arith.constant 0 : i32
    return %c0_i32, %c0_i32_0, %c0_i32_1 : i32, i32, i32
  }
  func.func @transform_5(%arg0: i32) -> (i32, i32, i32, i32) {
    %c0_i32 = arith.constant 0 : i32
    %c0_i32_0 = arith.constant 0 : i32
    %c0_i32_1 = arith.constant 0 : i32
    %c0_i32_2 = arith.constant 0 : i32
    %c0_i32_3 = arith.constant 0 : i32
    return %c0_i32, %c0_i32_0, %c0_i32_1, %c0_i32_2 : i32, i32, i32, i32
  }
  func.func @transform_6(%arg0: i32) -> (i32, i32, i32) {
    %c0_i32 = arith.constant 0 : i32
    %c0_i32_0 = arith.constant 0 : i32
    %c0_i32_1 = arith.constant 0 : i32
    %c0_i32_2 = arith.constant 0 : i32
    return %c0_i32, %c0_i32_0, %c0_i32_1 : i32, i32, i32
  }
  func.func @transform_7(%arg0: i32) -> i32 {
    %c0_i32 = arith.constant 0 : i32
    %c0_i32_0 = arith.constant 0 : i32
    return %c0_i32 : i32
  }
  func.func @transform_8(%arg0: i32) -> (i32, i32, i32) {
    %c0_i32 = arith.constant 0 : i32
    %c0_i32_0 = arith.constant 0 : i32
    %c0_i32_1 = arith.constant 0 : i32
    return %arg0, %c0_i32, %c0_i32_0 : i32, i32, i32
  }
}

module attributes {stable_mosaic.version = 11 : i64} {
  func.func @kernel(%arg0: i32, %arg1: memref<1x2x2x64xbf16, #tpu.memory_space<vmem>>, %arg2: memref<3x64x32xbf16, #tpu.memory_space<vmem>>, %arg3: memref<1x32xf32, #tpu.memory_space<vmem>>, %arg4: memref<1x3x32x32xbf16, #tpu.memory_space<vmem>>, %arg5: memref<1x1x32xf32, #tpu.memory_space<vmem>>, %arg6: memref<1x3x32x32xbf16, #tpu.memory_space<vmem>>, %arg7: memref<1x1x32xf32, #tpu.memory_space<vmem>>, %arg8: memref<2xf32, #tpu.memory_space<smem>>, %arg9: memref<1x3x32xf32, #tpu.memory_space<vmem>>, %arg10: memref<3x32xf32, #tpu.memory_space<vmem>>) attributes {dimension_semantics = [#tpu.dimension_semantics<parallel>], iteration_bounds = array<i64: 2>, scalar_prefetch = 0 : i64, scratch_operands = 1 : i64, tpu.core_type = #tpu.core_type<tc>, window_params = [{transform_indices = @transform_0, window_bounds = array<i64: 1, 2, 2, 64>}, {pipeline_mode = #tpu.pipeline_mode<synchronous>, transform_indices = @transform_1, window_bounds = array<i64: 3, 64, 32>}, {pipeline_mode = #tpu.pipeline_mode<synchronous>, transform_indices = @transform_2, window_bounds = array<i64: 1, 32>}, {pipeline_mode = #tpu.pipeline_mode<synchronous>, transform_indices = @transform_3, window_bounds = array<i64: 1, 3, 32, 32>}, {pipeline_mode = #tpu.pipeline_mode<synchronous>, transform_indices = @transform_4, window_bounds = array<i64: 1, 1, 32>}, {pipeline_mode = #tpu.pipeline_mode<synchronous>, transform_indices = @transform_5, window_bounds = array<i64: 1, 3, 32, 32>}, {pipeline_mode = #tpu.pipeline_mode<synchronous>, transform_indices = @transform_6, window_bounds = array<i64: 1, 1, 32>}, {transform_indices = @transform_7, window_bounds = array<i64: 2>}, {transform_indices = @transform_8, window_bounds = array<i64: 1, 3, 32>}]} {
    %cst = arith.constant 0.000000e+00 : f32
    %0 = vector.broadcast %cst : f32 to vector<3x32xf32>
    %c0 = arith.constant 0 : index
    %c0_0 = arith.constant 0 : index
    %c0_1 = arith.constant 0 : index
    %1 = vector.load %arg9[%c0, %c0_0, %c0_1] : memref<1x3x32xf32, #tpu.memory_space<vmem>>, vector<1x3x32xf32>
    %2 = vector.shape_cast %1 : vector<1x3x32xf32> to vector<3x32xf32>
    %3 = vector.shape_cast %0 : vector<3x32xf32> to vector<1x3x32xf32>
    tpu.vector_store %arg9[%c0, %c0_0, %c0_1], %3 {strides = array<i32>} : memref<1x3x32xf32, #tpu.memory_space<vmem>>, vector<1x3x32xf32>,
    %cst_2 = arith.constant 0.000000e+00 : f32
    %4 = vector.broadcast %cst_2 : f32 to vector<3x32xf32>
    %c0_3 = arith.constant 0 : index
    %c0_4 = arith.constant 0 : index
    %5 = vector.load %arg10[%c0_3, %c0_4] : memref<3x32xf32, #tpu.memory_space<vmem>>, vector<3x32xf32>
    tpu.vector_store %arg10[%c0_3, %c0_4], %4 {strides = array<i32>} : memref<3x32xf32, #tpu.memory_space<vmem>>, vector<3x32xf32>,
    %c0_5 = arith.constant 0 : index
    %c0_6 = arith.constant 0 : index
    %c0_7 = arith.constant 0 : index
    %c0_8 = arith.constant 0 : index
    %6 = vector.load %arg1[%c0_5, %c0_6, %c0_7, %c0_8] : memref<1x2x2x64xbf16, #tpu.memory_space<vmem>>, vector<1x1x1x64xbf16>
    %7 = vector.shape_cast %6 : vector<1x1x1x64xbf16> to vector<1x64xbf16>
    %c0_9 = arith.constant 0 : index
    %c0_10 = arith.constant 0 : index
    %c0_11 = arith.constant 0 : index
    %8 = vector.load %arg2[%c0_9, %c0_10, %c0_11] : memref<3x64x32xbf16, #tpu.memory_space<vmem>>, vector<1x64x32xbf16>
    %9 = vector.shape_cast %8 : vector<1x64x32xbf16> to vector<64x32xbf16>
    %cst_12 = arith.constant dense<0.000000e+00> : vector<1x32xf32>
    %10 = tpu.matmul %7, %9, %cst_12 {dimension_numbers = #tpu.dot_dimension_numbers<[1], [0], [0], [1], [0, 0, 1, 1], [], []>} : vector<1x64xbf16>, vector<64x32xbf16>, vector<1x32xf32> -> vector<1x32xf32>
    %c0_13 = arith.constant 0 : index
    %c1 = arith.constant 1 : index
    %c0_14 = arith.constant 0 : index
    %c0_15 = arith.constant 0 : index
    %11 = vector.load %arg1[%c0_13, %c1, %c0_14, %c0_15] : memref<1x2x2x64xbf16, #tpu.memory_space<vmem>>, vector<1x1x1x64xbf16>
    %12 = vector.shape_cast %11 : vector<1x1x1x64xbf16> to vector<1x64xbf16>
    %c1_16 = arith.constant 1 : index
    %c0_17 = arith.constant 0 : index
    %c0_18 = arith.constant 0 : index
    %13 = vector.load %arg2[%c1_16, %c0_17, %c0_18] : memref<3x64x32xbf16, #tpu.memory_space<vmem>>, vector<1x64x32xbf16>
    %14 = vector.shape_cast %13 : vector<1x64x32xbf16> to vector<64x32xbf16>
    %cst_19 = arith.constant dense<0.000000e+00> : vector<1x32xf32>
    %15 = tpu.matmul %12, %14, %cst_19 {dimension_numbers = #tpu.dot_dimension_numbers<[1], [0], [0], [1], [0, 0, 1, 1], [], []>} : vector<1x64xbf16>, vector<64x32xbf16>, vector<1x32xf32> -> vector<1x32xf32>
    %16 = arith.addf %10, %15 : vector<1x32xf32>
    %c0_20 = arith.constant 0 : index
    %c0_21 = arith.constant 0 : index
    %c1_22 = arith.constant 1 : index
    %c0_23 = arith.constant 0 : index
    %17 = vector.load %arg1[%c0_20, %c0_21, %c1_22, %c0_23] : memref<1x2x2x64xbf16, #tpu.memory_space<vmem>>, vector<1x1x1x64xbf16>
    %18 = vector.shape_cast %17 : vector<1x1x1x64xbf16> to vector<1x64xbf16>
    %c2 = arith.constant 2 : index
    %c0_24 = arith.constant 0 : index
    %c0_25 = arith.constant 0 : index
    %19 = vector.load %arg2[%c2, %c0_24, %c0_25] : memref<3x64x32xbf16, #tpu.memory_space<vmem>>, vector<1x64x32xbf16>
    %20 = vector.shape_cast %19 : vector<1x64x32xbf16> to vector<64x32xbf16>
    %cst_26 = arith.constant dense<0.000000e+00> : vector<1x32xf32>
    %21 = tpu.matmul %18, %20, %cst_26 {dimension_numbers = #tpu.dot_dimension_numbers<[1], [0], [0], [1], [0, 0, 1, 1], [], []>} : vector<1x64xbf16>, vector<64x32xbf16>, vector<1x32xf32> -> vector<1x32xf32>
    %22 = arith.addf %16, %21 : vector<1x32xf32>
    %c0_27 = arith.constant 0 : index
    %c0_28 = arith.constant 0 : index
    %23 = vector.load %arg3[%c0_27, %c0_28] : memref<1x32xf32, #tpu.memory_space<vmem>>, vector<1x32xf32>
    %24 = arith.addf %22, %23 : vector<1x32xf32>
    %c0_29 = arith.constant 0 : index
    %25 = memref.load %arg8[%c0_29] : memref<2xf32, #tpu.memory_space<smem>>
    %cst_30 = arith.constant 0.000000e+00 : f32
    %26 = vector.broadcast %cst_30 : f32 to vector<1x32xf32>
    %27 = arith.cmpf oge, %24, %26 : vector<1x32xf32>
    %28 = vector.broadcast %25 : f32 to vector<1x32xf32>
    %29 = arith.mulf %28, %24 : vector<1x32xf32>
    %30 = arith.select %27, %24, %29 : vector<1x32xi1>, vector<1x32xf32>
    %c0_31 = arith.constant 0 : index
    %c1_32 = arith.constant 1 : index
    %c0_33 = arith.constant 0 : index
    %31 = vector.load %arg9[%c0_31, %c1_32, %c0_33] : memref<1x3x32xf32, #tpu.memory_space<vmem>>, vector<1x1x32xf32>
    %32 = vector.shape_cast %31 : vector<1x1x32xf32> to vector<1x32xf32>
    %33 = vector.shape_cast %30 : vector<1x32xf32> to vector<1x1x32xf32>
    tpu.vector_store %arg9[%c0_31, %c1_32, %c0_33], %33 {strides = array<i32>} : memref<1x3x32xf32, #tpu.memory_space<vmem>>, vector<1x1x32xf32>,
    %c0_34 = arith.constant 0 : index
    %c0_35 = arith.constant 0 : index
    %c0_36 = arith.constant 0 : index
    %34 = vector.load %arg9[%c0_34, %c0_35, %c0_36] : memref<1x3x32xf32, #tpu.memory_space<vmem>>, vector<1x1x32xf32>
    %35 = vector.shape_cast %34 : vector<1x1x32xf32> to vector<1x32xf32>
    %36 = arith.truncf %35 : vector<1x32xf32> to vector<1x32xbf16>
    %c0_37 = arith.constant 0 : index
    %c0_38 = arith.constant 0 : index
    %c0_39 = arith.constant 0 : index
    %c0_40 = arith.constant 0 : index
    %37 = vector.load %arg4[%c0_37, %c0_38, %c0_39, %c0_40] : memref<1x3x32x32xbf16, #tpu.memory_space<vmem>>, vector<1x1x32x32xbf16>
    %38 = vector.shape_cast %37 : vector<1x1x32x32xbf16> to vector<32x32xbf16>
    %cst_41 = arith.constant dense<0.000000e+00> : vector<1x32xf32>
    %39 = tpu.matmul %36, %38, %cst_41 {dimension_numbers = #tpu.dot_dimension_numbers<[1], [0], [0], [1], [0, 0, 1, 1], [], []>} : vector<1x32xbf16>, vector<32x32xbf16>, vector<1x32xf32> -> vector<1x32xf32>
    %c0_42 = arith.constant 0 : index
    %c1_43 = arith.constant 1 : index
    %c0_44 = arith.constant 0 : index
    %40 = vector.load %arg9[%c0_42, %c1_43, %c0_44] : memref<1x3x32xf32, #tpu.memory_space<vmem>>, vector<1x1x32xf32>
    %41 = vector.shape_cast %40 : vector<1x1x32xf32> to vector<1x32xf32>
    %42 = arith.truncf %41 : vector<1x32xf32> to vector<1x32xbf16>
    %c0_45 = arith.constant 0 : index
    %c1_46 = arith.constant 1 : index
    %c0_47 = arith.constant 0 : index
    %c0_48 = arith.constant 0 : index
    %43 = vector.load %arg4[%c0_45, %c1_46, %c0_47, %c0_48] : memref<1x3x32x32xbf16, #tpu.memory_space<vmem>>, vector<1x1x32x32xbf16>
    %44 = vector.shape_cast %43 : vector<1x1x32x32xbf16> to vector<32x32xbf16>
    %cst_49 = arith.constant dense<0.000000e+00> : vector<1x32xf32>
    %45 = tpu.matmul %42, %44, %cst_49 {dimension_numbers = #tpu.dot_dimension_numbers<[1], [0], [0], [1], [0, 0, 1, 1], [], []>} : vector<1x32xbf16>, vector<32x32xbf16>, vector<1x32xf32> -> vector<1x32xf32>
    %46 = arith.addf %39, %45 : vector<1x32xf32>
    %c0_50 = arith.constant 0 : index
    %c2_51 = arith.constant 2 : index
    %c0_52 = arith.constant 0 : index
    %47 = vector.load %arg9[%c0_50, %c2_51, %c0_52] : memref<1x3x32xf32, #tpu.memory_space<vmem>>, vector<1x1x32xf32>
    %48 = vector.shape_cast %47 : vector<1x1x32xf32> to vector<1x32xf32>
    %49 = arith.truncf %48 : vector<1x32xf32> to vector<1x32xbf16>
    %c0_53 = arith.constant 0 : index
    %c2_54 = arith.constant 2 : index
    %c0_55 = arith.constant 0 : index
    %c0_56 = arith.constant 0 : index
    %50 = vector.load %arg4[%c0_53, %c2_54, %c0_55, %c0_56] : memref<1x3x32x32xbf16, #tpu.memory_space<vmem>>, vector<1x1x32x32xbf16>
    %51 = vector.shape_cast %50 : vector<1x1x32x32xbf16> to vector<32x32xbf16>
    %cst_57 = arith.constant dense<0.000000e+00> : vector<1x32xf32>
    %52 = tpu.matmul %49, %51, %cst_57 {dimension_numbers = #tpu.dot_dimension_numbers<[1], [0], [0], [1], [0, 0, 1, 1], [], []>} : vector<1x32xbf16>, vector<32x32xbf16>, vector<1x32xf32> -> vector<1x32xf32>
    %53 = arith.addf %46, %52 : vector<1x32xf32>
    %c0_58 = arith.constant 0 : index
    %c0_59 = arith.constant 0 : index
    %c0_60 = arith.constant 0 : index
    %54 = vector.load %arg5[%c0_58, %c0_59, %c0_60] : memref<1x1x32xf32, #tpu.memory_space<vmem>>, vector<1x1x32xf32>
    %55 = vector.shape_cast %54 : vector<1x1x32xf32> to vector<1x32xf32>
    %56 = arith.addf %53, %55 : vector<1x32xf32>
    %c1_61 = arith.constant 1 : index
    %57 = memref.load %arg8[%c1_61] : memref<2xf32, #tpu.memory_space<smem>>
    %cst_62 = arith.constant 0.000000e+00 : f32
    %58 = vector.broadcast %cst_62 : f32 to vector<1x32xf32>
    %59 = arith.cmpf oge, %56, %58 : vector<1x32xf32>
    %60 = vector.broadcast %57 : f32 to vector<1x32xf32>
    %61 = arith.mulf %60, %56 : vector<1x32xf32>
    %62 = arith.select %59, %56, %61 : vector<1x32xi1>, vector<1x32xf32>
    %c1_63 = arith.constant 1 : index
    %c0_64 = arith.constant 0 : index
    %63 = vector.load %arg10[%c1_63, %c0_64] : memref<3x32xf32, #tpu.memory_space<vmem>>, vector<1x32xf32>
    tpu.vector_store %arg10[%c1_63, %c0_64], %62 {strides = array<i32>} : memref<3x32xf32, #tpu.memory_space<vmem>>, vector<1x32xf32>,
    %c0_65 = arith.constant 0 : index
    %c0_66 = arith.constant 0 : index
    %64 = vector.load %arg10[%c0_65, %c0_66] : memref<3x32xf32, #tpu.memory_space<vmem>>, vector<1x32xf32>
    %65 = arith.truncf %64 : vector<1x32xf32> to vector<1x32xbf16>
    %c0_67 = arith.constant 0 : index
    %c0_68 = arith.constant 0 : index
    %c0_69 = arith.constant 0 : index
    %c0_70 = arith.constant 0 : index
    %66 = vector.load %arg6[%c0_67, %c0_68, %c0_69, %c0_70] : memref<1x3x32x32xbf16, #tpu.memory_space<vmem>>, vector<1x1x32x32xbf16>
    %67 = vector.shape_cast %66 : vector<1x1x32x32xbf16> to vector<32x32xbf16>
    %cst_71 = arith.constant dense<0.000000e+00> : vector<1x32xf32>
    %68 = tpu.matmul %65, %67, %cst_71 {dimension_numbers = #tpu.dot_dimension_numbers<[1], [0], [0], [1], [0, 0, 1, 1], [], []>} : vector<1x32xbf16>, vector<32x32xbf16>, vector<1x32xf32> -> vector<1x32xf32>
    %c1_72 = arith.constant 1 : index
    %c0_73 = arith.constant 0 : index
    %69 = vector.load %arg10[%c1_72, %c0_73] : memref<3x32xf32, #tpu.memory_space<vmem>>, vector<1x32xf32>
    %70 = arith.truncf %69 : vector<1x32xf32> to vector<1x32xbf16>
    %c0_74 = arith.constant 0 : index
    %c1_75 = arith.constant 1 : index
    %c0_76 = arith.constant 0 : index
    %c0_77 = arith.constant 0 : index
    %71 = vector.load %arg6[%c0_74, %c1_75, %c0_76, %c0_77] : memref<1x3x32x32xbf16, #tpu.memory_space<vmem>>, vector<1x1x32x32xbf16>
    %72 = vector.shape_cast %71 : vector<1x1x32x32xbf16> to vector<32x32xbf16>
    %cst_78 = arith.constant dense<0.000000e+00> : vector<1x32xf32>
    %73 = tpu.matmul %70, %72, %cst_78 {dimension_numbers = #tpu.dot_dimension_numbers<[1], [0], [0], [1], [0, 0, 1, 1], [], []>} : vector<1x32xbf16>, vector<32x32xbf16>, vector<1x32xf32> -> vector<1x32xf32>
    %74 = arith.addf %68, %73 : vector<1x32xf32>
    %c2_79 = arith.constant 2 : index
    %c0_80 = arith.constant 0 : index
    %75 = vector.load %arg10[%c2_79, %c0_80] : memref<3x32xf32, #tpu.memory_space<vmem>>, vector<1x32xf32>
    %76 = arith.truncf %75 : vector<1x32xf32> to vector<1x32xbf16>
    %c0_81 = arith.constant 0 : index
    %c2_82 = arith.constant 2 : index
    %c0_83 = arith.constant 0 : index
    %c0_84 = arith.constant 0 : index
    %77 = vector.load %arg6[%c0_81, %c2_82, %c0_83, %c0_84] : memref<1x3x32x32xbf16, #tpu.memory_space<vmem>>, vector<1x1x32x32xbf16>
    %78 = vector.shape_cast %77 : vector<1x1x32x32xbf16> to vector<32x32xbf16>
    %cst_85 = arith.constant dense<0.000000e+00> : vector<1x32xf32>
    %79 = tpu.matmul %76, %78, %cst_85 {dimension_numbers = #tpu.dot_dimension_numbers<[1], [0], [0], [1], [0, 0, 1, 1], [], []>} : vector<1x32xbf16>, vector<32x32xbf16>, vector<1x32xf32> -> vector<1x32xf32>
    %80 = arith.addf %74, %79 : vector<1x32xf32>
    %c0_86 = arith.constant 0 : index
    %c0_87 = arith.constant 0 : index
    %c0_88 = arith.constant 0 : index
    %81 = vector.load %arg7[%c0_86, %c0_87, %c0_88] : memref<1x1x32xf32, #tpu.memory_space<vmem>>, vector<1x1x32xf32>
    %82 = vector.shape_cast %81 : vector<1x1x32xf32> to vector<1x32xf32>
    %83 = arith.addf %80, %82 : vector<1x32xf32>
    %c0_89 = arith.constant 0 : index
    %c1_90 = arith.constant 1 : index
    %c0_91 = arith.constant 0 : index
    %84 = vector.load %arg9[%c0_89, %c1_90, %c0_91] : memref<1x3x32xf32, #tpu.memory_space<vmem>>, vector<1x1x32xf32>
    %85 = vector.shape_cast %84 : vector<1x1x32xf32> to vector<1x32xf32>
    %86 = arith.addf %83, %85 : vector<1x32xf32>
    %c0_92 = arith.constant 0 : index
    %c1_93 = arith.constant 1 : index
    %c0_94 = arith.constant 0 : index
    %87 = vector.load %arg9[%c0_92, %c1_93, %c0_94] : memref<1x3x32xf32, #tpu.memory_space<vmem>>, vector<1x1x32xf32>
    %88 = vector.shape_cast %87 : vector<1x1x32xf32> to vector<1x32xf32>
    %89 = vector.shape_cast %86 : vector<1x32xf32> to vector<1x1x32xf32>
    tpu.vector_store %arg9[%c0_92, %c1_93, %c0_94], %89 {strides = array<i32>} : memref<1x3x32xf32, #tpu.memory_space<vmem>>, vector<1x1x32xf32>,
    return
  }
  func.func @transform_0(%arg0: i32) -> (i32, i32, i32, i32) {
    %c0_i32 = arith.constant 0 : i32
    %c0_i32_0 = arith.constant 0 : i32
    %c0_i32_1 = arith.constant 0 : i32
    %c0_i32_2 = arith.constant 0 : i32
    return %arg0, %c0_i32, %c0_i32_0, %c0_i32_1 : i32, i32, i32, i32
  }
  func.func @transform_1(%arg0: i32) -> (i32, i32, i32) {
    %c0_i32 = arith.constant 0 : i32
    %c0_i32_0 = arith.constant 0 : i32
    %c0_i32_1 = arith.constant 0 : i32
    %c0_i32_2 = arith.constant 0 : i32
    return %c0_i32, %c0_i32_0, %c0_i32_1 : i32, i32, i32
  }
  func.func @transform_2(%arg0: i32) -> (i32, i32) {
    %c0_i32 = arith.constant 0 : i32
    %c0_i32_0 = arith.constant 0 : i32
    %c0_i32_1 = arith.constant 0 : i32
    return %c0_i32, %c0_i32_0 : i32, i32
  }
  func.func @transform_3(%arg0: i32) -> (i32, i32, i32, i32) {
    %c0_i32 = arith.constant 0 : i32
    %c0_i32_0 = arith.constant 0 : i32
    %c0_i32_1 = arith.constant 0 : i32
    %c0_i32_2 = arith.constant 0 : i32
    %c0_i32_3 = arith.constant 0 : i32
    return %c0_i32, %c0_i32_0, %c0_i32_1, %c0_i32_2 : i32, i32, i32, i32
  }
  func.func @transform_4(%arg0: i32) -> (i32, i32, i32) {
    %c0_i32 = arith.constant 0 : i32
    %c0_i32_0 = arith.constant 0 : i32
    %c0_i32_1 = arith.constant 0 : i32
    %c0_i32_2 = arith.constant 0 : i32
    return %c0_i32, %c0_i32_0, %c0_i32_1 : i32, i32, i32
  }
  func.func @transform_5(%arg0: i32) -> (i32, i32, i32, i32) {
    %c0_i32 = arith.constant 0 : i32
    %c0_i32_0 = arith.constant 0 : i32
    %c0_i32_1 = arith.constant 0 : i32
    %c0_i32_2 = arith.constant 0 : i32
    %c0_i32_3 = arith.constant 0 : i32
    return %c0_i32, %c0_i32_0, %c0_i32_1, %c0_i32_2 : i32, i32, i32, i32
  }
  func.func @transform_6(%arg0: i32) -> (i32, i32, i32) {
    %c0_i32 = arith.constant 0 : i32
    %c0_i32_0 = arith.constant 0 : i32
    %c0_i32_1 = arith.constant 0 : i32
    %c0_i32_2 = arith.constant 0 : i32
    return %c0_i32, %c0_i32_0, %c0_i32_1 : i32, i32, i32
  }
  func.func @transform_7(%arg0: i32) -> i32 {
    %c0_i32 = arith.constant 0 : i32
    %c0_i32_0 = arith.constant 0 : i32
    return %c0_i32 : i32
  }
  func.func @transform_8(%arg0: i32) -> (i32, i32, i32) {
    %c0_i32 = arith.constant 0 : i32
    %c0_i32_0 = arith.constant 0 : i32
    %c0_i32_1 = arith.constant 0 : i32
    return %arg0, %c0_i32, %c0_i32_0 : i32, i32, i32
  }
}

</mosaic_0001>

<llo_original>
// kernel: _lambda_.8
$region0: #{_lambda_.8}
  #allocation0 [shape = 'u32[]', space=smem, size = 0x4, offset = 0x4, fixed_abs, tag = 'smem constant byte address 0x4 - core index']
  #allocation1 [shape = 'u32[144,128]{1,0:T(1,128)}', space=vmem, size = 0x12000, scoped, tag = 'internal scratch']
  #allocation2 [shape = 'f32[4,64]{1,0:T(4,128)}', space=vmem, size = 0x800, scoped, tag = 'scratch operand']
  %s0 = inlined_call_operand.vmem [shape: bf16[2,2,3,128], index: 0, kind: input, shape index: {}]
  %s1 = inlined_call_operand.vmem [shape: bf16[3,128,64], index: 1, kind: input, shape index: {}]
  %s2 = inlined_call_operand.vmem [shape: f32[1,64], index: 2, kind: input, shape index: {}]
  %s3 = inlined_call_operand.vmem [shape: bf16[1,3,64,64], index: 3, kind: input, shape index: {}]
  %s4 = inlined_call_operand.vmem [shape: f32[1,1,64], index: 4, kind: input, shape index: {}]
  %s5 = inlined_call_operand.vmem [shape: bf16[1,3,64,64], index: 5, kind: input, shape index: {}]
  %s6 = inlined_call_operand.vmem [shape: f32[1,1,64], index: 6, kind: input, shape index: {}]
  %s7 = inlined_call_operand.vmem [shape: f32[2], index: 7, kind: input, shape index: {}]
  %s8 = inlined_call_operand.vmem [shape: f32[2,4,64], index: 8, kind: output, shape index: {}]
  %s9 = sld [smem:[#allocation0]]
  $region69: #{_lambda_.8} parent=0
    _
  %s11 = ssub.s32 1, %s9
  %s12 = scalar_select 0, %s11, %s9
  $region1: #{_lambda_.8} parent=0
    #allocation3 [shape = 'u8[512]{0}', space=smem, size = 0x200, scoped, tag = 'input window, operand 7, single buffered']
    #allocation4 [shape = 's32[2]{0}', space=sflag, size = 0x8, scoped, tag = 'scoped memory for _lambda_.8']
    %13 = vsyncpa [#allocation4], 0
    loop: start=0, step=1, limit=4
    $region2: #{_lambda_.8} parent=1 // loop_pre_header
      _
    $region3: #{_lambda_.8} parent=1 // loop_header
      %s15 = sphi 0, %s19
      %p16 = scmp.ge.s32.totalorder %s15, 4
      %s25 = sphi 0, %s27
      %s28 = sphi 0, %s25
      %s29 = sphi 0, %s28
      %s45 = sphi 0, %s29
      %s49 = sphi 0, %s49
      %s51 = sphi 0, %s49
      %s52 = sphi 0, %s51
      %s66 = sphi 0, %s52
      %s70 = sphi 0, %s70
      %s72 = sphi 0, %s70
      %s73 = sphi 0, %s72
      %s87 = sphi 0, %s73
      %s91 = sphi 0, %s91
      %s93 = sphi 0, %s91
      %s94 = sphi 0, %s93
      %s108 = sphi 0, %s94
      %s112 = sphi 0, %s112
      %s114 = sphi 0, %s112
      %s115 = sphi 0, %s114
      %s129 = sphi 0, %s115
      %s133 = sphi 0, %s133
      %s135 = sphi 0, %s133
      %s136 = sphi 0, %s135
      %s150 = sphi 0, %s136
      %s154 = sphi 0, %s154
      %s156 = sphi 0, %s154
      %s157 = sphi 0, %s156
      %s171 = sphi 0, %s157
      %s175 = sphi 0, %s175
      %s177 = sphi 0, %s175
      %s178 = sphi 0, %s177
      %s192 = sphi 0, %s178
      %s198 = sphi 0, %s200
      %s201 = sphi 0, %s198
      %s202 = sphi 0, %s201
      %s218 = sphi 0, %s202
    $region4: #{_lambda_.8} parent=1 // loop_header_branch
      %18 = sbr.rel (%p16) target = $region8
    $region5: #{_lambda_.8} parent=1 // loop_body
      %s20 = ssub.s32 %s15, 1
      %s21 = ssub.s32 %s15, 2
      %s22 = sadd.s32 %s15, 1
      %s23 = ssub.s32 %s15, %s22
      %p24 = scmp.eq.s32.totalorder %s23, 0
      %s26 = sadd.s32 %s25, 1
      %s27 = scalar_select %p24, %s25, %s26
      %p30 = pneg %p24
      %p31 = scmp.eq.s32.totalorder %s15, 1
      %p32 = por %p30, %p31
      %p33 = scmp.ne.s32.totalorder %s25, %s28
      %p34 = scmp.eq.s32.totalorder %s15, 0
      %p35 = por %p33, %p34
      %p36 = scmp.ne.s32.totalorder %s25, %s28
      %p37 = scmp.eq.s32.totalorder %s20, 1
      %p38 = por %p36, %p37
      %p39 = scmp.ne.s32.totalorder %s28, %s29
      %p40 = scmp.eq.s32.totalorder %s20, 0
      %p41 = por %p39, %p40
      %p42 = scmp.ne.s32.totalorder %s28, %s29
      %p43 = scmp.eq.s32.totalorder %s21, 1
      %p44 = por %p42, %p43
      %p46 = scmp.ne.s32.totalorder %s29, %s45
      %p47 = scmp.eq.s32.totalorder %s21, 0
      %p48 = por %p46, %p47
      %s50 = sadd.s32 %s49, 1
      %p53 = scmp.eq.s32.totalorder %s15, 1
      %p54 = scmp.ne.s32.totalorder %s49, %s51
      %p55 = scmp.eq.s32.totalorder %s15, 0
      %p56 = por %p54, %p55
      %p57 = scmp.ne.s32.totalorder %s49, %s51
      %p58 = scmp.eq.s32.totalorder %s20, 1
      %p59 = por %p57, %p58
      %p60 = scmp.ne.s32.totalorder %s51, %s52
      %p61 = scmp.eq.s32.totalorder %s20, 0
      %p62 = por %p60, %p61
      %p63 = scmp.ne.s32.totalorder %s51, %s52
      %p64 = scmp.eq.s32.totalorder %s21, 1
      %p65 = por %p63, %p64
      %p67 = scmp.ne.s32.totalorder %s52, %s66
      %p68 = scmp.eq.s32.totalorder %s21, 0
      %p69 = por %p67, %p68
      %s71 = sadd.s32 %s70, 1
      %p74 = scmp.eq.s32.totalorder %s15, 1
      %p75 = scmp.ne.s32.totalorder %s70, %s72
      %p76 = scmp.eq.s32.totalorder %s15, 0
      %p77 = por %p75, %p76
      %p78 = scmp.ne.s32.totalorder %s70, %s72
      %p79 = scmp.eq.s32.totalorder %s20, 1
      %p80 = por %p78, %p79
      %p81 = scmp.ne.s32.totalorder %s72, %s73
      %p82 = scmp.eq.s32.totalorder %s20, 0
      %p83 = por %p81, %p82
      %p84 = scmp.ne.s32.totalorder %s72, %s73
      %p85 = scmp.eq.s32.totalorder %s21, 1
      %p86 = por %p84, %p85
      %p88 = scmp.ne.s32.totalorder %s73, %s87
      %p89 = scmp.eq.s32.totalorder %s21, 0
      %p90 = por %p88, %p89
      %s92 = sadd.s32 %s91, 1
      %p95 = scmp.eq.s32.totalorder %s15, 1
      %p96 = scmp.ne.s32.totalorder %s91, %s93
      %p97 = scmp.eq.s32.totalorder %s15, 0
      %p98 = por %p96, %p97
      %p99 = scmp.ne.s32.totalorder %s91, %s93
      %p100 = scmp.eq.s32.totalorder %s20, 1
      %p101 = por %p99, %p100
      %p102 = scmp.ne.s32.totalorder %s93, %s94
      %p103 = scmp.eq.s32.totalorder %s20, 0
      %p104 = por %p102, %p103
      %p105 = scmp.ne.s32.totalorder %s93, %s94
      %p106 = scmp.eq.s32.totalorder %s21, 1
      %p107 = por %p105, %p106
      %p109 = scmp.ne.s32.totalorder %s94, %s108
      %p110 = scmp.eq.s32.totalorder %s21, 0
      %p111 = por %p109, %p110
      %s113 = sadd.s32 %s112, 1
      %p116 = scmp.eq.s32.totalorder %s15, 1
      %p117 = scmp.ne.s32.totalorder %s112, %s114
      %p118 = scmp.eq.s32.totalorder %s15, 0
      %p119 = por %p117, %p118
      %p120 = scmp.ne.s32.totalorder %s112, %s114
      %p121 = scmp.eq.s32.totalorder %s20, 1
      %p122 = por %p120, %p121
      %p123 = scmp.ne.s32.totalorder %s114, %s115
      %p124 = scmp.eq.s32.totalorder %s20, 0
      %p125 = por %p123, %p124
      %p126 = scmp.ne.s32.totalorder %s114, %s115
      %p127 = scmp.eq.s32.totalorder %s21, 1
      %p128 = por %p126, %p127
      %p130 = scmp.ne.s32.totalorder %s115, %s129
      %p131 = scmp.eq.s32.totalorder %s21, 0
      %p132 = por %p130, %p131
      %s134 = sadd.s32 %s133, 1
      %p137 = scmp.eq.s32.totalorder %s15, 1
      %p138 = scmp.ne.s32.totalorder %s133, %s135
      %p139 = scmp.eq.s32.totalorder %s15, 0
      %p140 = por %p138, %p139
      %p141 = scmp.ne.s32.totalorder %s133, %s135
      %p142 = scmp.eq.s32.totalorder %s20, 1
      %p143 = por %p141, %p142
      %p144 = scmp.ne.s32.totalorder %s135, %s136
      %p145 = scmp.eq.s32.totalorder %s20, 0
      %p146 = por %p144, %p145
      %p147 = scmp.ne.s32.totalorder %s135, %s136
      %p148 = scmp.eq.s32.totalorder %s21, 1
      %p149 = por %p147, %p148
      %p151 = scmp.ne.s32.totalorder %s136, %s150
      %p152 = scmp.eq.s32.totalorder %s21, 0
      %p153 = por %p151, %p152
      %s155 = sadd.s32 %s154, 1
      %p158 = scmp.eq.s32.totalorder %s15, 1
      %p159 = scmp.ne.s32.totalorder %s154, %s156
      %p160 = scmp.eq.s32.totalorder %s15, 0
      %p161 = por %p159, %p160
      %p162 = scmp.ne.s32.totalorder %s154, %s156
      %p163 = scmp.eq.s32.totalorder %s20, 1
      %p164 = por %p162, %p163
      %p165 = scmp.ne.s32.totalorder %s156, %s157
      %p166 = scmp.eq.s32.totalorder %s20, 0
      %p167 = por %p165, %p166
      %p168 = scmp.ne.s32.totalorder %s156, %s157
      %p169 = scmp.eq.s32.totalorder %s21, 1
      %p170 = por %p168, %p169
      %p172 = scmp.ne.s32.totalorder %s157, %s171
      %p173 = scmp.eq.s32.totalorder %s21, 0
      %p174 = por %p172, %p173
      %s176 = sadd.s32 %s175, 1
      %p179 = scmp.eq.s32.totalorder %s15, 1
      %p180 = scmp.ne.s32.totalorder %s175, %s177
      %p181 = scmp.eq.s32.totalorder %s15, 0
      %p182 = por %p180, %p181
      %p183 = scmp.ne.s32.totalorder %s175, %s177
      %p184 = scmp.eq.s32.totalorder %s20, 1
      %p185 = por %p183, %p184
      %p186 = scmp.ne.s32.totalorder %s177, %s178
      %p187 = scmp.eq.s32.totalorder %s20, 0
      %p188 = por %p186, %p187
      %p189 = scmp.ne.s32.totalorder %s177, %s178
      %p190 = scmp.eq.s32.totalorder %s21, 1
      %p191 = por %p189, %p190
      %p193 = scmp.ne.s32.totalorder %s178, %s192
      %p194 = scmp.eq.s32.totalorder %s21, 0
      %p195 = por %p193, %p194
      %s196 = ssub.s32 %s15, %s22
      %p197 = scmp.eq.s32.totalorder %s196, 0
      %s199 = sadd.s32 %s198, 1
      %s200 = scalar_select %p197, %s198, %s199
      %p203 = pneg %p197
      %p204 = scmp.eq.s32.totalorder %s15, 1
      %p205 = por %p203, %p204
      %p206 = scmp.ne.s32.totalorder %s198, %s201
      %p207 = scmp.eq.s32.totalorder %s15, 0
      %p208 = por %p206, %p207
      %p209 = scmp.ne.s32.totalorder %s198, %s201
      %p210 = scmp.eq.s32.totalorder %s20, 1
      %p211 = por %p209, %p210
      %p212 = scmp.ne.s32.totalorder %s201, %s202
      %p213 = scmp.eq.s32.totalorder %s20, 0
      %p214 = por %p212, %p213
      %p215 = scmp.ne.s32.totalorder %s201, %s202
      %p216 = scmp.eq.s32.totalorder %s21, 1
      %p217 = por %p215, %p216
      %p219 = scmp.ne.s32.totalorder %s202, %s218
      %p220 = scmp.eq.s32.totalorder %s21, 0
      %p221 = por %p219, %p220
      %p222 = scmp.le.s32.totalorder 1, %s15
      %p223 = scmp.lt.s32.totalorder %s15, 3
      %p224 = pnand %p222, %p223
      %p225 = pneg %p224
      // Predicated region
      $region9: #{_lambda_.8} parent=5 // pred_check
        _
      $region10: #{_lambda_.8} parent=5 // pred_check_branch
        %227 = sbr.rel (%p224) target = $region12
      $region11: #{_lambda_.8} parent=5 // pred_region
        %s228 = ssub.s32 %s15, 1
        // Predicated region
        $region13: #{_lambda_.8} parent=11 // pred_check
          %p229 = pneg %p62
        $region14: #{_lambda_.8} parent=11 // pred_check_branch
          %231 = sbr.rel (%p229) target = $region16
        $region15: #{_lambda_.8} parent=11 // pred_region
          _
        $region16: #{_lambda_.8} parent=11 // pred_fallthru
          _
        // Predicated region
        $region17: #{_lambda_.8} parent=11 // pred_check
          %p232 = pneg %p83
        $region18: #{_lambda_.8} parent=11 // pred_check_branch
          %234 = sbr.rel (%p232) target = $region20
        $region19: #{_lambda_.8} parent=11 // pred_region
          _
        $region20: #{_lambda_.8} parent=11 // pred_fallthru
          _
        // Predicated region
        $region21: #{_lambda_.8} parent=11 // pred_check
          %p235 = pneg %p104
        $region22: #{_lambda_.8} parent=11 // pred_check_branch
          %237 = sbr.rel (%p235) target = $region24
        $region23: #{_lambda_.8} parent=11 // pred_region
          _
        $region24: #{_lambda_.8} parent=11 // pred_fallthru
          _
        // Predicated region
        $region25: #{_lambda_.8} parent=11 // pred_check
          %p238 = pneg %p125
        $region26: #{_lambda_.8} parent=11 // pred_check_branch
          %240 = sbr.rel (%p238) target = $region28
        $region27: #{_lambda_.8} parent=11 // pred_region
          _
        $region28: #{_lambda_.8} parent=11 // pred_fallthru
          _
        // Predicated region
        $region29: #{_lambda_.8} parent=11 // pred_check
          %p241 = pneg %p146
        $region30: #{_lambda_.8} parent=11 // pred_check_branch
          %243 = sbr.rel (%p241) target = $region32
        $region31: #{_lambda_.8} parent=11 // pred_region
          _
        $region32: #{_lambda_.8} parent=11 // pred_fallthru
          _
        // Predicated region
        $region33: #{_lambda_.8} parent=11 // pred_check
          %p244 = pneg %p167
        $region34: #{_lambda_.8} parent=11 // pred_check_branch
          %246 = sbr.rel (%p244) target = $region36
        $region35: #{_lambda_.8} parent=11 // pred_region
          _
        $region36: #{_lambda_.8} parent=11 // pred_fallthru
          _
        // Predicated region
        $region37: #{_lambda_.8} parent=11 // pred_check
          %p247 = pneg %p188
        $region38: #{_lambda_.8} parent=11 // pred_check_branch
          %249 = sbr.rel (%p247) target = $region40
        $region39: #{_lambda_.8} parent=11 // pred_region
          %s251 = ssub.s32 16, 16
          %252 = vsyncadd [#allocation4], %s251
          %s254 = sshll.u32 %s7, 4
          %s255 = int_to_ptr.vmem [resolvable:$true] %s254
          %257 = dma.vmem_to_smem %s255, 16, [#allocation3], [#allocation4]
        $region40: #{_lambda_.8} parent=11 // pred_fallthru
          _
      $region12: #{_lambda_.8} parent=5 // pred_fallthru
        _
      %p258 = scmp.lt.s32.totalorder %s15, 2
      // Predicated region
      $region41: #{_lambda_.8} parent=5 // pred_check
        %p259 = pneg %p258
      $region42: #{_lambda_.8} parent=5 // pred_check_branch
        %261 = sbr.rel (%p259) target = $region44
      $region43: #{_lambda_.8} parent=5 // pred_region
        // Predicated region
        $region45: #{_lambda_.8} parent=43 // pred_check
          %p262 = pneg %p35
        $region46: #{_lambda_.8} parent=43 // pred_check_branch
          %264 = sbr.rel (%p262) target = $region48
        $region47: #{_lambda_.8} parent=43 // pred_region
          %p265 = scmp.lt.s32.totalorder %s15, 1
          %s266 = scalar_select %p265, %s15, 1
          %s267 = smul.addr %s266, 2
          %s268 = smul.addr %s267, 2
          %s269 = scalar_lea.vmem %s0, %s268
        $region48: #{_lambda_.8} parent=43 // pred_fallthru
          _
      $region44: #{_lambda_.8} parent=5 // pred_fallthru
        _
      %p270 = scmp.le.s32.totalorder 1, %s15
      %p271 = scmp.lt.s32.totalorder %s15, 3
      %p272 = pnand %p270, %p271
      %p273 = pneg %p272
      // Predicated region
      $region49: #{_lambda_.8} parent=5 // pred_check
        _
      $region50: #{_lambda_.8} parent=5 // pred_check_branch
        %275 = sbr.rel (%p272) target = $region52
      $region51: #{_lambda_.8} parent=5 // pred_region
        %s276 = ssub.s32 %s15, 1
        // Predicated region
        $region53: #{_lambda_.8} parent=51 // pred_check
          %p277 = pneg %p188
        $region54: #{_lambda_.8} parent=51 // pred_check_branch
          %279 = sbr.rel (%p277) target = $region56
        $region55: #{_lambda_.8} parent=51 // pred_region
          %280 = dma.done [#allocation4], 16
        $region56: #{_lambda_.8} parent=51 // pred_fallthru
          _
        %281 = sfence
        %p282 = scmp.lt.s32.totalorder %s20, 1
        %s283 = scalar_select %p282, %s20, 1
        %s284 = smul.addr %s283, 2
        %s285 = smul.addr %s284, 2
        %s286 = scalar_lea.vmem %s0, %s285
        %p287 = pneg %p41
        %p288 = pneg %p38
        %p289 = pneg %p62
        %p290 = pneg %p59
        %p291 = pneg %p83
        %p292 = pneg %p80
        %p293 = pneg %p104
        %p294 = pneg %p101
        %p295 = pneg %p125
        %p296 = pneg %p122
        %p297 = pneg %p146
        %p298 = pneg %p143
        %p299 = pneg %p167
        %p300 = pneg %p164
        %p301 = pneg %p188
        %p302 = pneg %p185
        %p303 = pneg %p214
        %p304 = pneg %p211
        %p305 = scmp.lt.s32.totalorder %s20, 1
        %s306 = scalar_select %p305, %s20, 1
        %s307 = smul.addr %s306, 4
        %s308 = scalar_lea.vmem %s8, %s307
        %p309 = scmp.lt.s32.totalorder %s20, 1
        %s310 = scalar_select %p309, %s20, 1
        %s311 = smul.addr %s310, 2
        %s312 = smul.addr %s311, 2
        %s313 = scalar_lea.vmem %s0, %s312
        %p314 = scmp.lt.s32.totalorder %s20, 1
        %s315 = scalar_select %p314, %s20, 1
        %s316 = smul.addr %s315, 4
        %s317 = scalar_lea.vmem %s8, %s316
        %vm319 = vcmask 519168
        %320 = vst.msk [vmem:[%s317] sm:$0xf] %vm319, 0.0
        %321 = vst.msk [vmem:[#allocation2] sm:$0xf] %vm319, 0.0
        %v322 = vld [vmem:[%s313] sm:$0x1]
        %v323 = vld [vmem:[%s1] sm:$0xf]
        %v324 = vld [vmem:[%s1 + $0x4] sm:$0xf]
        %v325 = vld [vmem:[%s1 + $0x8] sm:$0xf]
        %v326 = vld [vmem:[%s1 + $0xc] sm:$0xf]
        %v327 = vld [vmem:[%s1 + $0x10] sm:$0xf]
        %v328 = vld [vmem:[%s1 + $0x14] sm:$0xf]
        %v329 = vld [vmem:[%s1 + $0x18] sm:$0xf]
        %v330 = vld [vmem:[%s1 + $0x1c] sm:$0xf]
        %v331 = vld [vmem:[%s1 + $0x20] sm:$0xf]
        %v332 = vld [vmem:[%s1 + $0x24] sm:$0xf]
        %v333 = vld [vmem:[%s1 + $0x28] sm:$0xf]
        %v334 = vld [vmem:[%s1 + $0x2c] sm:$0xf]
        %v335 = vld [vmem:[%s1 + $0x30] sm:$0xf]
        %v336 = vld [vmem:[%s1 + $0x34] sm:$0xf]
        %v337 = vld [vmem:[%s1 + $0x38] sm:$0xf]
        %v338 = vld [vmem:[%s1 + $0x3c] sm:$0xf]
        %s339 = scalar_lea.vmem %s313, 2
        %v340 = vld [vmem:[%s339] sm:$0x1]
        %s341 = scalar_lea.vmem %s1, 64
        %v342 = vld [vmem:[%s341] sm:$0xf]
        %v343 = vld [vmem:[%s341 + $0x4] sm:$0xf]
        %v344 = vld [vmem:[%s341 + $0x8] sm:$0xf]
        %v345 = vld [vmem:[%s341 + $0xc] sm:$0xf]
        %v346 = vld [vmem:[%s341 + $0x10] sm:$0xf]
        %v347 = vld [vmem:[%s341 + $0x14] sm:$0xf]
        %v348 = vld [vmem:[%s341 + $0x18] sm:$0xf]
        %v349 = vld [vmem:[%s341 + $0x1c] sm:$0xf]
        %v350 = vld [vmem:[%s341 + $0x20] sm:$0xf]
        %v351 = vld [vmem:[%s341 + $0x24] sm:$0xf]
        %v352 = vld [vmem:[%s341 + $0x28] sm:$0xf]
        %v353 = vld [vmem:[%s341 + $0x2c] sm:$0xf]
        %v354 = vld [vmem:[%s341 + $0x30] sm:$0xf]
        %v355 = vld [vmem:[%s341 + $0x34] sm:$0xf]
        %v356 = vld [vmem:[%s341 + $0x38] sm:$0xf]
        %v357 = vld [vmem:[%s341 + $0x3c] sm:$0xf]
        %v374 = vunpack.c.l.b16 %v342
        %v375 = vunpack.c.l.b16 %v343
        %v376 = vunpack.c.l.b16 %v344
        %v377 = vunpack.c.l.b16 %v345
        %v378 = vunpack.c.l.b16 %v346
        %v379 = vunpack.c.l.b16 %v347
        %v380 = vunpack.c.l.b16 %v348
        %v381 = vunpack.c.l.b16 %v349
        %v382 = vunpack.c.l.b16 %v350
        %v383 = vunpack.c.l.b16 %v351
        %v384 = vunpack.c.l.b16 %v352
        %v385 = vunpack.c.l.b16 %v353
        %v386 = vunpack.c.l.b16 %v354
        %v387 = vunpack.c.l.b16 %v355
        %v388 = vunpack.c.l.b16 %v356
        %v389 = vunpack.c.l.b16 %v357
        %v390 = vpack.c.b16 %v375, %v374
        %v391 = vpack.c.b16 %v377, %v376
        %v392 = vpack.c.b16 %v379, %v378
        %v393 = vpack.c.b16 %v381, %v380
        %v394 = vpack.c.b16 %v383, %v382
        %v395 = vpack.c.b16 %v385, %v384
        %v396 = vpack.c.b16 %v387, %v386
        %v397 = vpack.c.b16 %v389, %v388
        %406 = vmatprep.subr.bf16.mxu0 0
        %407 = vmatpush1.bf16.msra.mxu0 %v390
        %408 = vmatprep.subr.bf16.mxu0 0
        %409 = vmatpush1.bf16.msra.mxu0 %v391
        %410 = vmatprep.subr.bf16.mxu0 0
        %411 = vmatpush1.bf16.msra.mxu0 %v392
        %412 = vmatprep.subr.bf16.mxu0 0
        %413 = vmatpush1.bf16.msra.mxu0 %v393
        %414 = vmatprep.subr.bf16.mxu0 0
        %415 = vmatpush1.bf16.msra.mxu0 %v394
        %416 = vmatprep.subr.bf16.mxu0 0
        %417 = vmatpush1.bf16.msra.mxu0 %v395
        %418 = vmatprep.subr.bf16.mxu0 0
        %419 = vmatpush1.bf16.msra.mxu0 %v396
        %420 = vmatprep.subr.bf16.mxu0 0
        %421 = vmatpush1.bf16.msra.mxu0 %v397
        %422 = vmatprep.subr.bf16.mxu0 0
        %423 = vmatpush1.bf16.msra.mxu0 0
        %424 = vmatprep.subr.bf16.mxu0 0
        %425 = vmatpush1.bf16.msra.mxu0 0
        %426 = vmatprep.subr.bf16.mxu0 0
        %427 = vmatpush1.bf16.msra.mxu0 0
        %428 = vmatprep.subr.bf16.mxu0 0
        %429 = vmatpush1.bf16.msra.mxu0 0
        %430 = vmatprep.subr.bf16.mxu0 0
        %431 = vmatpush1.bf16.msra.mxu0 0
        %432 = vmatprep.subr.bf16.mxu0 0
        %433 = vmatpush1.bf16.msra.mxu0 0
        %434 = vmatprep.subr.bf16.mxu0 0
        %435 = vmatpush1.bf16.msra.mxu0 0
        %436 = vmatprep.subr.bf16.mxu0 0
        %437 = vmatpush1.bf16.msra.mxu0 0
        %438 = vmatprep.mubr.bf16.mxu0 0
        %439 = vmatmul.mubr.bf16.gmra.mrb[0].mxu0 %v340
        %v440 = vpop.f32.mrb[0].mxu0
        %v441 = vadd.f32 0.0, %v440
        %v442 = vpop.f32.mrb[0].mxu0
        %v443 = vpop.f32.mrb[0].mxu0
        %v444 = vpop.f32.mrb[0].mxu0
        %445 = vdwg.mxu0
        %v462 = vunpack.c.l.b16 %v323
        %v463 = vunpack.c.l.b16 %v324
        %v464 = vunpack.c.l.b16 %v325
        %v465 = vunpack.c.l.b16 %v326
        %v466 = vunpack.c.l.b16 %v327
        %v467 = vunpack.c.l.b16 %v328
        %v468 = vunpack.c.l.b16 %v329
        %v469 = vunpack.c.l.b16 %v330
        %v470 = vunpack.c.l.b16 %v331
        %v471 = vunpack.c.l.b16 %v332
        %v472 = vunpack.c.l.b16 %v333
        %v473 = vunpack.c.l.b16 %v334
        %v474 = vunpack.c.l.b16 %v335
        %v475 = vunpack.c.l.b16 %v336
        %v476 = vunpack.c.l.b16 %v337
        %v477 = vunpack.c.l.b16 %v338
        %v478 = vpack.c.b16 %v463, %v462
        %v479 = vpack.c.b16 %v465, %v464
        %v480 = vpack.c.b16 %v467, %v466
        %v481 = vpack.c.b16 %v469, %v468
        %v482 = vpack.c.b16 %v471, %v470
        %v483 = vpack.c.b16 %v473, %v472
        %v484 = vpack.c.b16 %v475, %v474
        %v485 = vpack.c.b16 %v477, %v476
        %494 = vmatprep.subr.bf16.mxu0 0
        %495 = vmatpush1.bf16.msra.mxu0 %v478
        %496 = vmatprep.subr.bf16.mxu0 0
        %497 = vmatpush1.bf16.msra.mxu0 %v479
        %498 = vmatprep.subr.bf16.mxu0 0
        %499 = vmatpush1.bf16.msra.mxu0 %v480
        %500 = vmatprep.subr.bf16.mxu0 0
        %501 = vmatpush1.bf16.msra.mxu0 %v481
        %502 = vmatprep.subr.bf16.mxu0 0
        %503 = vmatpush1.bf16.msra.mxu0 %v482
        %504 = vmatprep.subr.bf16.mxu0 0
        %505 = vmatpush1.bf16.msra.mxu0 %v483
        %506 = vmatprep.subr.bf16.mxu0 0
        %507 = vmatpush1.bf16.msra.mxu0 %v484
        %508 = vmatprep.subr.bf16.mxu0 0
        %509 = vmatpush1.bf16.msra.mxu0 %v485
        %510 = vmatprep.subr.bf16.mxu0 0
        %511 = vmatpush1.bf16.msra.mxu0 0
        %512 = vmatprep.subr.bf16.mxu0 0
        %513 = vmatpush1.bf16.msra.mxu0 0
        %514 = vmatprep.subr.bf16.mxu0 0
        %515 = vmatpush1.bf16.msra.mxu0 0
        %516 = vmatprep.subr.bf16.mxu0 0
        %517 = vmatpush1.bf16.msra.mxu0 0
        %518 = vmatprep.subr.bf16.mxu0 0
        %519 = vmatpush1.bf16.msra.mxu0 0
        %520 = vmatprep.subr.bf16.mxu0 0
        %521 = vmatpush1.bf16.msra.mxu0 0
        %522 = vmatprep.subr.bf16.mxu0 0
        %523 = vmatpush1.bf16.msra.mxu0 0
        %524 = vmatprep.subr.bf16.mxu0 0
        %525 = vmatpush1.bf16.msra.mxu0 0
        %526 = vmatprep.mubr.bf16.mxu0 0
        %527 = vmatmul.mubr.bf16.gmra.mrb[0].mxu0 %v322
        %v528 = vpop.f32.mrb[0].mxu0
        %v529 = vadd.f32 %v441, %v528
        %v530 = vpop.f32.mrb[0].mxu0
        %v531 = vpop.f32.mrb[0].mxu0
        %v532 = vpop.f32.mrb[0].mxu0
        %533 = vdwg.mxu0
        %v534 = vld [vmem:[%s313] sm:$0x3]
        %s535 = scalar_lea.vmem %s1, 128
        %v536 = vld [vmem:[%s535] sm:$0xf]
        %v537 = vld [vmem:[%s535 + $0x4] sm:$0xf]
        %v538 = vld [vmem:[%s535 + $0x8] sm:$0xf]
        %v539 = vld [vmem:[%s535 + $0xc] sm:$0xf]
        %v540 = vld [vmem:[%s535 + $0x10] sm:$0xf]
        %v541 = vld [vmem:[%s535 + $0x14] sm:$0xf]
        %v542 = vld [vmem:[%s535 + $0x18] sm:$0xf]
        %v543 = vld [vmem:[%s535 + $0x1c] sm:$0xf]
        %v544 = vld [vmem:[%s535 + $0x20] sm:$0xf]
        %v545 = vld [vmem:[%s535 + $0x24] sm:$0xf]
        %v546 = vld [vmem:[%s535 + $0x28] sm:$0xf]
        %v547 = vld [vmem:[%s535 + $0x2c] sm:$0xf]
        %v548 = vld [vmem:[%s535 + $0x30] sm:$0xf]
        %v549 = vld [vmem:[%s535 + $0x34] sm:$0xf]
        %v550 = vld [vmem:[%s535 + $0x38] sm:$0xf]
        %v551 = vld [vmem:[%s535 + $0x3c] sm:$0xf]
        %v554 = vunpack.c.l.s4 1983009808
        %v555 = vunpack.c.0.s8 %v554
        %v556 = vlaneseq
        %v557 = vshrl.u32 %v556, 7
        %v558 = vsub.s32 %v555, %v557
        %v559 = vrot.slane %v534, %v558
        %v561 = vshrl.u32 %v559, 16
        %v563 = vshll.u32 %v559, 16
        %v565 = vrot.slane %v563, 1
        %v566 = vor.u32 %v561, %v565
        %v584 = vunpack.c.l.b16 %v536
        %v585 = vunpack.c.l.b16 %v537
        %v586 = vunpack.c.l.b16 %v538
        %v587 = vunpack.c.l.b16 %v539
        %v588 = vunpack.c.l.b16 %v540
        %v589 = vunpack.c.l.b16 %v541
        %v590 = vunpack.c.l.b16 %v542
        %v591 = vunpack.c.l.b16 %v543
        %v592 = vunpack.c.l.b16 %v544
        %v593 = vunpack.c.l.b16 %v545
        %v594 = vunpack.c.l.b16 %v546
        %v595 = vunpack.c.l.b16 %v547
        %v596 = vunpack.c.l.b16 %v548
        %v597 = vunpack.c.l.b16 %v549
        %v598 = vunpack.c.l.b16 %v550
        %v599 = vunpack.c.l.b16 %v551
        %v600 = vpack.c.b16 %v585, %v584
        %v601 = vpack.c.b16 %v587, %v586
        %v602 = vpack.c.b16 %v589, %v588
        %v603 = vpack.c.b16 %v591, %v590
        %v604 = vpack.c.b16 %v593, %v592
        %v605 = vpack.c.b16 %v595, %v594
        %v606 = vpack.c.b16 %v597, %v596
        %v607 = vpack.c.b16 %v599, %v598
        %616 = vmatprep.subr.bf16.mxu0 0
        %617 = vmatpush1.bf16.msra.mxu0 %v600
        %618 = vmatprep.subr.bf16.mxu0 0
        %619 = vmatpush1.bf16.msra.mxu0 %v601
        %620 = vmatprep.subr.bf16.mxu0 0
        %621 = vmatpush1.bf16.msra.mxu0 %v602
        %622 = vmatprep.subr.bf16.mxu0 0
        %623 = vmatpush1.bf16.msra.mxu0 %v603
        %624 = vmatprep.subr.bf16.mxu0 0
        %625 = vmatpush1.bf16.msra.mxu0 %v604
        %626 = vmatprep.subr.bf16.mxu0 0
        %627 = vmatpush1.bf16.msra.mxu0 %v605
        %628 = vmatprep.subr.bf16.mxu0 0
        %629 = vmatpush1.bf16.msra.mxu0 %v606
        %630 = vmatprep.subr.bf16.mxu0 0
        %631 = vmatpush1.bf16.msra.mxu0 %v607
        %632 = vmatprep.subr.bf16.mxu0 0
        %633 = vmatpush1.bf16.msra.mxu0 0
        %634 = vmatprep.subr.bf16.mxu0 0
        %635 = vmatpush1.bf16.msra.mxu0 0
        %636 = vmatprep.subr.bf16.mxu0 0
        %637 = vmatpush1.bf16.msra.mxu0 0
        %638 = vmatprep.subr.bf16.mxu0 0
        %639 = vmatpush1.bf16.msra.mxu0 0
        %640 = vmatprep.subr.bf16.mxu0 0
        %641 = vmatpush1.bf16.msra.mxu0 0
        %642 = vmatprep.subr.bf16.mxu0 0
        %643 = vmatpush1.bf16.msra.mxu0 0
        %644 = vmatprep.subr.bf16.mxu0 0
        %645 = vmatpush1.bf16.msra.mxu0 0
        %646 = vmatprep.subr.bf16.mxu0 0
        %647 = vmatpush1.bf16.msra.mxu0 0
        %648 = vmatprep.mubr.bf16.mxu0 0
        %649 = vmatmul.mubr.bf16.gmra.mrb[0].mxu0 %v566
        %v650 = vpop.f32.mrb[0].mxu0
        %v651 = vadd.f32 0.0, %v650
        %v652 = vpop.f32.mrb[0].mxu0
        %v653 = vpop.f32.mrb[0].mxu0
        %v654 = vpop.f32.mrb[0].mxu0
        %655 = vdwg.mxu0
        %v656 = vadd.f32 %v529, %v651
        %v657 = vld [vmem:[%s2] sm:$0x1]
        %v659 = vlaneseq
        %v660 = vshrl.u32 %v659, 7
        %v661 = vsub.s32 0, %v660
        %v662 = vrot.slane %v657, %v661
        %v664 = vadd.f32 %v656, %v662
        %s665 = sld [smem:[#allocation3]]
        %vm666 = vcmp.ge.f32.partialorder %v664, 0.0
        %v667 = vstv %s665
        %v668 = vmul.f32 %v667, %v664
        %v669 = vsel %vm666, %v664, %v668
        %vm670 = vcmask 517120
        %671 = vst.msk [vmem:[%s317 + $0x1] sm:$0x3] %vm670, %v669
        %v672 = vld [vmem:[%s317] sm:$0x3]
        %v673 = vpack.c.bf16 %v672, %v672
        %v674 = vld [vmem:[%s3] sm:$0xf]
        %v675 = vld [vmem:[%s3 + $0x4] sm:$0xf]
        %v676 = vld [vmem:[%s3 + $0x8] sm:$0xf]
        %v677 = vld [vmem:[%s3 + $0xc] sm:$0xf]
        %v678 = vld [vmem:[%s3 + $0x10] sm:$0xf]
        %v679 = vld [vmem:[%s3 + $0x14] sm:$0xf]
        %v680 = vld [vmem:[%s3 + $0x18] sm:$0xf]
        %v681 = vld [vmem:[%s3 + $0x1c] sm:$0xf]
        %v682 = vld [vmem:[%s317 + $0x1] sm:$0x3]
        %v683 = vpack.c.bf16 %v682, %v682
        %s684 = scalar_lea.vmem %s3, 32
        %v685 = vld [vmem:[%s684] sm:$0xf]
        %v686 = vld [vmem:[%s684 + $0x4] sm:$0xf]
        %v687 = vld [vmem:[%s684 + $0x8] sm:$0xf]
        %v688 = vld [vmem:[%s684 + $0xc] sm:$0xf]
        %v689 = vld [vmem:[%s684 + $0x10] sm:$0xf]
        %v690 = vld [vmem:[%s684 + $0x14] sm:$0xf]
        %v691 = vld [vmem:[%s684 + $0x18] sm:$0xf]
        %v692 = vld [vmem:[%s684 + $0x1c] sm:$0xf]
        %v701 = vunpack.c.l.b16 %v685
        %v702 = vunpack.c.l.b16 %v686
        %v703 = vunpack.c.l.b16 %v687
        %v704 = vunpack.c.l.b16 %v688
        %v705 = vunpack.c.l.b16 %v689
        %v706 = vunpack.c.l.b16 %v690
        %v707 = vunpack.c.l.b16 %v691
        %v708 = vunpack.c.l.b16 %v692
        %v709 = vpack.c.b16 %v702, %v701
        %v710 = vpack.c.b16 %v704, %v703
        %v711 = vpack.c.b16 %v706, %v705
        %v712 = vpack.c.b16 %v708, %v707
        %vm717 = vcmask 523264
        %v719 = vsel %vm717, %v683, 0
        %721 = vmatprep.subr.bf16.mxu0 0
        %722 = vmatpush1.bf16.msra.mxu0 %v709
        %723 = vmatprep.subr.bf16.mxu0 0
        %724 = vmatpush1.bf16.msra.mxu0 %v710
        %725 = vmatprep.subr.bf16.mxu0 0
        %726 = vmatpush1.bf16.msra.mxu0 %v711
        %727 = vmatprep.subr.bf16.mxu0 0
        %728 = vmatpush1.bf16.msra.mxu0 %v712
        %729 = vmatprep.subr.bf16.mxu0 0
        %730 = vmatpush1.bf16.msra.mxu0 0
        %731 = vmatprep.subr.bf16.mxu0 0
        %732 = vmatpush1.bf16.msra.mxu0 0
        %733 = vmatprep.subr.bf16.mxu0 0
        %734 = vmatpush1.bf16.msra.mxu0 0
        %735 = vmatprep.subr.bf16.mxu0 0
        %736 = vmatpush1.bf16.msra.mxu0 0
        %737 = vmatprep.subr.bf16.mxu0 0
        %738 = vmatpush1.bf16.msra.mxu0 0
        %739 = vmatprep.subr.bf16.mxu0 0
        %740 = vmatpush1.bf16.msra.mxu0 0
        %741 = vmatprep.subr.bf16.mxu0 0
        %742 = vmatpush1.bf16.msra.mxu0 0
        %743 = vmatprep.subr.bf16.mxu0 0
        %744 = vmatpush1.bf16.msra.mxu0 0
        %745 = vmatprep.subr.bf16.mxu0 0
        %746 = vmatpush1.bf16.msra.mxu0 0
        %747 = vmatprep.subr.bf16.mxu0 0
        %748 = vmatpush1.bf16.msra.mxu0 0
        %749 = vmatprep.subr.bf16.mxu0 0
        %750 = vmatpush1.bf16.msra.mxu0 0
        %751 = vmatprep.subr.bf16.mxu0 0
        %752 = vmatpush1.bf16.msra.mxu0 0
        %753 = vmatprep.mubr.bf16.mxu0 0
        %754 = vmatmul.mubr.bf16.gmra.mrb[0].mxu0 %v719
        %v755 = vpop.f32.mrb[0].mxu0
        %v756 = vadd.f32 0.0, %v755
        %v757 = vpop.f32.mrb[0].mxu0
        %v758 = vpop.f32.mrb[0].mxu0
        %v759 = vpop.f32.mrb[0].mxu0
        %760 = vdwg.mxu0
        %v769 = vunpack.c.l.b16 %v674
        %v770 = vunpack.c.l.b16 %v675
        %v771 = vunpack.c.l.b16 %v676
        %v772 = vunpack.c.l.b16 %v677
        %v773 = vunpack.c.l.b16 %v678
        %v774 = vunpack.c.l.b16 %v679
        %v775 = vunpack.c.l.b16 %v680
        %v776 = vunpack.c.l.b16 %v681
        %v777 = vpack.c.b16 %v770, %v769
        %v778 = vpack.c.b16 %v772, %v771
        %v779 = vpack.c.b16 %v774, %v773
        %v780 = vpack.c.b16 %v776, %v775
        %v786 = vsel %vm717, %v673, 0
        %788 = vmatprep.subr.bf16.mxu0 0
        %789 = vmatpush1.bf16.msra.mxu0 %v777
        %790 = vmatprep.subr.bf16.mxu0 0
        %791 = vmatpush1.bf16.msra.mxu0 %v778
        %792 = vmatprep.subr.bf16.mxu0 0
        %793 = vmatpush1.bf16.msra.mxu0 %v779
        %794 = vmatprep.subr.bf16.mxu0 0
        %795 = vmatpush1.bf16.msra.mxu0 %v780
        %796 = vmatprep.subr.bf16.mxu0 0
        %797 = vmatpush1.bf16.msra.mxu0 0
        %798 = vmatprep.subr.bf16.mxu0 0
        %799 = vmatpush1.bf16.msra.mxu0 0
        %800 = vmatprep.subr.bf16.mxu0 0
        %801 = vmatpush1.bf16.msra.mxu0 0
        %802 = vmatprep.subr.bf16.mxu0 0
        %803 = vmatpush1.bf16.msra.mxu0 0
        %804 = vmatprep.subr.bf16.mxu0 0
        %805 = vmatpush1.bf16.msra.mxu0 0
        %806 = vmatprep.subr.bf16.mxu0 0
        %807 = vmatpush1.bf16.msra.mxu0 0
        %808 = vmatprep.subr.bf16.mxu0 0
        %809 = vmatpush1.bf16.msra.mxu0 0
        %810 = vmatprep.subr.bf16.mxu0 0
        %811 = vmatpush1.bf16.msra.mxu0 0
        %812 = vmatprep.subr.bf16.mxu0 0
        %813 = vmatpush1.bf16.msra.mxu0 0
        %814 = vmatprep.subr.bf16.mxu0 0
        %815 = vmatpush1.bf16.msra.mxu0 0
        %816 = vmatprep.subr.bf16.mxu0 0
        %817 = vmatpush1.bf16.msra.mxu0 0
        %818 = vmatprep.subr.bf16.mxu0 0
        %819 = vmatpush1.bf16.msra.mxu0 0
        %820 = vmatprep.mubr.bf16.mxu0 0
        %821 = vmatmul.mubr.bf16.gmra.mrb[0].mxu0 %v786
        %v822 = vpop.f32.mrb[0].mxu0
        %v823 = vadd.f32 %v756, %v822
        %v824 = vpop.f32.mrb[0].mxu0
        %v825 = vpop.f32.mrb[0].mxu0
        %v826 = vpop.f32.mrb[0].mxu0
        %827 = vdwg.mxu0
        %v828 = vld [vmem:[%s317 + $0x2] sm:$0x3]
        %v829 = vpack.c.bf16 %v828, %v828
        %s830 = scalar_lea.vmem %s3, 64
        %v831 = vld [vmem:[%s830] sm:$0xf]
        %v832 = vld [vmem:[%s830 + $0x4] sm:$0xf]
        %v833 = vld [vmem:[%s830 + $0x8] sm:$0xf]
        %v834 = vld [vmem:[%s830 + $0xc] sm:$0xf]
        %v835 = vld [vmem:[%s830 + $0x10] sm:$0xf]
        %v836 = vld [vmem:[%s830 + $0x14] sm:$0xf]
        %v837 = vld [vmem:[%s830 + $0x18] sm:$0xf]
        %v838 = vld [vmem:[%s830 + $0x1c] sm:$0xf]
        %v847 = vunpack.c.l.b16 %v831
        %v848 = vunpack.c.l.b16 %v832
        %v849 = vunpack.c.l.b16 %v833
        %v850 = vunpack.c.l.b16 %v834
        %v851 = vunpack.c.l.b16 %v835
        %v852 = vunpack.c.l.b16 %v836
        %v853 = vunpack.c.l.b16 %v837
        %v854 = vunpack.c.l.b16 %v838
        %v855 = vpack.c.b16 %v848, %v847
        %v856 = vpack.c.b16 %v850, %v849
        %v857 = vpack.c.b16 %v852, %v851
        %v858 = vpack.c.b16 %v854, %v853
        %v864 = vsel %vm717, %v829, 0
        %866 = vmatprep.subr.bf16.mxu0 0
        %867 = vmatpush1.bf16.msra.mxu0 %v855
        %868 = vmatprep.subr.bf16.mxu0 0
        %869 = vmatpush1.bf16.msra.mxu0 %v856
        %870 = vmatprep.subr.bf16.mxu0 0
        %871 = vmatpush1.bf16.msra.mxu0 %v857
        %872 = vmatprep.subr.bf16.mxu0 0
        %873 = vmatpush1.bf16.msra.mxu0 %v858
        %874 = vmatprep.subr.bf16.mxu0 0
        %875 = vmatpush1.bf16.msra.mxu0 0
        %876 = vmatprep.subr.bf16.mxu0 0
        %877 = vmatpush1.bf16.msra.mxu0 0
        %878 = vmatprep.subr.bf16.mxu0 0
        %879 = vmatpush1.bf16.msra.mxu0 0
        %880 = vmatprep.subr.bf16.mxu0 0
        %881 = vmatpush1.bf16.msra.mxu0 0
        %882 = vmatprep.subr.bf16.mxu0 0
        %883 = vmatpush1.bf16.msra.mxu0 0
        %884 = vmatprep.subr.bf16.mxu0 0
        %885 = vmatpush1.bf16.msra.mxu0 0
        %886 = vmatprep.subr.bf16.mxu0 0
        %887 = vmatpush1.bf16.msra.mxu0 0
        %888 = vmatprep.subr.bf16.mxu0 0
        %889 = vmatpush1.bf16.msra.mxu0 0
        %890 = vmatprep.subr.bf16.mxu0 0
        %891 = vmatpush1.bf16.msra.mxu0 0
        %892 = vmatprep.subr.bf16.mxu0 0
        %893 = vmatpush1.bf16.msra.mxu0 0
        %894 = vmatprep.subr.bf16.mxu0 0
        %895 = vmatpush1.bf16.msra.mxu0 0
        %896 = vmatprep.subr.bf16.mxu0 0
        %897 = vmatpush1.bf16.msra.mxu0 0
        %898 = vmatprep.mubr.bf16.mxu0 0
        %899 = vmatmul.mubr.bf16.gmra.mrb[0].mxu0 %v864
        %v900 = vpop.f32.mrb[0].mxu0
        %v901 = vadd.f32 0.0, %v900
        %v902 = vpop.f32.mrb[0].mxu0
        %v903 = vpop.f32.mrb[0].mxu0
        %v904 = vpop.f32.mrb[0].mxu0
        %905 = vdwg.mxu0
        %v906 = vadd.f32 %v823, %v901
        %v907 = vld [vmem:[%s4] sm:$0x1]
        %v909 = vlaneseq
        %v910 = vshrl.u32 %v909, 7
        %v911 = vsub.s32 0, %v910
        %v912 = vrot.slane %v907, %v911
        %v914 = vadd.f32 %v906, %v912
        %s915 = sld [smem:[#allocation3 + $0x1]]
        %vm916 = vcmp.ge.f32.partialorder %v914, 0.0
        %v917 = vstv %s915
        %v918 = vmul.f32 %v917, %v914
        %v919 = vsel %vm916, %v914, %v918
        %920 = vst.msk [vmem:[#allocation2 + $0x1] sm:$0x3] %vm670, %v919
        %v921 = vld [vmem:[#allocation2] sm:$0x3]
        %v922 = vpack.c.bf16 %v921, %v921
        %v923 = vld [vmem:[%s5] sm:$0xf]
        %v924 = vld [vmem:[%s5 + $0x4] sm:$0xf]
        %v925 = vld [vmem:[%s5 + $0x8] sm:$0xf]
        %v926 = vld [vmem:[%s5 + $0xc] sm:$0xf]
        %v927 = vld [vmem:[%s5 + $0x10] sm:$0xf]
        %v928 = vld [vmem:[%s5 + $0x14] sm:$0xf]
        %v929 = vld [vmem:[%s5 + $0x18] sm:$0xf]
        %v930 = vld [vmem:[%s5 + $0x1c] sm:$0xf]
        %v931 = vld [vmem:[#allocation2 + $0x1] sm:$0x3]
        %v932 = vpack.c.bf16 %v931, %v931
        %s933 = scalar_lea.vmem %s5, 32
        %v934 = vld [vmem:[%s933] sm:$0xf]
        %v935 = vld [vmem:[%s933 + $0x4] sm:$0xf]
        %v936 = vld [vmem:[%s933 + $0x8] sm:$0xf]
        %v937 = vld [vmem:[%s933 + $0xc] sm:$0xf]
        %v938 = vld [vmem:[%s933 + $0x10] sm:$0xf]
        %v939 = vld [vmem:[%s933 + $0x14] sm:$0xf]
        %v940 = vld [vmem:[%s933 + $0x18] sm:$0xf]
        %v941 = vld [vmem:[%s933 + $0x1c] sm:$0xf]
        %v950 = vunpack.c.l.b16 %v934
        %v951 = vunpack.c.l.b16 %v935
        %v952 = vunpack.c.l.b16 %v936
        %v953 = vunpack.c.l.b16 %v937
        %v954 = vunpack.c.l.b16 %v938
        %v955 = vunpack.c.l.b16 %v939
        %v956 = vunpack.c.l.b16 %v940
        %v957 = vunpack.c.l.b16 %v941
        %v958 = vpack.c.b16 %v951, %v950
        %v959 = vpack.c.b16 %v953, %v952
        %v960 = vpack.c.b16 %v955, %v954
        %v961 = vpack.c.b16 %v957, %v956
        %v967 = vsel %vm717, %v932, 0
        %969 = vmatprep.subr.bf16.mxu0 0
        %970 = vmatpush1.bf16.msra.mxu0 %v958
        %971 = vmatprep.subr.bf16.mxu0 0
        %972 = vmatpush1.bf16.msra.mxu0 %v959
        %973 = vmatprep.subr.bf16.mxu0 0
        %974 = vmatpush1.bf16.msra.mxu0 %v960
        %975 = vmatprep.subr.bf16.mxu0 0
        %976 = vmatpush1.bf16.msra.mxu0 %v961
        %977 = vmatprep.subr.bf16.mxu0 0
        %978 = vmatpush1.bf16.msra.mxu0 0
        %979 = vmatprep.subr.bf16.mxu0 0
        %980 = vmatpush1.bf16.msra.mxu0 0
        %981 = vmatprep.subr.bf16.mxu0 0
        %982 = vmatpush1.bf16.msra.mxu0 0
        %983 = vmatprep.subr.bf16.mxu0 0
        %984 = vmatpush1.bf16.msra.mxu0 0
        %985 = vmatprep.subr.bf16.mxu0 0
        %986 = vmatpush1.bf16.msra.mxu0 0
        %987 = vmatprep.subr.bf16.mxu0 0
        %988 = vmatpush1.bf16.msra.mxu0 0
        %989 = vmatprep.subr.bf16.mxu0 0
        %990 = vmatpush1.bf16.msra.mxu0 0
        %991 = vmatprep.subr.bf16.mxu0 0
        %992 = vmatpush1.bf16.msra.mxu0 0
        %993 = vmatprep.subr.bf16.mxu0 0
        %994 = vmatpush1.bf16.msra.mxu0 0
        %995 = vmatprep.subr.bf16.mxu0 0
        %996 = vmatpush1.bf16.msra.mxu0 0
        %997 = vmatprep.subr.bf16.mxu0 0
        %998 = vmatpush1.bf16.msra.mxu0 0
        %999 = vmatprep.subr.bf16.mxu0 0
        %1000 = vmatpush1.bf16.msra.mxu0 0
        %1001 = vmatprep.mubr.bf16.mxu0 0
        %1002 = vmatmul.mubr.bf16.gmra.mrb[0].mxu0 %v967
        %v1003 = vpop.f32.mrb[0].mxu0
        %v1004 = vadd.f32 0.0, %v1003
        %v1005 = vpop.f32.mrb[0].mxu0
        %v1006 = vpop.f32.mrb[0].mxu0
        %v1007 = vpop.f32.mrb[0].mxu0
        %1008 = vdwg.mxu0
        %v1017 = vunpack.c.l.b16 %v923
        %v1018 = vunpack.c.l.b16 %v924
        %v1019 = vunpack.c.l.b16 %v925
        %v1020 = vunpack.c.l.b16 %v926
        %v1021 = vunpack.c.l.b16 %v927
        %v1022 = vunpack.c.l.b16 %v928
        %v1023 = vunpack.c.l.b16 %v929
        %v1024 = vunpack.c.l.b16 %v930
        %v1025 = vpack.c.b16 %v1018, %v1017
        %v1026 = vpack.c.b16 %v1020, %v1019
        %v1027 = vpack.c.b16 %v1022, %v1021
        %v1028 = vpack.c.b16 %v1024, %v1023
        %v1034 = vsel %vm717, %v922, 0
        %1036 = vmatprep.subr.bf16.mxu0 0
        %1037 = vmatpush1.bf16.msra.mxu0 %v1025
        %1038 = vmatprep.subr.bf16.mxu0 0
        %1039 = vmatpush1.bf16.msra.mxu0 %v1026
        %1040 = vmatprep.subr.bf16.mxu0 0
        %1041 = vmatpush1.bf16.msra.mxu0 %v1027
        %1042 = vmatprep.subr.bf16.mxu0 0
        %1043 = vmatpush1.bf16.msra.mxu0 %v1028
        %1044 = vmatprep.subr.bf16.mxu0 0
        %1045 = vmatpush1.bf16.msra.mxu0 0
        %1046 = vmatprep.subr.bf16.mxu0 0
        %1047 = vmatpush1.bf16.msra.mxu0 0
        %1048 = vmatprep.subr.bf16.mxu0 0
        %1049 = vmatpush1.bf16.msra.mxu0 0
        %1050 = vmatprep.subr.bf16.mxu0 0
        %1051 = vmatpush1.bf16.msra.mxu0 0
        %1052 = vmatprep.subr.bf16.mxu0 0
        %1053 = vmatpush1.bf16.msra.mxu0 0
        %1054 = vmatprep.subr.bf16.mxu0 0
        %1055 = vmatpush1.bf16.msra.mxu0 0
        %1056 = vmatprep.subr.bf16.mxu0 0
        %1057 = vmatpush1.bf16.msra.mxu0 0
        %1058 = vmatprep.subr.bf16.mxu0 0
        %1059 = vmatpush1.bf16.msra.mxu0 0
        %1060 = vmatprep.subr.bf16.mxu0 0
        %1061 = vmatpush1.bf16.msra.mxu0 0
        %1062 = vmatprep.subr.bf16.mxu0 0
        %1063 = vmatpush1.bf16.msra.mxu0 0
        %1064 = vmatprep.subr.bf16.mxu0 0
        %1065 = vmatpush1.bf16.msra.mxu0 0
        %1066 = vmatprep.subr.bf16.mxu0 0
        %1067 = vmatpush1.bf16.msra.mxu0 0
        %1068 = vmatprep.mubr.bf16.mxu0 0
        %1069 = vmatmul.mubr.bf16.gmra.mrb[0].mxu0 %v1034
        %v1070 = vpop.f32.mrb[0].mxu0
        %v1071 = vadd.f32 %v1004, %v1070
        %v1072 = vpop.f32.mrb[0].mxu0
        %v1073 = vpop.f32.mrb[0].mxu0
        %v1074 = vpop.f32.mrb[0].mxu0
        %1075 = vdwg.mxu0
        %v1076 = vld [vmem:[#allocation2 + $0x2] sm:$0x3]
        %v1077 = vpack.c.bf16 %v1076, %v1076
        %s1078 = scalar_lea.vmem %s5, 64
        %v1079 = vld [vmem:[%s1078] sm:$0xf]
        %v1080 = vld [vmem:[%s1078 + $0x4] sm:$0xf]
        %v1081 = vld [vmem:[%s1078 + $0x8] sm:$0xf]
        %v1082 = vld [vmem:[%s1078 + $0xc] sm:$0xf]
        %v1083 = vld [vmem:[%s1078 + $0x10] sm:$0xf]
        %v1084 = vld [vmem:[%s1078 + $0x14] sm:$0xf]
        %v1085 = vld [vmem:[%s1078 + $0x18] sm:$0xf]
        %v1086 = vld [vmem:[%s1078 + $0x1c] sm:$0xf]
        %v1095 = vunpack.c.l.b16 %v1079
        %v1096 = vunpack.c.l.b16 %v1080
        %v1097 = vunpack.c.l.b16 %v1081
        %v1098 = vunpack.c.l.b16 %v1082
        %v1099 = vunpack.c.l.b16 %v1083
        %v1100 = vunpack.c.l.b16 %v1084
        %v1101 = vunpack.c.l.b16 %v1085
        %v1102 = vunpack.c.l.b16 %v1086
        %v1103 = vpack.c.b16 %v1096, %v1095
        %v1104 = vpack.c.b16 %v1098, %v1097
        %v1105 = vpack.c.b16 %v1100, %v1099
        %v1106 = vpack.c.b16 %v1102, %v1101
        %v1112 = vsel %vm717, %v1077, 0
        %1114 = vmatprep.subr.bf16.mxu0 0
        %1115 = vmatpush1.bf16.msra.mxu0 %v1103
        %1116 = vmatprep.subr.bf16.mxu0 0
        %1117 = vmatpush1.bf16.msra.mxu0 %v1104
        %1118 = vmatprep.subr.bf16.mxu0 0
        %1119 = vmatpush1.bf16.msra.mxu0 %v1105
        %1120 = vmatprep.subr.bf16.mxu0 0
        %1121 = vmatpush1.bf16.msra.mxu0 %v1106
        %1122 = vmatprep.subr.bf16.mxu0 0
        %1123 = vmatpush1.bf16.msra.mxu0 0
        %1124 = vmatprep.subr.bf16.mxu0 0
        %1125 = vmatpush1.bf16.msra.mxu0 0
        %1126 = vmatprep.subr.bf16.mxu0 0
        %1127 = vmatpush1.bf16.msra.mxu0 0
        %1128 = vmatprep.subr.bf16.mxu0 0
        %1129 = vmatpush1.bf16.msra.mxu0 0
        %1130 = vmatprep.subr.bf16.mxu0 0
        %1131 = vmatpush1.bf16.msra.mxu0 0
        %1132 = vmatprep.subr.bf16.mxu0 0
        %1133 = vmatpush1.bf16.msra.mxu0 0
        %1134 = vmatprep.subr.bf16.mxu0 0
        %1135 = vmatpush1.bf16.msra.mxu0 0
        %1136 = vmatprep.subr.bf16.mxu0 0
        %1137 = vmatpush1.bf16.msra.mxu0 0
        %1138 = vmatprep.subr.bf16.mxu0 0
        %1139 = vmatpush1.bf16.msra.mxu0 0
        %1140 = vmatprep.subr.bf16.mxu0 0
        %1141 = vmatpush1.bf16.msra.mxu0 0
        %1142 = vmatprep.subr.bf16.mxu0 0
        %1143 = vmatpush1.bf16.msra.mxu0 0
        %1144 = vmatprep.subr.bf16.mxu0 0
        %1145 = vmatpush1.bf16.msra.mxu0 0
        %1146 = vmatprep.mubr.bf16.mxu0 0
        %1147 = vmatmul.mubr.bf16.gmra.mrb[0].mxu0 %v1112
        %v1148 = vpop.f32.mrb[0].mxu0
        %v1149 = vadd.f32 0.0, %v1148
        %v1150 = vpop.f32.mrb[0].mxu0
        %v1151 = vpop.f32.mrb[0].mxu0
        %v1152 = vpop.f32.mrb[0].mxu0
        %1153 = vdwg.mxu0
        %v1154 = vadd.f32 %v1071, %v1149
        %v1155 = vld [vmem:[%s6] sm:$0x1]
        %v1157 = vlaneseq
        %v1158 = vshrl.u32 %v1157, 7
        %v1159 = vsub.s32 0, %v1158
        %v1160 = vrot.slane %v1155, %v1159
        %v1162 = vadd.f32 %v1154, %v1160
        %v1163 = vld [vmem:[%s317 + $0x1] sm:$0x3]
        %v1164 = vadd.f32 %v1162, %v1163
        %1165 = vst.msk [vmem:[%s317 + $0x1] sm:$0x3] %vm670, %v1164
        %p1166 = scmp.lt.s32.totalorder %s20, 1
        %s1167 = scalar_select %p1166, %s20, 1
        %s1168 = smul.addr %s1167, 4
        %s1169 = scalar_lea.vmem %s8, %s1168
        // Predicated region
        $region57: #{_lambda_.8} parent=51 // pred_check
          %p1170 = pneg %p211
        $region58: #{_lambda_.8} parent=51 // pred_check_branch
          %1172 = sbr.rel (%p1170) target = $region60
        $region59: #{_lambda_.8} parent=51 // pred_region
          _
        $region60: #{_lambda_.8} parent=51 // pred_fallthru
          _
      $region52: #{_lambda_.8} parent=5 // pred_fallthru
        _
      %p1173 = scmp.le.s32.totalorder 2, %s15
      // Predicated region
      $region61: #{_lambda_.8} parent=5 // pred_check
        %p1174 = pneg %p1173
      $region62: #{_lambda_.8} parent=5 // pred_check_branch
        %1176 = sbr.rel (%p1174) target = $region64
      $region63: #{_lambda_.8} parent=5 // pred_region
        %s1177 = ssub.s32 %s15, 2
        // Predicated region
        $region65: #{_lambda_.8} parent=63 // pred_check
          %p1178 = pneg %p217
        $region66: #{_lambda_.8} parent=63 // pred_check_branch
          %1180 = sbr.rel (%p1178) target = $region68
        $region67: #{_lambda_.8} parent=63 // pred_region
          %p1181 = scmp.lt.s32.totalorder %s21, 1
          %s1182 = scalar_select %p1181, %s21, 1
          %s1183 = smul.addr %s1182, 4
          %s1184 = scalar_lea.vmem %s8, %s1183
        $region68: #{_lambda_.8} parent=63 // pred_fallthru
          _
      $region64: #{_lambda_.8} parent=5 // pred_fallthru
        _
    $region6: #{_lambda_.8} parent=1 // loop_footer
      %s19 = sadd.s32 1, %s15
    $region7: #{_lambda_.8} parent=1 // loop_footer_branch
      %14 = sbr.rel target = $region3
    $region8: #{_lambda_.8} parent=1 // loop_exit
      _
    %1185 = vsyncpa [#allocation4], 1
    %s1186 = scalar_lea.sflag [#allocation4], 1
    %1187 = vsyncpa %s1186, 1

// kernel: _lambda_.7
$region0: #{_lambda_.7}
  #allocation0 [shape = 'u32[]', space=smem, size = 0x4, offset = 0x4, fixed_abs, tag = 'smem constant byte address 0x4 - core index']
  #allocation1 [shape = 'u32[144,128]{1,0:T(1,128)}', space=vmem, size = 0x12000, scoped, tag = 'internal scratch']
  #allocation2 [shape = 'f32[6,128]{1,0:T(8,128)}', space=vmem, size = 0x1000, scoped, tag = 'scratch operand']
  %s0 = inlined_call_operand.vmem [shape: bf16[2,2,5,128], index: 0, kind: input, shape index: {}]
  %s1 = inlined_call_operand.vmem [shape: bf16[3,128,128], index: 1, kind: input, shape index: {}]
  %s2 = inlined_call_operand.vmem [shape: f32[1,128], index: 2, kind: input, shape index: {}]
  %s3 = inlined_call_operand.vmem [shape: bf16[1,3,128,128], index: 3, kind: input, shape index: {}]
  %s4 = inlined_call_operand.vmem [shape: f32[1,1,128], index: 4, kind: input, shape index: {}]
  %s5 = inlined_call_operand.vmem [shape: bf16[1,3,128,128], index: 5, kind: input, shape index: {}]
  %s6 = inlined_call_operand.vmem [shape: f32[1,1,128], index: 6, kind: input, shape index: {}]
  %s7 = inlined_call_operand.vmem [shape: f32[2], index: 7, kind: input, shape index: {}]
  %s8 = inlined_call_operand.vmem [shape: f32[2,6,128], index: 8, kind: output, shape index: {}]
  %s9 = sld [smem:[#allocation0]]
  $region69: #{_lambda_.7} parent=0
    _
  %s11 = ssub.s32 1, %s9
  %s12 = scalar_select 0, %s11, %s9
  $region1: #{_lambda_.7} parent=0
    #allocation3 [shape = 'u8[512]{0}', space=smem, size = 0x200, scoped, tag = 'input window, operand 7, single buffered']
    #allocation4 [shape = 's32[2]{0}', space=sflag, size = 0x8, scoped, tag = 'scoped memory for _lambda_.7']
    %13 = vsyncpa [#allocation4], 0
    loop: start=0, step=1, limit=4
    $region2: #{_lambda_.7} parent=1 // loop_pre_header
      _
    $region3: #{_lambda_.7} parent=1 // loop_header
      %s15 = sphi 0, %s19
      %p16 = scmp.ge.s32.totalorder %s15, 4
      %s25 = sphi 0, %s27
      %s28 = sphi 0, %s25
      %s29 = sphi 0, %s28
      %s45 = sphi 0, %s29
      %s49 = sphi 0, %s49
      %s51 = sphi 0, %s49
      %s52 = sphi 0, %s51
      %s66 = sphi 0, %s52
      %s70 = sphi 0, %s70
      %s72 = sphi 0, %s70
      %s73 = sphi 0, %s72
      %s87 = sphi 0, %s73
      %s91 = sphi 0, %s91
      %s93 = sphi 0, %s91
      %s94 = sphi 0, %s93
      %s108 = sphi 0, %s94
      %s112 = sphi 0, %s112
      %s114 = sphi 0, %s112
      %s115 = sphi 0, %s114
      %s129 = sphi 0, %s115
      %s133 = sphi 0, %s133
      %s135 = sphi 0, %s133
      %s136 = sphi 0, %s135
      %s150 = sphi 0, %s136
      %s154 = sphi 0, %s154
      %s156 = sphi 0, %s154
      %s157 = sphi 0, %s156
      %s171 = sphi 0, %s157
      %s175 = sphi 0, %s175
      %s177 = sphi 0, %s175
      %s178 = sphi 0, %s177
      %s192 = sphi 0, %s178
      %s198 = sphi 0, %s200
      %s201 = sphi 0, %s198
      %s202 = sphi 0, %s201
      %s218 = sphi 0, %s202
    $region4: #{_lambda_.7} parent=1 // loop_header_branch
      %18 = sbr.rel (%p16) target = $region8
    $region5: #{_lambda_.7} parent=1 // loop_body
      %s20 = ssub.s32 %s15, 1
      %s21 = ssub.s32 %s15, 2
      %s22 = sadd.s32 %s15, 1
      %s23 = ssub.s32 %s15, %s22
      %p24 = scmp.eq.s32.totalorder %s23, 0
      %s26 = sadd.s32 %s25, 1
      %s27 = scalar_select %p24, %s25, %s26
      %p30 = pneg %p24
      %p31 = scmp.eq.s32.totalorder %s15, 1
      %p32 = por %p30, %p31
      %p33 = scmp.ne.s32.totalorder %s25, %s28
      %p34 = scmp.eq.s32.totalorder %s15, 0
      %p35 = por %p33, %p34
      %p36 = scmp.ne.s32.totalorder %s25, %s28
      %p37 = scmp.eq.s32.totalorder %s20, 1
      %p38 = por %p36, %p37
      %p39 = scmp.ne.s32.totalorder %s28, %s29
      %p40 = scmp.eq.s32.totalorder %s20, 0
      %p41 = por %p39, %p40
      %p42 = scmp.ne.s32.totalorder %s28, %s29
      %p43 = scmp.eq.s32.totalorder %s21, 1
      %p44 = por %p42, %p43
      %p46 = scmp.ne.s32.totalorder %s29, %s45
      %p47 = scmp.eq.s32.totalorder %s21, 0
      %p48 = por %p46, %p47
      %s50 = sadd.s32 %s49, 1
      %p53 = scmp.eq.s32.totalorder %s15, 1
      %p54 = scmp.ne.s32.totalorder %s49, %s51
      %p55 = scmp.eq.s32.totalorder %s15, 0
      %p56 = por %p54, %p55
      %p57 = scmp.ne.s32.totalorder %s49, %s51
      %p58 = scmp.eq.s32.totalorder %s20, 1
      %p59 = por %p57, %p58
      %p60 = scmp.ne.s32.totalorder %s51, %s52
      %p61 = scmp.eq.s32.totalorder %s20, 0
      %p62 = por %p60, %p61
      %p63 = scmp.ne.s32.totalorder %s51, %s52
      %p64 = scmp.eq.s32.totalorder %s21, 1
      %p65 = por %p63, %p64
      %p67 = scmp.ne.s32.totalorder %s52, %s66
      %p68 = scmp.eq.s32.totalorder %s21, 0
      %p69 = por %p67, %p68
      %s71 = sadd.s32 %s70, 1
      %p74 = scmp.eq.s32.totalorder %s15, 1
      %p75 = scmp.ne.s32.totalorder %s70, %s72
      %p76 = scmp.eq.s32.totalorder %s15, 0
      %p77 = por %p75, %p76
      %p78 = scmp.ne.s32.totalorder %s70, %s72
      %p79 = scmp.eq.s32.totalorder %s20, 1
      %p80 = por %p78, %p79
      %p81 = scmp.ne.s32.totalorder %s72, %s73
      %p82 = scmp.eq.s32.totalorder %s20, 0
      %p83 = por %p81, %p82
      %p84 = scmp.ne.s32.totalorder %s72, %s73
      %p85 = scmp.eq.s32.totalorder %s21, 1
      %p86 = por %p84, %p85
      %p88 = scmp.ne.s32.totalorder %s73, %s87
      %p89 = scmp.eq.s32.totalorder %s21, 0
      %p90 = por %p88, %p89
      %s92 = sadd.s32 %s91, 1
      %p95 = scmp.eq.s32.totalorder %s15, 1
      %p96 = scmp.ne.s32.totalorder %s91, %s93
      %p97 = scmp.eq.s32.totalorder %s15, 0
      %p98 = por %p96, %p97
      %p99 = scmp.ne.s32.totalorder %s91, %s93
      %p100 = scmp.eq.s32.totalorder %s20, 1
      %p101 = por %p99, %p100
      %p102 = scmp.ne.s32.totalorder %s93, %s94
      %p103 = scmp.eq.s32.totalorder %s20, 0
      %p104 = por %p102, %p103
      %p105 = scmp.ne.s32.totalorder %s93, %s94
      %p106 = scmp.eq.s32.totalorder %s21, 1
      %p107 = por %p105, %p106
      %p109 = scmp.ne.s32.totalorder %s94, %s108
      %p110 = scmp.eq.s32.totalorder %s21, 0
      %p111 = por %p109, %p110
      %s113 = sadd.s32 %s112, 1
      %p116 = scmp.eq.s32.totalorder %s15, 1
      %p117 = scmp.ne.s32.totalorder %s112, %s114
      %p118 = scmp.eq.s32.totalorder %s15, 0
      %p119 = por %p117, %p118
      %p120 = scmp.ne.s32.totalorder %s112, %s114
      %p121 = scmp.eq.s32.totalorder %s20, 1
      %p122 = por %p120, %p121
      %p123 = scmp.ne.s32.totalorder %s114, %s115
      %p124 = scmp.eq.s32.totalorder %s20, 0
      %p125 = por %p123, %p124
      %p126 = scmp.ne.s32.totalorder %s114, %s115
      %p127 = scmp.eq.s32.totalorder %s21, 1
      %p128 = por %p126, %p127
      %p130 = scmp.ne.s32.totalorder %s115, %s129
      %p131 = scmp.eq.s32.totalorder %s21, 0
      %p132 = por %p130, %p131
      %s134 = sadd.s32 %s133, 1
      %p137 = scmp.eq.s32.totalorder %s15, 1
      %p138 = scmp.ne.s32.totalorder %s133, %s135
      %p139 = scmp.eq.s32.totalorder %s15, 0
      %p140 = por %p138, %p139
      %p141 = scmp.ne.s32.totalorder %s133, %s135
      %p142 = scmp.eq.s32.totalorder %s20, 1
      %p143 = por %p141, %p142
      %p144 = scmp.ne.s32.totalorder %s135, %s136
      %p145 = scmp.eq.s32.totalorder %s20, 0
      %p146 = por %p144, %p145
      %p147 = scmp.ne.s32.totalorder %s135, %s136
      %p148 = scmp.eq.s32.totalorder %s21, 1
      %p149 = por %p147, %p148
      %p151 = scmp.ne.s32.totalorder %s136, %s150
      %p152 = scmp.eq.s32.totalorder %s21, 0
      %p153 = por %p151, %p152
      %s155 = sadd.s32 %s154, 1
      %p158 = scmp.eq.s32.totalorder %s15, 1
      %p159 = scmp.ne.s32.totalorder %s154, %s156
      %p160 = scmp.eq.s32.totalorder %s15, 0
      %p161 = por %p159, %p160
      %p162 = scmp.ne.s32.totalorder %s154, %s156
      %p163 = scmp.eq.s32.totalorder %s20, 1
      %p164 = por %p162, %p163
      %p165 = scmp.ne.s32.totalorder %s156, %s157
      %p166 = scmp.eq.s32.totalorder %s20, 0
      %p167 = por %p165, %p166
      %p168 = scmp.ne.s32.totalorder %s156, %s157
      %p169 = scmp.eq.s32.totalorder %s21, 1
      %p170 = por %p168, %p169
      %p172 = scmp.ne.s32.totalorder %s157, %s171
      %p173 = scmp.eq.s32.totalorder %s21, 0
      %p174 = por %p172, %p173
      %s176 = sadd.s32 %s175, 1
      %p179 = scmp.eq.s32.totalorder %s15, 1
      %p180 = scmp.ne.s32.totalorder %s175, %s177
      %p181 = scmp.eq.s32.totalorder %s15, 0
      %p182 = por %p180, %p181
      %p183 = scmp.ne.s32.totalorder %s175, %s177
      %p184 = scmp.eq.s32.totalorder %s20, 1
      %p185 = por %p183, %p184
      %p186 = scmp.ne.s32.totalorder %s177, %s178
      %p187 = scmp.eq.s32.totalorder %s20, 0
      %p188 = por %p186, %p187
      %p189 = scmp.ne.s32.totalorder %s177, %s178
      %p190 = scmp.eq.s32.totalorder %s21, 1
      %p191 = por %p189, %p190
      %p193 = scmp.ne.s32.totalorder %s178, %s192
      %p194 = scmp.eq.s32.totalorder %s21, 0
      %p195 = por %p193, %p194
      %s196 = ssub.s32 %s15, %s22
      %p197 = scmp.eq.s32.totalorder %s196, 0
      %s199 = sadd.s32 %s198, 1
      %s200 = scalar_select %p197, %s198, %s199
      %p203 = pneg %p197
      %p204 = scmp.eq.s32.totalorder %s15, 1
      %p205 = por %p203, %p204
      %p206 = scmp.ne.s32.totalorder %s198, %s201
      %p207 = scmp.eq.s32.totalorder %s15, 0
      %p208 = por %p206, %p207
      %p209 = scmp.ne.s32.totalorder %s198, %s201
      %p210 = scmp.eq.s32.totalorder %s20, 1
      %p211 = por %p209, %p210
      %p212 = scmp.ne.s32.totalorder %s201, %s202
      %p213 = scmp.eq.s32.totalorder %s20, 0
      %p214 = por %p212, %p213
      %p215 = scmp.ne.s32.totalorder %s201, %s202
      %p216 = scmp.eq.s32.totalorder %s21, 1
      %p217 = por %p215, %p216
      %p219 = scmp.ne.s32.totalorder %s202, %s218
      %p220 = scmp.eq.s32.totalorder %s21, 0
      %p221 = por %p219, %p220
      %p222 = scmp.le.s32.totalorder 1, %s15
      %p223 = scmp.lt.s32.totalorder %s15, 3
      %p224 = pnand %p222, %p223
      %p225 = pneg %p224
      // Predicated region
      $region9: #{_lambda_.7} parent=5 // pred_check
        _
      $region10: #{_lambda_.7} parent=5 // pred_check_branch
        %227 = sbr.rel (%p224) target = $region12
      $region11: #{_lambda_.7} parent=5 // pred_region
        %s228 = ssub.s32 %s15, 1
        // Predicated region
        $region13: #{_lambda_.7} parent=11 // pred_check
          %p229 = pneg %p62
        $region14: #{_lambda_.7} parent=11 // pred_check_branch
          %231 = sbr.rel (%p229) target = $region16
        $region15: #{_lambda_.7} parent=11 // pred_region
          _
        $region16: #{_lambda_.7} parent=11 // pred_fallthru
          _
        // Predicated region
        $region17: #{_lambda_.7} parent=11 // pred_check
          %p232 = pneg %p83
        $region18: #{_lambda_.7} parent=11 // pred_check_branch
          %234 = sbr.rel (%p232) target = $region20
        $region19: #{_lambda_.7} parent=11 // pred_region
          _
        $region20: #{_lambda_.7} parent=11 // pred_fallthru
          _
        // Predicated region
        $region21: #{_lambda_.7} parent=11 // pred_check
          %p235 = pneg %p104
        $region22: #{_lambda_.7} parent=11 // pred_check_branch
          %237 = sbr.rel (%p235) target = $region24
        $region23: #{_lambda_.7} parent=11 // pred_region
          _
        $region24: #{_lambda_.7} parent=11 // pred_fallthru
          _
        // Predicated region
        $region25: #{_lambda_.7} parent=11 // pred_check
          %p238 = pneg %p125
        $region26: #{_lambda_.7} parent=11 // pred_check_branch
          %240 = sbr.rel (%p238) target = $region28
        $region27: #{_lambda_.7} parent=11 // pred_region
          _
        $region28: #{_lambda_.7} parent=11 // pred_fallthru
          _
        // Predicated region
        $region29: #{_lambda_.7} parent=11 // pred_check
          %p241 = pneg %p146
        $region30: #{_lambda_.7} parent=11 // pred_check_branch
          %243 = sbr.rel (%p241) target = $region32
        $region31: #{_lambda_.7} parent=11 // pred_region
          _
        $region32: #{_lambda_.7} parent=11 // pred_fallthru
          _
        // Predicated region
        $region33: #{_lambda_.7} parent=11 // pred_check
          %p244 = pneg %p167
        $region34: #{_lambda_.7} parent=11 // pred_check_branch
          %246 = sbr.rel (%p244) target = $region36
        $region35: #{_lambda_.7} parent=11 // pred_region
          _
        $region36: #{_lambda_.7} parent=11 // pred_fallthru
          _
        // Predicated region
        $region37: #{_lambda_.7} parent=11 // pred_check
          %p247 = pneg %p188
        $region38: #{_lambda_.7} parent=11 // pred_check_branch
          %249 = sbr.rel (%p247) target = $region40
        $region39: #{_lambda_.7} parent=11 // pred_region
          %s251 = ssub.s32 16, 16
          %252 = vsyncadd [#allocation4], %s251
          %s254 = sshll.u32 %s7, 4
          %s255 = int_to_ptr.vmem [resolvable:$true] %s254
          %257 = dma.vmem_to_smem %s255, 16, [#allocation3], [#allocation4]
        $region40: #{_lambda_.7} parent=11 // pred_fallthru
          _
      $region12: #{_lambda_.7} parent=5 // pred_fallthru
        _
      %p258 = scmp.lt.s32.totalorder %s15, 2
      // Predicated region
      $region41: #{_lambda_.7} parent=5 // pred_check
        %p259 = pneg %p258
      $region42: #{_lambda_.7} parent=5 // pred_check_branch
        %261 = sbr.rel (%p259) target = $region44
      $region43: #{_lambda_.7} parent=5 // pred_region
        // Predicated region
        $region45: #{_lambda_.7} parent=43 // pred_check
          %p262 = pneg %p35
        $region46: #{_lambda_.7} parent=43 // pred_check_branch
          %264 = sbr.rel (%p262) target = $region48
        $region47: #{_lambda_.7} parent=43 // pred_region
          %p265 = scmp.lt.s32.totalorder %s15, 1
          %s266 = scalar_select %p265, %s15, 1
          %s267 = smul.addr %s266, 2
          %s268 = smul.addr %s267, 4
          %s269 = scalar_lea.vmem %s0, %s268
        $region48: #{_lambda_.7} parent=43 // pred_fallthru
          _
      $region44: #{_lambda_.7} parent=5 // pred_fallthru
        _
      %p270 = scmp.le.s32.totalorder 1, %s15
      %p271 = scmp.lt.s32.totalorder %s15, 3
      %p272 = pnand %p270, %p271
      %p273 = pneg %p272
      // Predicated region
      $region49: #{_lambda_.7} parent=5 // pred_check
        _
      $region50: #{_lambda_.7} parent=5 // pred_check_branch
        %275 = sbr.rel (%p272) target = $region52
      $region51: #{_lambda_.7} parent=5 // pred_region
        %s276 = ssub.s32 %s15, 1
        // Predicated region
        $region53: #{_lambda_.7} parent=51 // pred_check
          %p277 = pneg %p188
        $region54: #{_lambda_.7} parent=51 // pred_check_branch
          %279 = sbr.rel (%p277) target = $region56
        $region55: #{_lambda_.7} parent=51 // pred_region
          %280 = dma.done [#allocation4], 16
        $region56: #{_lambda_.7} parent=51 // pred_fallthru
          _
        %281 = sfence
        %p282 = scmp.lt.s32.totalorder %s20, 1
        %s283 = scalar_select %p282, %s20, 1
        %s284 = smul.addr %s283, 2
        %s285 = smul.addr %s284, 4
        %s286 = scalar_lea.vmem %s0, %s285
        %p287 = pneg %p41
        %p288 = pneg %p38
        %p289 = pneg %p62
        %p290 = pneg %p59
        %p291 = pneg %p83
        %p292 = pneg %p80
        %p293 = pneg %p104
        %p294 = pneg %p101
        %p295 = pneg %p125
        %p296 = pneg %p122
        %p297 = pneg %p146
        %p298 = pneg %p143
        %p299 = pneg %p167
        %p300 = pneg %p164
        %p301 = pneg %p188
        %p302 = pneg %p185
        %p303 = pneg %p214
        %p304 = pneg %p211
        %p305 = scmp.lt.s32.totalorder %s20, 1
        %s306 = scalar_select %p305, %s20, 1
        %s307 = smul.addr %s306, 8
        %s308 = scalar_lea.vmem %s8, %s307
        %p309 = scmp.lt.s32.totalorder %s20, 1
        %s310 = scalar_select %p309, %s20, 1
        %s311 = smul.addr %s310, 2
        %s312 = smul.addr %s311, 4
        %s313 = scalar_lea.vmem %s0, %s312
        %p314 = scmp.lt.s32.totalorder %s20, 1
        %s315 = scalar_select %p314, %s20, 1
        %s316 = smul.addr %s315, 8
        %s317 = scalar_lea.vmem %s8, %s316
        %319 = vst [vmem:[%s317] sm:$0x3f] 0.0
        %320 = vst [vmem:[#allocation2] sm:$0x3f] 0.0
        %v321 = vld [vmem:[%s313] sm:$0x3]
        %v322 = vld [vmem:[%s1] sm:$0xf]
        %v323 = vld [vmem:[%s1 + $0x4] sm:$0xf]
        %v324 = vld [vmem:[%s1 + $0x8] sm:$0xf]
        %v325 = vld [vmem:[%s1 + $0xc] sm:$0xf]
        %v326 = vld [vmem:[%s1 + $0x10] sm:$0xf]
        %v327 = vld [vmem:[%s1 + $0x14] sm:$0xf]
        %v328 = vld [vmem:[%s1 + $0x18] sm:$0xf]
        %v329 = vld [vmem:[%s1 + $0x1c] sm:$0xf]
        %v330 = vld [vmem:[%s1 + $0x20] sm:$0xf]
        %v331 = vld [vmem:[%s1 + $0x24] sm:$0xf]
        %v332 = vld [vmem:[%s1 + $0x28] sm:$0xf]
        %v333 = vld [vmem:[%s1 + $0x2c] sm:$0xf]
        %v334 = vld [vmem:[%s1 + $0x30] sm:$0xf]
        %v335 = vld [vmem:[%s1 + $0x34] sm:$0xf]
        %v336 = vld [vmem:[%s1 + $0x38] sm:$0xf]
        %v337 = vld [vmem:[%s1 + $0x3c] sm:$0xf]
        %s338 = scalar_lea.vmem %s313, 4
        %v339 = vld [vmem:[%s338] sm:$0x3]
        %s340 = scalar_lea.vmem %s1, 64
        %v341 = vld [vmem:[%s340] sm:$0xf]
        %v342 = vld [vmem:[%s340 + $0x4] sm:$0xf]
        %v343 = vld [vmem:[%s340 + $0x8] sm:$0xf]
        %v344 = vld [vmem:[%s340 + $0xc] sm:$0xf]
        %v345 = vld [vmem:[%s340 + $0x10] sm:$0xf]
        %v346 = vld [vmem:[%s340 + $0x14] sm:$0xf]
        %v347 = vld [vmem:[%s340 + $0x18] sm:$0xf]
        %v348 = vld [vmem:[%s340 + $0x1c] sm:$0xf]
        %v349 = vld [vmem:[%s340 + $0x20] sm:$0xf]
        %v350 = vld [vmem:[%s340 + $0x24] sm:$0xf]
        %v351 = vld [vmem:[%s340 + $0x28] sm:$0xf]
        %v352 = vld [vmem:[%s340 + $0x2c] sm:$0xf]
        %v353 = vld [vmem:[%s340 + $0x30] sm:$0xf]
        %v354 = vld [vmem:[%s340 + $0x34] sm:$0xf]
        %v355 = vld [vmem:[%s340 + $0x38] sm:$0xf]
        %v356 = vld [vmem:[%s340 + $0x3c] sm:$0xf]
        %v373 = vunpack.c.l.b16 %v341
        %v374 = vunpack.c.l.b16 %v342
        %v375 = vunpack.c.l.b16 %v343
        %v376 = vunpack.c.l.b16 %v344
        %v377 = vunpack.c.l.b16 %v345
        %v378 = vunpack.c.l.b16 %v346
        %v379 = vunpack.c.l.b16 %v347
        %v380 = vunpack.c.l.b16 %v348
        %v381 = vunpack.c.l.b16 %v349
        %v382 = vunpack.c.l.b16 %v350
        %v383 = vunpack.c.l.b16 %v351
        %v384 = vunpack.c.l.b16 %v352
        %v385 = vunpack.c.l.b16 %v353
        %v386 = vunpack.c.l.b16 %v354
        %v387 = vunpack.c.l.b16 %v355
        %v388 = vunpack.c.l.b16 %v356
        %v389 = vpack.c.b16 %v374, %v373
        %v390 = vpack.c.b16 %v376, %v375
        %v391 = vpack.c.b16 %v378, %v377
        %v392 = vpack.c.b16 %v380, %v379
        %v393 = vpack.c.b16 %v382, %v381
        %v394 = vpack.c.b16 %v384, %v383
        %v395 = vpack.c.b16 %v386, %v385
        %v396 = vpack.c.b16 %v388, %v387
        %405 = vmatprep.subr.bf16.mxu0 0
        %406 = vmatpush1.bf16.msra.mxu0 %v389
        %407 = vmatprep.subr.bf16.mxu0 0
        %408 = vmatpush1.bf16.msra.mxu0 %v390
        %409 = vmatprep.subr.bf16.mxu0 0
        %410 = vmatpush1.bf16.msra.mxu0 %v391
        %411 = vmatprep.subr.bf16.mxu0 0
        %412 = vmatpush1.bf16.msra.mxu0 %v392
        %413 = vmatprep.subr.bf16.mxu0 0
        %414 = vmatpush1.bf16.msra.mxu0 %v393
        %415 = vmatprep.subr.bf16.mxu0 0
        %416 = vmatpush1.bf16.msra.mxu0 %v394
        %417 = vmatprep.subr.bf16.mxu0 0
        %418 = vmatpush1.bf16.msra.mxu0 %v395
        %419 = vmatprep.subr.bf16.mxu0 0
        %420 = vmatpush1.bf16.msra.mxu0 %v396
        %421 = vmatprep.subr.bf16.mxu0 0
        %422 = vmatpush1.bf16.msra.mxu0 0
        %423 = vmatprep.subr.bf16.mxu0 0
        %424 = vmatpush1.bf16.msra.mxu0 0
        %425 = vmatprep.subr.bf16.mxu0 0
        %426 = vmatpush1.bf16.msra.mxu0 0
        %427 = vmatprep.subr.bf16.mxu0 0
        %428 = vmatpush1.bf16.msra.mxu0 0
        %429 = vmatprep.subr.bf16.mxu0 0
        %430 = vmatpush1.bf16.msra.mxu0 0
        %431 = vmatprep.subr.bf16.mxu0 0
        %432 = vmatpush1.bf16.msra.mxu0 0
        %433 = vmatprep.subr.bf16.mxu0 0
        %434 = vmatpush1.bf16.msra.mxu0 0
        %435 = vmatprep.subr.bf16.mxu0 0
        %436 = vmatpush1.bf16.msra.mxu0 0
        %437 = vmatprep.mubr.bf16.mxu0 0
        %438 = vmatmul.mubr.bf16.gmra.mrb[0].mxu0 %v339
        %v439 = vpop.f32.mrb[0].mxu0
        %v440 = vadd.f32 0.0, %v439
        %v441 = vpop.f32.mrb[0].mxu0
        %v442 = vpop.f32.mrb[0].mxu0
        %v443 = vpop.f32.mrb[0].mxu0
        %444 = vdwg.mxu0
        %v461 = vunpack.c.l.b16 %v322
        %v462 = vunpack.c.l.b16 %v323
        %v463 = vunpack.c.l.b16 %v324
        %v464 = vunpack.c.l.b16 %v325
        %v465 = vunpack.c.l.b16 %v326
        %v466 = vunpack.c.l.b16 %v327
        %v467 = vunpack.c.l.b16 %v328
        %v468 = vunpack.c.l.b16 %v329
        %v469 = vunpack.c.l.b16 %v330
        %v470 = vunpack.c.l.b16 %v331
        %v471 = vunpack.c.l.b16 %v332
        %v472 = vunpack.c.l.b16 %v333
        %v473 = vunpack.c.l.b16 %v334
        %v474 = vunpack.c.l.b16 %v335
        %v475 = vunpack.c.l.b16 %v336
        %v476 = vunpack.c.l.b16 %v337
        %v477 = vpack.c.b16 %v462, %v461
        %v478 = vpack.c.b16 %v464, %v463
        %v479 = vpack.c.b16 %v466, %v465
        %v480 = vpack.c.b16 %v468, %v467
        %v481 = vpack.c.b16 %v470, %v469
        %v482 = vpack.c.b16 %v472, %v471
        %v483 = vpack.c.b16 %v474, %v473
        %v484 = vpack.c.b16 %v476, %v475
        %493 = vmatprep.subr.bf16.mxu0 0
        %494 = vmatpush1.bf16.msra.mxu0 %v477
        %495 = vmatprep.subr.bf16.mxu0 0
        %496 = vmatpush1.bf16.msra.mxu0 %v478
        %497 = vmatprep.subr.bf16.mxu0 0
        %498 = vmatpush1.bf16.msra.mxu0 %v479
        %499 = vmatprep.subr.bf16.mxu0 0
        %500 = vmatpush1.bf16.msra.mxu0 %v480
        %501 = vmatprep.subr.bf16.mxu0 0
        %502 = vmatpush1.bf16.msra.mxu0 %v481
        %503 = vmatprep.subr.bf16.mxu0 0
        %504 = vmatpush1.bf16.msra.mxu0 %v482
        %505 = vmatprep.subr.bf16.mxu0 0
        %506 = vmatpush1.bf16.msra.mxu0 %v483
        %507 = vmatprep.subr.bf16.mxu0 0
        %508 = vmatpush1.bf16.msra.mxu0 %v484
        %509 = vmatprep.subr.bf16.mxu0 0
        %510 = vmatpush1.bf16.msra.mxu0 0
        %511 = vmatprep.subr.bf16.mxu0 0
        %512 = vmatpush1.bf16.msra.mxu0 0
        %513 = vmatprep.subr.bf16.mxu0 0
        %514 = vmatpush1.bf16.msra.mxu0 0
        %515 = vmatprep.subr.bf16.mxu0 0
        %516 = vmatpush1.bf16.msra.mxu0 0
        %517 = vmatprep.subr.bf16.mxu0 0
        %518 = vmatpush1.bf16.msra.mxu0 0
        %519 = vmatprep.subr.bf16.mxu0 0
        %520 = vmatpush1.bf16.msra.mxu0 0
        %521 = vmatprep.subr.bf16.mxu0 0
        %522 = vmatpush1.bf16.msra.mxu0 0
        %523 = vmatprep.subr.bf16.mxu0 0
        %524 = vmatpush1.bf16.msra.mxu0 0
        %525 = vmatprep.mubr.bf16.mxu0 0
        %526 = vmatmul.mubr.bf16.gmra.mrb[0].mxu0 %v321
        %v527 = vpop.f32.mrb[0].mxu0
        %v528 = vadd.f32 %v440, %v527
        %v529 = vpop.f32.mrb[0].mxu0
        %v530 = vpop.f32.mrb[0].mxu0
        %v531 = vpop.f32.mrb[0].mxu0
        %532 = vdwg.mxu0
        %v533 = vld [vmem:[%s313] sm:$0x7]
        %s534 = scalar_lea.vmem %s1, 128
        %v535 = vld [vmem:[%s534] sm:$0xf]
        %v536 = vld [vmem:[%s534 + $0x4] sm:$0xf]
        %v537 = vld [vmem:[%s534 + $0x8] sm:$0xf]
        %v538 = vld [vmem:[%s534 + $0xc] sm:$0xf]
        %v539 = vld [vmem:[%s534 + $0x10] sm:$0xf]
        %v540 = vld [vmem:[%s534 + $0x14] sm:$0xf]
        %v541 = vld [vmem:[%s534 + $0x18] sm:$0xf]
        %v542 = vld [vmem:[%s534 + $0x1c] sm:$0xf]
        %v543 = vld [vmem:[%s534 + $0x20] sm:$0xf]
        %v544 = vld [vmem:[%s534 + $0x24] sm:$0xf]
        %v545 = vld [vmem:[%s534 + $0x28] sm:$0xf]
        %v546 = vld [vmem:[%s534 + $0x2c] sm:$0xf]
        %v547 = vld [vmem:[%s534 + $0x30] sm:$0xf]
        %v548 = vld [vmem:[%s534 + $0x34] sm:$0xf]
        %v549 = vld [vmem:[%s534 + $0x38] sm:$0xf]
        %v550 = vld [vmem:[%s534 + $0x3c] sm:$0xf]
        %v552 = vunpack.c.l.b16 %v533
        %v553 = vpack.c.b16 %v552, %v552
        %v555 = vshrl.u32 %v553, 16
        %v557 = vshll.u32 %v553, 16
        %v559 = vrot.slane %v557, 1
        %v560 = vor.u32 %v555, %v559
        %v578 = vunpack.c.l.b16 %v535
        %v579 = vunpack.c.l.b16 %v536
        %v580 = vunpack.c.l.b16 %v537
        %v581 = vunpack.c.l.b16 %v538
        %v582 = vunpack.c.l.b16 %v539
        %v583 = vunpack.c.l.b16 %v540
        %v584 = vunpack.c.l.b16 %v541
        %v585 = vunpack.c.l.b16 %v542
        %v586 = vunpack.c.l.b16 %v543
        %v587 = vunpack.c.l.b16 %v544
        %v588 = vunpack.c.l.b16 %v545
        %v589 = vunpack.c.l.b16 %v546
        %v590 = vunpack.c.l.b16 %v547
        %v591 = vunpack.c.l.b16 %v548
        %v592 = vunpack.c.l.b16 %v549
        %v593 = vunpack.c.l.b16 %v550
        %v594 = vpack.c.b16 %v579, %v578
        %v595 = vpack.c.b16 %v581, %v580
        %v596 = vpack.c.b16 %v583, %v582
        %v597 = vpack.c.b16 %v585, %v584
        %v598 = vpack.c.b16 %v587, %v586
        %v599 = vpack.c.b16 %v589, %v588
        %v600 = vpack.c.b16 %v591, %v590
        %v601 = vpack.c.b16 %v593, %v592
        %610 = vmatprep.subr.bf16.mxu0 0
        %611 = vmatpush1.bf16.msra.mxu0 %v594
        %612 = vmatprep.subr.bf16.mxu0 0
        %613 = vmatpush1.bf16.msra.mxu0 %v595
        %614 = vmatprep.subr.bf16.mxu0 0
        %615 = vmatpush1.bf16.msra.mxu0 %v596
        %616 = vmatprep.subr.bf16.mxu0 0
        %617 = vmatpush1.bf16.msra.mxu0 %v597
        %618 = vmatprep.subr.bf16.mxu0 0
        %619 = vmatpush1.bf16.msra.mxu0 %v598
        %620 = vmatprep.subr.bf16.mxu0 0
        %621 = vmatpush1.bf16.msra.mxu0 %v599
        %622 = vmatprep.subr.bf16.mxu0 0
        %623 = vmatpush1.bf16.msra.mxu0 %v600
        %624 = vmatprep.subr.bf16.mxu0 0
        %625 = vmatpush1.bf16.msra.mxu0 %v601
        %626 = vmatprep.subr.bf16.mxu0 0
        %627 = vmatpush1.bf16.msra.mxu0 0
        %628 = vmatprep.subr.bf16.mxu0 0
        %629 = vmatpush1.bf16.msra.mxu0 0
        %630 = vmatprep.subr.bf16.mxu0 0
        %631 = vmatpush1.bf16.msra.mxu0 0
        %632 = vmatprep.subr.bf16.mxu0 0
        %633 = vmatpush1.bf16.msra.mxu0 0
        %634 = vmatprep.subr.bf16.mxu0 0
        %635 = vmatpush1.bf16.msra.mxu0 0
        %636 = vmatprep.subr.bf16.mxu0 0
        %637 = vmatpush1.bf16.msra.mxu0 0
        %638 = vmatprep.subr.bf16.mxu0 0
        %639 = vmatpush1.bf16.msra.mxu0 0
        %640 = vmatprep.subr.bf16.mxu0 0
        %641 = vmatpush1.bf16.msra.mxu0 0
        %642 = vmatprep.mubr.bf16.mxu0 0
        %643 = vmatmul.mubr.bf16.gmra.mrb[0].mxu0 %v560
        %v644 = vpop.f32.mrb[0].mxu0
        %v645 = vadd.f32 0.0, %v644
        %v646 = vpop.f32.mrb[0].mxu0
        %v647 = vpop.f32.mrb[0].mxu0
        %v648 = vpop.f32.mrb[0].mxu0
        %649 = vdwg.mxu0
        %v650 = vadd.f32 %v528, %v645
        %v651 = vld [vmem:[%s2] sm:$0x1]
        %v653 = vlaneseq
        %v654 = vshrl.u32 %v653, 7
        %v655 = vsub.s32 0, %v654
        %v656 = vrot.slane %v651, %v655
        %v658 = vadd.f32 %v650, %v656
        %s659 = sld [smem:[#allocation3]]
        %vm660 = vcmp.ge.f32.partialorder %v658, 0.0
        %v661 = vstv %s659
        %v662 = vmul.f32 %v661, %v658
        %v663 = vsel %vm660, %v658, %v662
        %664 = vst [vmem:[%s317 + $0x1] sm:$0xf] %v663
        %v665 = vld [vmem:[%s317] sm:$0xf]
        %v666 = vpack.c.bf16 %v665, %v665
        %v667 = vld [vmem:[%s3] sm:$0xf]
        %v668 = vld [vmem:[%s3 + $0x4] sm:$0xf]
        %v669 = vld [vmem:[%s3 + $0x8] sm:$0xf]
        %v670 = vld [vmem:[%s3 + $0xc] sm:$0xf]
        %v671 = vld [vmem:[%s3 + $0x10] sm:$0xf]
        %v672 = vld [vmem:[%s3 + $0x14] sm:$0xf]
        %v673 = vld [vmem:[%s3 + $0x18] sm:$0xf]
        %v674 = vld [vmem:[%s3 + $0x1c] sm:$0xf]
        %v675 = vld [vmem:[%s3 + $0x20] sm:$0xf]
        %v676 = vld [vmem:[%s3 + $0x24] sm:$0xf]
        %v677 = vld [vmem:[%s3 + $0x28] sm:$0xf]
        %v678 = vld [vmem:[%s3 + $0x2c] sm:$0xf]
        %v679 = vld [vmem:[%s3 + $0x30] sm:$0xf]
        %v680 = vld [vmem:[%s3 + $0x34] sm:$0xf]
        %v681 = vld [vmem:[%s3 + $0x38] sm:$0xf]
        %v682 = vld [vmem:[%s3 + $0x3c] sm:$0xf]
        %v683 = vld [vmem:[%s317 + $0x1] sm:$0xf]
        %v684 = vpack.c.bf16 %v683, %v683
        %s685 = scalar_lea.vmem %s3, 64
        %v686 = vld [vmem:[%s685] sm:$0xf]
        %v687 = vld [vmem:[%s685 + $0x4] sm:$0xf]
        %v688 = vld [vmem:[%s685 + $0x8] sm:$0xf]
        %v689 = vld [vmem:[%s685 + $0xc] sm:$0xf]
        %v690 = vld [vmem:[%s685 + $0x10] sm:$0xf]
        %v691 = vld [vmem:[%s685 + $0x14] sm:$0xf]
        %v692 = vld [vmem:[%s685 + $0x18] sm:$0xf]
        %v693 = vld [vmem:[%s685 + $0x1c] sm:$0xf]
        %v694 = vld [vmem:[%s685 + $0x20] sm:$0xf]
        %v695 = vld [vmem:[%s685 + $0x24] sm:$0xf]
        %v696 = vld [vmem:[%s685 + $0x28] sm:$0xf]
        %v697 = vld [vmem:[%s685 + $0x2c] sm:$0xf]
        %v698 = vld [vmem:[%s685 + $0x30] sm:$0xf]
        %v699 = vld [vmem:[%s685 + $0x34] sm:$0xf]
        %v700 = vld [vmem:[%s685 + $0x38] sm:$0xf]
        %v701 = vld [vmem:[%s685 + $0x3c] sm:$0xf]
        %v718 = vunpack.c.l.b16 %v686
        %v719 = vunpack.c.l.b16 %v687
        %v720 = vunpack.c.l.b16 %v688
        %v721 = vunpack.c.l.b16 %v689
        %v722 = vunpack.c.l.b16 %v690
        %v723 = vunpack.c.l.b16 %v691
        %v724 = vunpack.c.l.b16 %v692
        %v725 = vunpack.c.l.b16 %v693
        %v726 = vunpack.c.l.b16 %v694
        %v727 = vunpack.c.l.b16 %v695
        %v728 = vunpack.c.l.b16 %v696
        %v729 = vunpack.c.l.b16 %v697
        %v730 = vunpack.c.l.b16 %v698
        %v731 = vunpack.c.l.b16 %v699
        %v732 = vunpack.c.l.b16 %v700
        %v733 = vunpack.c.l.b16 %v701
        %v734 = vpack.c.b16 %v719, %v718
        %v735 = vpack.c.b16 %v721, %v720
        %v736 = vpack.c.b16 %v723, %v722
        %v737 = vpack.c.b16 %v725, %v724
        %v738 = vpack.c.b16 %v727, %v726
        %v739 = vpack.c.b16 %v729, %v728
        %v740 = vpack.c.b16 %v731, %v730
        %v741 = vpack.c.b16 %v733, %v732
        %750 = vmatprep.subr.bf16.mxu0 0
        %751 = vmatpush1.bf16.msra.mxu0 %v734
        %752 = vmatprep.subr.bf16.mxu0 0
        %753 = vmatpush1.bf16.msra.mxu0 %v735
        %754 = vmatprep.subr.bf16.mxu0 0
        %755 = vmatpush1.bf16.msra.mxu0 %v736
        %756 = vmatprep.subr.bf16.mxu0 0
        %757 = vmatpush1.bf16.msra.mxu0 %v737
        %758 = vmatprep.subr.bf16.mxu0 0
        %759 = vmatpush1.bf16.msra.mxu0 %v738
        %760 = vmatprep.subr.bf16.mxu0 0
        %761 = vmatpush1.bf16.msra.mxu0 %v739
        %762 = vmatprep.subr.bf16.mxu0 0
        %763 = vmatpush1.bf16.msra.mxu0 %v740
        %764 = vmatprep.subr.bf16.mxu0 0
        %765 = vmatpush1.bf16.msra.mxu0 %v741
        %766 = vmatprep.subr.bf16.mxu0 0
        %767 = vmatpush1.bf16.msra.mxu0 0
        %768 = vmatprep.subr.bf16.mxu0 0
        %769 = vmatpush1.bf16.msra.mxu0 0
        %770 = vmatprep.subr.bf16.mxu0 0
        %771 = vmatpush1.bf16.msra.mxu0 0
        %772 = vmatprep.subr.bf16.mxu0 0
        %773 = vmatpush1.bf16.msra.mxu0 0
        %774 = vmatprep.subr.bf16.mxu0 0
        %775 = vmatpush1.bf16.msra.mxu0 0
        %776 = vmatprep.subr.bf16.mxu0 0
        %777 = vmatpush1.bf16.msra.mxu0 0
        %778 = vmatprep.subr.bf16.mxu0 0
        %779 = vmatpush1.bf16.msra.mxu0 0
        %780 = vmatprep.subr.bf16.mxu0 0
        %781 = vmatpush1.bf16.msra.mxu0 0
        %782 = vmatprep.mubr.bf16.mxu0 0
        %783 = vmatmul.mubr.bf16.gmra.mrb[0].mxu0 %v684
        %v784 = vpop.f32.mrb[0].mxu0
        %v785 = vadd.f32 0.0, %v784
        %v786 = vpop.f32.mrb[0].mxu0
        %v787 = vpop.f32.mrb[0].mxu0
        %v788 = vpop.f32.mrb[0].mxu0
        %789 = vdwg.mxu0
        %v806 = vunpack.c.l.b16 %v667
        %v807 = vunpack.c.l.b16 %v668
        %v808 = vunpack.c.l.b16 %v669
        %v809 = vunpack.c.l.b16 %v670
        %v810 = vunpack.c.l.b16 %v671
        %v811 = vunpack.c.l.b16 %v672
        %v812 = vunpack.c.l.b16 %v673
        %v813 = vunpack.c.l.b16 %v674
        %v814 = vunpack.c.l.b16 %v675
        %v815 = vunpack.c.l.b16 %v676
        %v816 = vunpack.c.l.b16 %v677
        %v817 = vunpack.c.l.b16 %v678
        %v818 = vunpack.c.l.b16 %v679
        %v819 = vunpack.c.l.b16 %v680
        %v820 = vunpack.c.l.b16 %v681
        %v821 = vunpack.c.l.b16 %v682
        %v822 = vpack.c.b16 %v807, %v806
        %v823 = vpack.c.b16 %v809, %v808
        %v824 = vpack.c.b16 %v811, %v810
        %v825 = vpack.c.b16 %v813, %v812
        %v826 = vpack.c.b16 %v815, %v814
        %v827 = vpack.c.b16 %v817, %v816
        %v828 = vpack.c.b16 %v819, %v818
        %v829 = vpack.c.b16 %v821, %v820
        %838 = vmatprep.subr.bf16.mxu0 0
        %839 = vmatpush1.bf16.msra.mxu0 %v822
        %840 = vmatprep.subr.bf16.mxu0 0
        %841 = vmatpush1.bf16.msra.mxu0 %v823
        %842 = vmatprep.subr.bf16.mxu0 0
        %843 = vmatpush1.bf16.msra.mxu0 %v824
        %844 = vmatprep.subr.bf16.mxu0 0
        %845 = vmatpush1.bf16.msra.mxu0 %v825
        %846 = vmatprep.subr.bf16.mxu0 0
        %847 = vmatpush1.bf16.msra.mxu0 %v826
        %848 = vmatprep.subr.bf16.mxu0 0
        %849 = vmatpush1.bf16.msra.mxu0 %v827
        %850 = vmatprep.subr.bf16.mxu0 0
        %851 = vmatpush1.bf16.msra.mxu0 %v828
        %852 = vmatprep.subr.bf16.mxu0 0
        %853 = vmatpush1.bf16.msra.mxu0 %v829
        %854 = vmatprep.subr.bf16.mxu0 0
        %855 = vmatpush1.bf16.msra.mxu0 0
        %856 = vmatprep.subr.bf16.mxu0 0
        %857 = vmatpush1.bf16.msra.mxu0 0
        %858 = vmatprep.subr.bf16.mxu0 0
        %859 = vmatpush1.bf16.msra.mxu0 0
        %860 = vmatprep.subr.bf16.mxu0 0
        %861 = vmatpush1.bf16.msra.mxu0 0
        %862 = vmatprep.subr.bf16.mxu0 0
        %863 = vmatpush1.bf16.msra.mxu0 0
        %864 = vmatprep.subr.bf16.mxu0 0
        %865 = vmatpush1.bf16.msra.mxu0 0
        %866 = vmatprep.subr.bf16.mxu0 0
        %867 = vmatpush1.bf16.msra.mxu0 0
        %868 = vmatprep.subr.bf16.mxu0 0
        %869 = vmatpush1.bf16.msra.mxu0 0
        %870 = vmatprep.mubr.bf16.mxu0 0
        %871 = vmatmul.mubr.bf16.gmra.mrb[0].mxu0 %v666
        %v872 = vpop.f32.mrb[0].mxu0
        %v873 = vadd.f32 %v785, %v872
        %v874 = vpop.f32.mrb[0].mxu0
        %v875 = vpop.f32.mrb[0].mxu0
        %v876 = vpop.f32.mrb[0].mxu0
        %877 = vdwg.mxu0
        %v878 = vld [vmem:[%s317 + $0x2] sm:$0xf]
        %v879 = vpack.c.bf16 %v878, %v878
        %s880 = scalar_lea.vmem %s3, 128
        %v881 = vld [vmem:[%s880] sm:$0xf]
        %v882 = vld [vmem:[%s880 + $0x4] sm:$0xf]
        %v883 = vld [vmem:[%s880 + $0x8] sm:$0xf]
        %v884 = vld [vmem:[%s880 + $0xc] sm:$0xf]
        %v885 = vld [vmem:[%s880 + $0x10] sm:$0xf]
        %v886 = vld [vmem:[%s880 + $0x14] sm:$0xf]
        %v887 = vld [vmem:[%s880 + $0x18] sm:$0xf]
        %v888 = vld [vmem:[%s880 + $0x1c] sm:$0xf]
        %v889 = vld [vmem:[%s880 + $0x20] sm:$0xf]
        %v890 = vld [vmem:[%s880 + $0x24] sm:$0xf]
        %v891 = vld [vmem:[%s880 + $0x28] sm:$0xf]
        %v892 = vld [vmem:[%s880 + $0x2c] sm:$0xf]
        %v893 = vld [vmem:[%s880 + $0x30] sm:$0xf]
        %v894 = vld [vmem:[%s880 + $0x34] sm:$0xf]
        %v895 = vld [vmem:[%s880 + $0x38] sm:$0xf]
        %v896 = vld [vmem:[%s880 + $0x3c] sm:$0xf]
        %v913 = vunpack.c.l.b16 %v881
        %v914 = vunpack.c.l.b16 %v882
        %v915 = vunpack.c.l.b16 %v883
        %v916 = vunpack.c.l.b16 %v884
        %v917 = vunpack.c.l.b16 %v885
        %v918 = vunpack.c.l.b16 %v886
        %v919 = vunpack.c.l.b16 %v887
        %v920 = vunpack.c.l.b16 %v888
        %v921 = vunpack.c.l.b16 %v889
        %v922 = vunpack.c.l.b16 %v890
        %v923 = vunpack.c.l.b16 %v891
        %v924 = vunpack.c.l.b16 %v892
        %v925 = vunpack.c.l.b16 %v893
        %v926 = vunpack.c.l.b16 %v894
        %v927 = vunpack.c.l.b16 %v895
        %v928 = vunpack.c.l.b16 %v896
        %v929 = vpack.c.b16 %v914, %v913
        %v930 = vpack.c.b16 %v916, %v915
        %v931 = vpack.c.b16 %v918, %v917
        %v932 = vpack.c.b16 %v920, %v919
        %v933 = vpack.c.b16 %v922, %v921
        %v934 = vpack.c.b16 %v924, %v923
        %v935 = vpack.c.b16 %v926, %v925
        %v936 = vpack.c.b16 %v928, %v927
        %945 = vmatprep.subr.bf16.mxu0 0
        %946 = vmatpush1.bf16.msra.mxu0 %v929
        %947 = vmatprep.subr.bf16.mxu0 0
        %948 = vmatpush1.bf16.msra.mxu0 %v930
        %949 = vmatprep.subr.bf16.mxu0 0
        %950 = vmatpush1.bf16.msra.mxu0 %v931
        %951 = vmatprep.subr.bf16.mxu0 0
        %952 = vmatpush1.bf16.msra.mxu0 %v932
        %953 = vmatprep.subr.bf16.mxu0 0
        %954 = vmatpush1.bf16.msra.mxu0 %v933
        %955 = vmatprep.subr.bf16.mxu0 0
        %956 = vmatpush1.bf16.msra.mxu0 %v934
        %957 = vmatprep.subr.bf16.mxu0 0
        %958 = vmatpush1.bf16.msra.mxu0 %v935
        %959 = vmatprep.subr.bf16.mxu0 0
        %960 = vmatpush1.bf16.msra.mxu0 %v936
        %961 = vmatprep.subr.bf16.mxu0 0
        %962 = vmatpush1.bf16.msra.mxu0 0
        %963 = vmatprep.subr.bf16.mxu0 0
        %964 = vmatpush1.bf16.msra.mxu0 0
        %965 = vmatprep.subr.bf16.mxu0 0
        %966 = vmatpush1.bf16.msra.mxu0 0
        %967 = vmatprep.subr.bf16.mxu0 0
        %968 = vmatpush1.bf16.msra.mxu0 0
        %969 = vmatprep.subr.bf16.mxu0 0
        %970 = vmatpush1.bf16.msra.mxu0 0
        %971 = vmatprep.subr.bf16.mxu0 0
        %972 = vmatpush1.bf16.msra.mxu0 0
        %973 = vmatprep.subr.bf16.mxu0 0
        %974 = vmatpush1.bf16.msra.mxu0 0
        %975 = vmatprep.subr.bf16.mxu0 0
        %976 = vmatpush1.bf16.msra.mxu0 0
        %977 = vmatprep.mubr.bf16.mxu0 0
        %978 = vmatmul.mubr.bf16.gmra.mrb[0].mxu0 %v879
        %v979 = vpop.f32.mrb[0].mxu0
        %v980 = vadd.f32 0.0, %v979
        %v981 = vpop.f32.mrb[0].mxu0
        %v982 = vpop.f32.mrb[0].mxu0
        %v983 = vpop.f32.mrb[0].mxu0
        %984 = vdwg.mxu0
        %v985 = vadd.f32 %v873, %v980
        %v986 = vld [vmem:[%s4] sm:$0x1]
        %v988 = vlaneseq
        %v989 = vshrl.u32 %v988, 7
        %v990 = vsub.s32 0, %v989
        %v991 = vrot.slane %v986, %v990
        %v993 = vadd.f32 %v985, %v991
        %s994 = sld [smem:[#allocation3 + $0x1]]
        %vm995 = vcmp.ge.f32.partialorder %v993, 0.0
        %v996 = vstv %s994
        %v997 = vmul.f32 %v996, %v993
        %v998 = vsel %vm995, %v993, %v997
        %999 = vst [vmem:[#allocation2 + $0x1] sm:$0xf] %v998
        %v1000 = vld [vmem:[#allocation2] sm:$0xf]
        %v1001 = vpack.c.bf16 %v1000, %v1000
        %v1002 = vld [vmem:[%s5] sm:$0xf]
        %v1003 = vld [vmem:[%s5 + $0x4] sm:$0xf]
        %v1004 = vld [vmem:[%s5 + $0x8] sm:$0xf]
        %v1005 = vld [vmem:[%s5 + $0xc] sm:$0xf]
        %v1006 = vld [vmem:[%s5 + $0x10] sm:$0xf]
        %v1007 = vld [vmem:[%s5 + $0x14] sm:$0xf]
        %v1008 = vld [vmem:[%s5 + $0x18] sm:$0xf]
        %v1009 = vld [vmem:[%s5 + $0x1c] sm:$0xf]
        %v1010 = vld [vmem:[%s5 + $0x20] sm:$0xf]
        %v1011 = vld [vmem:[%s5 + $0x24] sm:$0xf]
        %v1012 = vld [vmem:[%s5 + $0x28] sm:$0xf]
        %v1013 = vld [vmem:[%s5 + $0x2c] sm:$0xf]
        %v1014 = vld [vmem:[%s5 + $0x30] sm:$0xf]
        %v1015 = vld [vmem:[%s5 + $0x34] sm:$0xf]
        %v1016 = vld [vmem:[%s5 + $0x38] sm:$0xf]
        %v1017 = vld [vmem:[%s5 + $0x3c] sm:$0xf]
        %v1018 = vld [vmem:[#allocation2 + $0x1] sm:$0xf]
        %v1019 = vpack.c.bf16 %v1018, %v1018
        %s1020 = scalar_lea.vmem %s5, 64
        %v1021 = vld [vmem:[%s1020] sm:$0xf]
        %v1022 = vld [vmem:[%s1020 + $0x4] sm:$0xf]
        %v1023 = vld [vmem:[%s1020 + $0x8] sm:$0xf]
        %v1024 = vld [vmem:[%s1020 + $0xc] sm:$0xf]
        %v1025 = vld [vmem:[%s1020 + $0x10] sm:$0xf]
        %v1026 = vld [vmem:[%s1020 + $0x14] sm:$0xf]
        %v1027 = vld [vmem:[%s1020 + $0x18] sm:$0xf]
        %v1028 = vld [vmem:[%s1020 + $0x1c] sm:$0xf]
        %v1029 = vld [vmem:[%s1020 + $0x20] sm:$0xf]
        %v1030 = vld [vmem:[%s1020 + $0x24] sm:$0xf]
        %v1031 = vld [vmem:[%s1020 + $0x28] sm:$0xf]
        %v1032 = vld [vmem:[%s1020 + $0x2c] sm:$0xf]
        %v1033 = vld [vmem:[%s1020 + $0x30] sm:$0xf]
        %v1034 = vld [vmem:[%s1020 + $0x34] sm:$0xf]
        %v1035 = vld [vmem:[%s1020 + $0x38] sm:$0xf]
        %v1036 = vld [vmem:[%s1020 + $0x3c] sm:$0xf]
        %v1053 = vunpack.c.l.b16 %v1021
        %v1054 = vunpack.c.l.b16 %v1022
        %v1055 = vunpack.c.l.b16 %v1023
        %v1056 = vunpack.c.l.b16 %v1024
        %v1057 = vunpack.c.l.b16 %v1025
        %v1058 = vunpack.c.l.b16 %v1026
        %v1059 = vunpack.c.l.b16 %v1027
        %v1060 = vunpack.c.l.b16 %v1028
        %v1061 = vunpack.c.l.b16 %v1029
        %v1062 = vunpack.c.l.b16 %v1030
        %v1063 = vunpack.c.l.b16 %v1031
        %v1064 = vunpack.c.l.b16 %v1032
        %v1065 = vunpack.c.l.b16 %v1033
        %v1066 = vunpack.c.l.b16 %v1034
        %v1067 = vunpack.c.l.b16 %v1035
        %v1068 = vunpack.c.l.b16 %v1036
        %v1069 = vpack.c.b16 %v1054, %v1053
        %v1070 = vpack.c.b16 %v1056, %v1055
        %v1071 = vpack.c.b16 %v1058, %v1057
        %v1072 = vpack.c.b16 %v1060, %v1059
        %v1073 = vpack.c.b16 %v1062, %v1061
        %v1074 = vpack.c.b16 %v1064, %v1063
        %v1075 = vpack.c.b16 %v1066, %v1065
        %v1076 = vpack.c.b16 %v1068, %v1067
        %1085 = vmatprep.subr.bf16.mxu0 0
        %1086 = vmatpush1.bf16.msra.mxu0 %v1069
        %1087 = vmatprep.subr.bf16.mxu0 0
        %1088 = vmatpush1.bf16.msra.mxu0 %v1070
        %1089 = vmatprep.subr.bf16.mxu0 0
        %1090 = vmatpush1.bf16.msra.mxu0 %v1071
        %1091 = vmatprep.subr.bf16.mxu0 0
        %1092 = vmatpush1.bf16.msra.mxu0 %v1072
        %1093 = vmatprep.subr.bf16.mxu0 0
        %1094 = vmatpush1.bf16.msra.mxu0 %v1073
        %1095 = vmatprep.subr.bf16.mxu0 0
        %1096 = vmatpush1.bf16.msra.mxu0 %v1074
        %1097 = vmatprep.subr.bf16.mxu0 0
        %1098 = vmatpush1.bf16.msra.mxu0 %v1075
        %1099 = vmatprep.subr.bf16.mxu0 0
        %1100 = vmatpush1.bf16.msra.mxu0 %v1076
        %1101 = vmatprep.subr.bf16.mxu0 0
        %1102 = vmatpush1.bf16.msra.mxu0 0
        %1103 = vmatprep.subr.bf16.mxu0 0
        %1104 = vmatpush1.bf16.msra.mxu0 0
        %1105 = vmatprep.subr.bf16.mxu0 0
        %1106 = vmatpush1.bf16.msra.mxu0 0
        %1107 = vmatprep.subr.bf16.mxu0 0
        %1108 = vmatpush1.bf16.msra.mxu0 0
        %1109 = vmatprep.subr.bf16.mxu0 0
        %1110 = vmatpush1.bf16.msra.mxu0 0
        %1111 = vmatprep.subr.bf16.mxu0 0
        %1112 = vmatpush1.bf16.msra.mxu0 0
        %1113 = vmatprep.subr.bf16.mxu0 0
        %1114 = vmatpush1.bf16.msra.mxu0 0
        %1115 = vmatprep.subr.bf16.mxu0 0
        %1116 = vmatpush1.bf16.msra.mxu0 0
        %1117 = vmatprep.mubr.bf16.mxu0 0
        %1118 = vmatmul.mubr.bf16.gmra.mrb[0].mxu0 %v1019
        %v1119 = vpop.f32.mrb[0].mxu0
        %v1120 = vadd.f32 0.0, %v1119
        %v1121 = vpop.f32.mrb[0].mxu0
        %v1122 = vpop.f32.mrb[0].mxu0
        %v1123 = vpop.f32.mrb[0].mxu0
        %1124 = vdwg.mxu0
        %v1141 = vunpack.c.l.b16 %v1002
        %v1142 = vunpack.c.l.b16 %v1003
        %v1143 = vunpack.c.l.b16 %v1004
        %v1144 = vunpack.c.l.b16 %v1005
        %v1145 = vunpack.c.l.b16 %v1006
        %v1146 = vunpack.c.l.b16 %v1007
        %v1147 = vunpack.c.l.b16 %v1008
        %v1148 = vunpack.c.l.b16 %v1009
        %v1149 = vunpack.c.l.b16 %v1010
        %v1150 = vunpack.c.l.b16 %v1011
        %v1151 = vunpack.c.l.b16 %v1012
        %v1152 = vunpack.c.l.b16 %v1013
        %v1153 = vunpack.c.l.b16 %v1014
        %v1154 = vunpack.c.l.b16 %v1015
        %v1155 = vunpack.c.l.b16 %v1016
        %v1156 = vunpack.c.l.b16 %v1017
        %v1157 = vpack.c.b16 %v1142, %v1141
        %v1158 = vpack.c.b16 %v1144, %v1143
        %v1159 = vpack.c.b16 %v1146, %v1145
        %v1160 = vpack.c.b16 %v1148, %v1147
        %v1161 = vpack.c.b16 %v1150, %v1149
        %v1162 = vpack.c.b16 %v1152, %v1151
        %v1163 = vpack.c.b16 %v1154, %v1153
        %v1164 = vpack.c.b16 %v1156, %v1155
        %1173 = vmatprep.subr.bf16.mxu0 0
        %1174 = vmatpush1.bf16.msra.mxu0 %v1157
        %1175 = vmatprep.subr.bf16.mxu0 0
        %1176 = vmatpush1.bf16.msra.mxu0 %v1158
        %1177 = vmatprep.subr.bf16.mxu0 0
        %1178 = vmatpush1.bf16.msra.mxu0 %v1159
        %1179 = vmatprep.subr.bf16.mxu0 0
        %1180 = vmatpush1.bf16.msra.mxu0 %v1160
        %1181 = vmatprep.subr.bf16.mxu0 0
        %1182 = vmatpush1.bf16.msra.mxu0 %v1161
        %1183 = vmatprep.subr.bf16.mxu0 0
        %1184 = vmatpush1.bf16.msra.mxu0 %v1162
        %1185 = vmatprep.subr.bf16.mxu0 0
        %1186 = vmatpush1.bf16.msra.mxu0 %v1163
        %1187 = vmatprep.subr.bf16.mxu0 0
        %1188 = vmatpush1.bf16.msra.mxu0 %v1164
        %1189 = vmatprep.subr.bf16.mxu0 0
        %1190 = vmatpush1.bf16.msra.mxu0 0
        %1191 = vmatprep.subr.bf16.mxu0 0
        %1192 = vmatpush1.bf16.msra.mxu0 0
        %1193 = vmatprep.subr.bf16.mxu0 0
        %1194 = vmatpush1.bf16.msra.mxu0 0
        %1195 = vmatprep.subr.bf16.mxu0 0
        %1196 = vmatpush1.bf16.msra.mxu0 0
        %1197 = vmatprep.subr.bf16.mxu0 0
        %1198 = vmatpush1.bf16.msra.mxu0 0
        %1199 = vmatprep.subr.bf16.mxu0 0
        %1200 = vmatpush1.bf16.msra.mxu0 0
        %1201 = vmatprep.subr.bf16.mxu0 0
        %1202 = vmatpush1.bf16.msra.mxu0 0
        %1203 = vmatprep.subr.bf16.mxu0 0
        %1204 = vmatpush1.bf16.msra.mxu0 0
        %1205 = vmatprep.mubr.bf16.mxu0 0
        %1206 = vmatmul.mubr.bf16.gmra.mrb[0].mxu0 %v1001
        %v1207 = vpop.f32.mrb[0].mxu0
        %v1208 = vadd.f32 %v1120, %v1207
        %v1209 = vpop.f32.mrb[0].mxu0
        %v1210 = vpop.f32.mrb[0].mxu0
        %v1211 = vpop.f32.mrb[0].mxu0
        %1212 = vdwg.mxu0
        %v1213 = vld [vmem:[#allocation2 + $0x2] sm:$0xf]
        %v1214 = vpack.c.bf16 %v1213, %v1213
        %s1215 = scalar_lea.vmem %s5, 128
        %v1216 = vld [vmem:[%s1215] sm:$0xf]
        %v1217 = vld [vmem:[%s1215 + $0x4] sm:$0xf]
        %v1218 = vld [vmem:[%s1215 + $0x8] sm:$0xf]
        %v1219 = vld [vmem:[%s1215 + $0xc] sm:$0xf]
        %v1220 = vld [vmem:[%s1215 + $0x10] sm:$0xf]
        %v1221 = vld [vmem:[%s1215 + $0x14] sm:$0xf]
        %v1222 = vld [vmem:[%s1215 + $0x18] sm:$0xf]
        %v1223 = vld [vmem:[%s1215 + $0x1c] sm:$0xf]
        %v1224 = vld [vmem:[%s1215 + $0x20] sm:$0xf]
        %v1225 = vld [vmem:[%s1215 + $0x24] sm:$0xf]
        %v1226 = vld [vmem:[%s1215 + $0x28] sm:$0xf]
        %v1227 = vld [vmem:[%s1215 + $0x2c] sm:$0xf]
        %v1228 = vld [vmem:[%s1215 + $0x30] sm:$0xf]
        %v1229 = vld [vmem:[%s1215 + $0x34] sm:$0xf]
        %v1230 = vld [vmem:[%s1215 + $0x38] sm:$0xf]
        %v1231 = vld [vmem:[%s1215 + $0x3c] sm:$0xf]
        %v1248 = vunpack.c.l.b16 %v1216
        %v1249 = vunpack.c.l.b16 %v1217
        %v1250 = vunpack.c.l.b16 %v1218
        %v1251 = vunpack.c.l.b16 %v1219
        %v1252 = vunpack.c.l.b16 %v1220
        %v1253 = vunpack.c.l.b16 %v1221
        %v1254 = vunpack.c.l.b16 %v1222
        %v1255 = vunpack.c.l.b16 %v1223
        %v1256 = vunpack.c.l.b16 %v1224
        %v1257 = vunpack.c.l.b16 %v1225
        %v1258 = vunpack.c.l.b16 %v1226
        %v1259 = vunpack.c.l.b16 %v1227
        %v1260 = vunpack.c.l.b16 %v1228
        %v1261 = vunpack.c.l.b16 %v1229
        %v1262 = vunpack.c.l.b16 %v1230
        %v1263 = vunpack.c.l.b16 %v1231
        %v1264 = vpack.c.b16 %v1249, %v1248
        %v1265 = vpack.c.b16 %v1251, %v1250
        %v1266 = vpack.c.b16 %v1253, %v1252
        %v1267 = vpack.c.b16 %v1255, %v1254
        %v1268 = vpack.c.b16 %v1257, %v1256
        %v1269 = vpack.c.b16 %v1259, %v1258
        %v1270 = vpack.c.b16 %v1261, %v1260
        %v1271 = vpack.c.b16 %v1263, %v1262
        %1280 = vmatprep.subr.bf16.mxu0 0
        %1281 = vmatpush1.bf16.msra.mxu0 %v1264
        %1282 = vmatprep.subr.bf16.mxu0 0
        %1283 = vmatpush1.bf16.msra.mxu0 %v1265
        %1284 = vmatprep.subr.bf16.mxu0 0
        %1285 = vmatpush1.bf16.msra.mxu0 %v1266
        %1286 = vmatprep.subr.bf16.mxu0 0
        %1287 = vmatpush1.bf16.msra.mxu0 %v1267
        %1288 = vmatprep.subr.bf16.mxu0 0
        %1289 = vmatpush1.bf16.msra.mxu0 %v1268
        %1290 = vmatprep.subr.bf16.mxu0 0
        %1291 = vmatpush1.bf16.msra.mxu0 %v1269
        %1292 = vmatprep.subr.bf16.mxu0 0
        %1293 = vmatpush1.bf16.msra.mxu0 %v1270
        %1294 = vmatprep.subr.bf16.mxu0 0
        %1295 = vmatpush1.bf16.msra.mxu0 %v1271
        %1296 = vmatprep.subr.bf16.mxu0 0
        %1297 = vmatpush1.bf16.msra.mxu0 0
        %1298 = vmatprep.subr.bf16.mxu0 0
        %1299 = vmatpush1.bf16.msra.mxu0 0
        %1300 = vmatprep.subr.bf16.mxu0 0
        %1301 = vmatpush1.bf16.msra.mxu0 0
        %1302 = vmatprep.subr.bf16.mxu0 0
        %1303 = vmatpush1.bf16.msra.mxu0 0
        %1304 = vmatprep.subr.bf16.mxu0 0
        %1305 = vmatpush1.bf16.msra.mxu0 0
        %1306 = vmatprep.subr.bf16.mxu0 0
        %1307 = vmatpush1.bf16.msra.mxu0 0
        %1308 = vmatprep.subr.bf16.mxu0 0
        %1309 = vmatpush1.bf16.msra.mxu0 0
        %1310 = vmatprep.subr.bf16.mxu0 0
        %1311 = vmatpush1.bf16.msra.mxu0 0
        %1312 = vmatprep.mubr.bf16.mxu0 0
        %1313 = vmatmul.mubr.bf16.gmra.mrb[0].mxu0 %v1214
        %v1314 = vpop.f32.mrb[0].mxu0
        %v1315 = vadd.f32 0.0, %v1314
        %v1316 = vpop.f32.mrb[0].mxu0
        %v1317 = vpop.f32.mrb[0].mxu0
        %v1318 = vpop.f32.mrb[0].mxu0
        %1319 = vdwg.mxu0
        %v1320 = vadd.f32 %v1208, %v1315
        %v1321 = vld [vmem:[%s6] sm:$0x1]
        %v1323 = vlaneseq
        %v1324 = vshrl.u32 %v1323, 7
        %v1325 = vsub.s32 0, %v1324
        %v1326 = vrot.slane %v1321, %v1325
        %v1328 = vadd.f32 %v1320, %v1326
        %v1329 = vld [vmem:[%s317 + $0x1] sm:$0xf]
        %v1330 = vadd.f32 %v1328, %v1329
        %1331 = vst [vmem:[%s317 + $0x1] sm:$0xf] %v1330
        %p1332 = scmp.lt.s32.totalorder %s20, 1
        %s1333 = scalar_select %p1332, %s20, 1
        %s1334 = smul.addr %s1333, 8
        %s1335 = scalar_lea.vmem %s8, %s1334
        // Predicated region
        $region57: #{_lambda_.7} parent=51 // pred_check
          %p1336 = pneg %p211
        $region58: #{_lambda_.7} parent=51 // pred_check_branch
          %1338 = sbr.rel (%p1336) target = $region60
        $region59: #{_lambda_.7} parent=51 // pred_region
          _
        $region60: #{_lambda_.7} parent=51 // pred_fallthru
          _
      $region52: #{_lambda_.7} parent=5 // pred_fallthru
        _
      %p1339 = scmp.le.s32.totalorder 2, %s15
      // Predicated region
      $region61: #{_lambda_.7} parent=5 // pred_check
        %p1340 = pneg %p1339
      $region62: #{_lambda_.7} parent=5 // pred_check_branch
        %1342 = sbr.rel (%p1340) target = $region64
      $region63: #{_lambda_.7} parent=5 // pred_region
        %s1343 = ssub.s32 %s15, 2
        // Predicated region
        $region65: #{_lambda_.7} parent=63 // pred_check
          %p1344 = pneg %p217
        $region66: #{_lambda_.7} parent=63 // pred_check_branch
          %1346 = sbr.rel (%p1344) target = $region68
        $region67: #{_lambda_.7} parent=63 // pred_region
          %p1347 = scmp.lt.s32.totalorder %s21, 1
          %s1348 = scalar_select %p1347, %s21, 1
          %s1349 = smul.addr %s1348, 8
          %s1350 = scalar_lea.vmem %s8, %s1349
        $region68: #{_lambda_.7} parent=63 // pred_fallthru
          _
      $region64: #{_lambda_.7} parent=5 // pred_fallthru
        _
    $region6: #{_lambda_.7} parent=1 // loop_footer
      %s19 = sadd.s32 1, %s15
    $region7: #{_lambda_.7} parent=1 // loop_footer_branch
      %14 = sbr.rel target = $region3
    $region8: #{_lambda_.7} parent=1 // loop_exit
      _
    %1351 = vsyncpa [#allocation4], 1
    %s1352 = scalar_lea.sflag [#allocation4], 1
    %1353 = vsyncpa %s1352, 1

// kernel: _lambda_.6
$region0: #{_lambda_.6}
  #allocation0 [shape = 'u32[]', space=smem, size = 0x4, offset = 0x4, fixed_abs, tag = 'smem constant byte address 0x4 - core index']
  #allocation1 [shape = 'u32[144,128]{1,0:T(1,128)}', space=vmem, size = 0x12000, scoped, tag = 'internal scratch']
  #allocation2 [shape = 'f32[10,128]{1,0:T(8,128)}', space=vmem, size = 0x2000, scoped, tag = 'scratch operand']
  %s0 = inlined_call_operand.vmem [shape: bf16[2,2,9,128], index: 0, kind: input, shape index: {}]
  %s1 = inlined_call_operand.vmem [shape: bf16[3,128,128], index: 1, kind: input, shape index: {}]
  %s2 = inlined_call_operand.vmem [shape: f32[1,128], index: 2, kind: input, shape index: {}]
  %s3 = inlined_call_operand.vmem [shape: bf16[1,3,128,128], index: 3, kind: input, shape index: {}]
  %s4 = inlined_call_operand.vmem [shape: f32[1,1,128], index: 4, kind: input, shape index: {}]
  %s5 = inlined_call_operand.vmem [shape: bf16[1,3,128,128], index: 5, kind: input, shape index: {}]
  %s6 = inlined_call_operand.vmem [shape: f32[1,1,128], index: 6, kind: input, shape index: {}]
  %s7 = inlined_call_operand.vmem [shape: f32[2], index: 7, kind: input, shape index: {}]
  %s8 = inlined_call_operand.vmem [shape: f32[2,10,128], index: 8, kind: output, shape index: {}]
  %s9 = sld [smem:[#allocation0]]
  $region69: #{_lambda_.6} parent=0
    _
  %s11 = ssub.s32 1, %s9
  %s12 = scalar_select 0, %s11, %s9
  $region1: #{_lambda_.6} parent=0
    #allocation3 [shape = 'u8[512]{0}', space=smem, size = 0x200, scoped, tag = 'input window, operand 7, single buffered']
    #allocation4 [shape = 's32[2]{0}', space=sflag, size = 0x8, scoped, tag = 'scoped memory for _lambda_.6']
    %13 = vsyncpa [#allocation4], 0
    loop: start=0, step=1, limit=4
    $region2: #{_lambda_.6} parent=1 // loop_pre_header
      _
    $region3: #{_lambda_.6} parent=1 // loop_header
      %s15 = sphi 0, %s19
      %p16 = scmp.ge.s32.totalorder %s15, 4
      %s25 = sphi 0, %s27
      %s28 = sphi 0, %s25
      %s29 = sphi 0, %s28
      %s45 = sphi 0, %s29
      %s49 = sphi 0, %s49
      %s51 = sphi 0, %s49
      %s52 = sphi 0, %s51
      %s66 = sphi 0, %s52
      %s70 = sphi 0, %s70
      %s72 = sphi 0, %s70
      %s73 = sphi 0, %s72
      %s87 = sphi 0, %s73
      %s91 = sphi 0, %s91
      %s93 = sphi 0, %s91
      %s94 = sphi 0, %s93
      %s108 = sphi 0, %s94
      %s112 = sphi 0, %s112
      %s114 = sphi 0, %s112
      %s115 = sphi 0, %s114
      %s129 = sphi 0, %s115
      %s133 = sphi 0, %s133
      %s135 = sphi 0, %s133
      %s136 = sphi 0, %s135
      %s150 = sphi 0, %s136
      %s154 = sphi 0, %s154
      %s156 = sphi 0, %s154
      %s157 = sphi 0, %s156
      %s171 = sphi 0, %s157
      %s175 = sphi 0, %s175
      %s177 = sphi 0, %s175
      %s178 = sphi 0, %s177
      %s192 = sphi 0, %s178
      %s198 = sphi 0, %s200
      %s201 = sphi 0, %s198
      %s202 = sphi 0, %s201
      %s218 = sphi 0, %s202
    $region4: #{_lambda_.6} parent=1 // loop_header_branch
      %18 = sbr.rel (%p16) target = $region8
    $region5: #{_lambda_.6} parent=1 // loop_body
      %s20 = ssub.s32 %s15, 1
      %s21 = ssub.s32 %s15, 2
      %s22 = sadd.s32 %s15, 1
      %s23 = ssub.s32 %s15, %s22
      %p24 = scmp.eq.s32.totalorder %s23, 0
      %s26 = sadd.s32 %s25, 1
      %s27 = scalar_select %p24, %s25, %s26
      %p30 = pneg %p24
      %p31 = scmp.eq.s32.totalorder %s15, 1
      %p32 = por %p30, %p31
      %p33 = scmp.ne.s32.totalorder %s25, %s28
      %p34 = scmp.eq.s32.totalorder %s15, 0
      %p35 = por %p33, %p34
      %p36 = scmp.ne.s32.totalorder %s25, %s28
      %p37 = scmp.eq.s32.totalorder %s20, 1
      %p38 = por %p36, %p37
      %p39 = scmp.ne.s32.totalorder %s28, %s29
      %p40 = scmp.eq.s32.totalorder %s20, 0
      %p41 = por %p39, %p40
      %p42 = scmp.ne.s32.totalorder %s28, %s29
      %p43 = scmp.eq.s32.totalorder %s21, 1
      %p44 = por %p42, %p43
      %p46 = scmp.ne.s32.totalorder %s29, %s45
      %p47 = scmp.eq.s32.totalorder %s21, 0
      %p48 = por %p46, %p47
      %s50 = sadd.s32 %s49, 1
      %p53 = scmp.eq.s32.totalorder %s15, 1
      %p54 = scmp.ne.s32.totalorder %s49, %s51
      %p55 = scmp.eq.s32.totalorder %s15, 0
      %p56 = por %p54, %p55
      %p57 = scmp.ne.s32.totalorder %s49, %s51
      %p58 = scmp.eq.s32.totalorder %s20, 1
      %p59 = por %p57, %p58
      %p60 = scmp.ne.s32.totalorder %s51, %s52
      %p61 = scmp.eq.s32.totalorder %s20, 0
      %p62 = por %p60, %p61
      %p63 = scmp.ne.s32.totalorder %s51, %s52
      %p64 = scmp.eq.s32.totalorder %s21, 1
      %p65 = por %p63, %p64
      %p67 = scmp.ne.s32.totalorder %s52, %s66
      %p68 = scmp.eq.s32.totalorder %s21, 0
      %p69 = por %p67, %p68
      %s71 = sadd.s32 %s70, 1
      %p74 = scmp.eq.s32.totalorder %s15, 1
      %p75 = scmp.ne.s32.totalorder %s70, %s72
      %p76 = scmp.eq.s32.totalorder %s15, 0
      %p77 = por %p75, %p76
      %p78 = scmp.ne.s32.totalorder %s70, %s72
      %p79 = scmp.eq.s32.totalorder %s20, 1
      %p80 = por %p78, %p79
      %p81 = scmp.ne.s32.totalorder %s72, %s73
      %p82 = scmp.eq.s32.totalorder %s20, 0
      %p83 = por %p81, %p82
      %p84 = scmp.ne.s32.totalorder %s72, %s73
      %p85 = scmp.eq.s32.totalorder %s21, 1
      %p86 = por %p84, %p85
      %p88 = scmp.ne.s32.totalorder %s73, %s87
      %p89 = scmp.eq.s32.totalorder %s21, 0
      %p90 = por %p88, %p89
      %s92 = sadd.s32 %s91, 1
      %p95 = scmp.eq.s32.totalorder %s15, 1
      %p96 = scmp.ne.s32.totalorder %s91, %s93
      %p97 = scmp.eq.s32.totalorder %s15, 0
      %p98 = por %p96, %p97
      %p99 = scmp.ne.s32.totalorder %s91, %s93
      %p100 = scmp.eq.s32.totalorder %s20, 1
      %p101 = por %p99, %p100
      %p102 = scmp.ne.s32.totalorder %s93, %s94
      %p103 = scmp.eq.s32.totalorder %s20, 0
      %p104 = por %p102, %p103
      %p105 = scmp.ne.s32.totalorder %s93, %s94
      %p106 = scmp.eq.s32.totalorder %s21, 1
      %p107 = por %p105, %p106
      %p109 = scmp.ne.s32.totalorder %s94, %s108
      %p110 = scmp.eq.s32.totalorder %s21, 0
      %p111 = por %p109, %p110
      %s113 = sadd.s32 %s112, 1
      %p116 = scmp.eq.s32.totalorder %s15, 1
      %p117 = scmp.ne.s32.totalorder %s112, %s114
      %p118 = scmp.eq.s32.totalorder %s15, 0
      %p119 = por %p117, %p118
      %p120 = scmp.ne.s32.totalorder %s112, %s114
      %p121 = scmp.eq.s32.totalorder %s20, 1
      %p122 = por %p120, %p121
      %p123 = scmp.ne.s32.totalorder %s114, %s115
      %p124 = scmp.eq.s32.totalorder %s20, 0
      %p125 = por %p123, %p124
      %p126 = scmp.ne.s32.totalorder %s114, %s115
      %p127 = scmp.eq.s32.totalorder %s21, 1
      %p128 = por %p126, %p127
      %p130 = scmp.ne.s32.totalorder %s115, %s129
      %p131 = scmp.eq.s32.totalorder %s21, 0
      %p132 = por %p130, %p131
      %s134 = sadd.s32 %s133, 1
      %p137 = scmp.eq.s32.totalorder %s15, 1
      %p138 = scmp.ne.s32.totalorder %s133, %s135
      %p139 = scmp.eq.s32.totalorder %s15, 0
      %p140 = por %p138, %p139
      %p141 = scmp.ne.s32.totalorder %s133, %s135
      %p142 = scmp.eq.s32.totalorder %s20, 1
      %p143 = por %p141, %p142
      %p144 = scmp.ne.s32.totalorder %s135, %s136
      %p145 = scmp.eq.s32.totalorder %s20, 0
      %p146 = por %p144, %p145
      %p147 = scmp.ne.s32.totalorder %s135, %s136
      %p148 = scmp.eq.s32.totalorder %s21, 1
      %p149 = por %p147, %p148
      %p151 = scmp.ne.s32.totalorder %s136, %s150
      %p152 = scmp.eq.s32.totalorder %s21, 0
      %p153 = por %p151, %p152
      %s155 = sadd.s32 %s154, 1
      %p158 = scmp.eq.s32.totalorder %s15, 1
      %p159 = scmp.ne.s32.totalorder %s154, %s156
      %p160 = scmp.eq.s32.totalorder %s15, 0
      %p161 = por %p159, %p160
      %p162 = scmp.ne.s32.totalorder %s154, %s156
      %p163 = scmp.eq.s32.totalorder %s20, 1
      %p164 = por %p162, %p163
      %p165 = scmp.ne.s32.totalorder %s156, %s157
      %p166 = scmp.eq.s32.totalorder %s20, 0
      %p167 = por %p165, %p166
      %p168 = scmp.ne.s32.totalorder %s156, %s157
      %p169 = scmp.eq.s32.totalorder %s21, 1
      %p170 = por %p168, %p169
      %p172 = scmp.ne.s32.totalorder %s157, %s171
      %p173 = scmp.eq.s32.totalorder %s21, 0
      %p174 = por %p172, %p173
      %s176 = sadd.s32 %s175, 1
      %p179 = scmp.eq.s32.totalorder %s15, 1
      %p180 = scmp.ne.s32.totalorder %s175, %s177
      %p181 = scmp.eq.s32.totalorder %s15, 0
      %p182 = por %p180, %p181
      %p183 = scmp.ne.s32.totalorder %s175, %s177
      %p184 = scmp.eq.s32.totalorder %s20, 1
      %p185 = por %p183, %p184
      %p186 = scmp.ne.s32.totalorder %s177, %s178
      %p187 = scmp.eq.s32.totalorder %s20, 0
      %p188 = por %p186, %p187
      %p189 = scmp.ne.s32.totalorder %s177, %s178
      %p190 = scmp.eq.s32.totalorder %s21, 1
      %p191 = por %p189, %p190
      %p193 = scmp.ne.s32.totalorder %s178, %s192
      %p194 = scmp.eq.s32.totalorder %s21, 0
      %p195 = por %p193, %p194
      %s196 = ssub.s32 %s15, %s22
      %p197 = scmp.eq.s32.totalorder %s196, 0
      %s199 = sadd.s32 %s198, 1
      %s200 = scalar_select %p197, %s198, %s199
      %p203 = pneg %p197
      %p204 = scmp.eq.s32.totalorder %s15, 1
      %p205 = por %p203, %p204
      %p206 = scmp.ne.s32.totalorder %s198, %s201
      %p207 = scmp.eq.s32.totalorder %s15, 0
      %p208 = por %p206, %p207
      %p209 = scmp.ne.s32.totalorder %s198, %s201
      %p210 = scmp.eq.s32.totalorder %s20, 1
      %p211 = por %p209, %p210
      %p212 = scmp.ne.s32.totalorder %s201, %s202
      %p213 = scmp.eq.s32.totalorder %s20, 0
      %p214 = por %p212, %p213
      %p215 = scmp.ne.s32.totalorder %s201, %s202
      %p216 = scmp.eq.s32.totalorder %s21, 1
      %p217 = por %p215, %p216
      %p219 = scmp.ne.s32.totalorder %s202, %s218
      %p220 = scmp.eq.s32.totalorder %s21, 0
      %p221 = por %p219, %p220
      %p222 = scmp.le.s32.totalorder 1, %s15
      %p223 = scmp.lt.s32.totalorder %s15, 3
      %p224 = pnand %p222, %p223
      %p225 = pneg %p224
      // Predicated region
      $region9: #{_lambda_.6} parent=5 // pred_check
        _
      $region10: #{_lambda_.6} parent=5 // pred_check_branch
        %227 = sbr.rel (%p224) target = $region12
      $region11: #{_lambda_.6} parent=5 // pred_region
        %s228 = ssub.s32 %s15, 1
        // Predicated region
        $region13: #{_lambda_.6} parent=11 // pred_check
          %p229 = pneg %p62
        $region14: #{_lambda_.6} parent=11 // pred_check_branch
          %231 = sbr.rel (%p229) target = $region16
        $region15: #{_lambda_.6} parent=11 // pred_region
          _
        $region16: #{_lambda_.6} parent=11 // pred_fallthru
          _
        // Predicated region
        $region17: #{_lambda_.6} parent=11 // pred_check
          %p232 = pneg %p83
        $region18: #{_lambda_.6} parent=11 // pred_check_branch
          %234 = sbr.rel (%p232) target = $region20
        $region19: #{_lambda_.6} parent=11 // pred_region
          _
        $region20: #{_lambda_.6} parent=11 // pred_fallthru
          _
        // Predicated region
        $region21: #{_lambda_.6} parent=11 // pred_check
          %p235 = pneg %p104
        $region22: #{_lambda_.6} parent=11 // pred_check_branch
          %237 = sbr.rel (%p235) target = $region24
        $region23: #{_lambda_.6} parent=11 // pred_region
          _
        $region24: #{_lambda_.6} parent=11 // pred_fallthru
          _
        // Predicated region
        $region25: #{_lambda_.6} parent=11 // pred_check
          %p238 = pneg %p125
        $region26: #{_lambda_.6} parent=11 // pred_check_branch
          %240 = sbr.rel (%p238) target = $region28
        $region27: #{_lambda_.6} parent=11 // pred_region
          _
        $region28: #{_lambda_.6} parent=11 // pred_fallthru
          _
        // Predicated region
        $region29: #{_lambda_.6} parent=11 // pred_check
          %p241 = pneg %p146
        $region30: #{_lambda_.6} parent=11 // pred_check_branch
          %243 = sbr.rel (%p241) target = $region32
        $region31: #{_lambda_.6} parent=11 // pred_region
          _
        $region32: #{_lambda_.6} parent=11 // pred_fallthru
          _
        // Predicated region
        $region33: #{_lambda_.6} parent=11 // pred_check
          %p244 = pneg %p167
        $region34: #{_lambda_.6} parent=11 // pred_check_branch
          %246 = sbr.rel (%p244) target = $region36
        $region35: #{_lambda_.6} parent=11 // pred_region
          _
        $region36: #{_lambda_.6} parent=11 // pred_fallthru
          _
        // Predicated region
        $region37: #{_lambda_.6} parent=11 // pred_check
          %p247 = pneg %p188
        $region38: #{_lambda_.6} parent=11 // pred_check_branch
          %249 = sbr.rel (%p247) target = $region40
        $region39: #{_lambda_.6} parent=11 // pred_region
          %s251 = ssub.s32 16, 16
          %252 = vsyncadd [#allocation4], %s251
          %s254 = sshll.u32 %s7, 4
          %s255 = int_to_ptr.vmem [resolvable:$true] %s254
          %257 = dma.vmem_to_smem %s255, 16, [#allocation3], [#allocation4]
        $region40: #{_lambda_.6} parent=11 // pred_fallthru
          _
      $region12: #{_lambda_.6} parent=5 // pred_fallthru
        _
      %p258 = scmp.lt.s32.totalorder %s15, 2
      // Predicated region
      $region41: #{_lambda_.6} parent=5 // pred_check
        %p259 = pneg %p258
      $region42: #{_lambda_.6} parent=5 // pred_check_branch
        %261 = sbr.rel (%p259) target = $region44
      $region43: #{_lambda_.6} parent=5 // pred_region
        // Predicated region
        $region45: #{_lambda_.6} parent=43 // pred_check
          %p262 = pneg %p35
        $region46: #{_lambda_.6} parent=43 // pred_check_branch
          %264 = sbr.rel (%p262) target = $region48
        $region47: #{_lambda_.6} parent=43 // pred_region
          %p265 = scmp.lt.s32.totalorder %s15, 1
          %s266 = scalar_select %p265, %s15, 1
          %s267 = smul.addr %s266, 4
          %s268 = smul.addr %s267, 4
          %s269 = scalar_lea.vmem %s0, %s268
        $region48: #{_lambda_.6} parent=43 // pred_fallthru
          _
      $region44: #{_lambda_.6} parent=5 // pred_fallthru
        _
      %p270 = scmp.le.s32.totalorder 1, %s15
      %p271 = scmp.lt.s32.totalorder %s15, 3
      %p272 = pnand %p270, %p271
      %p273 = pneg %p272
      // Predicated region
      $region49: #{_lambda_.6} parent=5 // pred_check
        _
      $region50: #{_lambda_.6} parent=5 // pred_check_branch
        %275 = sbr.rel (%p272) target = $region52
      $region51: #{_lambda_.6} parent=5 // pred_region
        %s276 = ssub.s32 %s15, 1
        // Predicated region
        $region53: #{_lambda_.6} parent=51 // pred_check
          %p277 = pneg %p188
        $region54: #{_lambda_.6} parent=51 // pred_check_branch
          %279 = sbr.rel (%p277) target = $region56
        $region55: #{_lambda_.6} parent=51 // pred_region
          %280 = dma.done [#allocation4], 16
        $region56: #{_lambda_.6} parent=51 // pred_fallthru
          _
        %281 = sfence
        %p282 = scmp.lt.s32.totalorder %s20, 1
        %s283 = scalar_select %p282, %s20, 1
        %s284 = smul.addr %s283, 4
        %s285 = smul.addr %s284, 4
        %s286 = scalar_lea.vmem %s0, %s285
        %p287 = pneg %p41
        %p288 = pneg %p38
        %p289 = pneg %p62
        %p290 = pneg %p59
        %p291 = pneg %p83
        %p292 = pneg %p80
        %p293 = pneg %p104
        %p294 = pneg %p101
        %p295 = pneg %p125
        %p296 = pneg %p122
        %p297 = pneg %p146
        %p298 = pneg %p143
        %p299 = pneg %p167
        %p300 = pneg %p164
        %p301 = pneg %p188
        %p302 = pneg %p185
        %p303 = pneg %p214
        %p304 = pneg %p211
        %p305 = scmp.lt.s32.totalorder %s20, 1
        %s306 = scalar_select %p305, %s20, 1
        %s307 = smul.addr %s306, 2
        %s308 = smul.addr %s307, 8
        %s309 = scalar_lea.vmem %s8, %s308
        %p310 = scmp.lt.s32.totalorder %s20, 1
        %s311 = scalar_select %p310, %s20, 1
        %s312 = smul.addr %s311, 4
        %s313 = smul.addr %s312, 4
        %s314 = scalar_lea.vmem %s0, %s313
        %p315 = scmp.lt.s32.totalorder %s20, 1
        %s316 = scalar_select %p315, %s20, 1
        %s317 = smul.addr %s316, 2
        %s318 = smul.addr %s317, 8
        %s319 = scalar_lea.vmem %s8, %s318
        %321 = vst [vmem:[%s319] sm:$0xff] 0.0
        %322 = vst [vmem:[%s319 + $0x8] sm:$0x3] 0.0
        %323 = vst [vmem:[#allocation2] sm:$0xff] 0.0
        %324 = vst [vmem:[#allocation2 + $0x8] sm:$0x3] 0.0
        %v325 = vld [vmem:[%s314] sm:$0xf]
        %v326 = vld [vmem:[%s1] sm:$0xf]
        %v327 = vld [vmem:[%s1 + $0x4] sm:$0xf]
        %v328 = vld [vmem:[%s1 + $0x8] sm:$0xf]
        %v329 = vld [vmem:[%s1 + $0xc] sm:$0xf]
        %v330 = vld [vmem:[%s1 + $0x10] sm:$0xf]
        %v331 = vld [vmem:[%s1 + $0x14] sm:$0xf]
        %v332 = vld [vmem:[%s1 + $0x18] sm:$0xf]
        %v333 = vld [vmem:[%s1 + $0x1c] sm:$0xf]
        %v334 = vld [vmem:[%s1 + $0x20] sm:$0xf]
        %v335 = vld [vmem:[%s1 + $0x24] sm:$0xf]
        %v336 = vld [vmem:[%s1 + $0x28] sm:$0xf]
        %v337 = vld [vmem:[%s1 + $0x2c] sm:$0xf]
        %v338 = vld [vmem:[%s1 + $0x30] sm:$0xf]
        %v339 = vld [vmem:[%s1 + $0x34] sm:$0xf]
        %v340 = vld [vmem:[%s1 + $0x38] sm:$0xf]
        %v341 = vld [vmem:[%s1 + $0x3c] sm:$0xf]
        %s342 = scalar_lea.vmem %s314, 8
        %v343 = vld [vmem:[%s342] sm:$0xf]
        %s344 = scalar_lea.vmem %s1, 64
        %v345 = vld [vmem:[%s344] sm:$0xf]
        %v346 = vld [vmem:[%s344 + $0x4] sm:$0xf]
        %v347 = vld [vmem:[%s344 + $0x8] sm:$0xf]
        %v348 = vld [vmem:[%s344 + $0xc] sm:$0xf]
        %v349 = vld [vmem:[%s344 + $0x10] sm:$0xf]
        %v350 = vld [vmem:[%s344 + $0x14] sm:$0xf]
        %v351 = vld [vmem:[%s344 + $0x18] sm:$0xf]
        %v352 = vld [vmem:[%s344 + $0x1c] sm:$0xf]
        %v353 = vld [vmem:[%s344 + $0x20] sm:$0xf]
        %v354 = vld [vmem:[%s344 + $0x24] sm:$0xf]
        %v355 = vld [vmem:[%s344 + $0x28] sm:$0xf]
        %v356 = vld [vmem:[%s344 + $0x2c] sm:$0xf]
        %v357 = vld [vmem:[%s344 + $0x30] sm:$0xf]
        %v358 = vld [vmem:[%s344 + $0x34] sm:$0xf]
        %v359 = vld [vmem:[%s344 + $0x38] sm:$0xf]
        %v360 = vld [vmem:[%s344 + $0x3c] sm:$0xf]
        %v377 = vunpack.c.l.b16 %v345
        %v378 = vunpack.c.l.b16 %v346
        %v379 = vunpack.c.l.b16 %v347
        %v380 = vunpack.c.l.b16 %v348
        %v381 = vunpack.c.l.b16 %v349
        %v382 = vunpack.c.l.b16 %v350
        %v383 = vunpack.c.l.b16 %v351
        %v384 = vunpack.c.l.b16 %v352
        %v385 = vunpack.c.l.b16 %v353
        %v386 = vunpack.c.l.b16 %v354
        %v387 = vunpack.c.l.b16 %v355
        %v388 = vunpack.c.l.b16 %v356
        %v389 = vunpack.c.l.b16 %v357
        %v390 = vunpack.c.l.b16 %v358
        %v391 = vunpack.c.l.b16 %v359
        %v392 = vunpack.c.l.b16 %v360
        %v393 = vpack.c.b16 %v378, %v377
        %v394 = vpack.c.b16 %v380, %v379
        %v395 = vpack.c.b16 %v382, %v381
        %v396 = vpack.c.b16 %v384, %v383
        %v397 = vpack.c.b16 %v386, %v385
        %v398 = vpack.c.b16 %v388, %v387
        %v399 = vpack.c.b16 %v390, %v389
        %v400 = vpack.c.b16 %v392, %v391
        %409 = vmatprep.subr.bf16.mxu0 0
        %410 = vmatpush1.bf16.msra.mxu0 %v393
        %411 = vmatprep.subr.bf16.mxu0 0
        %412 = vmatpush1.bf16.msra.mxu0 %v394
        %413 = vmatprep.subr.bf16.mxu0 0
        %414 = vmatpush1.bf16.msra.mxu0 %v395
        %415 = vmatprep.subr.bf16.mxu0 0
        %416 = vmatpush1.bf16.msra.mxu0 %v396
        %417 = vmatprep.subr.bf16.mxu0 0
        %418 = vmatpush1.bf16.msra.mxu0 %v397
        %419 = vmatprep.subr.bf16.mxu0 0
        %420 = vmatpush1.bf16.msra.mxu0 %v398
        %421 = vmatprep.subr.bf16.mxu0 0
        %422 = vmatpush1.bf16.msra.mxu0 %v399
        %423 = vmatprep.subr.bf16.mxu0 0
        %424 = vmatpush1.bf16.msra.mxu0 %v400
        %425 = vmatprep.subr.bf16.mxu0 0
        %426 = vmatpush1.bf16.msra.mxu0 0
        %427 = vmatprep.subr.bf16.mxu0 0
        %428 = vmatpush1.bf16.msra.mxu0 0
        %429 = vmatprep.subr.bf16.mxu0 0
        %430 = vmatpush1.bf16.msra.mxu0 0
        %431 = vmatprep.subr.bf16.mxu0 0
        %432 = vmatpush1.bf16.msra.mxu0 0
        %433 = vmatprep.subr.bf16.mxu0 0
        %434 = vmatpush1.bf16.msra.mxu0 0
        %435 = vmatprep.subr.bf16.mxu0 0
        %436 = vmatpush1.bf16.msra.mxu0 0
        %437 = vmatprep.subr.bf16.mxu0 0
        %438 = vmatpush1.bf16.msra.mxu0 0
        %439 = vmatprep.subr.bf16.mxu0 0
        %440 = vmatpush1.bf16.msra.mxu0 0
        %441 = vmatprep.mubr.bf16.mxu0 0
        %442 = vmatmul.mubr.bf16.gmra.mrb[0].mxu0 %v343
        %v443 = vpop.f32.mrb[0].mxu0
        %v444 = vadd.f32 0.0, %v443
        %v445 = vpop.f32.mrb[0].mxu0
        %v446 = vpop.f32.mrb[0].mxu0
        %v447 = vpop.f32.mrb[0].mxu0
        %448 = vdwg.mxu0
        %v465 = vunpack.c.l.b16 %v326
        %v466 = vunpack.c.l.b16 %v327
        %v467 = vunpack.c.l.b16 %v328
        %v468 = vunpack.c.l.b16 %v329
        %v469 = vunpack.c.l.b16 %v330
        %v470 = vunpack.c.l.b16 %v331
        %v471 = vunpack.c.l.b16 %v332
        %v472 = vunpack.c.l.b16 %v333
        %v473 = vunpack.c.l.b16 %v334
        %v474 = vunpack.c.l.b16 %v335
        %v475 = vunpack.c.l.b16 %v336
        %v476 = vunpack.c.l.b16 %v337
        %v477 = vunpack.c.l.b16 %v338
        %v478 = vunpack.c.l.b16 %v339
        %v479 = vunpack.c.l.b16 %v340
        %v480 = vunpack.c.l.b16 %v341
        %v481 = vpack.c.b16 %v466, %v465
        %v482 = vpack.c.b16 %v468, %v467
        %v483 = vpack.c.b16 %v470, %v469
        %v484 = vpack.c.b16 %v472, %v471
        %v485 = vpack.c.b16 %v474, %v473
        %v486 = vpack.c.b16 %v476, %v475
        %v487 = vpack.c.b16 %v478, %v477
        %v488 = vpack.c.b16 %v480, %v479
        %497 = vmatprep.subr.bf16.mxu0 0
        %498 = vmatpush1.bf16.msra.mxu0 %v481
        %499 = vmatprep.subr.bf16.mxu0 0
        %500 = vmatpush1.bf16.msra.mxu0 %v482
        %501 = vmatprep.subr.bf16.mxu0 0
        %502 = vmatpush1.bf16.msra.mxu0 %v483
        %503 = vmatprep.subr.bf16.mxu0 0
        %504 = vmatpush1.bf16.msra.mxu0 %v484
        %505 = vmatprep.subr.bf16.mxu0 0
        %506 = vmatpush1.bf16.msra.mxu0 %v485
        %507 = vmatprep.subr.bf16.mxu0 0
        %508 = vmatpush1.bf16.msra.mxu0 %v486
        %509 = vmatprep.subr.bf16.mxu0 0
        %510 = vmatpush1.bf16.msra.mxu0 %v487
        %511 = vmatprep.subr.bf16.mxu0 0
        %512 = vmatpush1.bf16.msra.mxu0 %v488
        %513 = vmatprep.subr.bf16.mxu0 0
        %514 = vmatpush1.bf16.msra.mxu0 0
        %515 = vmatprep.subr.bf16.mxu0 0
        %516 = vmatpush1.bf16.msra.mxu0 0
        %517 = vmatprep.subr.bf16.mxu0 0
        %518 = vmatpush1.bf16.msra.mxu0 0
        %519 = vmatprep.subr.bf16.mxu0 0
        %520 = vmatpush1.bf16.msra.mxu0 0
        %521 = vmatprep.subr.bf16.mxu0 0
        %522 = vmatpush1.bf16.msra.mxu0 0
        %523 = vmatprep.subr.bf16.mxu0 0
        %524 = vmatpush1.bf16.msra.mxu0 0
        %525 = vmatprep.subr.bf16.mxu0 0
        %526 = vmatpush1.bf16.msra.mxu0 0
        %527 = vmatprep.subr.bf16.mxu0 0
        %528 = vmatpush1.bf16.msra.mxu0 0
        %529 = vmatprep.mubr.bf16.mxu0 0
        %530 = vmatmul.mubr.bf16.gmra.mrb[0].mxu0 %v325
        %v531 = vpop.f32.mrb[0].mxu0
        %v532 = vadd.f32 %v444, %v531
        %v533 = vpop.f32.mrb[0].mxu0
        %v534 = vpop.f32.mrb[0].mxu0
        %v535 = vpop.f32.mrb[0].mxu0
        %536 = vdwg.mxu0
        %v537 = vld [vmem:[%s314] sm:$0xf]
        %v538 = vld [vmem:[%s314 + $0x4] sm:$0x1]
        %s539 = scalar_lea.vmem %s1, 128
        %v540 = vld [vmem:[%s539] sm:$0xf]
        %v541 = vld [vmem:[%s539 + $0x4] sm:$0xf]
        %v542 = vld [vmem:[%s539 + $0x8] sm:$0xf]
        %v543 = vld [vmem:[%s539 + $0xc] sm:$0xf]
        %v544 = vld [vmem:[%s539 + $0x10] sm:$0xf]
        %v545 = vld [vmem:[%s539 + $0x14] sm:$0xf]
        %v546 = vld [vmem:[%s539 + $0x18] sm:$0xf]
        %v547 = vld [vmem:[%s539 + $0x1c] sm:$0xf]
        %v548 = vld [vmem:[%s539 + $0x20] sm:$0xf]
        %v549 = vld [vmem:[%s539 + $0x24] sm:$0xf]
        %v550 = vld [vmem:[%s539 + $0x28] sm:$0xf]
        %v551 = vld [vmem:[%s539 + $0x2c] sm:$0xf]
        %v552 = vld [vmem:[%s539 + $0x30] sm:$0xf]
        %v553 = vld [vmem:[%s539 + $0x34] sm:$0xf]
        %v554 = vld [vmem:[%s539 + $0x38] sm:$0xf]
        %v555 = vld [vmem:[%s539 + $0x3c] sm:$0xf]
        %v558 = vunpack.c.l.b16 %v537
        %v559 = vunpack.c.l.b16 %v538
        %v560 = vpack.c.b16 %v559, %v558
        %v562 = vshrl.u32 %v560, 16
        %v564 = vshll.u32 %v560, 16
        %v566 = vrot.slane %v564, 1
        %v567 = vor.u32 %v562, %v566
        %v585 = vunpack.c.l.b16 %v540
        %v586 = vunpack.c.l.b16 %v541
        %v587 = vunpack.c.l.b16 %v542
        %v588 = vunpack.c.l.b16 %v543
        %v589 = vunpack.c.l.b16 %v544
        %v590 = vunpack.c.l.b16 %v545
        %v591 = vunpack.c.l.b16 %v546
        %v592 = vunpack.c.l.b16 %v547
        %v593 = vunpack.c.l.b16 %v548
        %v594 = vunpack.c.l.b16 %v549
        %v595 = vunpack.c.l.b16 %v550
        %v596 = vunpack.c.l.b16 %v551
        %v597 = vunpack.c.l.b16 %v552
        %v598 = vunpack.c.l.b16 %v553
        %v599 = vunpack.c.l.b16 %v554
        %v600 = vunpack.c.l.b16 %v555
        %v601 = vpack.c.b16 %v586, %v585
        %v602 = vpack.c.b16 %v588, %v587
        %v603 = vpack.c.b16 %v590, %v589
        %v604 = vpack.c.b16 %v592, %v591
        %v605 = vpack.c.b16 %v594, %v593
        %v606 = vpack.c.b16 %v596, %v595
        %v607 = vpack.c.b16 %v598, %v597
        %v608 = vpack.c.b16 %v600, %v599
        %617 = vmatprep.subr.bf16.mxu0 0
        %618 = vmatpush1.bf16.msra.mxu0 %v601
        %619 = vmatprep.subr.bf16.mxu0 0
        %620 = vmatpush1.bf16.msra.mxu0 %v602
        %621 = vmatprep.subr.bf16.mxu0 0
        %622 = vmatpush1.bf16.msra.mxu0 %v603
        %623 = vmatprep.subr.bf16.mxu0 0
        %624 = vmatpush1.bf16.msra.mxu0 %v604
        %625 = vmatprep.subr.bf16.mxu0 0
        %626 = vmatpush1.bf16.msra.mxu0 %v605
        %627 = vmatprep.subr.bf16.mxu0 0
        %628 = vmatpush1.bf16.msra.mxu0 %v606
        %629 = vmatprep.subr.bf16.mxu0 0
        %630 = vmatpush1.bf16.msra.mxu0 %v607
        %631 = vmatprep.subr.bf16.mxu0 0
        %632 = vmatpush1.bf16.msra.mxu0 %v608
        %633 = vmatprep.subr.bf16.mxu0 0
        %634 = vmatpush1.bf16.msra.mxu0 0
        %635 = vmatprep.subr.bf16.mxu0 0
        %636 = vmatpush1.bf16.msra.mxu0 0
        %637 = vmatprep.subr.bf16.mxu0 0
        %638 = vmatpush1.bf16.msra.mxu0 0
        %639 = vmatprep.subr.bf16.mxu0 0
        %640 = vmatpush1.bf16.msra.mxu0 0
        %641 = vmatprep.subr.bf16.mxu0 0
        %642 = vmatpush1.bf16.msra.mxu0 0
        %643 = vmatprep.subr.bf16.mxu0 0
        %644 = vmatpush1.bf16.msra.mxu0 0
        %645 = vmatprep.subr.bf16.mxu0 0
        %646 = vmatpush1.bf16.msra.mxu0 0
        %647 = vmatprep.subr.bf16.mxu0 0
        %648 = vmatpush1.bf16.msra.mxu0 0
        %649 = vmatprep.mubr.bf16.mxu0 0
        %650 = vmatmul.mubr.bf16.gmra.mrb[0].mxu0 %v567
        %v651 = vpop.f32.mrb[0].mxu0
        %v652 = vadd.f32 0.0, %v651
        %v653 = vpop.f32.mrb[0].mxu0
        %v654 = vpop.f32.mrb[0].mxu0
        %v655 = vpop.f32.mrb[0].mxu0
        %656 = vdwg.mxu0
        %v657 = vadd.f32 %v532, %v652
        %v658 = vld [vmem:[%s2] sm:$0x1]
        %v660 = vlaneseq
        %v661 = vshrl.u32 %v660, 7
        %v662 = vsub.s32 0, %v661
        %v663 = vrot.slane %v658, %v662
        %v665 = vadd.f32 %v657, %v663
        %s666 = sld [smem:[#allocation3]]
        %vm667 = vcmp.ge.f32.partialorder %v665, 0.0
        %v668 = vstv %s666
        %v669 = vmul.f32 %v668, %v665
        %v670 = vsel %vm667, %v665, %v669
        %671 = vst [vmem:[%s319 + $0x1] sm:$0xff] %v670
        %v672 = vld [vmem:[%s319] sm:$0xff]
        %v673 = vpack.c.bf16 %v672, %v672
        %v674 = vld [vmem:[%s3] sm:$0xf]
        %v675 = vld [vmem:[%s3 + $0x4] sm:$0xf]
        %v676 = vld [vmem:[%s3 + $0x8] sm:$0xf]
        %v677 = vld [vmem:[%s3 + $0xc] sm:$0xf]
        %v678 = vld [vmem:[%s3 + $0x10] sm:$0xf]
        %v679 = vld [vmem:[%s3 + $0x14] sm:$0xf]
        %v680 = vld [vmem:[%s3 + $0x18] sm:$0xf]
        %v681 = vld [vmem:[%s3 + $0x1c] sm:$0xf]
        %v682 = vld [vmem:[%s3 + $0x20] sm:$0xf]
        %v683 = vld [vmem:[%s3 + $0x24] sm:$0xf]
        %v684 = vld [vmem:[%s3 + $0x28] sm:$0xf]
        %v685 = vld [vmem:[%s3 + $0x2c] sm:$0xf]
        %v686 = vld [vmem:[%s3 + $0x30] sm:$0xf]
        %v687 = vld [vmem:[%s3 + $0x34] sm:$0xf]
        %v688 = vld [vmem:[%s3 + $0x38] sm:$0xf]
        %v689 = vld [vmem:[%s3 + $0x3c] sm:$0xf]
        %v690 = vld [vmem:[%s319 + $0x1] sm:$0xff]
        %v691 = vpack.c.bf16 %v690, %v690
        %s692 = scalar_lea.vmem %s3, 64
        %v693 = vld [vmem:[%s692] sm:$0xf]
        %v694 = vld [vmem:[%s692 + $0x4] sm:$0xf]
        %v695 = vld [vmem:[%s692 + $0x8] sm:$0xf]
        %v696 = vld [vmem:[%s692 + $0xc] sm:$0xf]
        %v697 = vld [vmem:[%s692 + $0x10] sm:$0xf]
        %v698 = vld [vmem:[%s692 + $0x14] sm:$0xf]
        %v699 = vld [vmem:[%s692 + $0x18] sm:$0xf]
        %v700 = vld [vmem:[%s692 + $0x1c] sm:$0xf]
        %v701 = vld [vmem:[%s692 + $0x20] sm:$0xf]
        %v702 = vld [vmem:[%s692 + $0x24] sm:$0xf]
        %v703 = vld [vmem:[%s692 + $0x28] sm:$0xf]
        %v704 = vld [vmem:[%s692 + $0x2c] sm:$0xf]
        %v705 = vld [vmem:[%s692 + $0x30] sm:$0xf]
        %v706 = vld [vmem:[%s692 + $0x34] sm:$0xf]
        %v707 = vld [vmem:[%s692 + $0x38] sm:$0xf]
        %v708 = vld [vmem:[%s692 + $0x3c] sm:$0xf]
        %v725 = vunpack.c.l.b16 %v693
        %v726 = vunpack.c.l.b16 %v694
        %v727 = vunpack.c.l.b16 %v695
        %v728 = vunpack.c.l.b16 %v696
        %v729 = vunpack.c.l.b16 %v697
        %v730 = vunpack.c.l.b16 %v698
        %v731 = vunpack.c.l.b16 %v699
        %v732 = vunpack.c.l.b16 %v700
        %v733 = vunpack.c.l.b16 %v701
        %v734 = vunpack.c.l.b16 %v702
        %v735 = vunpack.c.l.b16 %v703
        %v736 = vunpack.c.l.b16 %v704
        %v737 = vunpack.c.l.b16 %v705
        %v738 = vunpack.c.l.b16 %v706
        %v739 = vunpack.c.l.b16 %v707
        %v740 = vunpack.c.l.b16 %v708
        %v741 = vpack.c.b16 %v726, %v725
        %v742 = vpack.c.b16 %v728, %v727
        %v743 = vpack.c.b16 %v730, %v729
        %v744 = vpack.c.b16 %v732, %v731
        %v745 = vpack.c.b16 %v734, %v733
        %v746 = vpack.c.b16 %v736, %v735
        %v747 = vpack.c.b16 %v738, %v737
        %v748 = vpack.c.b16 %v740, %v739
        %757 = vmatprep.subr.bf16.mxu0 0
        %758 = vmatpush1.bf16.msra.mxu0 %v741
        %759 = vmatprep.subr.bf16.mxu0 0
        %760 = vmatpush1.bf16.msra.mxu0 %v742
        %761 = vmatprep.subr.bf16.mxu0 0
        %762 = vmatpush1.bf16.msra.mxu0 %v743
        %763 = vmatprep.subr.bf16.mxu0 0
        %764 = vmatpush1.bf16.msra.mxu0 %v744
        %765 = vmatprep.subr.bf16.mxu0 0
        %766 = vmatpush1.bf16.msra.mxu0 %v745
        %767 = vmatprep.subr.bf16.mxu0 0
        %768 = vmatpush1.bf16.msra.mxu0 %v746
        %769 = vmatprep.subr.bf16.mxu0 0
        %770 = vmatpush1.bf16.msra.mxu0 %v747
        %771 = vmatprep.subr.bf16.mxu0 0
        %772 = vmatpush1.bf16.msra.mxu0 %v748
        %773 = vmatprep.subr.bf16.mxu0 0
        %774 = vmatpush1.bf16.msra.mxu0 0
        %775 = vmatprep.subr.bf16.mxu0 0
        %776 = vmatpush1.bf16.msra.mxu0 0
        %777 = vmatprep.subr.bf16.mxu0 0
        %778 = vmatpush1.bf16.msra.mxu0 0
        %779 = vmatprep.subr.bf16.mxu0 0
        %780 = vmatpush1.bf16.msra.mxu0 0
        %781 = vmatprep.subr.bf16.mxu0 0
        %782 = vmatpush1.bf16.msra.mxu0 0
        %783 = vmatprep.subr.bf16.mxu0 0
        %784 = vmatpush1.bf16.msra.mxu0 0
        %785 = vmatprep.subr.bf16.mxu0 0
        %786 = vmatpush1.bf16.msra.mxu0 0
        %787 = vmatprep.subr.bf16.mxu0 0
        %788 = vmatpush1.bf16.msra.mxu0 0
        %789 = vmatprep.mubr.bf16.mxu0 0
        %790 = vmatmul.mubr.bf16.gmra.mrb[0].mxu0 %v691
        %v791 = vpop.f32.mrb[0].mxu0
        %v792 = vadd.f32 0.0, %v791
        %v793 = vpop.f32.mrb[0].mxu0
        %v794 = vpop.f32.mrb[0].mxu0
        %v795 = vpop.f32.mrb[0].mxu0
        %796 = vdwg.mxu0
        %v813 = vunpack.c.l.b16 %v674
        %v814 = vunpack.c.l.b16 %v675
        %v815 = vunpack.c.l.b16 %v676
        %v816 = vunpack.c.l.b16 %v677
        %v817 = vunpack.c.l.b16 %v678
        %v818 = vunpack.c.l.b16 %v679
        %v819 = vunpack.c.l.b16 %v680
        %v820 = vunpack.c.l.b16 %v681
        %v821 = vunpack.c.l.b16 %v682
        %v822 = vunpack.c.l.b16 %v683
        %v823 = vunpack.c.l.b16 %v684
        %v824 = vunpack.c.l.b16 %v685
        %v825 = vunpack.c.l.b16 %v686
        %v826 = vunpack.c.l.b16 %v687
        %v827 = vunpack.c.l.b16 %v688
        %v828 = vunpack.c.l.b16 %v689
        %v829 = vpack.c.b16 %v814, %v813
        %v830 = vpack.c.b16 %v816, %v815
        %v831 = vpack.c.b16 %v818, %v817
        %v832 = vpack.c.b16 %v820, %v819
        %v833 = vpack.c.b16 %v822, %v821
        %v834 = vpack.c.b16 %v824, %v823
        %v835 = vpack.c.b16 %v826, %v825
        %v836 = vpack.c.b16 %v828, %v827
        %845 = vmatprep.subr.bf16.mxu0 0
        %846 = vmatpush1.bf16.msra.mxu0 %v829
        %847 = vmatprep.subr.bf16.mxu0 0
        %848 = vmatpush1.bf16.msra.mxu0 %v830
        %849 = vmatprep.subr.bf16.mxu0 0
        %850 = vmatpush1.bf16.msra.mxu0 %v831
        %851 = vmatprep.subr.bf16.mxu0 0
        %852 = vmatpush1.bf16.msra.mxu0 %v832
        %853 = vmatprep.subr.bf16.mxu0 0
        %854 = vmatpush1.bf16.msra.mxu0 %v833
        %855 = vmatprep.subr.bf16.mxu0 0
        %856 = vmatpush1.bf16.msra.mxu0 %v834
        %857 = vmatprep.subr.bf16.mxu0 0
        %858 = vmatpush1.bf16.msra.mxu0 %v835
        %859 = vmatprep.subr.bf16.mxu0 0
        %860 = vmatpush1.bf16.msra.mxu0 %v836
        %861 = vmatprep.subr.bf16.mxu0 0
        %862 = vmatpush1.bf16.msra.mxu0 0
        %863 = vmatprep.subr.bf16.mxu0 0
        %864 = vmatpush1.bf16.msra.mxu0 0
        %865 = vmatprep.subr.bf16.mxu0 0
        %866 = vmatpush1.bf16.msra.mxu0 0
        %867 = vmatprep.subr.bf16.mxu0 0
        %868 = vmatpush1.bf16.msra.mxu0 0
        %869 = vmatprep.subr.bf16.mxu0 0
        %870 = vmatpush1.bf16.msra.mxu0 0
        %871 = vmatprep.subr.bf16.mxu0 0
        %872 = vmatpush1.bf16.msra.mxu0 0
        %873 = vmatprep.subr.bf16.mxu0 0
        %874 = vmatpush1.bf16.msra.mxu0 0
        %875 = vmatprep.subr.bf16.mxu0 0
        %876 = vmatpush1.bf16.msra.mxu0 0
        %877 = vmatprep.mubr.bf16.mxu0 0
        %878 = vmatmul.mubr.bf16.gmra.mrb[0].mxu0 %v673
        %v879 = vpop.f32.mrb[0].mxu0
        %v880 = vadd.f32 %v792, %v879
        %v881 = vpop.f32.mrb[0].mxu0
        %v882 = vpop.f32.mrb[0].mxu0
        %v883 = vpop.f32.mrb[0].mxu0
        %884 = vdwg.mxu0
        %v885 = vld [vmem:[%s319 + $0x2] sm:$0xff]
        %v886 = vpack.c.bf16 %v885, %v885
        %s887 = scalar_lea.vmem %s3, 128
        %v888 = vld [vmem:[%s887] sm:$0xf]
        %v889 = vld [vmem:[%s887 + $0x4] sm:$0xf]
        %v890 = vld [vmem:[%s887 + $0x8] sm:$0xf]
        %v891 = vld [vmem:[%s887 + $0xc] sm:$0xf]
        %v892 = vld [vmem:[%s887 + $0x10] sm:$0xf]
        %v893 = vld [vmem:[%s887 + $0x14] sm:$0xf]
        %v894 = vld [vmem:[%s887 + $0x18] sm:$0xf]
        %v895 = vld [vmem:[%s887 + $0x1c] sm:$0xf]
        %v896 = vld [vmem:[%s887 + $0x20] sm:$0xf]
        %v897 = vld [vmem:[%s887 + $0x24] sm:$0xf]
        %v898 = vld [vmem:[%s887 + $0x28] sm:$0xf]
        %v899 = vld [vmem:[%s887 + $0x2c] sm:$0xf]
        %v900 = vld [vmem:[%s887 + $0x30] sm:$0xf]
        %v901 = vld [vmem:[%s887 + $0x34] sm:$0xf]
        %v902 = vld [vmem:[%s887 + $0x38] sm:$0xf]
        %v903 = vld [vmem:[%s887 + $0x3c] sm:$0xf]
        %v920 = vunpack.c.l.b16 %v888
        %v921 = vunpack.c.l.b16 %v889
        %v922 = vunpack.c.l.b16 %v890
        %v923 = vunpack.c.l.b16 %v891
        %v924 = vunpack.c.l.b16 %v892
        %v925 = vunpack.c.l.b16 %v893
        %v926 = vunpack.c.l.b16 %v894
        %v927 = vunpack.c.l.b16 %v895
        %v928 = vunpack.c.l.b16 %v896
        %v929 = vunpack.c.l.b16 %v897
        %v930 = vunpack.c.l.b16 %v898
        %v931 = vunpack.c.l.b16 %v899
        %v932 = vunpack.c.l.b16 %v900
        %v933 = vunpack.c.l.b16 %v901
        %v934 = vunpack.c.l.b16 %v902
        %v935 = vunpack.c.l.b16 %v903
        %v936 = vpack.c.b16 %v921, %v920
        %v937 = vpack.c.b16 %v923, %v922
        %v938 = vpack.c.b16 %v925, %v924
        %v939 = vpack.c.b16 %v927, %v926
        %v940 = vpack.c.b16 %v929, %v928
        %v941 = vpack.c.b16 %v931, %v930
        %v942 = vpack.c.b16 %v933, %v932
        %v943 = vpack.c.b16 %v935, %v934
        %952 = vmatprep.subr.bf16.mxu0 0
        %953 = vmatpush1.bf16.msra.mxu0 %v936
        %954 = vmatprep.subr.bf16.mxu0 0
        %955 = vmatpush1.bf16.msra.mxu0 %v937
        %956 = vmatprep.subr.bf16.mxu0 0
        %957 = vmatpush1.bf16.msra.mxu0 %v938
        %958 = vmatprep.subr.bf16.mxu0 0
        %959 = vmatpush1.bf16.msra.mxu0 %v939
        %960 = vmatprep.subr.bf16.mxu0 0
        %961 = vmatpush1.bf16.msra.mxu0 %v940
        %962 = vmatprep.subr.bf16.mxu0 0
        %963 = vmatpush1.bf16.msra.mxu0 %v941
        %964 = vmatprep.subr.bf16.mxu0 0
        %965 = vmatpush1.bf16.msra.mxu0 %v942
        %966 = vmatprep.subr.bf16.mxu0 0
        %967 = vmatpush1.bf16.msra.mxu0 %v943
        %968 = vmatprep.subr.bf16.mxu0 0
        %969 = vmatpush1.bf16.msra.mxu0 0
        %970 = vmatprep.subr.bf16.mxu0 0
        %971 = vmatpush1.bf16.msra.mxu0 0
        %972 = vmatprep.subr.bf16.mxu0 0
        %973 = vmatpush1.bf16.msra.mxu0 0
        %974 = vmatprep.subr.bf16.mxu0 0
        %975 = vmatpush1.bf16.msra.mxu0 0
        %976 = vmatprep.subr.bf16.mxu0 0
        %977 = vmatpush1.bf16.msra.mxu0 0
        %978 = vmatprep.subr.bf16.mxu0 0
        %979 = vmatpush1.bf16.msra.mxu0 0
        %980 = vmatprep.subr.bf16.mxu0 0
        %981 = vmatpush1.bf16.msra.mxu0 0
        %982 = vmatprep.subr.bf16.mxu0 0
        %983 = vmatpush1.bf16.msra.mxu0 0
        %984 = vmatprep.mubr.bf16.mxu0 0
        %985 = vmatmul.mubr.bf16.gmra.mrb[0].mxu0 %v886
        %v986 = vpop.f32.mrb[0].mxu0
        %v987 = vadd.f32 0.0, %v986
        %v988 = vpop.f32.mrb[0].mxu0
        %v989 = vpop.f32.mrb[0].mxu0
        %v990 = vpop.f32.mrb[0].mxu0
        %991 = vdwg.mxu0
        %v992 = vadd.f32 %v880, %v987
        %v993 = vld [vmem:[%s4] sm:$0x1]
        %v995 = vlaneseq
        %v996 = vshrl.u32 %v995, 7
        %v997 = vsub.s32 0, %v996
        %v998 = vrot.slane %v993, %v997
        %v1000 = vadd.f32 %v992, %v998
        %s1001 = sld [smem:[#allocation3 + $0x1]]
        %vm1002 = vcmp.ge.f32.partialorder %v1000, 0.0
        %v1003 = vstv %s1001
        %v1004 = vmul.f32 %v1003, %v1000
        %v1005 = vsel %vm1002, %v1000, %v1004
        %1006 = vst [vmem:[#allocation2 + $0x1] sm:$0xff] %v1005
        %v1007 = vld [vmem:[#allocation2] sm:$0xff]
        %v1008 = vpack.c.bf16 %v1007, %v1007
        %v1009 = vld [vmem:[%s5] sm:$0xf]
        %v1010 = vld [vmem:[%s5 + $0x4] sm:$0xf]
        %v1011 = vld [vmem:[%s5 + $0x8] sm:$0xf]
        %v1012 = vld [vmem:[%s5 + $0xc] sm:$0xf]
        %v1013 = vld [vmem:[%s5 + $0x10] sm:$0xf]
        %v1014 = vld [vmem:[%s5 + $0x14] sm:$0xf]
        %v1015 = vld [vmem:[%s5 + $0x18] sm:$0xf]
        %v1016 = vld [vmem:[%s5 + $0x1c] sm:$0xf]
        %v1017 = vld [vmem:[%s5 + $0x20] sm:$0xf]
        %v1018 = vld [vmem:[%s5 + $0x24] sm:$0xf]
        %v1019 = vld [vmem:[%s5 + $0x28] sm:$0xf]
        %v1020 = vld [vmem:[%s5 + $0x2c] sm:$0xf]
        %v1021 = vld [vmem:[%s5 + $0x30] sm:$0xf]
        %v1022 = vld [vmem:[%s5 + $0x34] sm:$0xf]
        %v1023 = vld [vmem:[%s5 + $0x38] sm:$0xf]
        %v1024 = vld [vmem:[%s5 + $0x3c] sm:$0xf]
        %v1025 = vld [vmem:[#allocation2 + $0x1] sm:$0xff]
        %v1026 = vpack.c.bf16 %v1025, %v1025
        %s1027 = scalar_lea.vmem %s5, 64
        %v1028 = vld [vmem:[%s1027] sm:$0xf]
        %v1029 = vld [vmem:[%s1027 + $0x4] sm:$0xf]
        %v1030 = vld [vmem:[%s1027 + $0x8] sm:$0xf]
        %v1031 = vld [vmem:[%s1027 + $0xc] sm:$0xf]
        %v1032 = vld [vmem:[%s1027 + $0x10] sm:$0xf]
        %v1033 = vld [vmem:[%s1027 + $0x14] sm:$0xf]
        %v1034 = vld [vmem:[%s1027 + $0x18] sm:$0xf]
        %v1035 = vld [vmem:[%s1027 + $0x1c] sm:$0xf]
        %v1036 = vld [vmem:[%s1027 + $0x20] sm:$0xf]
        %v1037 = vld [vmem:[%s1027 + $0x24] sm:$0xf]
        %v1038 = vld [vmem:[%s1027 + $0x28] sm:$0xf]
        %v1039 = vld [vmem:[%s1027 + $0x2c] sm:$0xf]
        %v1040 = vld [vmem:[%s1027 + $0x30] sm:$0xf]
        %v1041 = vld [vmem:[%s1027 + $0x34] sm:$0xf]
        %v1042 = vld [vmem:[%s1027 + $0x38] sm:$0xf]
        %v1043 = vld [vmem:[%s1027 + $0x3c] sm:$0xf]
        %v1060 = vunpack.c.l.b16 %v1028
        %v1061 = vunpack.c.l.b16 %v1029
        %v1062 = vunpack.c.l.b16 %v1030
        %v1063 = vunpack.c.l.b16 %v1031
        %v1064 = vunpack.c.l.b16 %v1032
        %v1065 = vunpack.c.l.b16 %v1033
        %v1066 = vunpack.c.l.b16 %v1034
        %v1067 = vunpack.c.l.b16 %v1035
        %v1068 = vunpack.c.l.b16 %v1036
        %v1069 = vunpack.c.l.b16 %v1037
        %v1070 = vunpack.c.l.b16 %v1038
        %v1071 = vunpack.c.l.b16 %v1039
        %v1072 = vunpack.c.l.b16 %v1040
        %v1073 = vunpack.c.l.b16 %v1041
        %v1074 = vunpack.c.l.b16 %v1042
        %v1075 = vunpack.c.l.b16 %v1043
        %v1076 = vpack.c.b16 %v1061, %v1060
        %v1077 = vpack.c.b16 %v1063, %v1062
        %v1078 = vpack.c.b16 %v1065, %v1064
        %v1079 = vpack.c.b16 %v1067, %v1066
        %v1080 = vpack.c.b16 %v1069, %v1068
        %v1081 = vpack.c.b16 %v1071, %v1070
        %v1082 = vpack.c.b16 %v1073, %v1072
        %v1083 = vpack.c.b16 %v1075, %v1074
        %1092 = vmatprep.subr.bf16.mxu0 0
        %1093 = vmatpush1.bf16.msra.mxu0 %v1076
        %1094 = vmatprep.subr.bf16.mxu0 0
        %1095 = vmatpush1.bf16.msra.mxu0 %v1077
        %1096 = vmatprep.subr.bf16.mxu0 0
        %1097 = vmatpush1.bf16.msra.mxu0 %v1078
        %1098 = vmatprep.subr.bf16.mxu0 0
        %1099 = vmatpush1.bf16.msra.mxu0 %v1079
        %1100 = vmatprep.subr.bf16.mxu0 0
        %1101 = vmatpush1.bf16.msra.mxu0 %v1080
        %1102 = vmatprep.subr.bf16.mxu0 0
        %1103 = vmatpush1.bf16.msra.mxu0 %v1081
        %1104 = vmatprep.subr.bf16.mxu0 0
        %1105 = vmatpush1.bf16.msra.mxu0 %v1082
        %1106 = vmatprep.subr.bf16.mxu0 0
        %1107 = vmatpush1.bf16.msra.mxu0 %v1083
        %1108 = vmatprep.subr.bf16.mxu0 0
        %1109 = vmatpush1.bf16.msra.mxu0 0
        %1110 = vmatprep.subr.bf16.mxu0 0
        %1111 = vmatpush1.bf16.msra.mxu0 0
        %1112 = vmatprep.subr.bf16.mxu0 0
        %1113 = vmatpush1.bf16.msra.mxu0 0
        %1114 = vmatprep.subr.bf16.mxu0 0
        %1115 = vmatpush1.bf16.msra.mxu0 0
        %1116 = vmatprep.subr.bf16.mxu0 0
        %1117 = vmatpush1.bf16.msra.mxu0 0
        %1118 = vmatprep.subr.bf16.mxu0 0
        %1119 = vmatpush1.bf16.msra.mxu0 0
        %1120 = vmatprep.subr.bf16.mxu0 0
        %1121 = vmatpush1.bf16.msra.mxu0 0
        %1122 = vmatprep.subr.bf16.mxu0 0
        %1123 = vmatpush1.bf16.msra.mxu0 0
        %1124 = vmatprep.mubr.bf16.mxu0 0
        %1125 = vmatmul.mubr.bf16.gmra.mrb[0].mxu0 %v1026
        %v1126 = vpop.f32.mrb[0].mxu0
        %v1127 = vadd.f32 0.0, %v1126
        %v1128 = vpop.f32.mrb[0].mxu0
        %v1129 = vpop.f32.mrb[0].mxu0
        %v1130 = vpop.f32.mrb[0].mxu0
        %1131 = vdwg.mxu0
        %v1148 = vunpack.c.l.b16 %v1009
        %v1149 = vunpack.c.l.b16 %v1010
        %v1150 = vunpack.c.l.b16 %v1011
        %v1151 = vunpack.c.l.b16 %v1012
        %v1152 = vunpack.c.l.b16 %v1013
        %v1153 = vunpack.c.l.b16 %v1014
        %v1154 = vunpack.c.l.b16 %v1015
        %v1155 = vunpack.c.l.b16 %v1016
        %v1156 = vunpack.c.l.b16 %v1017
        %v1157 = vunpack.c.l.b16 %v1018
        %v1158 = vunpack.c.l.b16 %v1019
        %v1159 = vunpack.c.l.b16 %v1020
        %v1160 = vunpack.c.l.b16 %v1021
        %v1161 = vunpack.c.l.b16 %v1022
        %v1162 = vunpack.c.l.b16 %v1023
        %v1163 = vunpack.c.l.b16 %v1024
        %v1164 = vpack.c.b16 %v1149, %v1148
        %v1165 = vpack.c.b16 %v1151, %v1150
        %v1166 = vpack.c.b16 %v1153, %v1152
        %v1167 = vpack.c.b16 %v1155, %v1154
        %v1168 = vpack.c.b16 %v1157, %v1156
        %v1169 = vpack.c.b16 %v1159, %v1158
        %v1170 = vpack.c.b16 %v1161, %v1160
        %v1171 = vpack.c.b16 %v1163, %v1162
        %1180 = vmatprep.subr.bf16.mxu0 0
        %1181 = vmatpush1.bf16.msra.mxu0 %v1164
        %1182 = vmatprep.subr.bf16.mxu0 0
        %1183 = vmatpush1.bf16.msra.mxu0 %v1165
        %1184 = vmatprep.subr.bf16.mxu0 0
        %1185 = vmatpush1.bf16.msra.mxu0 %v1166
        %1186 = vmatprep.subr.bf16.mxu0 0
        %1187 = vmatpush1.bf16.msra.mxu0 %v1167
        %1188 = vmatprep.subr.bf16.mxu0 0
        %1189 = vmatpush1.bf16.msra.mxu0 %v1168
        %1190 = vmatprep.subr.bf16.mxu0 0
        %1191 = vmatpush1.bf16.msra.mxu0 %v1169
        %1192 = vmatprep.subr.bf16.mxu0 0
        %1193 = vmatpush1.bf16.msra.mxu0 %v1170
        %1194 = vmatprep.subr.bf16.mxu0 0
        %1195 = vmatpush1.bf16.msra.mxu0 %v1171
        %1196 = vmatprep.subr.bf16.mxu0 0
        %1197 = vmatpush1.bf16.msra.mxu0 0
        %1198 = vmatprep.subr.bf16.mxu0 0
        %1199 = vmatpush1.bf16.msra.mxu0 0
        %1200 = vmatprep.subr.bf16.mxu0 0
        %1201 = vmatpush1.bf16.msra.mxu0 0
        %1202 = vmatprep.subr.bf16.mxu0 0
        %1203 = vmatpush1.bf16.msra.mxu0 0
        %1204 = vmatprep.subr.bf16.mxu0 0
        %1205 = vmatpush1.bf16.msra.mxu0 0
        %1206 = vmatprep.subr.bf16.mxu0 0
        %1207 = vmatpush1.bf16.msra.mxu0 0
        %1208 = vmatprep.subr.bf16.mxu0 0
        %1209 = vmatpush1.bf16.msra.mxu0 0
        %1210 = vmatprep.subr.bf16.mxu0 0
        %1211 = vmatpush1.bf16.msra.mxu0 0
        %1212 = vmatprep.mubr.bf16.mxu0 0
        %1213 = vmatmul.mubr.bf16.gmra.mrb[0].mxu0 %v1008
        %v1214 = vpop.f32.mrb[0].mxu0
        %v1215 = vadd.f32 %v1127, %v1214
        %v1216 = vpop.f32.mrb[0].mxu0
        %v1217 = vpop.f32.mrb[0].mxu0
        %v1218 = vpop.f32.mrb[0].mxu0
        %1219 = vdwg.mxu0
        %v1220 = vld [vmem:[#allocation2 + $0x2] sm:$0xff]
        %v1221 = vpack.c.bf16 %v1220, %v1220
        %s1222 = scalar_lea.vmem %s5, 128
        %v1223 = vld [vmem:[%s1222] sm:$0xf]
        %v1224 = vld [vmem:[%s1222 + $0x4] sm:$0xf]
        %v1225 = vld [vmem:[%s1222 + $0x8] sm:$0xf]
        %v1226 = vld [vmem:[%s1222 + $0xc] sm:$0xf]
        %v1227 = vld [vmem:[%s1222 + $0x10] sm:$0xf]
        %v1228 = vld [vmem:[%s1222 + $0x14] sm:$0xf]
        %v1229 = vld [vmem:[%s1222 + $0x18] sm:$0xf]
        %v1230 = vld [vmem:[%s1222 + $0x1c] sm:$0xf]
        %v1231 = vld [vmem:[%s1222 + $0x20] sm:$0xf]
        %v1232 = vld [vmem:[%s1222 + $0x24] sm:$0xf]
        %v1233 = vld [vmem:[%s1222 + $0x28] sm:$0xf]
        %v1234 = vld [vmem:[%s1222 + $0x2c] sm:$0xf]
        %v1235 = vld [vmem:[%s1222 + $0x30] sm:$0xf]
        %v1236 = vld [vmem:[%s1222 + $0x34] sm:$0xf]
        %v1237 = vld [vmem:[%s1222 + $0x38] sm:$0xf]
        %v1238 = vld [vmem:[%s1222 + $0x3c] sm:$0xf]
        %v1255 = vunpack.c.l.b16 %v1223
        %v1256 = vunpack.c.l.b16 %v1224
        %v1257 = vunpack.c.l.b16 %v1225
        %v1258 = vunpack.c.l.b16 %v1226
        %v1259 = vunpack.c.l.b16 %v1227
        %v1260 = vunpack.c.l.b16 %v1228
        %v1261 = vunpack.c.l.b16 %v1229
        %v1262 = vunpack.c.l.b16 %v1230
        %v1263 = vunpack.c.l.b16 %v1231
        %v1264 = vunpack.c.l.b16 %v1232
        %v1265 = vunpack.c.l.b16 %v1233
        %v1266 = vunpack.c.l.b16 %v1234
        %v1267 = vunpack.c.l.b16 %v1235
        %v1268 = vunpack.c.l.b16 %v1236
        %v1269 = vunpack.c.l.b16 %v1237
        %v1270 = vunpack.c.l.b16 %v1238
        %v1271 = vpack.c.b16 %v1256, %v1255
        %v1272 = vpack.c.b16 %v1258, %v1257
        %v1273 = vpack.c.b16 %v1260, %v1259
        %v1274 = vpack.c.b16 %v1262, %v1261
        %v1275 = vpack.c.b16 %v1264, %v1263
        %v1276 = vpack.c.b16 %v1266, %v1265
        %v1277 = vpack.c.b16 %v1268, %v1267
        %v1278 = vpack.c.b16 %v1270, %v1269
        %1287 = vmatprep.subr.bf16.mxu0 0
        %1288 = vmatpush1.bf16.msra.mxu0 %v1271
        %1289 = vmatprep.subr.bf16.mxu0 0
        %1290 = vmatpush1.bf16.msra.mxu0 %v1272
        %1291 = vmatprep.subr.bf16.mxu0 0
        %1292 = vmatpush1.bf16.msra.mxu0 %v1273
        %1293 = vmatprep.subr.bf16.mxu0 0
        %1294 = vmatpush1.bf16.msra.mxu0 %v1274
        %1295 = vmatprep.subr.bf16.mxu0 0
        %1296 = vmatpush1.bf16.msra.mxu0 %v1275
        %1297 = vmatprep.subr.bf16.mxu0 0
        %1298 = vmatpush1.bf16.msra.mxu0 %v1276
        %1299 = vmatprep.subr.bf16.mxu0 0
        %1300 = vmatpush1.bf16.msra.mxu0 %v1277
        %1301 = vmatprep.subr.bf16.mxu0 0
        %1302 = vmatpush1.bf16.msra.mxu0 %v1278
        %1303 = vmatprep.subr.bf16.mxu0 0
        %1304 = vmatpush1.bf16.msra.mxu0 0
        %1305 = vmatprep.subr.bf16.mxu0 0
        %1306 = vmatpush1.bf16.msra.mxu0 0
        %1307 = vmatprep.subr.bf16.mxu0 0
        %1308 = vmatpush1.bf16.msra.mxu0 0
        %1309 = vmatprep.subr.bf16.mxu0 0
        %1310 = vmatpush1.bf16.msra.mxu0 0
        %1311 = vmatprep.subr.bf16.mxu0 0
        %1312 = vmatpush1.bf16.msra.mxu0 0
        %1313 = vmatprep.subr.bf16.mxu0 0
        %1314 = vmatpush1.bf16.msra.mxu0 0
        %1315 = vmatprep.subr.bf16.mxu0 0
        %1316 = vmatpush1.bf16.msra.mxu0 0
        %1317 = vmatprep.subr.bf16.mxu0 0
        %1318 = vmatpush1.bf16.msra.mxu0 0
        %1319 = vmatprep.mubr.bf16.mxu0 0
        %1320 = vmatmul.mubr.bf16.gmra.mrb[0].mxu0 %v1221
        %v1321 = vpop.f32.mrb[0].mxu0
        %v1322 = vadd.f32 0.0, %v1321
        %v1323 = vpop.f32.mrb[0].mxu0
        %v1324 = vpop.f32.mrb[0].mxu0
        %v1325 = vpop.f32.mrb[0].mxu0
        %1326 = vdwg.mxu0
        %v1327 = vadd.f32 %v1215, %v1322
        %v1328 = vld [vmem:[%s6] sm:$0x1]
        %v1330 = vlaneseq
        %v1331 = vshrl.u32 %v1330, 7
        %v1332 = vsub.s32 0, %v1331
        %v1333 = vrot.slane %v1328, %v1332
        %v1335 = vadd.f32 %v1327, %v1333
        %v1336 = vld [vmem:[%s319 + $0x1] sm:$0xff]
        %v1337 = vadd.f32 %v1335, %v1336
        %1338 = vst [vmem:[%s319 + $0x1] sm:$0xff] %v1337
        %p1339 = scmp.lt.s32.totalorder %s20, 1
        %s1340 = scalar_select %p1339, %s20, 1
        %s1341 = smul.addr %s1340, 2
        %s1342 = smul.addr %s1341, 8
        %s1343 = scalar_lea.vmem %s8, %s1342
        // Predicated region
        $region57: #{_lambda_.6} parent=51 // pred_check
          %p1344 = pneg %p211
        $region58: #{_lambda_.6} parent=51 // pred_check_branch
          %1346 = sbr.rel (%p1344) target = $region60
        $region59: #{_lambda_.6} parent=51 // pred_region
          _
        $region60: #{_lambda_.6} parent=51 // pred_fallthru
          _
      $region52: #{_lambda_.6} parent=5 // pred_fallthru
        _
      %p1347 = scmp.le.s32.totalorder 2, %s15
      // Predicated region
      $region61: #{_lambda_.6} parent=5 // pred_check
        %p1348 = pneg %p1347
      $region62: #{_lambda_.6} parent=5 // pred_check_branch
        %1350 = sbr.rel (%p1348) target = $region64
      $region63: #{_lambda_.6} parent=5 // pred_region
        %s1351 = ssub.s32 %s15, 2
        // Predicated region
        $region65: #{_lambda_.6} parent=63 // pred_check
          %p1352 = pneg %p217
        $region66: #{_lambda_.6} parent=63 // pred_check_branch
          %1354 = sbr.rel (%p1352) target = $region68
        $region67: #{_lambda_.6} parent=63 // pred_region
          %p1355 = scmp.lt.s32.totalorder %s21, 1
          %s1356 = scalar_select %p1355, %s21, 1
          %s1357 = smul.addr %s1356, 2
          %s1358 = smul.addr %s1357, 8
          %s1359 = scalar_lea.vmem %s8, %s1358
        $region68: #{_lambda_.6} parent=63 // pred_fallthru
          _
      $region64: #{_lambda_.6} parent=5 // pred_fallthru
        _
    $region6: #{_lambda_.6} parent=1 // loop_footer
      %s19 = sadd.s32 1, %s15
    $region7: #{_lambda_.6} parent=1 // loop_footer_branch
      %14 = sbr.rel target = $region3
    $region8: #{_lambda_.6} parent=1 // loop_exit
      _
    %1360 = vsyncpa [#allocation4], 1
    %s1361 = scalar_lea.sflag [#allocation4], 1
    %1362 = vsyncpa %s1361, 1

// kernel: _lambda_.5
$region0: #{_lambda_.5}
  #allocation0 [shape = 'u32[]', space=smem, size = 0x4, offset = 0x4, fixed_abs, tag = 'smem constant byte address 0x4 - core index']
  #allocation1 [shape = 'u32[144,128]{1,0:T(1,128)}', space=vmem, size = 0x12000, scoped, tag = 'internal scratch']
  #allocation2 [shape = 'f32[18,128]{1,0:T(8,128)}', space=vmem, size = 0x3000, scoped, tag = 'scratch operand']
  %s0 = inlined_call_operand.vmem [shape: bf16[2,1,22,64], index: 0, kind: input, shape index: {}]
  %s1 = inlined_call_operand.vmem [shape: bf16[7,64,128], index: 1, kind: input, shape index: {}]
  %s2 = inlined_call_operand.vmem [shape: f32[1,128], index: 2, kind: input, shape index: {}]
  %s3 = inlined_call_operand.vmem [shape: bf16[1,3,128,128], index: 3, kind: input, shape index: {}]
  %s4 = inlined_call_operand.vmem [shape: f32[1,1,128], index: 4, kind: input, shape index: {}]
  %s5 = inlined_call_operand.vmem [shape: bf16[1,3,128,128], index: 5, kind: input, shape index: {}]
  %s6 = inlined_call_operand.vmem [shape: f32[1,1,128], index: 6, kind: input, shape index: {}]
  %s7 = inlined_call_operand.vmem [shape: f32[2], index: 7, kind: input, shape index: {}]
  %s8 = inlined_call_operand.vmem [shape: f32[2,18,128], index: 8, kind: output, shape index: {}]
  %s9 = sld [smem:[#allocation0]]
  $region69: #{_lambda_.5} parent=0
    _
  %s11 = ssub.s32 1, %s9
  %s12 = scalar_select 0, %s11, %s9
  $region1: #{_lambda_.5} parent=0
    #allocation3 [shape = 'u8[512]{0}', space=smem, size = 0x200, scoped, tag = 'input window, operand 7, single buffered']
    #allocation4 [shape = 's32[2]{0}', space=sflag, size = 0x8, scoped, tag = 'scoped memory for _lambda_.5']
    %13 = vsyncpa [#allocation4], 0
    loop: start=0, step=1, limit=4
    $region2: #{_lambda_.5} parent=1 // loop_pre_header
      _
    $region3: #{_lambda_.5} parent=1 // loop_header
      %s15 = sphi 0, %s19
      %p16 = scmp.ge.s32.totalorder %s15, 4
      %s25 = sphi 0, %s27
      %s28 = sphi 0, %s25
      %s29 = sphi 0, %s28
      %s45 = sphi 0, %s29
      %s49 = sphi 0, %s49
      %s51 = sphi 0, %s49
      %s52 = sphi 0, %s51
      %s66 = sphi 0, %s52
      %s70 = sphi 0, %s70
      %s72 = sphi 0, %s70
      %s73 = sphi 0, %s72
      %s87 = sphi 0, %s73
      %s91 = sphi 0, %s91
      %s93 = sphi 0, %s91
      %s94 = sphi 0, %s93
      %s108 = sphi 0, %s94
      %s112 = sphi 0, %s112
      %s114 = sphi 0, %s112
      %s115 = sphi 0, %s114
      %s129 = sphi 0, %s115
      %s133 = sphi 0, %s133
      %s135 = sphi 0, %s133
      %s136 = sphi 0, %s135
      %s150 = sphi 0, %s136
      %s154 = sphi 0, %s154
      %s156 = sphi 0, %s154
      %s157 = sphi 0, %s156
      %s171 = sphi 0, %s157
      %s175 = sphi 0, %s175
      %s177 = sphi 0, %s175
      %s178 = sphi 0, %s177
      %s192 = sphi 0, %s178
      %s198 = sphi 0, %s200
      %s201 = sphi 0, %s198
      %s202 = sphi 0, %s201
      %s218 = sphi 0, %s202
    $region4: #{_lambda_.5} parent=1 // loop_header_branch
      %18 = sbr.rel (%p16) target = $region8
    $region5: #{_lambda_.5} parent=1 // loop_body
      %s20 = ssub.s32 %s15, 1
      %s21 = ssub.s32 %s15, 2
      %s22 = sadd.s32 %s15, 1
      %s23 = ssub.s32 %s15, %s22
      %p24 = scmp.eq.s32.totalorder %s23, 0
      %s26 = sadd.s32 %s25, 1
      %s27 = scalar_select %p24, %s25, %s26
      %p30 = pneg %p24
      %p31 = scmp.eq.s32.totalorder %s15, 1
      %p32 = por %p30, %p31
      %p33 = scmp.ne.s32.totalorder %s25, %s28
      %p34 = scmp.eq.s32.totalorder %s15, 0
      %p35 = por %p33, %p34
      %p36 = scmp.ne.s32.totalorder %s25, %s28
      %p37 = scmp.eq.s32.totalorder %s20, 1
      %p38 = por %p36, %p37
      %p39 = scmp.ne.s32.totalorder %s28, %s29
      %p40 = scmp.eq.s32.totalorder %s20, 0
      %p41 = por %p39, %p40
      %p42 = scmp.ne.s32.totalorder %s28, %s29
      %p43 = scmp.eq.s32.totalorder %s21, 1
      %p44 = por %p42, %p43
      %p46 = scmp.ne.s32.totalorder %s29, %s45
      %p47 = scmp.eq.s32.totalorder %s21, 0
      %p48 = por %p46, %p47
      %s50 = sadd.s32 %s49, 1
      %p53 = scmp.eq.s32.totalorder %s15, 1
      %p54 = scmp.ne.s32.totalorder %s49, %s51
      %p55 = scmp.eq.s32.totalorder %s15, 0
      %p56 = por %p54, %p55
      %p57 = scmp.ne.s32.totalorder %s49, %s51
      %p58 = scmp.eq.s32.totalorder %s20, 1
      %p59 = por %p57, %p58
      %p60 = scmp.ne.s32.totalorder %s51, %s52
      %p61 = scmp.eq.s32.totalorder %s20, 0
      %p62 = por %p60, %p61
      %p63 = scmp.ne.s32.totalorder %s51, %s52
      %p64 = scmp.eq.s32.totalorder %s21, 1
      %p65 = por %p63, %p64
      %p67 = scmp.ne.s32.totalorder %s52, %s66
      %p68 = scmp.eq.s32.totalorder %s21, 0
      %p69 = por %p67, %p68
      %s71 = sadd.s32 %s70, 1
      %p74 = scmp.eq.s32.totalorder %s15, 1
      %p75 = scmp.ne.s32.totalorder %s70, %s72
      %p76 = scmp.eq.s32.totalorder %s15, 0
      %p77 = por %p75, %p76
      %p78 = scmp.ne.s32.totalorder %s70, %s72
      %p79 = scmp.eq.s32.totalorder %s20, 1
      %p80 = por %p78, %p79
      %p81 = scmp.ne.s32.totalorder %s72, %s73
      %p82 = scmp.eq.s32.totalorder %s20, 0
      %p83 = por %p81, %p82
      %p84 = scmp.ne.s32.totalorder %s72, %s73
      %p85 = scmp.eq.s32.totalorder %s21, 1
      %p86 = por %p84, %p85
      %p88 = scmp.ne.s32.totalorder %s73, %s87
      %p89 = scmp.eq.s32.totalorder %s21, 0
      %p90 = por %p88, %p89
      %s92 = sadd.s32 %s91, 1
      %p95 = scmp.eq.s32.totalorder %s15, 1
      %p96 = scmp.ne.s32.totalorder %s91, %s93
      %p97 = scmp.eq.s32.totalorder %s15, 0
      %p98 = por %p96, %p97
      %p99 = scmp.ne.s32.totalorder %s91, %s93
      %p100 = scmp.eq.s32.totalorder %s20, 1
      %p101 = por %p99, %p100
      %p102 = scmp.ne.s32.totalorder %s93, %s94
      %p103 = scmp.eq.s32.totalorder %s20, 0
      %p104 = por %p102, %p103
      %p105 = scmp.ne.s32.totalorder %s93, %s94
      %p106 = scmp.eq.s32.totalorder %s21, 1
      %p107 = por %p105, %p106
      %p109 = scmp.ne.s32.totalorder %s94, %s108
      %p110 = scmp.eq.s32.totalorder %s21, 0
      %p111 = por %p109, %p110
      %s113 = sadd.s32 %s112, 1
      %p116 = scmp.eq.s32.totalorder %s15, 1
      %p117 = scmp.ne.s32.totalorder %s112, %s114
      %p118 = scmp.eq.s32.totalorder %s15, 0
      %p119 = por %p117, %p118
      %p120 = scmp.ne.s32.totalorder %s112, %s114
      %p121 = scmp.eq.s32.totalorder %s20, 1
      %p122 = por %p120, %p121
      %p123 = scmp.ne.s32.totalorder %s114, %s115
      %p124 = scmp.eq.s32.totalorder %s20, 0
      %p125 = por %p123, %p124
      %p126 = scmp.ne.s32.totalorder %s114, %s115
      %p127 = scmp.eq.s32.totalorder %s21, 1
      %p128 = por %p126, %p127
      %p130 = scmp.ne.s32.totalorder %s115, %s129
      %p131 = scmp.eq.s32.totalorder %s21, 0
      %p132 = por %p130, %p131
      %s134 = sadd.s32 %s133, 1
      %p137 = scmp.eq.s32.totalorder %s15, 1
      %p138 = scmp.ne.s32.totalorder %s133, %s135
      %p139 = scmp.eq.s32.totalorder %s15, 0
      %p140 = por %p138, %p139
      %p141 = scmp.ne.s32.totalorder %s133, %s135
      %p142 = scmp.eq.s32.totalorder %s20, 1
      %p143 = por %p141, %p142
      %p144 = scmp.ne.s32.totalorder %s135, %s136
      %p145 = scmp.eq.s32.totalorder %s20, 0
      %p146 = por %p144, %p145
      %p147 = scmp.ne.s32.totalorder %s135, %s136
      %p148 = scmp.eq.s32.totalorder %s21, 1
      %p149 = por %p147, %p148
      %p151 = scmp.ne.s32.totalorder %s136, %s150
      %p152 = scmp.eq.s32.totalorder %s21, 0
      %p153 = por %p151, %p152
      %s155 = sadd.s32 %s154, 1
      %p158 = scmp.eq.s32.totalorder %s15, 1
      %p159 = scmp.ne.s32.totalorder %s154, %s156
      %p160 = scmp.eq.s32.totalorder %s15, 0
      %p161 = por %p159, %p160
      %p162 = scmp.ne.s32.totalorder %s154, %s156
      %p163 = scmp.eq.s32.totalorder %s20, 1
      %p164 = por %p162, %p163
      %p165 = scmp.ne.s32.totalorder %s156, %s157
      %p166 = scmp.eq.s32.totalorder %s20, 0
      %p167 = por %p165, %p166
      %p168 = scmp.ne.s32.totalorder %s156, %s157
      %p169 = scmp.eq.s32.totalorder %s21, 1
      %p170 = por %p168, %p169
      %p172 = scmp.ne.s32.totalorder %s157, %s171
      %p173 = scmp.eq.s32.totalorder %s21, 0
      %p174 = por %p172, %p173
      %s176 = sadd.s32 %s175, 1
      %p179 = scmp.eq.s32.totalorder %s15, 1
      %p180 = scmp.ne.s32.totalorder %s175, %s177
      %p181 = scmp.eq.s32.totalorder %s15, 0
      %p182 = por %p180, %p181
      %p183 = scmp.ne.s32.totalorder %s175, %s177
      %p184 = scmp.eq.s32.totalorder %s20, 1
      %p185 = por %p183, %p184
      %p186 = scmp.ne.s32.totalorder %s177, %s178
      %p187 = scmp.eq.s32.totalorder %s20, 0
      %p188 = por %p186, %p187
      %p189 = scmp.ne.s32.totalorder %s177, %s178
      %p190 = scmp.eq.s32.totalorder %s21, 1
      %p191 = por %p189, %p190
      %p193 = scmp.ne.s32.totalorder %s178, %s192
      %p194 = scmp.eq.s32.totalorder %s21, 0
      %p195 = por %p193, %p194
      %s196 = ssub.s32 %s15, %s22
      %p197 = scmp.eq.s32.totalorder %s196, 0
      %s199 = sadd.s32 %s198, 1
      %s200 = scalar_select %p197, %s198, %s199
      %p203 = pneg %p197
      %p204 = scmp.eq.s32.totalorder %s15, 1
      %p205 = por %p203, %p204
      %p206 = scmp.ne.s32.totalorder %s198, %s201
      %p207 = scmp.eq.s32.totalorder %s15, 0
      %p208 = por %p206, %p207
      %p209 = scmp.ne.s32.totalorder %s198, %s201
      %p210 = scmp.eq.s32.totalorder %s20, 1
      %p211 = por %p209, %p210
      %p212 = scmp.ne.s32.totalorder %s201, %s202
      %p213 = scmp.eq.s32.totalorder %s20, 0
      %p214 = por %p212, %p213
      %p215 = scmp.ne.s32.totalorder %s201, %s202
      %p216 = scmp.eq.s32.totalorder %s21, 1
      %p217 = por %p215, %p216
      %p219 = scmp.ne.s32.totalorder %s202, %s218
      %p220 = scmp.eq.s32.totalorder %s21, 0
      %p221 = por %p219, %p220
      %p222 = scmp.le.s32.totalorder 1, %s15
      %p223 = scmp.lt.s32.totalorder %s15, 3
      %p224 = pnand %p222, %p223
      %p225 = pneg %p224
      // Predicated region
      $region9: #{_lambda_.5} parent=5 // pred_check
        _
      $region10: #{_lambda_.5} parent=5 // pred_check_branch
        %227 = sbr.rel (%p224) target = $region12
      $region11: #{_lambda_.5} parent=5 // pred_region
        %s228 = ssub.s32 %s15, 1
        // Predicated region
        $region13: #{_lambda_.5} parent=11 // pred_check
          %p229 = pneg %p62
        $region14: #{_lambda_.5} parent=11 // pred_check_branch
          %231 = sbr.rel (%p229) target = $region16
        $region15: #{_lambda_.5} parent=11 // pred_region
          _
        $region16: #{_lambda_.5} parent=11 // pred_fallthru
          _
        // Predicated region
        $region17: #{_lambda_.5} parent=11 // pred_check
          %p232 = pneg %p83
        $region18: #{_lambda_.5} parent=11 // pred_check_branch
          %234 = sbr.rel (%p232) target = $region20
        $region19: #{_lambda_.5} parent=11 // pred_region
          _
        $region20: #{_lambda_.5} parent=11 // pred_fallthru
          _
        // Predicated region
        $region21: #{_lambda_.5} parent=11 // pred_check
          %p235 = pneg %p104
        $region22: #{_lambda_.5} parent=11 // pred_check_branch
          %237 = sbr.rel (%p235) target = $region24
        $region23: #{_lambda_.5} parent=11 // pred_region
          _
        $region24: #{_lambda_.5} parent=11 // pred_fallthru
          _
        // Predicated region
        $region25: #{_lambda_.5} parent=11 // pred_check
          %p238 = pneg %p125
        $region26: #{_lambda_.5} parent=11 // pred_check_branch
          %240 = sbr.rel (%p238) target = $region28
        $region27: #{_lambda_.5} parent=11 // pred_region
          _
        $region28: #{_lambda_.5} parent=11 // pred_fallthru
          _
        // Predicated region
        $region29: #{_lambda_.5} parent=11 // pred_check
          %p241 = pneg %p146
        $region30: #{_lambda_.5} parent=11 // pred_check_branch
          %243 = sbr.rel (%p241) target = $region32
        $region31: #{_lambda_.5} parent=11 // pred_region
          _
        $region32: #{_lambda_.5} parent=11 // pred_fallthru
          _
        // Predicated region
        $region33: #{_lambda_.5} parent=11 // pred_check
          %p244 = pneg %p167
        $region34: #{_lambda_.5} parent=11 // pred_check_branch
          %246 = sbr.rel (%p244) target = $region36
        $region35: #{_lambda_.5} parent=11 // pred_region
          _
        $region36: #{_lambda_.5} parent=11 // pred_fallthru
          _
        // Predicated region
        $region37: #{_lambda_.5} parent=11 // pred_check
          %p247 = pneg %p188
        $region38: #{_lambda_.5} parent=11 // pred_check_branch
          %249 = sbr.rel (%p247) target = $region40
        $region39: #{_lambda_.5} parent=11 // pred_region
          %s251 = ssub.s32 16, 16
          %252 = vsyncadd [#allocation4], %s251
          %s254 = sshll.u32 %s7, 4
          %s255 = int_to_ptr.vmem [resolvable:$true] %s254
          %257 = dma.vmem_to_smem %s255, 16, [#allocation3], [#allocation4]
        $region40: #{_lambda_.5} parent=11 // pred_fallthru
          _
      $region12: #{_lambda_.5} parent=5 // pred_fallthru
        _
      %p258 = scmp.lt.s32.totalorder %s15, 2
      // Predicated region
      $region41: #{_lambda_.5} parent=5 // pred_check
        %p259 = pneg %p258
      $region42: #{_lambda_.5} parent=5 // pred_check_branch
        %261 = sbr.rel (%p259) target = $region44
      $region43: #{_lambda_.5} parent=5 // pred_region
        // Predicated region
        $region45: #{_lambda_.5} parent=43 // pred_check
          %p262 = pneg %p35
        $region46: #{_lambda_.5} parent=43 // pred_check_branch
          %264 = sbr.rel (%p262) target = $region48
        $region47: #{_lambda_.5} parent=43 // pred_region
          %p265 = scmp.lt.s32.totalorder %s15, 1
          %s266 = scalar_select %p265, %s15, 1
          %s267 = smul.addr %s266, 3
          %s268 = smul.addr %s267, 4
          %s269 = scalar_lea.vmem %s0, %s268
        $region48: #{_lambda_.5} parent=43 // pred_fallthru
          _
      $region44: #{_lambda_.5} parent=5 // pred_fallthru
        _
      %p270 = scmp.le.s32.totalorder 1, %s15
      %p271 = scmp.lt.s32.totalorder %s15, 3
      %p272 = pnand %p270, %p271
      %p273 = pneg %p272
      // Predicated region
      $region49: #{_lambda_.5} parent=5 // pred_check
        _
      $region50: #{_lambda_.5} parent=5 // pred_check_branch
        %275 = sbr.rel (%p272) target = $region52
      $region51: #{_lambda_.5} parent=5 // pred_region
        %s276 = ssub.s32 %s15, 1
        // Predicated region
        $region53: #{_lambda_.5} parent=51 // pred_check
          %p277 = pneg %p188
        $region54: #{_lambda_.5} parent=51 // pred_check_branch
          %279 = sbr.rel (%p277) target = $region56
        $region55: #{_lambda_.5} parent=51 // pred_region
          %280 = dma.done [#allocation4], 16
        $region56: #{_lambda_.5} parent=51 // pred_fallthru
          _
        %281 = sfence
        %p282 = scmp.lt.s32.totalorder %s20, 1
        %s283 = scalar_select %p282, %s20, 1
        %s284 = smul.addr %s283, 3
        %s285 = smul.addr %s284, 4
        %s286 = scalar_lea.vmem %s0, %s285
        %p287 = pneg %p41
        %p288 = pneg %p38
        %p289 = pneg %p62
        %p290 = pneg %p59
        %p291 = pneg %p83
        %p292 = pneg %p80
        %p293 = pneg %p104
        %p294 = pneg %p101
        %p295 = pneg %p125
        %p296 = pneg %p122
        %p297 = pneg %p146
        %p298 = pneg %p143
        %p299 = pneg %p167
        %p300 = pneg %p164
        %p301 = pneg %p188
        %p302 = pneg %p185
        %p303 = pneg %p214
        %p304 = pneg %p211
        %p305 = scmp.lt.s32.totalorder %s20, 1
        %s306 = scalar_select %p305, %s20, 1
        %s307 = smul.addr %s306, 3
        %s308 = smul.addr %s307, 8
        %s309 = scalar_lea.vmem %s8, %s308
        %p310 = scmp.lt.s32.totalorder %s20, 1
        %s311 = scalar_select %p310, %s20, 1
        %s312 = smul.addr %s311, 3
        %s313 = smul.addr %s312, 4
        %s314 = scalar_lea.vmem %s0, %s313
        %p315 = scmp.lt.s32.totalorder %s20, 1
        %s316 = scalar_select %p315, %s20, 1
        %s317 = smul.addr %s316, 3
        %s318 = smul.addr %s317, 8
        %s319 = scalar_lea.vmem %s8, %s318
        %321 = vst [vmem:[%s319] sm:$0xff] 0.0
        %322 = vst [vmem:[%s319 + $0x8] sm:$0xff] 0.0
        %323 = vst [vmem:[%s319 + $0x10] sm:$0x3] 0.0
        %324 = vst [vmem:[#allocation2] sm:$0xff] 0.0
        %325 = vst [vmem:[#allocation2 + $0x8] sm:$0xff] 0.0
        %326 = vst [vmem:[#allocation2 + $0x10] sm:$0x3] 0.0
        %v327 = vld [vmem:[%s314] sm:$0xf]
        %v328 = vld [vmem:[%s314 + $0x4] sm:$0xf]
        %v329 = vld [vmem:[%s1] sm:$0xf]
        %v330 = vld [vmem:[%s1 + $0x4] sm:$0xf]
        %v331 = vld [vmem:[%s1 + $0x8] sm:$0xf]
        %v332 = vld [vmem:[%s1 + $0xc] sm:$0xf]
        %v333 = vld [vmem:[%s1 + $0x10] sm:$0xf]
        %v334 = vld [vmem:[%s1 + $0x14] sm:$0xf]
        %v335 = vld [vmem:[%s1 + $0x18] sm:$0xf]
        %v336 = vld [vmem:[%s1 + $0x1c] sm:$0xf]
        %v337 = vld [vmem:[%s314 + $0x8] sm:$0x1]
        %s338 = scalar_lea.vmem %s1, 32
        %v339 = vld [vmem:[%s338] sm:$0xf]
        %v340 = vld [vmem:[%s338 + $0x4] sm:$0xf]
        %v341 = vld [vmem:[%s338 + $0x8] sm:$0xf]
        %v342 = vld [vmem:[%s338 + $0xc] sm:$0xf]
        %v343 = vld [vmem:[%s338 + $0x10] sm:$0xf]
        %v344 = vld [vmem:[%s338 + $0x14] sm:$0xf]
        %v345 = vld [vmem:[%s338 + $0x18] sm:$0xf]
        %v346 = vld [vmem:[%s338 + $0x1c] sm:$0xf]
        %v350 = vunpack.c.l.b16 %v327
        %v351 = vunpack.c.l.b16 %v328
        %v352 = vunpack.c.l.b16 %v337
        %v353 = vpack.c.b16 %v351, %v350
        %v354 = vpack.c.b16 %v352, %v352
        %vm355 = vsmask.f32 7424
        %v357 = vshrl.u32 %v353, 16
        %v359 = vshll.u32 %v353, 16
        %v361 = vrot.slane %v359, 1
        %v362 = vor.u32 %v357, %v361
        %v364 = vshll.u32 %v354, 16
        %v366 = vrot.slane %v364, 1
        %v367 = vsel %vm355, %v362, %v366
        %v376 = vunpack.c.l.b16 %v339
        %v377 = vunpack.c.l.b16 %v340
        %v378 = vunpack.c.l.b16 %v341
        %v379 = vunpack.c.l.b16 %v342
        %v380 = vunpack.c.l.b16 %v343
        %v381 = vunpack.c.l.b16 %v344
        %v382 = vunpack.c.l.b16 %v345
        %v383 = vunpack.c.l.b16 %v346
        %v384 = vpack.c.b16 %v377, %v376
        %v385 = vpack.c.b16 %v379, %v378
        %v386 = vpack.c.b16 %v381, %v380
        %v387 = vpack.c.b16 %v383, %v382
        %vm392 = vcmask 523264
        %v394 = vsel %vm392, %v367, 0
        %396 = vmatprep.subr.bf16.mxu0 0
        %397 = vmatpush1.bf16.msra.mxu0 %v384
        %398 = vmatprep.subr.bf16.mxu0 0
        %399 = vmatpush1.bf16.msra.mxu0 %v385
        %400 = vmatprep.subr.bf16.mxu0 0
        %401 = vmatpush1.bf16.msra.mxu0 %v386
        %402 = vmatprep.subr.bf16.mxu0 0
        %403 = vmatpush1.bf16.msra.mxu0 %v387
        %404 = vmatprep.subr.bf16.mxu0 0
        %405 = vmatpush1.bf16.msra.mxu0 0
        %406 = vmatprep.subr.bf16.mxu0 0
        %407 = vmatpush1.bf16.msra.mxu0 0
        %408 = vmatprep.subr.bf16.mxu0 0
        %409 = vmatpush1.bf16.msra.mxu0 0
        %410 = vmatprep.subr.bf16.mxu0 0
        %411 = vmatpush1.bf16.msra.mxu0 0
        %412 = vmatprep.subr.bf16.mxu0 0
        %413 = vmatpush1.bf16.msra.mxu0 0
        %414 = vmatprep.subr.bf16.mxu0 0
        %415 = vmatpush1.bf16.msra.mxu0 0
        %416 = vmatprep.subr.bf16.mxu0 0
        %417 = vmatpush1.bf16.msra.mxu0 0
        %418 = vmatprep.subr.bf16.mxu0 0
        %419 = vmatpush1.bf16.msra.mxu0 0
        %420 = vmatprep.subr.bf16.mxu0 0
        %421 = vmatpush1.bf16.msra.mxu0 0
        %422 = vmatprep.subr.bf16.mxu0 0
        %423 = vmatpush1.bf16.msra.mxu0 0
        %424 = vmatprep.subr.bf16.mxu0 0
        %425 = vmatpush1.bf16.msra.mxu0 0
        %426 = vmatprep.subr.bf16.mxu0 0
        %427 = vmatpush1.bf16.msra.mxu0 0
        %428 = vmatprep.mubr.bf16.mxu0 0
        %429 = vmatmul.mubr.bf16.gmra.mrb[0].mxu0 %v394
        %v430 = vpop.f32.mrb[0].mxu0
        %v431 = vadd.f32 0.0, %v430
        %v432 = vpop.f32.mrb[0].mxu0
        %v433 = vpop.f32.mrb[0].mxu0
        %v434 = vadd.f32 0.0, %v433
        %v435 = vpop.f32.mrb[0].mxu0
        %436 = vdwg.mxu0
        %v445 = vunpack.c.l.b16 %v329
        %v446 = vunpack.c.l.b16 %v330
        %v447 = vunpack.c.l.b16 %v331
        %v448 = vunpack.c.l.b16 %v332
        %v449 = vunpack.c.l.b16 %v333
        %v450 = vunpack.c.l.b16 %v334
        %v451 = vunpack.c.l.b16 %v335
        %v452 = vunpack.c.l.b16 %v336
        %v453 = vpack.c.b16 %v446, %v445
        %v454 = vpack.c.b16 %v448, %v447
        %v455 = vpack.c.b16 %v450, %v449
        %v456 = vpack.c.b16 %v452, %v451
        %v461 = vsel %vm392, %v353, 0
        %463 = vmatprep.subr.bf16.mxu0 0
        %464 = vmatpush1.bf16.msra.mxu0 %v453
        %465 = vmatprep.subr.bf16.mxu0 0
        %466 = vmatpush1.bf16.msra.mxu0 %v454
        %467 = vmatprep.subr.bf16.mxu0 0
        %468 = vmatpush1.bf16.msra.mxu0 %v455
        %469 = vmatprep.subr.bf16.mxu0 0
        %470 = vmatpush1.bf16.msra.mxu0 %v456
        %471 = vmatprep.subr.bf16.mxu0 0
        %472 = vmatpush1.bf16.msra.mxu0 0
        %473 = vmatprep.subr.bf16.mxu0 0
        %474 = vmatpush1.bf16.msra.mxu0 0
        %475 = vmatprep.subr.bf16.mxu0 0
        %476 = vmatpush1.bf16.msra.mxu0 0
        %477 = vmatprep.subr.bf16.mxu0 0
        %478 = vmatpush1.bf16.msra.mxu0 0
        %479 = vmatprep.subr.bf16.mxu0 0
        %480 = vmatpush1.bf16.msra.mxu0 0
        %481 = vmatprep.subr.bf16.mxu0 0
        %482 = vmatpush1.bf16.msra.mxu0 0
        %483 = vmatprep.subr.bf16.mxu0 0
        %484 = vmatpush1.bf16.msra.mxu0 0
        %485 = vmatprep.subr.bf16.mxu0 0
        %486 = vmatpush1.bf16.msra.mxu0 0
        %487 = vmatprep.subr.bf16.mxu0 0
        %488 = vmatpush1.bf16.msra.mxu0 0
        %489 = vmatprep.subr.bf16.mxu0 0
        %490 = vmatpush1.bf16.msra.mxu0 0
        %491 = vmatprep.subr.bf16.mxu0 0
        %492 = vmatpush1.bf16.msra.mxu0 0
        %493 = vmatprep.subr.bf16.mxu0 0
        %494 = vmatpush1.bf16.msra.mxu0 0
        %495 = vmatprep.mubr.bf16.mxu0 0
        %496 = vmatmul.mubr.bf16.gmra.mrb[0].mxu0 %v461
        %v497 = vpop.f32.mrb[0].mxu0
        %v498 = vadd.f32 %v431, %v497
        %v499 = vpop.f32.mrb[0].mxu0
        %v500 = vpop.f32.mrb[0].mxu0
        %v501 = vadd.f32 %v434, %v500
        %v502 = vpop.f32.mrb[0].mxu0
        %503 = vdwg.mxu0
        %v504 = vld [vmem:[%s314] sm:$0xe]
        %s505 = scalar_lea.vmem %s1, 64
        %v506 = vld [vmem:[%s505] sm:$0xf]
        %v507 = vld [vmem:[%s505 + $0x4] sm:$0xf]
        %v508 = vld [vmem:[%s505 + $0x8] sm:$0xf]
        %v509 = vld [vmem:[%s505 + $0xc] sm:$0xf]
        %v510 = vld [vmem:[%s505 + $0x10] sm:$0xf]
        %v511 = vld [vmem:[%s505 + $0x14] sm:$0xf]
        %v512 = vld [vmem:[%s505 + $0x18] sm:$0xf]
        %v513 = vld [vmem:[%s505 + $0x1c] sm:$0xf]
        %v515 = vunpack.c.l.b16 %v504
        %v516 = vpack.c.b16 %v351, %v515
        %vm517 = vcmask 1046528
        %v518 = vrot.slane %v516, 1
        %v519 = vrot.slane %v354, 1
        %v520 = vsel %vm517, %v518, %v519
        %v529 = vunpack.c.l.b16 %v506
        %v530 = vunpack.c.l.b16 %v507
        %v531 = vunpack.c.l.b16 %v508
        %v532 = vunpack.c.l.b16 %v509
        %v533 = vunpack.c.l.b16 %v510
        %v534 = vunpack.c.l.b16 %v511
        %v535 = vunpack.c.l.b16 %v512
        %v536 = vunpack.c.l.b16 %v513
        %v537 = vpack.c.b16 %v530, %v529
        %v538 = vpack.c.b16 %v532, %v531
        %v539 = vpack.c.b16 %v534, %v533
        %v540 = vpack.c.b16 %v536, %v535
        %v546 = vsel %vm392, %v520, 0
        %548 = vmatprep.subr.bf16.mxu0 0
        %549 = vmatpush1.bf16.msra.mxu0 %v537
        %550 = vmatprep.subr.bf16.mxu0 0
        %551 = vmatpush1.bf16.msra.mxu0 %v538
        %552 = vmatprep.subr.bf16.mxu0 0
        %553 = vmatpush1.bf16.msra.mxu0 %v539
        %554 = vmatprep.subr.bf16.mxu0 0
        %555 = vmatpush1.bf16.msra.mxu0 %v540
        %556 = vmatprep.subr.bf16.mxu0 0
        %557 = vmatpush1.bf16.msra.mxu0 0
        %558 = vmatprep.subr.bf16.mxu0 0
        %559 = vmatpush1.bf16.msra.mxu0 0
        %560 = vmatprep.subr.bf16.mxu0 0
        %561 = vmatpush1.bf16.msra.mxu0 0
        %562 = vmatprep.subr.bf16.mxu0 0
        %563 = vmatpush1.bf16.msra.mxu0 0
        %564 = vmatprep.subr.bf16.mxu0 0
        %565 = vmatpush1.bf16.msra.mxu0 0
        %566 = vmatprep.subr.bf16.mxu0 0
        %567 = vmatpush1.bf16.msra.mxu0 0
        %568 = vmatprep.subr.bf16.mxu0 0
        %569 = vmatpush1.bf16.msra.mxu0 0
        %570 = vmatprep.subr.bf16.mxu0 0
        %571 = vmatpush1.bf16.msra.mxu0 0
        %572 = vmatprep.subr.bf16.mxu0 0
        %573 = vmatpush1.bf16.msra.mxu0 0
        %574 = vmatprep.subr.bf16.mxu0 0
        %575 = vmatpush1.bf16.msra.mxu0 0
        %576 = vmatprep.subr.bf16.mxu0 0
        %577 = vmatpush1.bf16.msra.mxu0 0
        %578 = vmatprep.subr.bf16.mxu0 0
        %579 = vmatpush1.bf16.msra.mxu0 0
        %580 = vmatprep.mubr.bf16.mxu0 0
        %581 = vmatmul.mubr.bf16.gmra.mrb[0].mxu0 %v546
        %v582 = vpop.f32.mrb[0].mxu0
        %v583 = vadd.f32 0.0, %v582
        %v584 = vpop.f32.mrb[0].mxu0
        %v585 = vpop.f32.mrb[0].mxu0
        %v586 = vadd.f32 0.0, %v585
        %v587 = vpop.f32.mrb[0].mxu0
        %588 = vdwg.mxu0
        %v589 = vadd.f32 %v498, %v583
        %v590 = vadd.f32 %v501, %v586
        %v591 = vld [vmem:[%s314 + $0x8] sm:$0x3]
        %s592 = scalar_lea.vmem %s1, 96
        %v593 = vld [vmem:[%s592] sm:$0xf]
        %v594 = vld [vmem:[%s592 + $0x4] sm:$0xf]
        %v595 = vld [vmem:[%s592 + $0x8] sm:$0xf]
        %v596 = vld [vmem:[%s592 + $0xc] sm:$0xf]
        %v597 = vld [vmem:[%s592 + $0x10] sm:$0xf]
        %v598 = vld [vmem:[%s592 + $0x14] sm:$0xf]
        %v599 = vld [vmem:[%s592 + $0x18] sm:$0xf]
        %v600 = vld [vmem:[%s592 + $0x1c] sm:$0xf]
        %v602 = vunpack.c.l.b16 %v591
        %v603 = vpack.c.b16 %v602, %v602
        %vm604 = vsmask.f32 6400
        %v606 = vshrl.u32 %v516, 16
        %v608 = vrot.slane %v606, 1
        %v609 = vshll.u32 %v516, 16
        %v611 = vrot.slane %v609, 2
        %v612 = vor.u32 %v608, %v611
        %v614 = vshrl.u32 %v603, 16
        %v616 = vrot.slane %v614, 1
        %v617 = vshll.u32 %v603, 16
        %v619 = vrot.slane %v617, 2
        %v620 = vor.u32 %v616, %v619
        %v621 = vsel %vm604, %v612, %v620
        %v630 = vunpack.c.l.b16 %v593
        %v631 = vunpack.c.l.b16 %v594
        %v632 = vunpack.c.l.b16 %v595
        %v633 = vunpack.c.l.b16 %v596
        %v634 = vunpack.c.l.b16 %v597
        %v635 = vunpack.c.l.b16 %v598
        %v636 = vunpack.c.l.b16 %v599
        %v637 = vunpack.c.l.b16 %v600
        %v638 = vpack.c.b16 %v631, %v630
        %v639 = vpack.c.b16 %v633, %v632
        %v640 = vpack.c.b16 %v635, %v634
        %v641 = vpack.c.b16 %v637, %v636
        %v647 = vsel %vm392, %v621, 0
        %649 = vmatprep.subr.bf16.mxu0 0
        %650 = vmatpush1.bf16.msra.mxu0 %v638
        %651 = vmatprep.subr.bf16.mxu0 0
        %652 = vmatpush1.bf16.msra.mxu0 %v639
        %653 = vmatprep.subr.bf16.mxu0 0
        %654 = vmatpush1.bf16.msra.mxu0 %v640
        %655 = vmatprep.subr.bf16.mxu0 0
        %656 = vmatpush1.bf16.msra.mxu0 %v641
        %657 = vmatprep.subr.bf16.mxu0 0
        %658 = vmatpush1.bf16.msra.mxu0 0
        %659 = vmatprep.subr.bf16.mxu0 0
        %660 = vmatpush1.bf16.msra.mxu0 0
        %661 = vmatprep.subr.bf16.mxu0 0
        %662 = vmatpush1.bf16.msra.mxu0 0
        %663 = vmatprep.subr.bf16.mxu0 0
        %664 = vmatpush1.bf16.msra.mxu0 0
        %665 = vmatprep.subr.bf16.mxu0 0
        %666 = vmatpush1.bf16.msra.mxu0 0
        %667 = vmatprep.subr.bf16.mxu0 0
        %668 = vmatpush1.bf16.msra.mxu0 0
        %669 = vmatprep.subr.bf16.mxu0 0
        %670 = vmatpush1.bf16.msra.mxu0 0
        %671 = vmatprep.subr.bf16.mxu0 0
        %672 = vmatpush1.bf16.msra.mxu0 0
        %673 = vmatprep.subr.bf16.mxu0 0
        %674 = vmatpush1.bf16.msra.mxu0 0
        %675 = vmatprep.subr.bf16.mxu0 0
        %676 = vmatpush1.bf16.msra.mxu0 0
        %677 = vmatprep.subr.bf16.mxu0 0
        %678 = vmatpush1.bf16.msra.mxu0 0
        %679 = vmatprep.subr.bf16.mxu0 0
        %680 = vmatpush1.bf16.msra.mxu0 0
        %681 = vmatprep.mubr.bf16.mxu0 0
        %682 = vmatmul.mubr.bf16.gmra.mrb[0].mxu0 %v647
        %v683 = vpop.f32.mrb[0].mxu0
        %v684 = vadd.f32 0.0, %v683
        %v685 = vpop.f32.mrb[0].mxu0
        %v686 = vpop.f32.mrb[0].mxu0
        %v687 = vadd.f32 0.0, %v686
        %v688 = vpop.f32.mrb[0].mxu0
        %689 = vdwg.mxu0
        %v690 = vadd.f32 %v589, %v684
        %v691 = vadd.f32 %v590, %v687
        %v692 = vld [vmem:[%s314] sm:$0xc]
        %s693 = scalar_lea.vmem %s1, 128
        %v694 = vld [vmem:[%s693] sm:$0xf]
        %v695 = vld [vmem:[%s693 + $0x4] sm:$0xf]
        %v696 = vld [vmem:[%s693 + $0x8] sm:$0xf]
        %v697 = vld [vmem:[%s693 + $0xc] sm:$0xf]
        %v698 = vld [vmem:[%s693 + $0x10] sm:$0xf]
        %v699 = vld [vmem:[%s693 + $0x14] sm:$0xf]
        %v700 = vld [vmem:[%s693 + $0x18] sm:$0xf]
        %v701 = vld [vmem:[%s693 + $0x1c] sm:$0xf]
        %v703 = vunpack.c.l.b16 %v692
        %v704 = vpack.c.b16 %v351, %v703
        %vm705 = vcmask 1045504
        %v706 = vrot.slane %v704, 2
        %v707 = vrot.slane %v603, 2
        %v708 = vsel %vm705, %v706, %v707
        %v717 = vunpack.c.l.b16 %v694
        %v718 = vunpack.c.l.b16 %v695
        %v719 = vunpack.c.l.b16 %v696
        %v720 = vunpack.c.l.b16 %v697
        %v721 = vunpack.c.l.b16 %v698
        %v722 = vunpack.c.l.b16 %v699
        %v723 = vunpack.c.l.b16 %v700
        %v724 = vunpack.c.l.b16 %v701
        %v725 = vpack.c.b16 %v718, %v717
        %v726 = vpack.c.b16 %v720, %v719
        %v727 = vpack.c.b16 %v722, %v721
        %v728 = vpack.c.b16 %v724, %v723
        %v734 = vsel %vm392, %v708, 0
        %736 = vmatprep.subr.bf16.mxu0 0
        %737 = vmatpush1.bf16.msra.mxu0 %v725
        %738 = vmatprep.subr.bf16.mxu0 0
        %739 = vmatpush1.bf16.msra.mxu0 %v726
        %740 = vmatprep.subr.bf16.mxu0 0
        %741 = vmatpush1.bf16.msra.mxu0 %v727
        %742 = vmatprep.subr.bf16.mxu0 0
        %743 = vmatpush1.bf16.msra.mxu0 %v728
        %744 = vmatprep.subr.bf16.mxu0 0
        %745 = vmatpush1.bf16.msra.mxu0 0
        %746 = vmatprep.subr.bf16.mxu0 0
        %747 = vmatpush1.bf16.msra.mxu0 0
        %748 = vmatprep.subr.bf16.mxu0 0
        %749 = vmatpush1.bf16.msra.mxu0 0
        %750 = vmatprep.subr.bf16.mxu0 0
        %751 = vmatpush1.bf16.msra.mxu0 0
        %752 = vmatprep.subr.bf16.mxu0 0
        %753 = vmatpush1.bf16.msra.mxu0 0
        %754 = vmatprep.subr.bf16.mxu0 0
        %755 = vmatpush1.bf16.msra.mxu0 0
        %756 = vmatprep.subr.bf16.mxu0 0
        %757 = vmatpush1.bf16.msra.mxu0 0
        %758 = vmatprep.subr.bf16.mxu0 0
        %759 = vmatpush1.bf16.msra.mxu0 0
        %760 = vmatprep.subr.bf16.mxu0 0
        %761 = vmatpush1.bf16.msra.mxu0 0
        %762 = vmatprep.subr.bf16.mxu0 0
        %763 = vmatpush1.bf16.msra.mxu0 0
        %764 = vmatprep.subr.bf16.mxu0 0
        %765 = vmatpush1.bf16.msra.mxu0 0
        %766 = vmatprep.subr.bf16.mxu0 0
        %767 = vmatpush1.bf16.msra.mxu0 0
        %768 = vmatprep.mubr.bf16.mxu0 0
        %769 = vmatmul.mubr.bf16.gmra.mrb[0].mxu0 %v734
        %v770 = vpop.f32.mrb[0].mxu0
        %v771 = vadd.f32 0.0, %v770
        %v772 = vpop.f32.mrb[0].mxu0
        %v773 = vpop.f32.mrb[0].mxu0
        %v774 = vadd.f32 0.0, %v773
        %v775 = vpop.f32.mrb[0].mxu0
        %776 = vdwg.mxu0
        %v777 = vadd.f32 %v690, %v771
        %v778 = vadd.f32 %v691, %v774
        %v779 = vld [vmem:[%s314 + $0x8] sm:$0x7]
        %s780 = scalar_lea.vmem %s1, 160
        %v781 = vld [vmem:[%s780] sm:$0xf]
        %v782 = vld [vmem:[%s780 + $0x4] sm:$0xf]
        %v783 = vld [vmem:[%s780 + $0x8] sm:$0xf]
        %v784 = vld [vmem:[%s780 + $0xc] sm:$0xf]
        %v785 = vld [vmem:[%s780 + $0x10] sm:$0xf]
        %v786 = vld [vmem:[%s780 + $0x14] sm:$0xf]
        %v787 = vld [vmem:[%s780 + $0x18] sm:$0xf]
        %v788 = vld [vmem:[%s780 + $0x1c] sm:$0xf]
        %v790 = vunpack.c.l.b16 %v779
        %v791 = vpack.c.b16 %v790, %v790
        %vm792 = vsmask.f32 5376
        %v794 = vshrl.u32 %v704, 16
        %v796 = vrot.slane %v794, 2
        %v797 = vshll.u32 %v704, 16
        %v799 = vrot.slane %v797, 3
        %v800 = vor.u32 %v796, %v799
        %v802 = vshrl.u32 %v791, 16
        %v804 = vrot.slane %v802, 2
        %v805 = vshll.u32 %v791, 16
        %v807 = vrot.slane %v805, 3
        %v808 = vor.u32 %v804, %v807
        %v809 = vsel %vm792, %v800, %v808
        %v818 = vunpack.c.l.b16 %v781
        %v819 = vunpack.c.l.b16 %v782
        %v820 = vunpack.c.l.b16 %v783
        %v821 = vunpack.c.l.b16 %v784
        %v822 = vunpack.c.l.b16 %v785
        %v823 = vunpack.c.l.b16 %v786
        %v824 = vunpack.c.l.b16 %v787
        %v825 = vunpack.c.l.b16 %v788
        %v826 = vpack.c.b16 %v819, %v818
        %v827 = vpack.c.b16 %v821, %v820
        %v828 = vpack.c.b16 %v823, %v822
        %v829 = vpack.c.b16 %v825, %v824
        %v835 = vsel %vm392, %v809, 0
        %837 = vmatprep.subr.bf16.mxu0 0
        %838 = vmatpush1.bf16.msra.mxu0 %v826
        %839 = vmatprep.subr.bf16.mxu0 0
        %840 = vmatpush1.bf16.msra.mxu0 %v827
        %841 = vmatprep.subr.bf16.mxu0 0
        %842 = vmatpush1.bf16.msra.mxu0 %v828
        %843 = vmatprep.subr.bf16.mxu0 0
        %844 = vmatpush1.bf16.msra.mxu0 %v829
        %845 = vmatprep.subr.bf16.mxu0 0
        %846 = vmatpush1.bf16.msra.mxu0 0
        %847 = vmatprep.subr.bf16.mxu0 0
        %848 = vmatpush1.bf16.msra.mxu0 0
        %849 = vmatprep.subr.bf16.mxu0 0
        %850 = vmatpush1.bf16.msra.mxu0 0
        %851 = vmatprep.subr.bf16.mxu0 0
        %852 = vmatpush1.bf16.msra.mxu0 0
        %853 = vmatprep.subr.bf16.mxu0 0
        %854 = vmatpush1.bf16.msra.mxu0 0
        %855 = vmatprep.subr.bf16.mxu0 0
        %856 = vmatpush1.bf16.msra.mxu0 0
        %857 = vmatprep.subr.bf16.mxu0 0
        %858 = vmatpush1.bf16.msra.mxu0 0
        %859 = vmatprep.subr.bf16.mxu0 0
        %860 = vmatpush1.bf16.msra.mxu0 0
        %861 = vmatprep.subr.bf16.mxu0 0
        %862 = vmatpush1.bf16.msra.mxu0 0
        %863 = vmatprep.subr.bf16.mxu0 0
        %864 = vmatpush1.bf16.msra.mxu0 0
        %865 = vmatprep.subr.bf16.mxu0 0
        %866 = vmatpush1.bf16.msra.mxu0 0
        %867 = vmatprep.subr.bf16.mxu0 0
        %868 = vmatpush1.bf16.msra.mxu0 0
        %869 = vmatprep.mubr.bf16.mxu0 0
        %870 = vmatmul.mubr.bf16.gmra.mrb[0].mxu0 %v835
        %v871 = vpop.f32.mrb[0].mxu0
        %v872 = vadd.f32 0.0, %v871
        %v873 = vpop.f32.mrb[0].mxu0
        %v874 = vpop.f32.mrb[0].mxu0
        %v875 = vadd.f32 0.0, %v874
        %v876 = vpop.f32.mrb[0].mxu0
        %877 = vdwg.mxu0
        %v878 = vadd.f32 %v777, %v872
        %v879 = vadd.f32 %v778, %v875
        %v880 = vld [vmem:[%s314] sm:$0x8]
        %s881 = scalar_lea.vmem %s1, 192
        %v882 = vld [vmem:[%s881] sm:$0xf]
        %v883 = vld [vmem:[%s881 + $0x4] sm:$0xf]
        %v884 = vld [vmem:[%s881 + $0x8] sm:$0xf]
        %v885 = vld [vmem:[%s881 + $0xc] sm:$0xf]
        %v886 = vld [vmem:[%s881 + $0x10] sm:$0xf]
        %v887 = vld [vmem:[%s881 + $0x14] sm:$0xf]
        %v888 = vld [vmem:[%s881 + $0x18] sm:$0xf]
        %v889 = vld [vmem:[%s881 + $0x1c] sm:$0xf]
        %v891 = vunpack.c.l.b16 %v880
        %v892 = vpack.c.b16 %v351, %v891
        %vm893 = vcmask 1044480
        %v894 = vrot.slane %v892, 3
        %v895 = vrot.slane %v791, 3
        %v896 = vsel %vm893, %v894, %v895
        %v905 = vunpack.c.l.b16 %v882
        %v906 = vunpack.c.l.b16 %v883
        %v907 = vunpack.c.l.b16 %v884
        %v908 = vunpack.c.l.b16 %v885
        %v909 = vunpack.c.l.b16 %v886
        %v910 = vunpack.c.l.b16 %v887
        %v911 = vunpack.c.l.b16 %v888
        %v912 = vunpack.c.l.b16 %v889
        %v913 = vpack.c.b16 %v906, %v905
        %v914 = vpack.c.b16 %v908, %v907
        %v915 = vpack.c.b16 %v910, %v909
        %v916 = vpack.c.b16 %v912, %v911
        %v922 = vsel %vm392, %v896, 0
        %924 = vmatprep.subr.bf16.mxu0 0
        %925 = vmatpush1.bf16.msra.mxu0 %v913
        %926 = vmatprep.subr.bf16.mxu0 0
        %927 = vmatpush1.bf16.msra.mxu0 %v914
        %928 = vmatprep.subr.bf16.mxu0 0
        %929 = vmatpush1.bf16.msra.mxu0 %v915
        %930 = vmatprep.subr.bf16.mxu0 0
        %931 = vmatpush1.bf16.msra.mxu0 %v916
        %932 = vmatprep.subr.bf16.mxu0 0
        %933 = vmatpush1.bf16.msra.mxu0 0
        %934 = vmatprep.subr.bf16.mxu0 0
        %935 = vmatpush1.bf16.msra.mxu0 0
        %936 = vmatprep.subr.bf16.mxu0 0
        %937 = vmatpush1.bf16.msra.mxu0 0
        %938 = vmatprep.subr.bf16.mxu0 0
        %939 = vmatpush1.bf16.msra.mxu0 0
        %940 = vmatprep.subr.bf16.mxu0 0
        %941 = vmatpush1.bf16.msra.mxu0 0
        %942 = vmatprep.subr.bf16.mxu0 0
        %943 = vmatpush1.bf16.msra.mxu0 0
        %944 = vmatprep.subr.bf16.mxu0 0
        %945 = vmatpush1.bf16.msra.mxu0 0
        %946 = vmatprep.subr.bf16.mxu0 0
        %947 = vmatpush1.bf16.msra.mxu0 0
        %948 = vmatprep.subr.bf16.mxu0 0
        %949 = vmatpush1.bf16.msra.mxu0 0
        %950 = vmatprep.subr.bf16.mxu0 0
        %951 = vmatpush1.bf16.msra.mxu0 0
        %952 = vmatprep.subr.bf16.mxu0 0
        %953 = vmatpush1.bf16.msra.mxu0 0
        %954 = vmatprep.subr.bf16.mxu0 0
        %955 = vmatpush1.bf16.msra.mxu0 0
        %956 = vmatprep.mubr.bf16.mxu0 0
        %957 = vmatmul.mubr.bf16.gmra.mrb[0].mxu0 %v922
        %v958 = vpop.f32.mrb[0].mxu0
        %v959 = vadd.f32 0.0, %v958
        %v960 = vpop.f32.mrb[0].mxu0
        %v961 = vpop.f32.mrb[0].mxu0
        %v962 = vadd.f32 0.0, %v961
        %v963 = vpop.f32.mrb[0].mxu0
        %964 = vdwg.mxu0
        %v965 = vadd.f32 %v878, %v959
        %v966 = vadd.f32 %v879, %v962
        %v967 = vld [vmem:[%s2] sm:$0x1]
        %v969 = vlaneseq
        %v970 = vshrl.u32 %v969, 7
        %v971 = vsub.s32 0, %v970
        %v972 = vrot.slane %v967, %v971
        %v974 = vadd.f32 %v965, %v972
        %v975 = vadd.f32 %v966, %v972
        %s976 = sld [smem:[#allocation3]]
        %vm977 = vcmp.ge.f32.partialorder %v974, 0.0
        %vm978 = vcmp.ge.f32.partialorder %v975, 0.0
        %v979 = vstv %s976
        %v980 = vmul.f32 %v979, %v974
        %v981 = vmul.f32 %v979, %v975
        %v982 = vsel %vm977, %v974, %v980
        %v983 = vsel %vm978, %v975, %v981
        %984 = vst [vmem:[%s319 + $0x1] sm:$0xff] %v982
        %985 = vst [vmem:[%s319 + $0x9] sm:$0xff] %v983
        %v986 = vld [vmem:[%s319] sm:$0xff]
        %v987 = vld [vmem:[%s319 + $0x8] sm:$0xff]
        %v988 = vpack.c.bf16 %v987, %v986
        %v989 = vld [vmem:[%s3] sm:$0xf]
        %v990 = vld [vmem:[%s3 + $0x4] sm:$0xf]
        %v991 = vld [vmem:[%s3 + $0x8] sm:$0xf]
        %v992 = vld [vmem:[%s3 + $0xc] sm:$0xf]
        %v993 = vld [vmem:[%s3 + $0x10] sm:$0xf]
        %v994 = vld [vmem:[%s3 + $0x14] sm:$0xf]
        %v995 = vld [vmem:[%s3 + $0x18] sm:$0xf]
        %v996 = vld [vmem:[%s3 + $0x1c] sm:$0xf]
        %v997 = vld [vmem:[%s3 + $0x20] sm:$0xf]
        %v998 = vld [vmem:[%s3 + $0x24] sm:$0xf]
        %v999 = vld [vmem:[%s3 + $0x28] sm:$0xf]
        %v1000 = vld [vmem:[%s3 + $0x2c] sm:$0xf]
        %v1001 = vld [vmem:[%s3 + $0x30] sm:$0xf]
        %v1002 = vld [vmem:[%s3 + $0x34] sm:$0xf]
        %v1003 = vld [vmem:[%s3 + $0x38] sm:$0xf]
        %v1004 = vld [vmem:[%s3 + $0x3c] sm:$0xf]
        %v1005 = vld [vmem:[%s319 + $0x1] sm:$0xff]
        %v1006 = vld [vmem:[%s319 + $0x9] sm:$0xff]
        %v1007 = vpack.c.bf16 %v1006, %v1005
        %s1008 = scalar_lea.vmem %s3, 64
        %v1009 = vld [vmem:[%s1008] sm:$0xf]
        %v1010 = vld [vmem:[%s1008 + $0x4] sm:$0xf]
        %v1011 = vld [vmem:[%s1008 + $0x8] sm:$0xf]
        %v1012 = vld [vmem:[%s1008 + $0xc] sm:$0xf]
        %v1013 = vld [vmem:[%s1008 + $0x10] sm:$0xf]
        %v1014 = vld [vmem:[%s1008 + $0x14] sm:$0xf]
        %v1015 = vld [vmem:[%s1008 + $0x18] sm:$0xf]
        %v1016 = vld [vmem:[%s1008 + $0x1c] sm:$0xf]
        %v1017 = vld [vmem:[%s1008 + $0x20] sm:$0xf]
        %v1018 = vld [vmem:[%s1008 + $0x24] sm:$0xf]
        %v1019 = vld [vmem:[%s1008 + $0x28] sm:$0xf]
        %v1020 = vld [vmem:[%s1008 + $0x2c] sm:$0xf]
        %v1021 = vld [vmem:[%s1008 + $0x30] sm:$0xf]
        %v1022 = vld [vmem:[%s1008 + $0x34] sm:$0xf]
        %v1023 = vld [vmem:[%s1008 + $0x38] sm:$0xf]
        %v1024 = vld [vmem:[%s1008 + $0x3c] sm:$0xf]
        %v1041 = vunpack.c.l.b16 %v1009
        %v1042 = vunpack.c.l.b16 %v1010
        %v1043 = vunpack.c.l.b16 %v1011
        %v1044 = vunpack.c.l.b16 %v1012
        %v1045 = vunpack.c.l.b16 %v1013
        %v1046 = vunpack.c.l.b16 %v1014
        %v1047 = vunpack.c.l.b16 %v1015
        %v1048 = vunpack.c.l.b16 %v1016
        %v1049 = vunpack.c.l.b16 %v1017
        %v1050 = vunpack.c.l.b16 %v1018
        %v1051 = vunpack.c.l.b16 %v1019
        %v1052 = vunpack.c.l.b16 %v1020
        %v1053 = vunpack.c.l.b16 %v1021
        %v1054 = vunpack.c.l.b16 %v1022
        %v1055 = vunpack.c.l.b16 %v1023
        %v1056 = vunpack.c.l.b16 %v1024
        %v1057 = vpack.c.b16 %v1042, %v1041
        %v1058 = vpack.c.b16 %v1044, %v1043
        %v1059 = vpack.c.b16 %v1046, %v1045
        %v1060 = vpack.c.b16 %v1048, %v1047
        %v1061 = vpack.c.b16 %v1050, %v1049
        %v1062 = vpack.c.b16 %v1052, %v1051
        %v1063 = vpack.c.b16 %v1054, %v1053
        %v1064 = vpack.c.b16 %v1056, %v1055
        %1073 = vmatprep.subr.bf16.mxu0 0
        %1074 = vmatpush1.bf16.msra.mxu0 %v1057
        %1075 = vmatprep.subr.bf16.mxu0 0
        %1076 = vmatpush1.bf16.msra.mxu0 %v1058
        %1077 = vmatprep.subr.bf16.mxu0 0
        %1078 = vmatpush1.bf16.msra.mxu0 %v1059
        %1079 = vmatprep.subr.bf16.mxu0 0
        %1080 = vmatpush1.bf16.msra.mxu0 %v1060
        %1081 = vmatprep.subr.bf16.mxu0 0
        %1082 = vmatpush1.bf16.msra.mxu0 %v1061
        %1083 = vmatprep.subr.bf16.mxu0 0
        %1084 = vmatpush1.bf16.msra.mxu0 %v1062
        %1085 = vmatprep.subr.bf16.mxu0 0
        %1086 = vmatpush1.bf16.msra.mxu0 %v1063
        %1087 = vmatprep.subr.bf16.mxu0 0
        %1088 = vmatpush1.bf16.msra.mxu0 %v1064
        %1089 = vmatprep.subr.bf16.mxu0 0
        %1090 = vmatpush1.bf16.msra.mxu0 0
        %1091 = vmatprep.subr.bf16.mxu0 0
        %1092 = vmatpush1.bf16.msra.mxu0 0
        %1093 = vmatprep.subr.bf16.mxu0 0
        %1094 = vmatpush1.bf16.msra.mxu0 0
        %1095 = vmatprep.subr.bf16.mxu0 0
        %1096 = vmatpush1.bf16.msra.mxu0 0
        %1097 = vmatprep.subr.bf16.mxu0 0
        %1098 = vmatpush1.bf16.msra.mxu0 0
        %1099 = vmatprep.subr.bf16.mxu0 0
        %1100 = vmatpush1.bf16.msra.mxu0 0
        %1101 = vmatprep.subr.bf16.mxu0 0
        %1102 = vmatpush1.bf16.msra.mxu0 0
        %1103 = vmatprep.subr.bf16.mxu0 0
        %1104 = vmatpush1.bf16.msra.mxu0 0
        %1105 = vmatprep.mubr.bf16.mxu0 0
        %1106 = vmatmul.mubr.bf16.gmra.mrb[0].mxu0 %v1007
        %v1107 = vpop.f32.mrb[0].mxu0
        %v1108 = vadd.f32 0.0, %v1107
        %v1109 = vpop.f32.mrb[0].mxu0
        %v1110 = vpop.f32.mrb[0].mxu0
        %v1111 = vadd.f32 0.0, %v1110
        %v1112 = vpop.f32.mrb[0].mxu0
        %1113 = vdwg.mxu0
        %v1130 = vunpack.c.l.b16 %v989
        %v1131 = vunpack.c.l.b16 %v990
        %v1132 = vunpack.c.l.b16 %v991
        %v1133 = vunpack.c.l.b16 %v992
        %v1134 = vunpack.c.l.b16 %v993
        %v1135 = vunpack.c.l.b16 %v994
        %v1136 = vunpack.c.l.b16 %v995
        %v1137 = vunpack.c.l.b16 %v996
        %v1138 = vunpack.c.l.b16 %v997
        %v1139 = vunpack.c.l.b16 %v998
        %v1140 = vunpack.c.l.b16 %v999
        %v1141 = vunpack.c.l.b16 %v1000
        %v1142 = vunpack.c.l.b16 %v1001
        %v1143 = vunpack.c.l.b16 %v1002
        %v1144 = vunpack.c.l.b16 %v1003
        %v1145 = vunpack.c.l.b16 %v1004
        %v1146 = vpack.c.b16 %v1131, %v1130
        %v1147 = vpack.c.b16 %v1133, %v1132
        %v1148 = vpack.c.b16 %v1135, %v1134
        %v1149 = vpack.c.b16 %v1137, %v1136
        %v1150 = vpack.c.b16 %v1139, %v1138
        %v1151 = vpack.c.b16 %v1141, %v1140
        %v1152 = vpack.c.b16 %v1143, %v1142
        %v1153 = vpack.c.b16 %v1145, %v1144
        %1162 = vmatprep.subr.bf16.mxu0 0
        %1163 = vmatpush1.bf16.msra.mxu0 %v1146
        %1164 = vmatprep.subr.bf16.mxu0 0
        %1165 = vmatpush1.bf16.msra.mxu0 %v1147
        %1166 = vmatprep.subr.bf16.mxu0 0
        %1167 = vmatpush1.bf16.msra.mxu0 %v1148
        %1168 = vmatprep.subr.bf16.mxu0 0
        %1169 = vmatpush1.bf16.msra.mxu0 %v1149
        %1170 = vmatprep.subr.bf16.mxu0 0
        %1171 = vmatpush1.bf16.msra.mxu0 %v1150
        %1172 = vmatprep.subr.bf16.mxu0 0
        %1173 = vmatpush1.bf16.msra.mxu0 %v1151
        %1174 = vmatprep.subr.bf16.mxu0 0
        %1175 = vmatpush1.bf16.msra.mxu0 %v1152
        %1176 = vmatprep.subr.bf16.mxu0 0
        %1177 = vmatpush1.bf16.msra.mxu0 %v1153
        %1178 = vmatprep.subr.bf16.mxu0 0
        %1179 = vmatpush1.bf16.msra.mxu0 0
        %1180 = vmatprep.subr.bf16.mxu0 0
        %1181 = vmatpush1.bf16.msra.mxu0 0
        %1182 = vmatprep.subr.bf16.mxu0 0
        %1183 = vmatpush1.bf16.msra.mxu0 0
        %1184 = vmatprep.subr.bf16.mxu0 0
        %1185 = vmatpush1.bf16.msra.mxu0 0
        %1186 = vmatprep.subr.bf16.mxu0 0
        %1187 = vmatpush1.bf16.msra.mxu0 0
        %1188 = vmatprep.subr.bf16.mxu0 0
        %1189 = vmatpush1.bf16.msra.mxu0 0
        %1190 = vmatprep.subr.bf16.mxu0 0
        %1191 = vmatpush1.bf16.msra.mxu0 0
        %1192 = vmatprep.subr.bf16.mxu0 0
        %1193 = vmatpush1.bf16.msra.mxu0 0
        %1194 = vmatprep.mubr.bf16.mxu0 0
        %1195 = vmatmul.mubr.bf16.gmra.mrb[0].mxu0 %v988
        %v1196 = vpop.f32.mrb[0].mxu0
        %v1197 = vadd.f32 %v1108, %v1196
        %v1198 = vpop.f32.mrb[0].mxu0
        %v1199 = vpop.f32.mrb[0].mxu0
        %v1200 = vadd.f32 %v1111, %v1199
        %v1201 = vpop.f32.mrb[0].mxu0
        %1202 = vdwg.mxu0
        %v1203 = vld [vmem:[%s319 + $0x2] sm:$0xff]
        %v1204 = vld [vmem:[%s319 + $0xa] sm:$0xff]
        %v1205 = vpack.c.bf16 %v1204, %v1203
        %s1206 = scalar_lea.vmem %s3, 128
        %v1207 = vld [vmem:[%s1206] sm:$0xf]
        %v1208 = vld [vmem:[%s1206 + $0x4] sm:$0xf]
        %v1209 = vld [vmem:[%s1206 + $0x8] sm:$0xf]
        %v1210 = vld [vmem:[%s1206 + $0xc] sm:$0xf]
        %v1211 = vld [vmem:[%s1206 + $0x10] sm:$0xf]
        %v1212 = vld [vmem:[%s1206 + $0x14] sm:$0xf]
        %v1213 = vld [vmem:[%s1206 + $0x18] sm:$0xf]
        %v1214 = vld [vmem:[%s1206 + $0x1c] sm:$0xf]
        %v1215 = vld [vmem:[%s1206 + $0x20] sm:$0xf]
        %v1216 = vld [vmem:[%s1206 + $0x24] sm:$0xf]
        %v1217 = vld [vmem:[%s1206 + $0x28] sm:$0xf]
        %v1218 = vld [vmem:[%s1206 + $0x2c] sm:$0xf]
        %v1219 = vld [vmem:[%s1206 + $0x30] sm:$0xf]
        %v1220 = vld [vmem:[%s1206 + $0x34] sm:$0xf]
        %v1221 = vld [vmem:[%s1206 + $0x38] sm:$0xf]
        %v1222 = vld [vmem:[%s1206 + $0x3c] sm:$0xf]
        %v1239 = vunpack.c.l.b16 %v1207
        %v1240 = vunpack.c.l.b16 %v1208
        %v1241 = vunpack.c.l.b16 %v1209
        %v1242 = vunpack.c.l.b16 %v1210
        %v1243 = vunpack.c.l.b16 %v1211
        %v1244 = vunpack.c.l.b16 %v1212
        %v1245 = vunpack.c.l.b16 %v1213
        %v1246 = vunpack.c.l.b16 %v1214
        %v1247 = vunpack.c.l.b16 %v1215
        %v1248 = vunpack.c.l.b16 %v1216
        %v1249 = vunpack.c.l.b16 %v1217
        %v1250 = vunpack.c.l.b16 %v1218
        %v1251 = vunpack.c.l.b16 %v1219
        %v1252 = vunpack.c.l.b16 %v1220
        %v1253 = vunpack.c.l.b16 %v1221
        %v1254 = vunpack.c.l.b16 %v1222
        %v1255 = vpack.c.b16 %v1240, %v1239
        %v1256 = vpack.c.b16 %v1242, %v1241
        %v1257 = vpack.c.b16 %v1244, %v1243
        %v1258 = vpack.c.b16 %v1246, %v1245
        %v1259 = vpack.c.b16 %v1248, %v1247
        %v1260 = vpack.c.b16 %v1250, %v1249
        %v1261 = vpack.c.b16 %v1252, %v1251
        %v1262 = vpack.c.b16 %v1254, %v1253
        %1271 = vmatprep.subr.bf16.mxu0 0
        %1272 = vmatpush1.bf16.msra.mxu0 %v1255
        %1273 = vmatprep.subr.bf16.mxu0 0
        %1274 = vmatpush1.bf16.msra.mxu0 %v1256
        %1275 = vmatprep.subr.bf16.mxu0 0
        %1276 = vmatpush1.bf16.msra.mxu0 %v1257
        %1277 = vmatprep.subr.bf16.mxu0 0
        %1278 = vmatpush1.bf16.msra.mxu0 %v1258
        %1279 = vmatprep.subr.bf16.mxu0 0
        %1280 = vmatpush1.bf16.msra.mxu0 %v1259
        %1281 = vmatprep.subr.bf16.mxu0 0
        %1282 = vmatpush1.bf16.msra.mxu0 %v1260
        %1283 = vmatprep.subr.bf16.mxu0 0
        %1284 = vmatpush1.bf16.msra.mxu0 %v1261
        %1285 = vmatprep.subr.bf16.mxu0 0
        %1286 = vmatpush1.bf16.msra.mxu0 %v1262
        %1287 = vmatprep.subr.bf16.mxu0 0
        %1288 = vmatpush1.bf16.msra.mxu0 0
        %1289 = vmatprep.subr.bf16.mxu0 0
        %1290 = vmatpush1.bf16.msra.mxu0 0
        %1291 = vmatprep.subr.bf16.mxu0 0
        %1292 = vmatpush1.bf16.msra.mxu0 0
        %1293 = vmatprep.subr.bf16.mxu0 0
        %1294 = vmatpush1.bf16.msra.mxu0 0
        %1295 = vmatprep.subr.bf16.mxu0 0
        %1296 = vmatpush1.bf16.msra.mxu0 0
        %1297 = vmatprep.subr.bf16.mxu0 0
        %1298 = vmatpush1.bf16.msra.mxu0 0
        %1299 = vmatprep.subr.bf16.mxu0 0
        %1300 = vmatpush1.bf16.msra.mxu0 0
        %1301 = vmatprep.subr.bf16.mxu0 0
        %1302 = vmatpush1.bf16.msra.mxu0 0
        %1303 = vmatprep.mubr.bf16.mxu0 0
        %1304 = vmatmul.mubr.bf16.gmra.mrb[0].mxu0 %v1205
        %v1305 = vpop.f32.mrb[0].mxu0
        %v1306 = vadd.f32 0.0, %v1305
        %v1307 = vpop.f32.mrb[0].mxu0
        %v1308 = vpop.f32.mrb[0].mxu0
        %v1309 = vadd.f32 0.0, %v1308
        %v1310 = vpop.f32.mrb[0].mxu0
        %1311 = vdwg.mxu0
        %v1312 = vadd.f32 %v1197, %v1306
        %v1313 = vadd.f32 %v1200, %v1309
        %v1314 = vld [vmem:[%s4] sm:$0x1]
        %v1316 = vlaneseq
        %v1317 = vshrl.u32 %v1316, 7
        %v1318 = vsub.s32 0, %v1317
        %v1319 = vrot.slane %v1314, %v1318
        %v1321 = vadd.f32 %v1312, %v1319
        %v1322 = vadd.f32 %v1313, %v1319
        %s1323 = sld [smem:[#allocation3 + $0x1]]
        %vm1324 = vcmp.ge.f32.partialorder %v1321, 0.0
        %vm1325 = vcmp.ge.f32.partialorder %v1322, 0.0
        %v1326 = vstv %s1323
        %v1327 = vmul.f32 %v1326, %v1321
        %v1328 = vmul.f32 %v1326, %v1322
        %v1329 = vsel %vm1324, %v1321, %v1327
        %v1330 = vsel %vm1325, %v1322, %v1328
        %1331 = vst [vmem:[#allocation2 + $0x1] sm:$0xff] %v1329
        %1332 = vst [vmem:[#allocation2 + $0x9] sm:$0xff] %v1330
        %v1333 = vld [vmem:[#allocation2] sm:$0xff]
        %v1334 = vld [vmem:[#allocation2 + $0x8] sm:$0xff]
        %v1335 = vpack.c.bf16 %v1334, %v1333
        %v1336 = vld [vmem:[%s5] sm:$0xf]
        %v1337 = vld [vmem:[%s5 + $0x4] sm:$0xf]
        %v1338 = vld [vmem:[%s5 + $0x8] sm:$0xf]
        %v1339 = vld [vmem:[%s5 + $0xc] sm:$0xf]
        %v1340 = vld [vmem:[%s5 + $0x10] sm:$0xf]
        %v1341 = vld [vmem:[%s5 + $0x14] sm:$0xf]
        %v1342 = vld [vmem:[%s5 + $0x18] sm:$0xf]
        %v1343 = vld [vmem:[%s5 + $0x1c] sm:$0xf]
        %v1344 = vld [vmem:[%s5 + $0x20] sm:$0xf]
        %v1345 = vld [vmem:[%s5 + $0x24] sm:$0xf]
        %v1346 = vld [vmem:[%s5 + $0x28] sm:$0xf]
        %v1347 = vld [vmem:[%s5 + $0x2c] sm:$0xf]
        %v1348 = vld [vmem:[%s5 + $0x30] sm:$0xf]
        %v1349 = vld [vmem:[%s5 + $0x34] sm:$0xf]
        %v1350 = vld [vmem:[%s5 + $0x38] sm:$0xf]
        %v1351 = vld [vmem:[%s5 + $0x3c] sm:$0xf]
        %v1352 = vld [vmem:[#allocation2 + $0x1] sm:$0xff]
        %v1353 = vld [vmem:[#allocation2 + $0x9] sm:$0xff]
        %v1354 = vpack.c.bf16 %v1353, %v1352
        %s1355 = scalar_lea.vmem %s5, 64
        %v1356 = vld [vmem:[%s1355] sm:$0xf]
        %v1357 = vld [vmem:[%s1355 + $0x4] sm:$0xf]
        %v1358 = vld [vmem:[%s1355 + $0x8] sm:$0xf]
        %v1359 = vld [vmem:[%s1355 + $0xc] sm:$0xf]
        %v1360 = vld [vmem:[%s1355 + $0x10] sm:$0xf]
        %v1361 = vld [vmem:[%s1355 + $0x14] sm:$0xf]
        %v1362 = vld [vmem:[%s1355 + $0x18] sm:$0xf]
        %v1363 = vld [vmem:[%s1355 + $0x1c] sm:$0xf]
        %v1364 = vld [vmem:[%s1355 + $0x20] sm:$0xf]
        %v1365 = vld [vmem:[%s1355 + $0x24] sm:$0xf]
        %v1366 = vld [vmem:[%s1355 + $0x28] sm:$0xf]
        %v1367 = vld [vmem:[%s1355 + $0x2c] sm:$0xf]
        %v1368 = vld [vmem:[%s1355 + $0x30] sm:$0xf]
        %v1369 = vld [vmem:[%s1355 + $0x34] sm:$0xf]
        %v1370 = vld [vmem:[%s1355 + $0x38] sm:$0xf]
        %v1371 = vld [vmem:[%s1355 + $0x3c] sm:$0xf]
        %v1388 = vunpack.c.l.b16 %v1356
        %v1389 = vunpack.c.l.b16 %v1357
        %v1390 = vunpack.c.l.b16 %v1358
        %v1391 = vunpack.c.l.b16 %v1359
        %v1392 = vunpack.c.l.b16 %v1360
        %v1393 = vunpack.c.l.b16 %v1361
        %v1394 = vunpack.c.l.b16 %v1362
        %v1395 = vunpack.c.l.b16 %v1363
        %v1396 = vunpack.c.l.b16 %v1364
        %v1397 = vunpack.c.l.b16 %v1365
        %v1398 = vunpack.c.l.b16 %v1366
        %v1399 = vunpack.c.l.b16 %v1367
        %v1400 = vunpack.c.l.b16 %v1368
        %v1401 = vunpack.c.l.b16 %v1369
        %v1402 = vunpack.c.l.b16 %v1370
        %v1403 = vunpack.c.l.b16 %v1371
        %v1404 = vpack.c.b16 %v1389, %v1388
        %v1405 = vpack.c.b16 %v1391, %v1390
        %v1406 = vpack.c.b16 %v1393, %v1392
        %v1407 = vpack.c.b16 %v1395, %v1394
        %v1408 = vpack.c.b16 %v1397, %v1396
        %v1409 = vpack.c.b16 %v1399, %v1398
        %v1410 = vpack.c.b16 %v1401, %v1400
        %v1411 = vpack.c.b16 %v1403, %v1402
        %1420 = vmatprep.subr.bf16.mxu0 0
        %1421 = vmatpush1.bf16.msra.mxu0 %v1404
        %1422 = vmatprep.subr.bf16.mxu0 0
        %1423 = vmatpush1.bf16.msra.mxu0 %v1405
        %1424 = vmatprep.subr.bf16.mxu0 0
        %1425 = vmatpush1.bf16.msra.mxu0 %v1406
        %1426 = vmatprep.subr.bf16.mxu0 0
        %1427 = vmatpush1.bf16.msra.mxu0 %v1407
        %1428 = vmatprep.subr.bf16.mxu0 0
        %1429 = vmatpush1.bf16.msra.mxu0 %v1408
        %1430 = vmatprep.subr.bf16.mxu0 0
        %1431 = vmatpush1.bf16.msra.mxu0 %v1409
        %1432 = vmatprep.subr.bf16.mxu0 0
        %1433 = vmatpush1.bf16.msra.mxu0 %v1410
        %1434 = vmatprep.subr.bf16.mxu0 0
        %1435 = vmatpush1.bf16.msra.mxu0 %v1411
        %1436 = vmatprep.subr.bf16.mxu0 0
        %1437 = vmatpush1.bf16.msra.mxu0 0
        %1438 = vmatprep.subr.bf16.mxu0 0
        %1439 = vmatpush1.bf16.msra.mxu0 0
        %1440 = vmatprep.subr.bf16.mxu0 0
        %1441 = vmatpush1.bf16.msra.mxu0 0
        %1442 = vmatprep.subr.bf16.mxu0 0
        %1443 = vmatpush1.bf16.msra.mxu0 0
        %1444 = vmatprep.subr.bf16.mxu0 0
        %1445 = vmatpush1.bf16.msra.mxu0 0
        %1446 = vmatprep.subr.bf16.mxu0 0
        %1447 = vmatpush1.bf16.msra.mxu0 0
        %1448 = vmatprep.subr.bf16.mxu0 0
        %1449 = vmatpush1.bf16.msra.mxu0 0
        %1450 = vmatprep.subr.bf16.mxu0 0
        %1451 = vmatpush1.bf16.msra.mxu0 0
        %1452 = vmatprep.mubr.bf16.mxu0 0
        %1453 = vmatmul.mubr.bf16.gmra.mrb[0].mxu0 %v1354
        %v1454 = vpop.f32.mrb[0].mxu0
        %v1455 = vadd.f32 0.0, %v1454
        %v1456 = vpop.f32.mrb[0].mxu0
        %v1457 = vpop.f32.mrb[0].mxu0
        %v1458 = vadd.f32 0.0, %v1457
        %v1459 = vpop.f32.mrb[0].mxu0
        %1460 = vdwg.mxu0
        %v1477 = vunpack.c.l.b16 %v1336
        %v1478 = vunpack.c.l.b16 %v1337
        %v1479 = vunpack.c.l.b16 %v1338
        %v1480 = vunpack.c.l.b16 %v1339
        %v1481 = vunpack.c.l.b16 %v1340
        %v1482 = vunpack.c.l.b16 %v1341
        %v1483 = vunpack.c.l.b16 %v1342
        %v1484 = vunpack.c.l.b16 %v1343
        %v1485 = vunpack.c.l.b16 %v1344
        %v1486 = vunpack.c.l.b16 %v1345
        %v1487 = vunpack.c.l.b16 %v1346
        %v1488 = vunpack.c.l.b16 %v1347
        %v1489 = vunpack.c.l.b16 %v1348
        %v1490 = vunpack.c.l.b16 %v1349
        %v1491 = vunpack.c.l.b16 %v1350
        %v1492 = vunpack.c.l.b16 %v1351
        %v1493 = vpack.c.b16 %v1478, %v1477
        %v1494 = vpack.c.b16 %v1480, %v1479
        %v1495 = vpack.c.b16 %v1482, %v1481
        %v1496 = vpack.c.b16 %v1484, %v1483
        %v1497 = vpack.c.b16 %v1486, %v1485
        %v1498 = vpack.c.b16 %v1488, %v1487
        %v1499 = vpack.c.b16 %v1490, %v1489
        %v1500 = vpack.c.b16 %v1492, %v1491
        %1509 = vmatprep.subr.bf16.mxu0 0
        %1510 = vmatpush1.bf16.msra.mxu0 %v1493
        %1511 = vmatprep.subr.bf16.mxu0 0
        %1512 = vmatpush1.bf16.msra.mxu0 %v1494
        %1513 = vmatprep.subr.bf16.mxu0 0
        %1514 = vmatpush1.bf16.msra.mxu0 %v1495
        %1515 = vmatprep.subr.bf16.mxu0 0
        %1516 = vmatpush1.bf16.msra.mxu0 %v1496
        %1517 = vmatprep.subr.bf16.mxu0 0
        %1518 = vmatpush1.bf16.msra.mxu0 %v1497
        %1519 = vmatprep.subr.bf16.mxu0 0
        %1520 = vmatpush1.bf16.msra.mxu0 %v1498
        %1521 = vmatprep.subr.bf16.mxu0 0
        %1522 = vmatpush1.bf16.msra.mxu0 %v1499
        %1523 = vmatprep.subr.bf16.mxu0 0
        %1524 = vmatpush1.bf16.msra.mxu0 %v1500
        %1525 = vmatprep.subr.bf16.mxu0 0
        %1526 = vmatpush1.bf16.msra.mxu0 0
        %1527 = vmatprep.subr.bf16.mxu0 0
        %1528 = vmatpush1.bf16.msra.mxu0 0
        %1529 = vmatprep.subr.bf16.mxu0 0
        %1530 = vmatpush1.bf16.msra.mxu0 0
        %1531 = vmatprep.subr.bf16.mxu0 0
        %1532 = vmatpush1.bf16.msra.mxu0 0
        %1533 = vmatprep.subr.bf16.mxu0 0
        %1534 = vmatpush1.bf16.msra.mxu0 0
        %1535 = vmatprep.subr.bf16.mxu0 0
        %1536 = vmatpush1.bf16.msra.mxu0 0
        %1537 = vmatprep.subr.bf16.mxu0 0
        %1538 = vmatpush1.bf16.msra.mxu0 0
        %1539 = vmatprep.subr.bf16.mxu0 0
        %1540 = vmatpush1.bf16.msra.mxu0 0
        %1541 = vmatprep.mubr.bf16.mxu0 0
        %1542 = vmatmul.mubr.bf16.gmra.mrb[0].mxu0 %v1335
        %v1543 = vpop.f32.mrb[0].mxu0
        %v1544 = vadd.f32 %v1455, %v1543
        %v1545 = vpop.f32.mrb[0].mxu0
        %v1546 = vpop.f32.mrb[0].mxu0
        %v1547 = vadd.f32 %v1458, %v1546
        %v1548 = vpop.f32.mrb[0].mxu0
        %1549 = vdwg.mxu0
        %v1550 = vld [vmem:[#allocation2 + $0x2] sm:$0xff]
        %v1551 = vld [vmem:[#allocation2 + $0xa] sm:$0xff]
        %v1552 = vpack.c.bf16 %v1551, %v1550
        %s1553 = scalar_lea.vmem %s5, 128
        %v1554 = vld [vmem:[%s1553] sm:$0xf]
        %v1555 = vld [vmem:[%s1553 + $0x4] sm:$0xf]
        %v1556 = vld [vmem:[%s1553 + $0x8] sm:$0xf]
        %v1557 = vld [vmem:[%s1553 + $0xc] sm:$0xf]
        %v1558 = vld [vmem:[%s1553 + $0x10] sm:$0xf]
        %v1559 = vld [vmem:[%s1553 + $0x14] sm:$0xf]
        %v1560 = vld [vmem:[%s1553 + $0x18] sm:$0xf]
        %v1561 = vld [vmem:[%s1553 + $0x1c] sm:$0xf]
        %v1562 = vld [vmem:[%s1553 + $0x20] sm:$0xf]
        %v1563 = vld [vmem:[%s1553 + $0x24] sm:$0xf]
        %v1564 = vld [vmem:[%s1553 + $0x28] sm:$0xf]
        %v1565 = vld [vmem:[%s1553 + $0x2c] sm:$0xf]
        %v1566 = vld [vmem:[%s1553 + $0x30] sm:$0xf]
        %v1567 = vld [vmem:[%s1553 + $0x34] sm:$0xf]
        %v1568 = vld [vmem:[%s1553 + $0x38] sm:$0xf]
        %v1569 = vld [vmem:[%s1553 + $0x3c] sm:$0xf]
        %v1586 = vunpack.c.l.b16 %v1554
        %v1587 = vunpack.c.l.b16 %v1555
        %v1588 = vunpack.c.l.b16 %v1556
        %v1589 = vunpack.c.l.b16 %v1557
        %v1590 = vunpack.c.l.b16 %v1558
        %v1591 = vunpack.c.l.b16 %v1559
        %v1592 = vunpack.c.l.b16 %v1560
        %v1593 = vunpack.c.l.b16 %v1561
        %v1594 = vunpack.c.l.b16 %v1562
        %v1595 = vunpack.c.l.b16 %v1563
        %v1596 = vunpack.c.l.b16 %v1564
        %v1597 = vunpack.c.l.b16 %v1565
        %v1598 = vunpack.c.l.b16 %v1566
        %v1599 = vunpack.c.l.b16 %v1567
        %v1600 = vunpack.c.l.b16 %v1568
        %v1601 = vunpack.c.l.b16 %v1569
        %v1602 = vpack.c.b16 %v1587, %v1586
        %v1603 = vpack.c.b16 %v1589, %v1588
        %v1604 = vpack.c.b16 %v1591, %v1590
        %v1605 = vpack.c.b16 %v1593, %v1592
        %v1606 = vpack.c.b16 %v1595, %v1594
        %v1607 = vpack.c.b16 %v1597, %v1596
        %v1608 = vpack.c.b16 %v1599, %v1598
        %v1609 = vpack.c.b16 %v1601, %v1600
        %1618 = vmatprep.subr.bf16.mxu0 0
        %1619 = vmatpush1.bf16.msra.mxu0 %v1602
        %1620 = vmatprep.subr.bf16.mxu0 0
        %1621 = vmatpush1.bf16.msra.mxu0 %v1603
        %1622 = vmatprep.subr.bf16.mxu0 0
        %1623 = vmatpush1.bf16.msra.mxu0 %v1604
        %1624 = vmatprep.subr.bf16.mxu0 0
        %1625 = vmatpush1.bf16.msra.mxu0 %v1605
        %1626 = vmatprep.subr.bf16.mxu0 0
        %1627 = vmatpush1.bf16.msra.mxu0 %v1606
        %1628 = vmatprep.subr.bf16.mxu0 0
        %1629 = vmatpush1.bf16.msra.mxu0 %v1607
        %1630 = vmatprep.subr.bf16.mxu0 0
        %1631 = vmatpush1.bf16.msra.mxu0 %v1608
        %1632 = vmatprep.subr.bf16.mxu0 0
        %1633 = vmatpush1.bf16.msra.mxu0 %v1609
        %1634 = vmatprep.subr.bf16.mxu0 0
        %1635 = vmatpush1.bf16.msra.mxu0 0
        %1636 = vmatprep.subr.bf16.mxu0 0
        %1637 = vmatpush1.bf16.msra.mxu0 0
        %1638 = vmatprep.subr.bf16.mxu0 0
        %1639 = vmatpush1.bf16.msra.mxu0 0
        %1640 = vmatprep.subr.bf16.mxu0 0
        %1641 = vmatpush1.bf16.msra.mxu0 0
        %1642 = vmatprep.subr.bf16.mxu0 0
        %1643 = vmatpush1.bf16.msra.mxu0 0
        %1644 = vmatprep.subr.bf16.mxu0 0
        %1645 = vmatpush1.bf16.msra.mxu0 0
        %1646 = vmatprep.subr.bf16.mxu0 0
        %1647 = vmatpush1.bf16.msra.mxu0 0
        %1648 = vmatprep.subr.bf16.mxu0 0
        %1649 = vmatpush1.bf16.msra.mxu0 0
        %1650 = vmatprep.mubr.bf16.mxu0 0
        %1651 = vmatmul.mubr.bf16.gmra.mrb[0].mxu0 %v1552
        %v1652 = vpop.f32.mrb[0].mxu0
        %v1653 = vadd.f32 0.0, %v1652
        %v1654 = vpop.f32.mrb[0].mxu0
        %v1655 = vpop.f32.mrb[0].mxu0
        %v1656 = vadd.f32 0.0, %v1655
        %v1657 = vpop.f32.mrb[0].mxu0
        %1658 = vdwg.mxu0
        %v1659 = vadd.f32 %v1544, %v1653
        %v1660 = vadd.f32 %v1547, %v1656
        %v1661 = vld [vmem:[%s6] sm:$0x1]
        %v1663 = vlaneseq
        %v1664 = vshrl.u32 %v1663, 7
        %v1665 = vsub.s32 0, %v1664
        %v1666 = vrot.slane %v1661, %v1665
        %v1668 = vadd.f32 %v1659, %v1666
        %v1669 = vadd.f32 %v1660, %v1666
        %v1670 = vld [vmem:[%s319 + $0x1] sm:$0xff]
        %v1671 = vld [vmem:[%s319 + $0x9] sm:$0xff]
        %v1672 = vadd.f32 %v1668, %v1670
        %v1673 = vadd.f32 %v1669, %v1671
        %1674 = vst [vmem:[%s319 + $0x1] sm:$0xff] %v1672
        %1675 = vst [vmem:[%s319 + $0x9] sm:$0xff] %v1673
        %p1676 = scmp.lt.s32.totalorder %s20, 1
        %s1677 = scalar_select %p1676, %s20, 1
        %s1678 = smul.addr %s1677, 3
        %s1679 = smul.addr %s1678, 8
        %s1680 = scalar_lea.vmem %s8, %s1679
        // Predicated region
        $region57: #{_lambda_.5} parent=51 // pred_check
          %p1681 = pneg %p211
        $region58: #{_lambda_.5} parent=51 // pred_check_branch
          %1683 = sbr.rel (%p1681) target = $region60
        $region59: #{_lambda_.5} parent=51 // pred_region
          _
        $region60: #{_lambda_.5} parent=51 // pred_fallthru
          _
      $region52: #{_lambda_.5} parent=5 // pred_fallthru
        _
      %p1684 = scmp.le.s32.totalorder 2, %s15
      // Predicated region
      $region61: #{_lambda_.5} parent=5 // pred_check
        %p1685 = pneg %p1684
      $region62: #{_lambda_.5} parent=5 // pred_check_branch
        %1687 = sbr.rel (%p1685) target = $region64
      $region63: #{_lambda_.5} parent=5 // pred_region
        %s1688 = ssub.s32 %s15, 2
        // Predicated region
        $region65: #{_lambda_.5} parent=63 // pred_check
          %p1689 = pneg %p217
        $region66: #{_lambda_.5} parent=63 // pred_check_branch
          %1691 = sbr.rel (%p1689) target = $region68
        $region67: #{_lambda_.5} parent=63 // pred_region
          %p1692 = scmp.lt.s32.totalorder %s21, 1
          %s1693 = scalar_select %p1692, %s21, 1
          %s1694 = smul.addr %s1693, 3
          %s1695 = smul.addr %s1694, 8
          %s1696 = scalar_lea.vmem %s8, %s1695
        $region68: #{_lambda_.5} parent=63 // pred_fallthru
          _
      $region64: #{_lambda_.5} parent=5 // pred_fallthru
        _
    $region6: #{_lambda_.5} parent=1 // loop_footer
      %s19 = sadd.s32 1, %s15
    $region7: #{_lambda_.5} parent=1 // loop_footer_branch
      %14 = sbr.rel target = $region3
    $region8: #{_lambda_.5} parent=1 // loop_exit
      _
    %1697 = vsyncpa [#allocation4], 1
    %s1698 = scalar_lea.sflag [#allocation4], 1
    %1699 = vsyncpa %s1698, 1

// kernel: _lambda_.9
$region0: #{_lambda_.9}
  #allocation0 [shape = 'u32[]', space=smem, size = 0x4, offset = 0x4, fixed_abs, tag = 'smem constant byte address 0x4 - core index']
  #allocation1 [shape = 'u32[144,128]{1,0:T(1,128)}', space=vmem, size = 0x12000, scoped, tag = 'internal scratch']
  #allocation2 [shape = 'f32[3,32]{1,0:T(4,128)}', space=vmem, size = 0x800, scoped, tag = 'scratch operand']
  %s0 = inlined_call_operand.vmem [shape: bf16[2,2,2,64], index: 0, kind: input, shape index: {}]
  %s1 = inlined_call_operand.vmem [shape: bf16[3,64,32], index: 1, kind: input, shape index: {}]
  %s2 = inlined_call_operand.vmem [shape: f32[1,32], index: 2, kind: input, shape index: {}]
  %s3 = inlined_call_operand.vmem [shape: bf16[1,3,32,32], index: 3, kind: input, shape index: {}]
  %s4 = inlined_call_operand.vmem [shape: f32[1,1,32], index: 4, kind: input, shape index: {}]
  %s5 = inlined_call_operand.vmem [shape: bf16[1,3,32,32], index: 5, kind: input, shape index: {}]
  %s6 = inlined_call_operand.vmem [shape: f32[1,1,32], index: 6, kind: input, shape index: {}]
  %s7 = inlined_call_operand.vmem [shape: f32[2], index: 7, kind: input, shape index: {}]
  %s8 = inlined_call_operand.vmem [shape: f32[2,3,32], index: 8, kind: output, shape index: {}]
  %s9 = sld [smem:[#allocation0]]
  $region69: #{_lambda_.9} parent=0
    _
  %s11 = ssub.s32 1, %s9
  %s12 = scalar_select 0, %s11, %s9
  $region1: #{_lambda_.9} parent=0
    #allocation3 [shape = 'u8[512]{0}', space=smem, size = 0x200, scoped, tag = 'input window, operand 7, single buffered']
    #allocation4 [shape = 's32[2]{0}', space=sflag, size = 0x8, scoped, tag = 'scoped memory for _lambda_.9']
    %13 = vsyncpa [#allocation4], 0
    loop: start=0, step=1, limit=4
    $region2: #{_lambda_.9} parent=1 // loop_pre_header
      _
    $region3: #{_lambda_.9} parent=1 // loop_header
      %s15 = sphi 0, %s19
      %p16 = scmp.ge.s32.totalorder %s15, 4
      %s25 = sphi 0, %s27
      %s28 = sphi 0, %s25
      %s29 = sphi 0, %s28
      %s45 = sphi 0, %s29
      %s49 = sphi 0, %s49
      %s51 = sphi 0, %s49
      %s52 = sphi 0, %s51
      %s66 = sphi 0, %s52
      %s70 = sphi 0, %s70
      %s72 = sphi 0, %s70
      %s73 = sphi 0, %s72
      %s87 = sphi 0, %s73
      %s91 = sphi 0, %s91
      %s93 = sphi 0, %s91
      %s94 = sphi 0, %s93
      %s108 = sphi 0, %s94
      %s112 = sphi 0, %s112
      %s114 = sphi 0, %s112
      %s115 = sphi 0, %s114
      %s129 = sphi 0, %s115
      %s133 = sphi 0, %s133
      %s135 = sphi 0, %s133
      %s136 = sphi 0, %s135
      %s150 = sphi 0, %s136
      %s154 = sphi 0, %s154
      %s156 = sphi 0, %s154
      %s157 = sphi 0, %s156
      %s171 = sphi 0, %s157
      %s175 = sphi 0, %s175
      %s177 = sphi 0, %s175
      %s178 = sphi 0, %s177
      %s192 = sphi 0, %s178
      %s198 = sphi 0, %s200
      %s201 = sphi 0, %s198
      %s202 = sphi 0, %s201
      %s218 = sphi 0, %s202
    $region4: #{_lambda_.9} parent=1 // loop_header_branch
      %18 = sbr.rel (%p16) target = $region8
    $region5: #{_lambda_.9} parent=1 // loop_body
      %s20 = ssub.s32 %s15, 1
      %s21 = ssub.s32 %s15, 2
      %s22 = sadd.s32 %s15, 1
      %s23 = ssub.s32 %s15, %s22
      %p24 = scmp.eq.s32.totalorder %s23, 0
      %s26 = sadd.s32 %s25, 1
      %s27 = scalar_select %p24, %s25, %s26
      %p30 = pneg %p24
      %p31 = scmp.eq.s32.totalorder %s15, 1
      %p32 = por %p30, %p31
      %p33 = scmp.ne.s32.totalorder %s25, %s28
      %p34 = scmp.eq.s32.totalorder %s15, 0
      %p35 = por %p33, %p34
      %p36 = scmp.ne.s32.totalorder %s25, %s28
      %p37 = scmp.eq.s32.totalorder %s20, 1
      %p38 = por %p36, %p37
      %p39 = scmp.ne.s32.totalorder %s28, %s29
      %p40 = scmp.eq.s32.totalorder %s20, 0
      %p41 = por %p39, %p40
      %p42 = scmp.ne.s32.totalorder %s28, %s29
      %p43 = scmp.eq.s32.totalorder %s21, 1
      %p44 = por %p42, %p43
      %p46 = scmp.ne.s32.totalorder %s29, %s45
      %p47 = scmp.eq.s32.totalorder %s21, 0
      %p48 = por %p46, %p47
      %s50 = sadd.s32 %s49, 1
      %p53 = scmp.eq.s32.totalorder %s15, 1
      %p54 = scmp.ne.s32.totalorder %s49, %s51
      %p55 = scmp.eq.s32.totalorder %s15, 0
      %p56 = por %p54, %p55
      %p57 = scmp.ne.s32.totalorder %s49, %s51
      %p58 = scmp.eq.s32.totalorder %s20, 1
      %p59 = por %p57, %p58
      %p60 = scmp.ne.s32.totalorder %s51, %s52
      %p61 = scmp.eq.s32.totalorder %s20, 0
      %p62 = por %p60, %p61
      %p63 = scmp.ne.s32.totalorder %s51, %s52
      %p64 = scmp.eq.s32.totalorder %s21, 1
      %p65 = por %p63, %p64
      %p67 = scmp.ne.s32.totalorder %s52, %s66
      %p68 = scmp.eq.s32.totalorder %s21, 0
      %p69 = por %p67, %p68
      %s71 = sadd.s32 %s70, 1
      %p74 = scmp.eq.s32.totalorder %s15, 1
      %p75 = scmp.ne.s32.totalorder %s70, %s72
      %p76 = scmp.eq.s32.totalorder %s15, 0
      %p77 = por %p75, %p76
      %p78 = scmp.ne.s32.totalorder %s70, %s72
      %p79 = scmp.eq.s32.totalorder %s20, 1
      %p80 = por %p78, %p79
      %p81 = scmp.ne.s32.totalorder %s72, %s73
      %p82 = scmp.eq.s32.totalorder %s20, 0
      %p83 = por %p81, %p82
      %p84 = scmp.ne.s32.totalorder %s72, %s73
      %p85 = scmp.eq.s32.totalorder %s21, 1
      %p86 = por %p84, %p85
      %p88 = scmp.ne.s32.totalorder %s73, %s87
      %p89 = scmp.eq.s32.totalorder %s21, 0
      %p90 = por %p88, %p89
      %s92 = sadd.s32 %s91, 1
      %p95 = scmp.eq.s32.totalorder %s15, 1
      %p96 = scmp.ne.s32.totalorder %s91, %s93
      %p97 = scmp.eq.s32.totalorder %s15, 0
      %p98 = por %p96, %p97
      %p99 = scmp.ne.s32.totalorder %s91, %s93
      %p100 = scmp.eq.s32.totalorder %s20, 1
      %p101 = por %p99, %p100
      %p102 = scmp.ne.s32.totalorder %s93, %s94
      %p103 = scmp.eq.s32.totalorder %s20, 0
      %p104 = por %p102, %p103
      %p105 = scmp.ne.s32.totalorder %s93, %s94
      %p106 = scmp.eq.s32.totalorder %s21, 1
      %p107 = por %p105, %p106
      %p109 = scmp.ne.s32.totalorder %s94, %s108
      %p110 = scmp.eq.s32.totalorder %s21, 0
      %p111 = por %p109, %p110
      %s113 = sadd.s32 %s112, 1
      %p116 = scmp.eq.s32.totalorder %s15, 1
      %p117 = scmp.ne.s32.totalorder %s112, %s114
      %p118 = scmp.eq.s32.totalorder %s15, 0
      %p119 = por %p117, %p118
      %p120 = scmp.ne.s32.totalorder %s112, %s114
      %p121 = scmp.eq.s32.totalorder %s20, 1
      %p122 = por %p120, %p121
      %p123 = scmp.ne.s32.totalorder %s114, %s115
      %p124 = scmp.eq.s32.totalorder %s20, 0
      %p125 = por %p123, %p124
      %p126 = scmp.ne.s32.totalorder %s114, %s115
      %p127 = scmp.eq.s32.totalorder %s21, 1
      %p128 = por %p126, %p127
      %p130 = scmp.ne.s32.totalorder %s115, %s129
      %p131 = scmp.eq.s32.totalorder %s21, 0
      %p132 = por %p130, %p131
      %s134 = sadd.s32 %s133, 1
      %p137 = scmp.eq.s32.totalorder %s15, 1
      %p138 = scmp.ne.s32.totalorder %s133, %s135
      %p139 = scmp.eq.s32.totalorder %s15, 0
      %p140 = por %p138, %p139
      %p141 = scmp.ne.s32.totalorder %s133, %s135
      %p142 = scmp.eq.s32.totalorder %s20, 1
      %p143 = por %p141, %p142
      %p144 = scmp.ne.s32.totalorder %s135, %s136
      %p145 = scmp.eq.s32.totalorder %s20, 0
      %p146 = por %p144, %p145
      %p147 = scmp.ne.s32.totalorder %s135, %s136
      %p148 = scmp.eq.s32.totalorder %s21, 1
      %p149 = por %p147, %p148
      %p151 = scmp.ne.s32.totalorder %s136, %s150
      %p152 = scmp.eq.s32.totalorder %s21, 0
      %p153 = por %p151, %p152
      %s155 = sadd.s32 %s154, 1
      %p158 = scmp.eq.s32.totalorder %s15, 1
      %p159 = scmp.ne.s32.totalorder %s154, %s156
      %p160 = scmp.eq.s32.totalorder %s15, 0
      %p161 = por %p159, %p160
      %p162 = scmp.ne.s32.totalorder %s154, %s156
      %p163 = scmp.eq.s32.totalorder %s20, 1
      %p164 = por %p162, %p163
      %p165 = scmp.ne.s32.totalorder %s156, %s157
      %p166 = scmp.eq.s32.totalorder %s20, 0
      %p167 = por %p165, %p166
      %p168 = scmp.ne.s32.totalorder %s156, %s157
      %p169 = scmp.eq.s32.totalorder %s21, 1
      %p170 = por %p168, %p169
      %p172 = scmp.ne.s32.totalorder %s157, %s171
      %p173 = scmp.eq.s32.totalorder %s21, 0
      %p174 = por %p172, %p173
      %s176 = sadd.s32 %s175, 1
      %p179 = scmp.eq.s32.totalorder %s15, 1
      %p180 = scmp.ne.s32.totalorder %s175, %s177
      %p181 = scmp.eq.s32.totalorder %s15, 0
      %p182 = por %p180, %p181
      %p183 = scmp.ne.s32.totalorder %s175, %s177
      %p184 = scmp.eq.s32.totalorder %s20, 1
      %p185 = por %p183, %p184
      %p186 = scmp.ne.s32.totalorder %s177, %s178
      %p187 = scmp.eq.s32.totalorder %s20, 0
      %p188 = por %p186, %p187
      %p189 = scmp.ne.s32.totalorder %s177, %s178
      %p190 = scmp.eq.s32.totalorder %s21, 1
      %p191 = por %p189, %p190
      %p193 = scmp.ne.s32.totalorder %s178, %s192
      %p194 = scmp.eq.s32.totalorder %s21, 0
      %p195 = por %p193, %p194
      %s196 = ssub.s32 %s15, %s22
      %p197 = scmp.eq.s32.totalorder %s196, 0
      %s199 = sadd.s32 %s198, 1
      %s200 = scalar_select %p197, %s198, %s199
      %p203 = pneg %p197
      %p204 = scmp.eq.s32.totalorder %s15, 1
      %p205 = por %p203, %p204
      %p206 = scmp.ne.s32.totalorder %s198, %s201
      %p207 = scmp.eq.s32.totalorder %s15, 0
      %p208 = por %p206, %p207
      %p209 = scmp.ne.s32.totalorder %s198, %s201
      %p210 = scmp.eq.s32.totalorder %s20, 1
      %p211 = por %p209, %p210
      %p212 = scmp.ne.s32.totalorder %s201, %s202
      %p213 = scmp.eq.s32.totalorder %s20, 0
      %p214 = por %p212, %p213
      %p215 = scmp.ne.s32.totalorder %s201, %s202
      %p216 = scmp.eq.s32.totalorder %s21, 1
      %p217 = por %p215, %p216
      %p219 = scmp.ne.s32.totalorder %s202, %s218
      %p220 = scmp.eq.s32.totalorder %s21, 0
      %p221 = por %p219, %p220
      %p222 = scmp.le.s32.totalorder 1, %s15
      %p223 = scmp.lt.s32.totalorder %s15, 3
      %p224 = pnand %p222, %p223
      %p225 = pneg %p224
      // Predicated region
      $region9: #{_lambda_.9} parent=5 // pred_check
        _
      $region10: #{_lambda_.9} parent=5 // pred_check_branch
        %227 = sbr.rel (%p224) target = $region12
      $region11: #{_lambda_.9} parent=5 // pred_region
        %s228 = ssub.s32 %s15, 1
        // Predicated region
        $region13: #{_lambda_.9} parent=11 // pred_check
          %p229 = pneg %p62
        $region14: #{_lambda_.9} parent=11 // pred_check_branch
          %231 = sbr.rel (%p229) target = $region16
        $region15: #{_lambda_.9} parent=11 // pred_region
          _
        $region16: #{_lambda_.9} parent=11 // pred_fallthru
          _
        // Predicated region
        $region17: #{_lambda_.9} parent=11 // pred_check
          %p232 = pneg %p83
        $region18: #{_lambda_.9} parent=11 // pred_check_branch
          %234 = sbr.rel (%p232) target = $region20
        $region19: #{_lambda_.9} parent=11 // pred_region
          _
        $region20: #{_lambda_.9} parent=11 // pred_fallthru
          _
        // Predicated region
        $region21: #{_lambda_.9} parent=11 // pred_check
          %p235 = pneg %p104
        $region22: #{_lambda_.9} parent=11 // pred_check_branch
          %237 = sbr.rel (%p235) target = $region24
        $region23: #{_lambda_.9} parent=11 // pred_region
          _
        $region24: #{_lambda_.9} parent=11 // pred_fallthru
          _
        // Predicated region
        $region25: #{_lambda_.9} parent=11 // pred_check
          %p238 = pneg %p125
        $region26: #{_lambda_.9} parent=11 // pred_check_branch
          %240 = sbr.rel (%p238) target = $region28
        $region27: #{_lambda_.9} parent=11 // pred_region
          _
        $region28: #{_lambda_.9} parent=11 // pred_fallthru
          _
        // Predicated region
        $region29: #{_lambda_.9} parent=11 // pred_check
          %p241 = pneg %p146
        $region30: #{_lambda_.9} parent=11 // pred_check_branch
          %243 = sbr.rel (%p241) target = $region32
        $region31: #{_lambda_.9} parent=11 // pred_region
          _
        $region32: #{_lambda_.9} parent=11 // pred_fallthru
          _
        // Predicated region
        $region33: #{_lambda_.9} parent=11 // pred_check
          %p244 = pneg %p167
        $region34: #{_lambda_.9} parent=11 // pred_check_branch
          %246 = sbr.rel (%p244) target = $region36
        $region35: #{_lambda_.9} parent=11 // pred_region
          _
        $region36: #{_lambda_.9} parent=11 // pred_fallthru
          _
        // Predicated region
        $region37: #{_lambda_.9} parent=11 // pred_check
          %p247 = pneg %p188
        $region38: #{_lambda_.9} parent=11 // pred_check_branch
          %249 = sbr.rel (%p247) target = $region40
        $region39: #{_lambda_.9} parent=11 // pred_region
          %s251 = ssub.s32 16, 16
          %252 = vsyncadd [#allocation4], %s251
          %s254 = sshll.u32 %s7, 4
          %s255 = int_to_ptr.vmem [resolvable:$true] %s254
          %257 = dma.vmem_to_smem %s255, 16, [#allocation3], [#allocation4]
        $region40: #{_lambda_.9} parent=11 // pred_fallthru
          _
      $region12: #{_lambda_.9} parent=5 // pred_fallthru
        _
      %p258 = scmp.lt.s32.totalorder %s15, 2
      // Predicated region
      $region41: #{_lambda_.9} parent=5 // pred_check
        %p259 = pneg %p258
      $region42: #{_lambda_.9} parent=5 // pred_check_branch
        %261 = sbr.rel (%p259) target = $region44
      $region43: #{_lambda_.9} parent=5 // pred_region
        // Predicated region
        $region45: #{_lambda_.9} parent=43 // pred_check
          %p262 = pneg %p35
        $region46: #{_lambda_.9} parent=43 // pred_check_branch
          %264 = sbr.rel (%p262) target = $region48
        $region47: #{_lambda_.9} parent=43 // pred_region
          %p265 = scmp.lt.s32.totalorder %s15, 1
          %s266 = scalar_select %p265, %s15, 1
          %s267 = smul.addr %s266, 2
          %s268 = scalar_lea.vmem %s0, %s267
        $region48: #{_lambda_.9} parent=43 // pred_fallthru
          _
      $region44: #{_lambda_.9} parent=5 // pred_fallthru
        _
      %p269 = scmp.le.s32.totalorder 1, %s15
      %p270 = scmp.lt.s32.totalorder %s15, 3
      %p271 = pnand %p269, %p270
      %p272 = pneg %p271
      // Predicated region
      $region49: #{_lambda_.9} parent=5 // pred_check
        _
      $region50: #{_lambda_.9} parent=5 // pred_check_branch
        %274 = sbr.rel (%p271) target = $region52
      $region51: #{_lambda_.9} parent=5 // pred_region
        %s275 = ssub.s32 %s15, 1
        // Predicated region
        $region53: #{_lambda_.9} parent=51 // pred_check
          %p276 = pneg %p188
        $region54: #{_lambda_.9} parent=51 // pred_check_branch
          %278 = sbr.rel (%p276) target = $region56
        $region55: #{_lambda_.9} parent=51 // pred_region
          %279 = dma.done [#allocation4], 16
        $region56: #{_lambda_.9} parent=51 // pred_fallthru
          _
        %280 = sfence
        %p281 = scmp.lt.s32.totalorder %s20, 1
        %s282 = scalar_select %p281, %s20, 1
        %s283 = smul.addr %s282, 2
        %s284 = scalar_lea.vmem %s0, %s283
        %p285 = pneg %p41
        %p286 = pneg %p38
        %p287 = pneg %p62
        %p288 = pneg %p59
        %p289 = pneg %p83
        %p290 = pneg %p80
        %p291 = pneg %p104
        %p292 = pneg %p101
        %p293 = pneg %p125
        %p294 = pneg %p122
        %p295 = pneg %p146
        %p296 = pneg %p143
        %p297 = pneg %p167
        %p298 = pneg %p164
        %p299 = pneg %p188
        %p300 = pneg %p185
        %p301 = pneg %p214
        %p302 = pneg %p211
        %p303 = scmp.lt.s32.totalorder %s20, 1
        %s304 = scalar_select %p303, %s20, 1
        %s305 = smul.addr %s304, 4
        %s306 = scalar_lea.vmem %s8, %s305
        %p307 = scmp.lt.s32.totalorder %s20, 1
        %s308 = scalar_select %p307, %s20, 1
        %s309 = smul.addr %s308, 2
        %s310 = scalar_lea.vmem %s0, %s309
        %p311 = scmp.lt.s32.totalorder %s20, 1
        %s312 = scalar_select %p311, %s20, 1
        %s313 = smul.addr %s312, 4
        %s314 = scalar_lea.vmem %s8, %s313
        %vm316 = vcmask 256000
        %317 = vst.msk [vmem:[%s314] sm:$0x7] %vm316, 0.0
        %318 = vst.msk [vmem:[#allocation2] sm:$0x7] %vm316, 0.0
        %v319 = vld [vmem:[%s310] sm:$0x1]
        %v320 = vld [vmem:[%s1] sm:$0xf]
        %v321 = vld [vmem:[%s1 + $0x4] sm:$0xf]
        %v322 = vld [vmem:[%s1 + $0x8] sm:$0xf]
        %v323 = vld [vmem:[%s1 + $0xc] sm:$0xf]
        %v324 = vld [vmem:[%s1 + $0x10] sm:$0xf]
        %v325 = vld [vmem:[%s1 + $0x14] sm:$0xf]
        %v326 = vld [vmem:[%s1 + $0x18] sm:$0xf]
        %v327 = vld [vmem:[%s1 + $0x1c] sm:$0xf]
        %s328 = scalar_lea.vmem %s310, 1
        %v329 = vld [vmem:[%s328] sm:$0x1]
        %s330 = scalar_lea.vmem %s1, 32
        %v331 = vld [vmem:[%s330] sm:$0xf]
        %v332 = vld [vmem:[%s330 + $0x4] sm:$0xf]
        %v333 = vld [vmem:[%s330 + $0x8] sm:$0xf]
        %v334 = vld [vmem:[%s330 + $0xc] sm:$0xf]
        %v335 = vld [vmem:[%s330 + $0x10] sm:$0xf]
        %v336 = vld [vmem:[%s330 + $0x14] sm:$0xf]
        %v337 = vld [vmem:[%s330 + $0x18] sm:$0xf]
        %v338 = vld [vmem:[%s330 + $0x1c] sm:$0xf]
        %v347 = vunpack.c.l.b16 %v331
        %v348 = vunpack.c.l.b16 %v332
        %v349 = vunpack.c.l.b16 %v333
        %v350 = vunpack.c.l.b16 %v334
        %v351 = vunpack.c.l.b16 %v335
        %v352 = vunpack.c.l.b16 %v336
        %v353 = vunpack.c.l.b16 %v337
        %v354 = vunpack.c.l.b16 %v338
        %v355 = vpack.c.b16 %v348, %v347
        %v356 = vpack.c.b16 %v350, %v349
        %v357 = vpack.c.b16 %v352, %v351
        %v358 = vpack.c.b16 %v354, %v353
        %vm363 = vcmask 523264
        %v365 = vsel %vm363, %v329, 0
        %367 = vmatprep.subr.bf16.mxu0 0
        %368 = vmatpush1.bf16.msra.mxu0 %v355
        %369 = vmatprep.subr.bf16.mxu0 0
        %370 = vmatpush1.bf16.msra.mxu0 %v356
        %371 = vmatprep.subr.bf16.mxu0 0
        %372 = vmatpush1.bf16.msra.mxu0 %v357
        %373 = vmatprep.subr.bf16.mxu0 0
        %374 = vmatpush1.bf16.msra.mxu0 %v358
        %375 = vmatprep.subr.bf16.mxu0 0
        %376 = vmatpush1.bf16.msra.mxu0 0
        %377 = vmatprep.subr.bf16.mxu0 0
        %378 = vmatpush1.bf16.msra.mxu0 0
        %379 = vmatprep.subr.bf16.mxu0 0
        %380 = vmatpush1.bf16.msra.mxu0 0
        %381 = vmatprep.subr.bf16.mxu0 0
        %382 = vmatpush1.bf16.msra.mxu0 0
        %383 = vmatprep.subr.bf16.mxu0 0
        %384 = vmatpush1.bf16.msra.mxu0 0
        %385 = vmatprep.subr.bf16.mxu0 0
        %386 = vmatpush1.bf16.msra.mxu0 0
        %387 = vmatprep.subr.bf16.mxu0 0
        %388 = vmatpush1.bf16.msra.mxu0 0
        %389 = vmatprep.subr.bf16.mxu0 0
        %390 = vmatpush1.bf16.msra.mxu0 0
        %391 = vmatprep.subr.bf16.mxu0 0
        %392 = vmatpush1.bf16.msra.mxu0 0
        %393 = vmatprep.subr.bf16.mxu0 0
        %394 = vmatpush1.bf16.msra.mxu0 0
        %395 = vmatprep.subr.bf16.mxu0 0
        %396 = vmatpush1.bf16.msra.mxu0 0
        %397 = vmatprep.subr.bf16.mxu0 0
        %398 = vmatpush1.bf16.msra.mxu0 0
        %399 = vmatprep.mubr.bf16.mxu0 0
        %400 = vmatmul.mubr.bf16.gmra.mrb[0].mxu0 %v365
        %v401 = vpop.f32.mrb[0].mxu0
        %v402 = vadd.f32 0.0, %v401
        %v403 = vpop.f32.mrb[0].mxu0
        %v404 = vpop.f32.mrb[0].mxu0
        %v405 = vpop.f32.mrb[0].mxu0
        %406 = vdwg.mxu0
        %v415 = vunpack.c.l.b16 %v320
        %v416 = vunpack.c.l.b16 %v321
        %v417 = vunpack.c.l.b16 %v322
        %v418 = vunpack.c.l.b16 %v323
        %v419 = vunpack.c.l.b16 %v324
        %v420 = vunpack.c.l.b16 %v325
        %v421 = vunpack.c.l.b16 %v326
        %v422 = vunpack.c.l.b16 %v327
        %v423 = vpack.c.b16 %v416, %v415
        %v424 = vpack.c.b16 %v418, %v417
        %v425 = vpack.c.b16 %v420, %v419
        %v426 = vpack.c.b16 %v422, %v421
        %v432 = vsel %vm363, %v319, 0
        %434 = vmatprep.subr.bf16.mxu0 0
        %435 = vmatpush1.bf16.msra.mxu0 %v423
        %436 = vmatprep.subr.bf16.mxu0 0
        %437 = vmatpush1.bf16.msra.mxu0 %v424
        %438 = vmatprep.subr.bf16.mxu0 0
        %439 = vmatpush1.bf16.msra.mxu0 %v425
        %440 = vmatprep.subr.bf16.mxu0 0
        %441 = vmatpush1.bf16.msra.mxu0 %v426
        %442 = vmatprep.subr.bf16.mxu0 0
        %443 = vmatpush1.bf16.msra.mxu0 0
        %444 = vmatprep.subr.bf16.mxu0 0
        %445 = vmatpush1.bf16.msra.mxu0 0
        %446 = vmatprep.subr.bf16.mxu0 0
        %447 = vmatpush1.bf16.msra.mxu0 0
        %448 = vmatprep.subr.bf16.mxu0 0
        %449 = vmatpush1.bf16.msra.mxu0 0
        %450 = vmatprep.subr.bf16.mxu0 0
        %451 = vmatpush1.bf16.msra.mxu0 0
        %452 = vmatprep.subr.bf16.mxu0 0
        %453 = vmatpush1.bf16.msra.mxu0 0
        %454 = vmatprep.subr.bf16.mxu0 0
        %455 = vmatpush1.bf16.msra.mxu0 0
        %456 = vmatprep.subr.bf16.mxu0 0
        %457 = vmatpush1.bf16.msra.mxu0 0
        %458 = vmatprep.subr.bf16.mxu0 0
        %459 = vmatpush1.bf16.msra.mxu0 0
        %460 = vmatprep.subr.bf16.mxu0 0
        %461 = vmatpush1.bf16.msra.mxu0 0
        %462 = vmatprep.subr.bf16.mxu0 0
        %463 = vmatpush1.bf16.msra.mxu0 0
        %464 = vmatprep.subr.bf16.mxu0 0
        %465 = vmatpush1.bf16.msra.mxu0 0
        %466 = vmatprep.mubr.bf16.mxu0 0
        %467 = vmatmul.mubr.bf16.gmra.mrb[0].mxu0 %v432
        %v468 = vpop.f32.mrb[0].mxu0
        %v469 = vadd.f32 %v402, %v468
        %v470 = vpop.f32.mrb[0].mxu0
        %v471 = vpop.f32.mrb[0].mxu0
        %v472 = vpop.f32.mrb[0].mxu0
        %473 = vdwg.mxu0
        %s474 = scalar_lea.vmem %s1, 64
        %v475 = vld [vmem:[%s474] sm:$0xf]
        %v476 = vld [vmem:[%s474 + $0x4] sm:$0xf]
        %v477 = vld [vmem:[%s474 + $0x8] sm:$0xf]
        %v478 = vld [vmem:[%s474 + $0xc] sm:$0xf]
        %v479 = vld [vmem:[%s474 + $0x10] sm:$0xf]
        %v480 = vld [vmem:[%s474 + $0x14] sm:$0xf]
        %v481 = vld [vmem:[%s474 + $0x18] sm:$0xf]
        %v482 = vld [vmem:[%s474 + $0x1c] sm:$0xf]
        %v485 = vunpack.c.l.s4 1966171168
        %v486 = vunpack.c.0.s8 %v485
        %v487 = vlaneseq
        %v488 = vshrl.u32 %v487, 7
        %v489 = vsub.s32 %v486, %v488
        %v490 = vrot.slane %v319, %v489
        %v492 = vunpack.c.l.s4 1966171168
        %v493 = vunpack.c.0.s8 %v492
        %v494 = vlaneseq
        %v495 = vshrl.u32 %v494, 7
        %v496 = vsub.s32 %v493, %v495
        %v497 = vrot.slane %v490, %v496
        %v499 = vshrl.u32 %v497, 16
        %v509 = vunpack.c.l.b16 %v475
        %v510 = vunpack.c.l.b16 %v476
        %v511 = vunpack.c.l.b16 %v477
        %v512 = vunpack.c.l.b16 %v478
        %v513 = vunpack.c.l.b16 %v479
        %v514 = vunpack.c.l.b16 %v480
        %v515 = vunpack.c.l.b16 %v481
        %v516 = vunpack.c.l.b16 %v482
        %v517 = vpack.c.b16 %v510, %v509
        %v518 = vpack.c.b16 %v512, %v511
        %v519 = vpack.c.b16 %v514, %v513
        %v520 = vpack.c.b16 %v516, %v515
        %v526 = vsel %vm363, %v499, 0
        %528 = vmatprep.subr.bf16.mxu0 0
        %529 = vmatpush1.bf16.msra.mxu0 %v517
        %530 = vmatprep.subr.bf16.mxu0 0
        %531 = vmatpush1.bf16.msra.mxu0 %v518
        %532 = vmatprep.subr.bf16.mxu0 0
        %533 = vmatpush1.bf16.msra.mxu0 %v519
        %534 = vmatprep.subr.bf16.mxu0 0
        %535 = vmatpush1.bf16.msra.mxu0 %v520
        %536 = vmatprep.subr.bf16.mxu0 0
        %537 = vmatpush1.bf16.msra.mxu0 0
        %538 = vmatprep.subr.bf16.mxu0 0
        %539 = vmatpush1.bf16.msra.mxu0 0
        %540 = vmatprep.subr.bf16.mxu0 0
        %541 = vmatpush1.bf16.msra.mxu0 0
        %542 = vmatprep.subr.bf16.mxu0 0
        %543 = vmatpush1.bf16.msra.mxu0 0
        %544 = vmatprep.subr.bf16.mxu0 0
        %545 = vmatpush1.bf16.msra.mxu0 0
        %546 = vmatprep.subr.bf16.mxu0 0
        %547 = vmatpush1.bf16.msra.mxu0 0
        %548 = vmatprep.subr.bf16.mxu0 0
        %549 = vmatpush1.bf16.msra.mxu0 0
        %550 = vmatprep.subr.bf16.mxu0 0
        %551 = vmatpush1.bf16.msra.mxu0 0
        %552 = vmatprep.subr.bf16.mxu0 0
        %553 = vmatpush1.bf16.msra.mxu0 0
        %554 = vmatprep.subr.bf16.mxu0 0
        %555 = vmatpush1.bf16.msra.mxu0 0
        %556 = vmatprep.subr.bf16.mxu0 0
        %557 = vmatpush1.bf16.msra.mxu0 0
        %558 = vmatprep.subr.bf16.mxu0 0
        %559 = vmatpush1.bf16.msra.mxu0 0
        %560 = vmatprep.mubr.bf16.mxu0 0
        %561 = vmatmul.mubr.bf16.gmra.mrb[0].mxu0 %v526
        %v562 = vpop.f32.mrb[0].mxu0
        %v563 = vadd.f32 0.0, %v562
        %v564 = vpop.f32.mrb[0].mxu0
        %v565 = vpop.f32.mrb[0].mxu0
        %v566 = vpop.f32.mrb[0].mxu0
        %567 = vdwg.mxu0
        %v568 = vadd.f32 %v469, %v563
        %v569 = vld [vmem:[%s2] sm:$0x1]
        %v570 = vadd.f32 %v568, %v569
        %s571 = sld [smem:[#allocation3]]
        %vm572 = vcmp.ge.f32.partialorder %v570, 0.0
        %v573 = vstv %s571
        %v574 = vmul.f32 %v573, %v570
        %v575 = vsel %vm572, %v570, %v574
        %vm576 = vcmask 253952
        %577 = vst.msk [vmem:[%s314 + $0x1] sm:$0x1] %vm576, %v575
        %v578 = vld [vmem:[%s314] sm:$0x1]
        %v579 = vpack.c.bf16 %v578, %v578
        %v580 = vld [vmem:[%s3] sm:$0xf]
        %v581 = vld [vmem:[%s3 + $0x4] sm:$0xf]
        %v582 = vld [vmem:[%s3 + $0x8] sm:$0xf]
        %v583 = vld [vmem:[%s3 + $0xc] sm:$0xf]
        %v584 = vld [vmem:[%s314 + $0x1] sm:$0x1]
        %v585 = vpack.c.bf16 %v584, %v584
        %s586 = scalar_lea.vmem %s3, 16
        %v587 = vld [vmem:[%s586] sm:$0xf]
        %v588 = vld [vmem:[%s586 + $0x4] sm:$0xf]
        %v589 = vld [vmem:[%s586 + $0x8] sm:$0xf]
        %v590 = vld [vmem:[%s586 + $0xc] sm:$0xf]
        %v595 = vunpack.c.l.b16 %v587
        %v596 = vunpack.c.l.b16 %v588
        %v597 = vunpack.c.l.b16 %v589
        %v598 = vunpack.c.l.b16 %v590
        %v599 = vpack.c.b16 %v596, %v595
        %v600 = vpack.c.b16 %v598, %v597
        %vm603 = vcmask 261120
        %v605 = vsel %vm603, %v585, 0
        %607 = vmatprep.subr.bf16.mxu0 0
        %608 = vmatpush1.bf16.msra.mxu0 %v599
        %609 = vmatprep.subr.bf16.mxu0 0
        %610 = vmatpush1.bf16.msra.mxu0 %v600
        %611 = vmatprep.subr.bf16.mxu0 0
        %612 = vmatpush1.bf16.msra.mxu0 0
        %613 = vmatprep.subr.bf16.mxu0 0
        %614 = vmatpush1.bf16.msra.mxu0 0
        %615 = vmatprep.subr.bf16.mxu0 0
        %616 = vmatpush1.bf16.msra.mxu0 0
        %617 = vmatprep.subr.bf16.mxu0 0
        %618 = vmatpush1.bf16.msra.mxu0 0
        %619 = vmatprep.subr.bf16.mxu0 0
        %620 = vmatpush1.bf16.msra.mxu0 0
        %621 = vmatprep.subr.bf16.mxu0 0
        %622 = vmatpush1.bf16.msra.mxu0 0
        %623 = vmatprep.subr.bf16.mxu0 0
        %624 = vmatpush1.bf16.msra.mxu0 0
        %625 = vmatprep.subr.bf16.mxu0 0
        %626 = vmatpush1.bf16.msra.mxu0 0
        %627 = vmatprep.subr.bf16.mxu0 0
        %628 = vmatpush1.bf16.msra.mxu0 0
        %629 = vmatprep.subr.bf16.mxu0 0
        %630 = vmatpush1.bf16.msra.mxu0 0
        %631 = vmatprep.subr.bf16.mxu0 0
        %632 = vmatpush1.bf16.msra.mxu0 0
        %633 = vmatprep.subr.bf16.mxu0 0
        %634 = vmatpush1.bf16.msra.mxu0 0
        %635 = vmatprep.subr.bf16.mxu0 0
        %636 = vmatpush1.bf16.msra.mxu0 0
        %637 = vmatprep.subr.bf16.mxu0 0
        %638 = vmatpush1.bf16.msra.mxu0 0
        %639 = vmatprep.mubr.bf16.mxu0 0
        %640 = vmatmul.mubr.bf16.gmra.mrb[0].mxu0 %v605
        %v641 = vpop.f32.mrb[0].mxu0
        %v642 = vadd.f32 0.0, %v641
        %v643 = vpop.f32.mrb[0].mxu0
        %v644 = vpop.f32.mrb[0].mxu0
        %v645 = vpop.f32.mrb[0].mxu0
        %646 = vdwg.mxu0
        %v651 = vunpack.c.l.b16 %v580
        %v652 = vunpack.c.l.b16 %v581
        %v653 = vunpack.c.l.b16 %v582
        %v654 = vunpack.c.l.b16 %v583
        %v655 = vpack.c.b16 %v652, %v651
        %v656 = vpack.c.b16 %v654, %v653
        %v660 = vsel %vm603, %v579, 0
        %662 = vmatprep.subr.bf16.mxu0 0
        %663 = vmatpush1.bf16.msra.mxu0 %v655
        %664 = vmatprep.subr.bf16.mxu0 0
        %665 = vmatpush1.bf16.msra.mxu0 %v656
        %666 = vmatprep.subr.bf16.mxu0 0
        %667 = vmatpush1.bf16.msra.mxu0 0
        %668 = vmatprep.subr.bf16.mxu0 0
        %669 = vmatpush1.bf16.msra.mxu0 0
        %670 = vmatprep.subr.bf16.mxu0 0
        %671 = vmatpush1.bf16.msra.mxu0 0
        %672 = vmatprep.subr.bf16.mxu0 0
        %673 = vmatpush1.bf16.msra.mxu0 0
        %674 = vmatprep.subr.bf16.mxu0 0
        %675 = vmatpush1.bf16.msra.mxu0 0
        %676 = vmatprep.subr.bf16.mxu0 0
        %677 = vmatpush1.bf16.msra.mxu0 0
        %678 = vmatprep.subr.bf16.mxu0 0
        %679 = vmatpush1.bf16.msra.mxu0 0
        %680 = vmatprep.subr.bf16.mxu0 0
        %681 = vmatpush1.bf16.msra.mxu0 0
        %682 = vmatprep.subr.bf16.mxu0 0
        %683 = vmatpush1.bf16.msra.mxu0 0
        %684 = vmatprep.subr.bf16.mxu0 0
        %685 = vmatpush1.bf16.msra.mxu0 0
        %686 = vmatprep.subr.bf16.mxu0 0
        %687 = vmatpush1.bf16.msra.mxu0 0
        %688 = vmatprep.subr.bf16.mxu0 0
        %689 = vmatpush1.bf16.msra.mxu0 0
        %690 = vmatprep.subr.bf16.mxu0 0
        %691 = vmatpush1.bf16.msra.mxu0 0
        %692 = vmatprep.subr.bf16.mxu0 0
        %693 = vmatpush1.bf16.msra.mxu0 0
        %694 = vmatprep.mubr.bf16.mxu0 0
        %695 = vmatmul.mubr.bf16.gmra.mrb[0].mxu0 %v660
        %v696 = vpop.f32.mrb[0].mxu0
        %v697 = vadd.f32 %v642, %v696
        %v698 = vpop.f32.mrb[0].mxu0
        %v699 = vpop.f32.mrb[0].mxu0
        %v700 = vpop.f32.mrb[0].mxu0
        %701 = vdwg.mxu0
        %v702 = vld [vmem:[%s314 + $0x2] sm:$0x1]
        %v703 = vpack.c.bf16 %v702, %v702
        %s704 = scalar_lea.vmem %s3, 32
        %v705 = vld [vmem:[%s704] sm:$0xf]
        %v706 = vld [vmem:[%s704 + $0x4] sm:$0xf]
        %v707 = vld [vmem:[%s704 + $0x8] sm:$0xf]
        %v708 = vld [vmem:[%s704 + $0xc] sm:$0xf]
        %v713 = vunpack.c.l.b16 %v705
        %v714 = vunpack.c.l.b16 %v706
        %v715 = vunpack.c.l.b16 %v707
        %v716 = vunpack.c.l.b16 %v708
        %v717 = vpack.c.b16 %v714, %v713
        %v718 = vpack.c.b16 %v716, %v715
        %v722 = vsel %vm603, %v703, 0
        %724 = vmatprep.subr.bf16.mxu0 0
        %725 = vmatpush1.bf16.msra.mxu0 %v717
        %726 = vmatprep.subr.bf16.mxu0 0
        %727 = vmatpush1.bf16.msra.mxu0 %v718
        %728 = vmatprep.subr.bf16.mxu0 0
        %729 = vmatpush1.bf16.msra.mxu0 0
        %730 = vmatprep.subr.bf16.mxu0 0
        %731 = vmatpush1.bf16.msra.mxu0 0
        %732 = vmatprep.subr.bf16.mxu0 0
        %733 = vmatpush1.bf16.msra.mxu0 0
        %734 = vmatprep.subr.bf16.mxu0 0
        %735 = vmatpush1.bf16.msra.mxu0 0
        %736 = vmatprep.subr.bf16.mxu0 0
        %737 = vmatpush1.bf16.msra.mxu0 0
        %738 = vmatprep.subr.bf16.mxu0 0
        %739 = vmatpush1.bf16.msra.mxu0 0
        %740 = vmatprep.subr.bf16.mxu0 0
        %741 = vmatpush1.bf16.msra.mxu0 0
        %742 = vmatprep.subr.bf16.mxu0 0
        %743 = vmatpush1.bf16.msra.mxu0 0
        %744 = vmatprep.subr.bf16.mxu0 0
        %745 = vmatpush1.bf16.msra.mxu0 0
        %746 = vmatprep.subr.bf16.mxu0 0
        %747 = vmatpush1.bf16.msra.mxu0 0
        %748 = vmatprep.subr.bf16.mxu0 0
        %749 = vmatpush1.bf16.msra.mxu0 0
        %750 = vmatprep.subr.bf16.mxu0 0
        %751 = vmatpush1.bf16.msra.mxu0 0
        %752 = vmatprep.subr.bf16.mxu0 0
        %753 = vmatpush1.bf16.msra.mxu0 0
        %754 = vmatprep.subr.bf16.mxu0 0
        %755 = vmatpush1.bf16.msra.mxu0 0
        %756 = vmatprep.mubr.bf16.mxu0 0
        %757 = vmatmul.mubr.bf16.gmra.mrb[0].mxu0 %v722
        %v758 = vpop.f32.mrb[0].mxu0
        %v759 = vadd.f32 0.0, %v758
        %v760 = vpop.f32.mrb[0].mxu0
        %v761 = vpop.f32.mrb[0].mxu0
        %v762 = vpop.f32.mrb[0].mxu0
        %763 = vdwg.mxu0
        %v764 = vadd.f32 %v697, %v759
        %v765 = vld [vmem:[%s4] sm:$0x1]
        %v766 = vadd.f32 %v764, %v765
        %s767 = sld [smem:[#allocation3 + $0x1]]
        %vm768 = vcmp.ge.f32.partialorder %v766, 0.0
        %v769 = vstv %s767
        %v770 = vmul.f32 %v769, %v766
        %v771 = vsel %vm768, %v766, %v770
        %772 = vst.msk [vmem:[#allocation2 + $0x1] sm:$0x1] %vm576, %v771
        %v773 = vld [vmem:[#allocation2] sm:$0x1]
        %v774 = vpack.c.bf16 %v773, %v773
        %v775 = vld [vmem:[%s5] sm:$0xf]
        %v776 = vld [vmem:[%s5 + $0x4] sm:$0xf]
        %v777 = vld [vmem:[%s5 + $0x8] sm:$0xf]
        %v778 = vld [vmem:[%s5 + $0xc] sm:$0xf]
        %v779 = vld [vmem:[#allocation2 + $0x1] sm:$0x1]
        %v780 = vpack.c.bf16 %v779, %v779
        %s781 = scalar_lea.vmem %s5, 16
        %v782 = vld [vmem:[%s781] sm:$0xf]
        %v783 = vld [vmem:[%s781 + $0x4] sm:$0xf]
        %v784 = vld [vmem:[%s781 + $0x8] sm:$0xf]
        %v785 = vld [vmem:[%s781 + $0xc] sm:$0xf]
        %v790 = vunpack.c.l.b16 %v782
        %v791 = vunpack.c.l.b16 %v783
        %v792 = vunpack.c.l.b16 %v784
        %v793 = vunpack.c.l.b16 %v785
        %v794 = vpack.c.b16 %v791, %v790
        %v795 = vpack.c.b16 %v793, %v792
        %v799 = vsel %vm603, %v780, 0
        %801 = vmatprep.subr.bf16.mxu0 0
        %802 = vmatpush1.bf16.msra.mxu0 %v794
        %803 = vmatprep.subr.bf16.mxu0 0
        %804 = vmatpush1.bf16.msra.mxu0 %v795
        %805 = vmatprep.subr.bf16.mxu0 0
        %806 = vmatpush1.bf16.msra.mxu0 0
        %807 = vmatprep.subr.bf16.mxu0 0
        %808 = vmatpush1.bf16.msra.mxu0 0
        %809 = vmatprep.subr.bf16.mxu0 0
        %810 = vmatpush1.bf16.msra.mxu0 0
        %811 = vmatprep.subr.bf16.mxu0 0
        %812 = vmatpush1.bf16.msra.mxu0 0
        %813 = vmatprep.subr.bf16.mxu0 0
        %814 = vmatpush1.bf16.msra.mxu0 0
        %815 = vmatprep.subr.bf16.mxu0 0
        %816 = vmatpush1.bf16.msra.mxu0 0
        %817 = vmatprep.subr.bf16.mxu0 0
        %818 = vmatpush1.bf16.msra.mxu0 0
        %819 = vmatprep.subr.bf16.mxu0 0
        %820 = vmatpush1.bf16.msra.mxu0 0
        %821 = vmatprep.subr.bf16.mxu0 0
        %822 = vmatpush1.bf16.msra.mxu0 0
        %823 = vmatprep.subr.bf16.mxu0 0
        %824 = vmatpush1.bf16.msra.mxu0 0
        %825 = vmatprep.subr.bf16.mxu0 0
        %826 = vmatpush1.bf16.msra.mxu0 0
        %827 = vmatprep.subr.bf16.mxu0 0
        %828 = vmatpush1.bf16.msra.mxu0 0
        %829 = vmatprep.subr.bf16.mxu0 0
        %830 = vmatpush1.bf16.msra.mxu0 0
        %831 = vmatprep.subr.bf16.mxu0 0
        %832 = vmatpush1.bf16.msra.mxu0 0
        %833 = vmatprep.mubr.bf16.mxu0 0
        %834 = vmatmul.mubr.bf16.gmra.mrb[0].mxu0 %v799
        %v835 = vpop.f32.mrb[0].mxu0
        %v836 = vadd.f32 0.0, %v835
        %v837 = vpop.f32.mrb[0].mxu0
        %v838 = vpop.f32.mrb[0].mxu0
        %v839 = vpop.f32.mrb[0].mxu0
        %840 = vdwg.mxu0
        %v845 = vunpack.c.l.b16 %v775
        %v846 = vunpack.c.l.b16 %v776
        %v847 = vunpack.c.l.b16 %v777
        %v848 = vunpack.c.l.b16 %v778
        %v849 = vpack.c.b16 %v846, %v845
        %v850 = vpack.c.b16 %v848, %v847
        %v854 = vsel %vm603, %v774, 0
        %856 = vmatprep.subr.bf16.mxu0 0
        %857 = vmatpush1.bf16.msra.mxu0 %v849
        %858 = vmatprep.subr.bf16.mxu0 0
        %859 = vmatpush1.bf16.msra.mxu0 %v850
        %860 = vmatprep.subr.bf16.mxu0 0
        %861 = vmatpush1.bf16.msra.mxu0 0
        %862 = vmatprep.subr.bf16.mxu0 0
        %863 = vmatpush1.bf16.msra.mxu0 0
        %864 = vmatprep.subr.bf16.mxu0 0
        %865 = vmatpush1.bf16.msra.mxu0 0
        %866 = vmatprep.subr.bf16.mxu0 0
        %867 = vmatpush1.bf16.msra.mxu0 0
        %868 = vmatprep.subr.bf16.mxu0 0
        %869 = vmatpush1.bf16.msra.mxu0 0
        %870 = vmatprep.subr.bf16.mxu0 0
        %871 = vmatpush1.bf16.msra.mxu0 0
        %872 = vmatprep.subr.bf16.mxu0 0
        %873 = vmatpush1.bf16.msra.mxu0 0
        %874 = vmatprep.subr.bf16.mxu0 0
        %875 = vmatpush1.bf16.msra.mxu0 0
        %876 = vmatprep.subr.bf16.mxu0 0
        %877 = vmatpush1.bf16.msra.mxu0 0
        %878 = vmatprep.subr.bf16.mxu0 0
        %879 = vmatpush1.bf16.msra.mxu0 0
        %880 = vmatprep.subr.bf16.mxu0 0
        %881 = vmatpush1.bf16.msra.mxu0 0
        %882 = vmatprep.subr.bf16.mxu0 0
        %883 = vmatpush1.bf16.msra.mxu0 0
        %884 = vmatprep.subr.bf16.mxu0 0
        %885 = vmatpush1.bf16.msra.mxu0 0
        %886 = vmatprep.subr.bf16.mxu0 0
        %887 = vmatpush1.bf16.msra.mxu0 0
        %888 = vmatprep.mubr.bf16.mxu0 0
        %889 = vmatmul.mubr.bf16.gmra.mrb[0].mxu0 %v854
        %v890 = vpop.f32.mrb[0].mxu0
        %v891 = vadd.f32 %v836, %v890
        %v892 = vpop.f32.mrb[0].mxu0
        %v893 = vpop.f32.mrb[0].mxu0
        %v894 = vpop.f32.mrb[0].mxu0
        %895 = vdwg.mxu0
        %v896 = vld [vmem:[#allocation2 + $0x2] sm:$0x1]
        %v897 = vpack.c.bf16 %v896, %v896
        %s898 = scalar_lea.vmem %s5, 32
        %v899 = vld [vmem:[%s898] sm:$0xf]
        %v900 = vld [vmem:[%s898 + $0x4] sm:$0xf]
        %v901 = vld [vmem:[%s898 + $0x8] sm:$0xf]
        %v902 = vld [vmem:[%s898 + $0xc] sm:$0xf]
        %v907 = vunpack.c.l.b16 %v899
        %v908 = vunpack.c.l.b16 %v900
        %v909 = vunpack.c.l.b16 %v901
        %v910 = vunpack.c.l.b16 %v902
        %v911 = vpack.c.b16 %v908, %v907
        %v912 = vpack.c.b16 %v910, %v909
        %v916 = vsel %vm603, %v897, 0
        %918 = vmatprep.subr.bf16.mxu0 0
        %919 = vmatpush1.bf16.msra.mxu0 %v911
        %920 = vmatprep.subr.bf16.mxu0 0
        %921 = vmatpush1.bf16.msra.mxu0 %v912
        %922 = vmatprep.subr.bf16.mxu0 0
        %923 = vmatpush1.bf16.msra.mxu0 0
        %924 = vmatprep.subr.bf16.mxu0 0
        %925 = vmatpush1.bf16.msra.mxu0 0
        %926 = vmatprep.subr.bf16.mxu0 0
        %927 = vmatpush1.bf16.msra.mxu0 0
        %928 = vmatprep.subr.bf16.mxu0 0
        %929 = vmatpush1.bf16.msra.mxu0 0
        %930 = vmatprep.subr.bf16.mxu0 0
        %931 = vmatpush1.bf16.msra.mxu0 0
        %932 = vmatprep.subr.bf16.mxu0 0
        %933 = vmatpush1.bf16.msra.mxu0 0
        %934 = vmatprep.subr.bf16.mxu0 0
        %935 = vmatpush1.bf16.msra.mxu0 0
        %936 = vmatprep.subr.bf16.mxu0 0
        %937 = vmatpush1.bf16.msra.mxu0 0
        %938 = vmatprep.subr.bf16.mxu0 0
        %939 = vmatpush1.bf16.msra.mxu0 0
        %940 = vmatprep.subr.bf16.mxu0 0
        %941 = vmatpush1.bf16.msra.mxu0 0
        %942 = vmatprep.subr.bf16.mxu0 0
        %943 = vmatpush1.bf16.msra.mxu0 0
        %944 = vmatprep.subr.bf16.mxu0 0
        %945 = vmatpush1.bf16.msra.mxu0 0
        %946 = vmatprep.subr.bf16.mxu0 0
        %947 = vmatpush1.bf16.msra.mxu0 0
        %948 = vmatprep.subr.bf16.mxu0 0
        %949 = vmatpush1.bf16.msra.mxu0 0
        %950 = vmatprep.mubr.bf16.mxu0 0
        %951 = vmatmul.mubr.bf16.gmra.mrb[0].mxu0 %v916
        %v952 = vpop.f32.mrb[0].mxu0
        %v953 = vadd.f32 0.0, %v952
        %v954 = vpop.f32.mrb[0].mxu0
        %v955 = vpop.f32.mrb[0].mxu0
        %v956 = vpop.f32.mrb[0].mxu0
        %957 = vdwg.mxu0
        %v958 = vadd.f32 %v891, %v953
        %v959 = vld [vmem:[%s6] sm:$0x1]
        %v960 = vadd.f32 %v958, %v959
        %v961 = vld [vmem:[%s314 + $0x1] sm:$0x1]
        %v962 = vadd.f32 %v960, %v961
        %963 = vst.msk [vmem:[%s314 + $0x1] sm:$0x1] %vm576, %v962
        %p964 = scmp.lt.s32.totalorder %s20, 1
        %s965 = scalar_select %p964, %s20, 1
        %s966 = smul.addr %s965, 4
        %s967 = scalar_lea.vmem %s8, %s966
        // Predicated region
        $region57: #{_lambda_.9} parent=51 // pred_check
          %p968 = pneg %p211
        $region58: #{_lambda_.9} parent=51 // pred_check_branch
          %970 = sbr.rel (%p968) target = $region60
        $region59: #{_lambda_.9} parent=51 // pred_region
          _
        $region60: #{_lambda_.9} parent=51 // pred_fallthru
          _
      $region52: #{_lambda_.9} parent=5 // pred_fallthru
        _
      %p971 = scmp.le.s32.totalorder 2, %s15
      // Predicated region
      $region61: #{_lambda_.9} parent=5 // pred_check
        %p972 = pneg %p971
      $region62: #{_lambda_.9} parent=5 // pred_check_branch
        %974 = sbr.rel (%p972) target = $region64
      $region63: #{_lambda_.9} parent=5 // pred_region
        %s975 = ssub.s32 %s15, 2
        // Predicated region
        $region65: #{_lambda_.9} parent=63 // pred_check
          %p976 = pneg %p217
        $region66: #{_lambda_.9} parent=63 // pred_check_branch
          %978 = sbr.rel (%p976) target = $region68
        $region67: #{_lambda_.9} parent=63 // pred_region
          %p979 = scmp.lt.s32.totalorder %s21, 1
          %s980 = scalar_select %p979, %s21, 1
          %s981 = smul.addr %s980, 4
          %s982 = scalar_lea.vmem %s8, %s981
        $region68: #{_lambda_.9} parent=63 // pred_fallthru
          _
      $region64: #{_lambda_.9} parent=5 // pred_fallthru
        _
    $region6: #{_lambda_.9} parent=1 // loop_footer
      %s19 = sadd.s32 1, %s15
    $region7: #{_lambda_.9} parent=1 // loop_footer_branch
      %14 = sbr.rel target = $region3
    $region8: #{_lambda_.9} parent=1 // loop_exit
      _
    %983 = vsyncpa [#allocation4], 1
    %s984 = scalar_lea.sflag [#allocation4], 1
    %985 = vsyncpa %s984, 1

</llo_original>
